<compile_context>
chip_gen: v6e
topology: v6e:2x2x1
jax: 0.10.0
libtpu: 0.0.40
codegen_flags: <defaults>
</compile_context>

<pallas_src>
import functools

import jax
import jax.numpy as jnp
from jax.experimental import pallas as pl
from jax.experimental.pallas import tpu as pltpu

_K = 7    # Conv1d kernel size
_CS = 4   # Conv1d stride (== number of folded phases)
_PK = 4   # MaxPool1d kernel size
_PS = 2   # MaxPool1d stride


def _conv_len(l, pad):
    return (l + 2 * pad - _K) // _CS + 1


def _pool_len(l, pad):
    return (l + 2 * pad - _PK) // _PS + 1


def _make_fold_emit(xb_next_ref, next_conv_pad, lw):
    """emit(b, wm): scatter this stage's maxpool output into the NEXT stage's
    phase-folded, zero-padded conv-input buffer xb_next_ref[b] (shape (Mb, 4*C)).

    wm[u] = max over the pool window starting at padded position u, so the pooled
    output is pooled[t] = wm[2t].  Folded entry (block m, phase p) holds padded-input
    position 4m+p of the next conv, i.e. pooled[4m+p-next_conv_pad] -> wm[8m+2p-2*pad].
    A one-hot 0/1 selection matmul does the stride-2 + stride-4 decimation exactly;
    out-of-range targets select nothing, which produces the next conv's zero padding
    (and the right-edge zeros) for free -- no scratch zeroing pass needed.
    """
    Mb = xb_next_ref.shape[1]
    sel_cache = []

    def emit(b, wm):
        C = wm.shape[1]
        if not sel_cache:   # build the 4 selection matrices once; reuse for every batch
            m_idx = jax.lax.broadcasted_iota(jnp.int32, (Mb, lw), 0)
            u_idx = jax.lax.broadcasted_iota(jnp.int32, (Mb, lw), 1)
            for p in range(_CS):
                tgt = 8 * m_idx + (2 * p - 2 * next_conv_pad)
                sel_cache.append((u_idx == tgt).astype(jnp.float32))
        for p in range(_CS):
            xb_next_ref[b, :, p * C:(p + 1) * C] = jnp.dot(
                sel_cache[p], wm, preferred_element_type=jnp.float32)

    return emit


def _make_out_emit(out_ref, lw):
    """emit(b, wm): write the final maxpool output (pooled[t] = wm[2t]) to out_ref[b]."""
    Lo = out_ref.shape[1]
    sel_cache = []

    def emit(b, wm):
        if not sel_cache:
            t_idx = jax.lax.broadcasted_iota(jnp.int32, (Lo, lw), 0)
            u_idx = jax.lax.broadcasted_iota(jnp.int32, (Lo, lw), 1)
            sel_cache.append((u_idx == 2 * t_idx).astype(jnp.float32))
        out_ref[b, :, :] = jnp.dot(sel_cache[0], wm,
                                   preferred_element_type=jnp.float32)

    return emit


def _stage(xb_ref, w_ref, g_ref, beta_ref, ybuf_ref, emit, *, l_conv, pool_pad, eps):
    """Conv1d(k=7,s=4,bias=False) -> BatchNorm1d(training batch stats) -> ReLU -> MaxPool1d(4,2).

    xb_ref   : (B, Mb, 4*C_in)  phase-folded, zero-padded conv input (block m holds
               padded positions 4m..4m+3, channels minor).
    w_ref    : (2, 4*C_in, C_out) folded conv weight (8th tap zero-padded).
    ybuf_ref : (B, l_conv, C_out) scratch holding the raw conv output (written once, read once).
    emit(b, wm): consumes wm[u] = max over the pool window at padded position u.
    """
    B = xb_ref.shape[0]
    C_out = w_ref.shape[2]
    w0 = w_ref[0]
    w1 = w_ref[1]

    # ---- Pass 1: conv as 2 dense MXU matmuls per batch + one-pass BN statistics ----
    # Load the folded tile once; run both phase matmuls over all Mb rows and shift/add the
    # (narrower) results instead of re-reading the wide folded input at sublane offset 1.
    ssum = jnp.zeros((1, C_out), jnp.float32)
    ssq = jnp.zeros((1, C_out), jnp.float32)
    for b in range(B):
        xb = xb_ref[b]                                              # (Mb, 4*C_in)
        y0 = jnp.dot(xb, w0, preferred_element_type=jnp.float32)    # (Mb, C_out)
        y1 = jnp.dot(xb, w1, preferred_element_type=jnp.float32)
        y = y0[0:l_conv, :] + y1[1:l_conv + 1, :]
        ybuf_ref[b, :, :] = y
        ssum = ssum + jnp.sum(y, axis=0, keepdims=True)
        ssq = ssq + jnp.sum(y * y, axis=0, keepdims=True)

    n = float(B * l_conv)
    mean = ssum / n
    var = jnp.maximum(ssq / n - mean * mean, 0.0)     # biased variance (training mode)
    scale = g_ref[...] * jax.lax.rsqrt(var + eps)
    shift = beta_ref[...] - mean * scale

    # Number of pool windows over the (virtually) padded activation.
    lw = l_conv + 2 * pool_pad - (_PK - 1)
    if pool_pad == 1:
        # Post-ReLU values are >= 0 and every pool window holds >= 1 real element, so the
        # zero pad is equivalent to PyTorch's -inf pad.  Out-of-range neighbours are
        # supplied via an XLU sublane roll + mask (hoisted iota) -- no placement matmul.
        u_idx = jax.lax.broadcasted_iota(jnp.int32, (lw, C_out), 0)
        left_mask = u_idx >= 1           # ya[u-1] exists only for u >= 1
        right_mask = u_idx <= lw - 2     # ya[u+2] exists only for u <= lw-2
    elif pool_pad != 0:
        raise NotImplementedError("only MaxPool1d padding in {0, 1} is used by the module")

    # ---- Pass 2: affine + ReLU, sliding window-of-4 max; stride-2 selection in emit ----
    for b in range(B):
        ya = jnp.maximum(ybuf_ref[b, :, :] * scale + shift, 0.0)    # (l_conv, C_out)
        if pool_pad == 0:
            wm = jnp.maximum(jnp.maximum(ya[0:lw, :], ya[1:lw + 1, :]),
                             jnp.maximum(ya[2:lw + 2, :], ya[3:lw + 3, :]))
        else:
            # padded window at u covers unpadded positions u-1 .. u+2 (clipped).
            vm1 = jnp.where(left_mask,
                            pltpu.roll(ya, shift=1, axis=0)[0:lw, :], 0.0)
            v2 = jnp.where(right_mask,
                           pltpu.roll(ya, shift=l_conv - 2, axis=0)[0:lw, :], 0.0)
            wm = jnp.maximum(jnp.maximum(ya[0:lw, :], ya[1:lw + 1, :]),
                             jnp.maximum(vm1, v2))
        emit(b, wm)


def _cnn_frontend_kernel(xb1_ref, w1_ref, g1_ref, b1_ref,
                         w2_ref, g2_ref, b2_ref,
                         w3_ref, g3_ref, b3_ref,
                         out_ref,
                         ybuf1_ref, xb2_ref, ybuf2_ref, xb3_ref, ybuf3_ref,
                         *, l_c1, l_c2, l_c3, eps):
    # Stage 1: Conv1d(C_in->64, k7, s4, p3) + BN + ReLU + MaxPool1d(4, 2, pad=1)
    _stage(xb1_ref, w1_ref, g1_ref, b1_ref, ybuf1_ref,
           _make_fold_emit(xb2_ref, next_conv_pad=3, lw=l_c1 + 2 * 1 - (_PK - 1)),
           l_conv=l_c1, pool_pad=1, eps=eps)
    # Stage 2: Conv1d(64->128, k7, s4, p3) + BN + ReLU + MaxPool1d(4, 2)
    _stage(xb2_ref, w2_ref, g2_ref, b2_ref, ybuf2_ref,
           _make_fold_emit(xb3_ref, next_conv_pad=0, lw=l_c2 - (_PK - 1)),
           l_conv=l_c2, pool_pad=0, eps=eps)
    # Stage 3: Conv1d(128->128, k7, s4, p0) + BN + ReLU + MaxPool1d(4, 2) -> output
    _stage(xb3_ref, w3_ref, g3_ref, b3_ref, ybuf3_ref,
           _make_out_emit(out_ref, lw=l_c3 - (_PK - 1)),
           l_conv=l_c3, pool_pad=0, eps=eps)


def _fold_weight(w_oik):
    """(C_out, C_in, 7) -> (2, 4*C_in, C_out): tap t multiplies folded input block m+t."""
    c_out, c_in, k = w_oik.shape
    w_kio = jnp.transpose(w_oik, (2, 1, 0)).astype(jnp.float32)   # (7, C_in, C_out)
    w_kio = jnp.pad(w_kio, ((0, 2 * _CS - k), (0, 0), (0, 0)))    # zero 8th tap
    return w_kio.reshape(2, _CS * c_in, c_out)


@jax.jit
def cnn_frontend_forward(x_ncl, params):
    """Forward pass of CNN_frontend.  x_ncl: (B, C_in, L) like the PyTorch module;
    returns (B, 128, L_out)."""
    eps = 1e-5
    B, C_in, L = x_ncl.shape
    c1 = params['w1_oik'].shape[0]
    c2 = params['w2_oik'].shape[0]
    c3 = params['w3_oik'].shape[0]

    l_c1 = _conv_len(L, 3);    l_p1 = _pool_len(l_c1, 1)
    l_c2 = _conv_len(l_p1, 3); l_p2 = _pool_len(l_c2, 0)
    l_c3 = _conv_len(l_p2, 0); l_p3 = _pool_len(l_c3, 0)
    if l_p3 < 1:
        raise ValueError("input length too short for three conv/pool stages")

    # Phase-fold the stage-1 input in XLA: zero-pad (conv pad 3 left, enough on the right
    # to cover block l_c1) and view as blocks of 4 consecutive samples, channels minor.
    x_blc = jnp.transpose(x_ncl, (0, 2, 1)).astype(jnp.float32)   # (B, L, C_in)
    flat1 = 4 * (l_c1 + 1)
    rpad = flat1 - 3 - L
    if rpad >= 0:
        x_pad = jnp.pad(x_blc, ((0, 0), (3, rpad), (0, 0)))
    else:
        x_pad = jnp.pad(x_blc, ((0, 0), (3, 0), (0, 0)))[:, :flat1, :]
    xb1 = x_pad.reshape(B, l_c1 + 1, 4 * C_in)

    w1 = _fold_weight(params['w1_oik'])
    w2 = _fold_weight(params['w2_oik'])
    w3 = _fold_weight(params['w3_oik'])
    g1 = params['g1'].reshape(1, c1).astype(jnp.float32)
    b1 = params['b1'].reshape(1, c1).astype(jnp.float32)
    g2 = params['g2'].reshape(1, c2).astype(jnp.float32)
    b2 = params['b2'].reshape(1, c2).astype(jnp.float32)
    g3 = params['g3'].reshape(1, c3).astype(jnp.float32)
    b3 = params['b3'].reshape(1, c3).astype(jnp.float32)

    kernel = functools.partial(_cnn_frontend_kernel,
                               l_c1=l_c1, l_c2=l_c2, l_c3=l_c3, eps=eps)
    vmem = pl.BlockSpec(memory_space=pltpu.MemorySpace.VMEM)
    # TODO(synk): for long sequences / large batches, tile the length axis with a
    # (K-1)-sample halo BlockSpec grid (cross-tile BN reduction needed) and add a
    # "parallel" batch grid axis so v7x's second TensorCore is used; at these sizes the
    # whole problem (<2 MiB) fits in VMEM on every generation and is launch-bound.
    out = pl.pallas_call(
        kernel,
        out_shape=jax.ShapeDtypeStruct((B, l_p3, c3), jnp.float32),
        in_specs=[vmem] * 10,
        out_specs=vmem,
        scratch_shapes=[
            pltpu.VMEM((B, l_c1, c1), jnp.float32),          # stage-1 conv output
            pltpu.VMEM((B, l_c2 + 1, 4 * c1), jnp.float32),  # folded stage-2 conv input
            pltpu.VMEM((B, l_c2, c2), jnp.float32),          # stage-2 conv output
            pltpu.VMEM((B, l_c3 + 1, 4 * c2), jnp.float32),  # folded stage-3 conv input
            pltpu.VMEM((B, l_c3, c3), jnp.float32),          # stage-3 conv output
        ],
    )(xb1, w1, g1, b1, w2, g2, b2, w3, g3, b3)
    return jnp.transpose(out, (0, 2, 1))   # (B, C_out, L_out), like nn.Conv1d stacks


def _reference(x_ncl, params, eps=1e-5):
    """Pure-JAX reference matching the PyTorch forward (training-mode BatchNorm)."""
    def conv(x, w_oik, stride, pad):
        return jax.lax.conv_general_dilated(
            x, w_oik, window_strides=(stride,), padding=[(pad, pad)],
            dimension_numbers=('NCH', 'OIH', 'NCH'),
            precision=jax.lax.Precision.HIGHEST)

    def bn_relu(x, g, b):
        mean = jnp.mean(x, axis=(0, 2), keepdims=True)
        var = jnp.mean((x - mean) ** 2, axis=(0, 2), keepdims=True)
        y = (x - mean) / jnp.sqrt(var + eps) * g[None, :, None] + b[None, :, None]
        return jnp.maximum(y, 0.0)

    def maxpool(x, pad):
        return jax.lax.reduce_window(x, -jnp.inf, jax.lax.max,
                                     (1, 1, 4), (1, 1, 2),
                                     [(0, 0), (0, 0), (pad, pad)])

    x = x_ncl.astype(jnp.float32)
    x = maxpool(bn_relu(conv(x, params['w1_oik'], 4, 3), params['g1'], params['b1']), 1)
    x = maxpool(bn_relu(conv(x, params['w2_oik'], 4, 3), params['g2'], params['b2']), 0)
    x = maxpool(bn_relu(conv(x, params['w3_oik'], 4, 0), params['g3'], params['b3']), 0)
    return x


if __name__ == "__main__":
    key = jax.random.PRNGKey(0)
    B, C_in, L = 2, 4, 2048   # L must be large enough that 3 conv/pool stages keep >= 1 frame
    ks = jax.random.split(key, 10)
    x = jax.random.normal(ks[0], (B, C_in, L), jnp.float32)
    # Deterministic parameters (shapes from __init__; training-mode BN uses batch stats,
    # so running_mean/var do not affect the forward output).
    params = {
        'w1_oik': 0.1 * jax.random.normal(ks[1], (64, C_in, 7), jnp.float32),
        'g1': 1.0 + 0.1 * jax.random.normal(ks[2], (64,), jnp.float32),
        'b1': 0.1 * jax.random.normal(ks[3], (64,), jnp.float32),
        'w2_oik': 0.1 * jax.random.normal(ks[4], (128, 64, 7), jnp.float32),
        'g2': 1.0 + 0.1 * jax.random.normal(ks[5], (128,), jnp.float32),
        'b2': 0.1 * jax.random.normal(ks[6], (128,), jnp.float32),
        'w3_oik': 0.1 * jax.random.normal(ks[7], (128, 128, 7), jnp.float32),
        'g3': 1.0 + 0.1 * jax.random.normal(ks[8], (128,), jnp.float32),
        'b3': 0.1 * jax.random.normal(ks[9], (128,), jnp.float32),
    }

    out = jax.block_until_ready(cnn_frontend_forward(x, params))
    ref = jax.block_until_ready(_reference(x, params))
    assert out.shape == ref.shape, (out.shape, ref.shape)
    max_err = float(jnp.max(jnp.abs(out - ref)))
    if not bool(jnp.allclose(out, ref, atol=2e-2, rtol=2e-2)):
        raise AssertionError(f"Pallas output mismatch vs reference, max abs err={max_err}")
    print("KERNEL_OK")
</pallas_src>

<mosaic_0001>
module attributes {stable_mosaic.version = 11 : i64} {
  func.func @_cnn_frontend_kernel(%arg0: memref<2x513x16xf32, #tpu.memory_space<vmem>>, %arg1: memref<2x16x64xf32, #tpu.memory_space<vmem>>, %arg2: memref<1x64xf32, #tpu.memory_space<vmem>>, %arg3: memref<1x64xf32, #tpu.memory_space<vmem>>, %arg4: memref<2x256x128xf32, #tpu.memory_space<vmem>>, %arg5: memref<1x128xf32, #tpu.memory_space<vmem>>, %arg6: memref<1x128xf32, #tpu.memory_space<vmem>>, %arg7: memref<2x512x128xf32, #tpu.memory_space<vmem>>, %arg8: memref<1x128xf32, #tpu.memory_space<vmem>>, %arg9: memref<1x128xf32, #tpu.memory_space<vmem>>, %arg10: memref<2x2x128xf32, #tpu.memory_space<vmem>>, %arg11: memref<2x512x64xf32, #tpu.memory_space<vmem>>, %arg12: memref<2x65x256xf32, #tpu.memory_space<vmem>>, %arg13: memref<2x64x128xf32, #tpu.memory_space<vmem>>, %arg14: memref<2x8x512xf32, #tpu.memory_space<vmem>>, %arg15: memref<2x7x128xf32, #tpu.memory_space<vmem>>) attributes {dimension_semantics = [], scalar_prefetch = 0 : i64, scratch_operands = 5 : i64, tpu.core_type = #tpu.core_type<tc>} {
    %c0 = arith.constant 0 : index
    %c0_0 = arith.constant 0 : index
    %c0_1 = arith.constant 0 : index
    %0 = vector.load %arg1[%c0, %c0_0, %c0_1] : memref<2x16x64xf32, #tpu.memory_space<vmem>>, vector<1x16x64xf32>
    %1 = vector.shape_cast %0 : vector<1x16x64xf32> to vector<16x64xf32>
    %c1 = arith.constant 1 : index
    %c0_2 = arith.constant 0 : index
    %c0_3 = arith.constant 0 : index
    %2 = vector.load %arg1[%c1, %c0_2, %c0_3] : memref<2x16x64xf32, #tpu.memory_space<vmem>>, vector<1x16x64xf32>
    %3 = vector.shape_cast %2 : vector<1x16x64xf32> to vector<16x64xf32>
    %cst = arith.constant 0.000000e+00 : f32
    %4 = vector.broadcast %cst : f32 to vector<1x64xf32>
    %cst_4 = arith.constant 0.000000e+00 : f32
    %5 = vector.broadcast %cst_4 : f32 to vector<1x64xf32>
    %c0_5 = arith.constant 0 : index
    %c0_6 = arith.constant 0 : index
    %c0_7 = arith.constant 0 : index
    %6 = vector.load %arg0[%c0_5, %c0_6, %c0_7] : memref<2x513x16xf32, #tpu.memory_space<vmem>>, vector<1x513x16xf32>
    %7 = vector.shape_cast %6 : vector<1x513x16xf32> to vector<513x16xf32>
    %cst_8 = arith.constant dense<0.000000e+00> : vector<513x64xf32>
    %8 = tpu.matmul %7, %1, %cst_8 {dimension_numbers = #tpu.dot_dimension_numbers<[1], [0], [0], [1], [0, 0, 1, 1], [], []>} : vector<513x16xf32>, vector<16x64xf32>, vector<513x64xf32> -> vector<513x64xf32>
    %cst_9 = arith.constant dense<0.000000e+00> : vector<513x64xf32>
    %9 = tpu.matmul %7, %3, %cst_9 {dimension_numbers = #tpu.dot_dimension_numbers<[1], [0], [0], [1], [0, 0, 1, 1], [], []>} : vector<513x16xf32>, vector<16x64xf32>, vector<513x64xf32> -> vector<513x64xf32>
    %10 = vector.extract_strided_slice %8 {offsets = [0, 0], sizes = [512, 64], strides = [1, 1]} : vector<513x64xf32> to vector<512x64xf32>
    %11 = vector.extract_strided_slice %9 {offsets = [1, 0], sizes = [512, 64], strides = [1, 1]} : vector<513x64xf32> to vector<512x64xf32>
    %12 = arith.addf %10, %11 : vector<512x64xf32>
    %c0_10 = arith.constant 0 : index
    %c0_11 = arith.constant 0 : index
    %c0_12 = arith.constant 0 : index
    %13 = vector.load %arg11[%c0_10, %c0_11, %c0_12] : memref<2x512x64xf32, #tpu.memory_space<vmem>>, vector<1x512x64xf32>
    %14 = vector.shape_cast %13 : vector<1x512x64xf32> to vector<512x64xf32>
    %15 = vector.shape_cast %12 : vector<512x64xf32> to vector<1x512x64xf32>
    tpu.vector_store %arg11[%c0_10, %c0_11, %c0_12], %15 {strides = array<i32>} : memref<2x512x64xf32, #tpu.memory_space<vmem>>, vector<1x512x64xf32>,
    %cst_13 = arith.constant dense<0.000000e+00> : vector<64xf32>
    %16 = vector.multi_reduction <add>, %12, %cst_13 [0] : vector<512x64xf32> to vector<64xf32>
    %17 = vector.shape_cast %16 : vector<64xf32> to vector<1x64xf32>
    %18 = arith.addf %4, %17 : vector<1x64xf32>
    %19 = arith.mulf %12, %12 : vector<512x64xf32>
    %cst_14 = arith.constant dense<0.000000e+00> : vector<64xf32>
    %20 = vector.multi_reduction <add>, %19, %cst_14 [0] : vector<512x64xf32> to vector<64xf32>
    %21 = vector.shape_cast %20 : vector<64xf32> to vector<1x64xf32>
    %22 = arith.addf %5, %21 : vector<1x64xf32>
    %c1_15 = arith.constant 1 : index
    %c0_16 = arith.constant 0 : index
    %c0_17 = arith.constant 0 : index
    %23 = vector.load %arg0[%c1_15, %c0_16, %c0_17] : memref<2x513x16xf32, #tpu.memory_space<vmem>>, vector<1x513x16xf32>
    %24 = vector.shape_cast %23 : vector<1x513x16xf32> to vector<513x16xf32>
    %cst_18 = arith.constant dense<0.000000e+00> : vector<513x64xf32>
    %25 = tpu.matmul %24, %1, %cst_18 {dimension_numbers = #tpu.dot_dimension_numbers<[1], [0], [0], [1], [0, 0, 1, 1], [], []>} : vector<513x16xf32>, vector<16x64xf32>, vector<513x64xf32> -> vector<513x64xf32>
    %cst_19 = arith.constant dense<0.000000e+00> : vector<513x64xf32>
    %26 = tpu.matmul %24, %3, %cst_19 {dimension_numbers = #tpu.dot_dimension_numbers<[1], [0], [0], [1], [0, 0, 1, 1], [], []>} : vector<513x16xf32>, vector<16x64xf32>, vector<513x64xf32> -> vector<513x64xf32>
    %27 = vector.extract_strided_slice %25 {offsets = [0, 0], sizes = [512, 64], strides = [1, 1]} : vector<513x64xf32> to vector<512x64xf32>
    %28 = vector.extract_strided_slice %26 {offsets = [1, 0], sizes = [512, 64], strides = [1, 1]} : vector<513x64xf32> to vector<512x64xf32>
    %29 = arith.addf %27, %28 : vector<512x64xf32>
    %c1_20 = arith.constant 1 : index
    %c0_21 = arith.constant 0 : index
    %c0_22 = arith.constant 0 : index
    %30 = vector.load %arg11[%c1_20, %c0_21, %c0_22] : memref<2x512x64xf32, #tpu.memory_space<vmem>>, vector<1x512x64xf32>
    %31 = vector.shape_cast %30 : vector<1x512x64xf32> to vector<512x64xf32>
    %32 = vector.shape_cast %29 : vector<512x64xf32> to vector<1x512x64xf32>
    tpu.vector_store %arg11[%c1_20, %c0_21, %c0_22], %32 {strides = array<i32>} : memref<2x512x64xf32, #tpu.memory_space<vmem>>, vector<1x512x64xf32>,
    %cst_23 = arith.constant dense<0.000000e+00> : vector<64xf32>
    %33 = vector.multi_reduction <add>, %29, %cst_23 [0] : vector<512x64xf32> to vector<64xf32>
    %34 = vector.shape_cast %33 : vector<64xf32> to vector<1x64xf32>
    %35 = arith.addf %18, %34 : vector<1x64xf32>
    %36 = arith.mulf %29, %29 : vector<512x64xf32>
    %cst_24 = arith.constant dense<0.000000e+00> : vector<64xf32>
    %37 = vector.multi_reduction <add>, %36, %cst_24 [0] : vector<512x64xf32> to vector<64xf32>
    %38 = vector.shape_cast %37 : vector<64xf32> to vector<1x64xf32>
    %39 = arith.addf %22, %38 : vector<1x64xf32>
    %cst_25 = arith.constant 1.024000e+03 : f32
    %40 = vector.broadcast %cst_25 : f32 to vector<1x64xf32>
    %41 = arith.divf %35, %40 : vector<1x64xf32>
    %cst_26 = arith.constant 1.024000e+03 : f32
    %42 = vector.broadcast %cst_26 : f32 to vector<1x64xf32>
    %43 = arith.divf %39, %42 : vector<1x64xf32>
    %44 = arith.mulf %41, %41 : vector<1x64xf32>
    %45 = arith.subf %43, %44 : vector<1x64xf32>
    %cst_27 = arith.constant 0.000000e+00 : f32
    %46 = vector.broadcast %cst_27 : f32 to vector<1x64xf32>
    %47 = arith.maximumf %45, %46 : vector<1x64xf32>
    %c0_28 = arith.constant 0 : index
    %c0_29 = arith.constant 0 : index
    %48 = vector.load %arg2[%c0_28, %c0_29] : memref<1x64xf32, #tpu.memory_space<vmem>>, vector<1x64xf32>
    %cst_30 = arith.constant 9.99999974E-6 : f32
    %49 = vector.broadcast %cst_30 : f32 to vector<1x64xf32>
    %50 = arith.addf %47, %49 : vector<1x64xf32>
    %51 = math.rsqrt %50 : vector<1x64xf32>
    %52 = arith.mulf %48, %51 : vector<1x64xf32>
    %c0_31 = arith.constant 0 : index
    %c0_32 = arith.constant 0 : index
    %53 = vector.load %arg3[%c0_31, %c0_32] : memref<1x64xf32, #tpu.memory_space<vmem>>, vector<1x64xf32>
    %54 = arith.mulf %41, %52 : vector<1x64xf32>
    %55 = arith.subf %53, %54 : vector<1x64xf32>
    %56 = tpu.iota {dimensions = array<i32: 0>} : vector<511x64xi32>
    %c1_i32 = arith.constant 1 : i32
    %57 = vector.broadcast %c1_i32 : i32 to vector<511x64xi32>
    %58 = arith.cmpi sge, %56, %57 : vector<511x64xi32>
    %c509_i32 = arith.constant 509 : i32
    %59 = vector.broadcast %c509_i32 : i32 to vector<511x64xi32>
    %60 = arith.cmpi sle, %56, %59 : vector<511x64xi32>
    %c0_33 = arith.constant 0 : index
    %c0_34 = arith.constant 0 : index
    %c0_35 = arith.constant 0 : index
    %61 = vector.load %arg11[%c0_33, %c0_34, %c0_35] : memref<2x512x64xf32, #tpu.memory_space<vmem>>, vector<1x512x64xf32>
    %62 = vector.shape_cast %61 : vector<1x512x64xf32> to vector<512x64xf32>
    %63 = vector.broadcast %52 : vector<1x64xf32> to vector<512x64xf32>
    %64 = arith.mulf %62, %63 : vector<512x64xf32>
    %65 = vector.broadcast %55 : vector<1x64xf32> to vector<512x64xf32>
    %66 = arith.addf %64, %65 : vector<512x64xf32>
    %cst_36 = arith.constant 0.000000e+00 : f32
    %67 = vector.broadcast %cst_36 : f32 to vector<512x64xf32>
    %68 = arith.maximumf %66, %67 : vector<512x64xf32>
    %c1_i32_37 = arith.constant 1 : i32
    %69 = tpu.dynamic_rotate %68 by %c1_i32_37 dim 0 : vector<512x64xf32>, i32 -> vector<512x64xf32>
    %70 = vector.extract_strided_slice %69 {offsets = [0, 0], sizes = [511, 64], strides = [1, 1]} : vector<512x64xf32> to vector<511x64xf32>
    %cst_38 = arith.constant 0.000000e+00 : f32
    %71 = vector.broadcast %cst_38 : f32 to vector<511x64xf32>
    %72 = arith.select %58, %70, %71 : vector<511x64xi1>, vector<511x64xf32>
    %c510_i32 = arith.constant 510 : i32
    %73 = tpu.dynamic_rotate %68 by %c510_i32 dim 0 : vector<512x64xf32>, i32 -> vector<512x64xf32>
    %74 = vector.extract_strided_slice %73 {offsets = [0, 0], sizes = [511, 64], strides = [1, 1]} : vector<512x64xf32> to vector<511x64xf32>
    %cst_39 = arith.constant 0.000000e+00 : f32
    %75 = vector.broadcast %cst_39 : f32 to vector<511x64xf32>
    %76 = arith.select %60, %74, %75 : vector<511x64xi1>, vector<511x64xf32>
    %77 = vector.extract_strided_slice %68 {offsets = [0, 0], sizes = [511, 64], strides = [1, 1]} : vector<512x64xf32> to vector<511x64xf32>
    %78 = vector.extract_strided_slice %68 {offsets = [1, 0], sizes = [511, 64], strides = [1, 1]} : vector<512x64xf32> to vector<511x64xf32>
    %79 = arith.maximumf %77, %78 : vector<511x64xf32>
    %80 = arith.maximumf %72, %76 : vector<511x64xf32>
    %81 = arith.maximumf %79, %80 : vector<511x64xf32>
    %82 = tpu.iota {dimensions = array<i32: 0>} : vector<65x511xi32>
    %83 = tpu.iota {dimensions = array<i32: 1>} : vector<65x511xi32>
    %c8_i32 = arith.constant 8 : i32
    %84 = vector.broadcast %c8_i32 : i32 to vector<65x511xi32>
    %85 = arith.muli %84, %82 : vector<65x511xi32>
    %c-6_i32 = arith.constant -6 : i32
    %86 = vector.broadcast %c-6_i32 : i32 to vector<65x511xi32>
    %87 = arith.addi %85, %86 : vector<65x511xi32>
    %88 = arith.cmpi eq, %83, %87 : vector<65x511xi32>
    %89 = arith.extui %88 : vector<65x511xi1> to vector<65x511xi32>
    %90 = arith.sitofp %89 : vector<65x511xi32> to vector<65x511xf32>
    %c8_i32_40 = arith.constant 8 : i32
    %91 = vector.broadcast %c8_i32_40 : i32 to vector<65x511xi32>
    %92 = arith.muli %91, %82 : vector<65x511xi32>
    %c-4_i32 = arith.constant -4 : i32
    %93 = vector.broadcast %c-4_i32 : i32 to vector<65x511xi32>
    %94 = arith.addi %92, %93 : vector<65x511xi32>
    %95 = arith.cmpi eq, %83, %94 : vector<65x511xi32>
    %96 = arith.extui %95 : vector<65x511xi1> to vector<65x511xi32>
    %97 = arith.sitofp %96 : vector<65x511xi32> to vector<65x511xf32>
    %c8_i32_41 = arith.constant 8 : i32
    %98 = vector.broadcast %c8_i32_41 : i32 to vector<65x511xi32>
    %99 = arith.muli %98, %82 : vector<65x511xi32>
    %c-2_i32 = arith.constant -2 : i32
    %100 = vector.broadcast %c-2_i32 : i32 to vector<65x511xi32>
    %101 = arith.addi %99, %100 : vector<65x511xi32>
    %102 = arith.cmpi eq, %83, %101 : vector<65x511xi32>
    %103 = arith.extui %102 : vector<65x511xi1> to vector<65x511xi32>
    %104 = arith.sitofp %103 : vector<65x511xi32> to vector<65x511xf32>
    %c8_i32_42 = arith.constant 8 : i32
    %105 = vector.broadcast %c8_i32_42 : i32 to vector<65x511xi32>
    %106 = arith.muli %105, %82 : vector<65x511xi32>
    %c0_i32 = arith.constant 0 : i32
    %107 = vector.broadcast %c0_i32 : i32 to vector<65x511xi32>
    %108 = arith.addi %106, %107 : vector<65x511xi32>
    %109 = arith.cmpi eq, %83, %108 : vector<65x511xi32>
    %110 = arith.extui %109 : vector<65x511xi1> to vector<65x511xi32>
    %111 = arith.sitofp %110 : vector<65x511xi32> to vector<65x511xf32>
    %cst_43 = arith.constant dense<0.000000e+00> : vector<65x64xf32>
    %112 = tpu.matmul %90, %81, %cst_43 {dimension_numbers = #tpu.dot_dimension_numbers<[1], [0], [0], [1], [0, 0, 1, 1], [], []>} : vector<65x511xf32>, vector<511x64xf32>, vector<65x64xf32> -> vector<65x64xf32>
    %c0_44 = arith.constant 0 : index
    %c0_45 = arith.constant 0 : index
    %c0_46 = arith.constant 0 : index
    %113 = vector.load %arg12[%c0_44, %c0_45, %c0_46] : memref<2x65x256xf32, #tpu.memory_space<vmem>>, vector<1x65x64xf32>
    %114 = vector.shape_cast %113 : vector<1x65x64xf32> to vector<65x64xf32>
    %115 = vector.shape_cast %112 : vector<65x64xf32> to vector<1x65x64xf32>
    tpu.vector_store %arg12[%c0_44, %c0_45, %c0_46], %115 {strides = array<i32>} : memref<2x65x256xf32, #tpu.memory_space<vmem>>, vector<1x65x64xf32>,
    %cst_47 = arith.constant dense<0.000000e+00> : vector<65x64xf32>
    %116 = tpu.matmul %97, %81, %cst_47 {dimension_numbers = #tpu.dot_dimension_numbers<[1], [0], [0], [1], [0, 0, 1, 1], [], []>} : vector<65x511xf32>, vector<511x64xf32>, vector<65x64xf32> -> vector<65x64xf32>
    %c0_48 = arith.constant 0 : index
    %c0_49 = arith.constant 0 : index
    %c64 = arith.constant 64 : index
    %117 = vector.load %arg12[%c0_48, %c0_49, %c64] : memref<2x65x256xf32, #tpu.memory_space<vmem>>, vector<1x65x64xf32>
    %118 = vector.shape_cast %117 : vector<1x65x64xf32> to vector<65x64xf32>
    %119 = vector.shape_cast %116 : vector<65x64xf32> to vector<1x65x64xf32>
    tpu.vector_store %arg12[%c0_48, %c0_49, %c64], %119 {strides = array<i32>} : memref<2x65x256xf32, #tpu.memory_space<vmem>>, vector<1x65x64xf32>,
    %cst_50 = arith.constant dense<0.000000e+00> : vector<65x64xf32>
    %120 = tpu.matmul %104, %81, %cst_50 {dimension_numbers = #tpu.dot_dimension_numbers<[1], [0], [0], [1], [0, 0, 1, 1], [], []>} : vector<65x511xf32>, vector<511x64xf32>, vector<65x64xf32> -> vector<65x64xf32>
    %c0_51 = arith.constant 0 : index
    %c0_52 = arith.constant 0 : index
    %c128 = arith.constant 128 : index
    %121 = vector.load %arg12[%c0_51, %c0_52, %c128] : memref<2x65x256xf32, #tpu.memory_space<vmem>>, vector<1x65x64xf32>
    %122 = vector.shape_cast %121 : vector<1x65x64xf32> to vector<65x64xf32>
    %123 = vector.shape_cast %120 : vector<65x64xf32> to vector<1x65x64xf32>
    tpu.vector_store %arg12[%c0_51, %c0_52, %c128], %123 {strides = array<i32>} : memref<2x65x256xf32, #tpu.memory_space<vmem>>, vector<1x65x64xf32>,
    %cst_53 = arith.constant dense<0.000000e+00> : vector<65x64xf32>
    %124 = tpu.matmul %111, %81, %cst_53 {dimension_numbers = #tpu.dot_dimension_numbers<[1], [0], [0], [1], [0, 0, 1, 1], [], []>} : vector<65x511xf32>, vector<511x64xf32>, vector<65x64xf32> -> vector<65x64xf32>
    %c0_54 = arith.constant 0 : index
    %c0_55 = arith.constant 0 : index
    %c192 = arith.constant 192 : index
    %125 = vector.load %arg12[%c0_54, %c0_55, %c192] : memref<2x65x256xf32, #tpu.memory_space<vmem>>, vector<1x65x64xf32>
    %126 = vector.shape_cast %125 : vector<1x65x64xf32> to vector<65x64xf32>
    %127 = vector.shape_cast %124 : vector<65x64xf32> to vector<1x65x64xf32>
    tpu.vector_store %arg12[%c0_54, %c0_55, %c192], %127 {strides = array<i32>} : memref<2x65x256xf32, #tpu.memory_space<vmem>>, vector<1x65x64xf32>,
    %c1_56 = arith.constant 1 : index
    %c0_57 = arith.constant 0 : index
    %c0_58 = arith.constant 0 : index
    %128 = vector.load %arg11[%c1_56, %c0_57, %c0_58] : memref<2x512x64xf32, #tpu.memory_space<vmem>>, vector<1x512x64xf32>
    %129 = vector.shape_cast %128 : vector<1x512x64xf32> to vector<512x64xf32>
    %130 = vector.broadcast %52 : vector<1x64xf32> to vector<512x64xf32>
    %131 = arith.mulf %129, %130 : vector<512x64xf32>
    %132 = vector.broadcast %55 : vector<1x64xf32> to vector<512x64xf32>
    %133 = arith.addf %131, %132 : vector<512x64xf32>
    %cst_59 = arith.constant 0.000000e+00 : f32
    %134 = vector.broadcast %cst_59 : f32 to vector<512x64xf32>
    %135 = arith.maximumf %133, %134 : vector<512x64xf32>
    %c1_i32_60 = arith.constant 1 : i32
    %136 = tpu.dynamic_rotate %135 by %c1_i32_60 dim 0 : vector<512x64xf32>, i32 -> vector<512x64xf32>
    %137 = vector.extract_strided_slice %136 {offsets = [0, 0], sizes = [511, 64], strides = [1, 1]} : vector<512x64xf32> to vector<511x64xf32>
    %cst_61 = arith.constant 0.000000e+00 : f32
    %138 = vector.broadcast %cst_61 : f32 to vector<511x64xf32>
    %139 = arith.select %58, %137, %138 : vector<511x64xi1>, vector<511x64xf32>
    %c510_i32_62 = arith.constant 510 : i32
    %140 = tpu.dynamic_rotate %135 by %c510_i32_62 dim 0 : vector<512x64xf32>, i32 -> vector<512x64xf32>
    %141 = vector.extract_strided_slice %140 {offsets = [0, 0], sizes = [511, 64], strides = [1, 1]} : vector<512x64xf32> to vector<511x64xf32>
    %cst_63 = arith.constant 0.000000e+00 : f32
    %142 = vector.broadcast %cst_63 : f32 to vector<511x64xf32>
    %143 = arith.select %60, %141, %142 : vector<511x64xi1>, vector<511x64xf32>
    %144 = vector.extract_strided_slice %135 {offsets = [0, 0], sizes = [511, 64], strides = [1, 1]} : vector<512x64xf32> to vector<511x64xf32>
    %145 = vector.extract_strided_slice %135 {offsets = [1, 0], sizes = [511, 64], strides = [1, 1]} : vector<512x64xf32> to vector<511x64xf32>
    %146 = arith.maximumf %144, %145 : vector<511x64xf32>
    %147 = arith.maximumf %139, %143 : vector<511x64xf32>
    %148 = arith.maximumf %146, %147 : vector<511x64xf32>
    %cst_64 = arith.constant dense<0.000000e+00> : vector<65x64xf32>
    %149 = tpu.matmul %90, %148, %cst_64 {dimension_numbers = #tpu.dot_dimension_numbers<[1], [0], [0], [1], [0, 0, 1, 1], [], []>} : vector<65x511xf32>, vector<511x64xf32>, vector<65x64xf32> -> vector<65x64xf32>
    %c1_65 = arith.constant 1 : index
    %c0_66 = arith.constant 0 : index
    %c0_67 = arith.constant 0 : index
    %150 = vector.load %arg12[%c1_65, %c0_66, %c0_67] : memref<2x65x256xf32, #tpu.memory_space<vmem>>, vector<1x65x64xf32>
    %151 = vector.shape_cast %150 : vector<1x65x64xf32> to vector<65x64xf32>
    %152 = vector.shape_cast %149 : vector<65x64xf32> to vector<1x65x64xf32>
    tpu.vector_store %arg12[%c1_65, %c0_66, %c0_67], %152 {strides = array<i32>} : memref<2x65x256xf32, #tpu.memory_space<vmem>>, vector<1x65x64xf32>,
    %cst_68 = arith.constant dense<0.000000e+00> : vector<65x64xf32>
    %153 = tpu.matmul %97, %148, %cst_68 {dimension_numbers = #tpu.dot_dimension_numbers<[1], [0], [0], [1], [0, 0, 1, 1], [], []>} : vector<65x511xf32>, vector<511x64xf32>, vector<65x64xf32> -> vector<65x64xf32>
    %c1_69 = arith.constant 1 : index
    %c0_70 = arith.constant 0 : index
    %c64_71 = arith.constant 64 : index
    %154 = vector.load %arg12[%c1_69, %c0_70, %c64_71] : memref<2x65x256xf32, #tpu.memory_space<vmem>>, vector<1x65x64xf32>
    %155 = vector.shape_cast %154 : vector<1x65x64xf32> to vector<65x64xf32>
    %156 = vector.shape_cast %153 : vector<65x64xf32> to vector<1x65x64xf32>
    tpu.vector_store %arg12[%c1_69, %c0_70, %c64_71], %156 {strides = array<i32>} : memref<2x65x256xf32, #tpu.memory_space<vmem>>, vector<1x65x64xf32>,
    %cst_72 = arith.constant dense<0.000000e+00> : vector<65x64xf32>
    %157 = tpu.matmul %104, %148, %cst_72 {dimension_numbers = #tpu.dot_dimension_numbers<[1], [0], [0], [1], [0, 0, 1, 1], [], []>} : vector<65x511xf32>, vector<511x64xf32>, vector<65x64xf32> -> vector<65x64xf32>
    %c1_73 = arith.constant 1 : index
    %c0_74 = arith.constant 0 : index
    %c128_75 = arith.constant 128 : index
    %158 = vector.load %arg12[%c1_73, %c0_74, %c128_75] : memref<2x65x256xf32, #tpu.memory_space<vmem>>, vector<1x65x64xf32>
    %159 = vector.shape_cast %158 : vector<1x65x64xf32> to vector<65x64xf32>
    %160 = vector.shape_cast %157 : vector<65x64xf32> to vector<1x65x64xf32>
    tpu.vector_store %arg12[%c1_73, %c0_74, %c128_75], %160 {strides = array<i32>} : memref<2x65x256xf32, #tpu.memory_space<vmem>>, vector<1x65x64xf32>,
    %cst_76 = arith.constant dense<0.000000e+00> : vector<65x64xf32>
    %161 = tpu.matmul %111, %148, %cst_76 {dimension_numbers = #tpu.dot_dimension_numbers<[1], [0], [0], [1], [0, 0, 1, 1], [], []>} : vector<65x511xf32>, vector<511x64xf32>, vector<65x64xf32> -> vector<65x64xf32>
    %c1_77 = arith.constant 1 : index
    %c0_78 = arith.constant 0 : index
    %c192_79 = arith.constant 192 : index
    %162 = vector.load %arg12[%c1_77, %c0_78, %c192_79] : memref<2x65x256xf32, #tpu.memory_space<vmem>>, vector<1x65x64xf32>
    %163 = vector.shape_cast %162 : vector<1x65x64xf32> to vector<65x64xf32>
    %164 = vector.shape_cast %161 : vector<65x64xf32> to vector<1x65x64xf32>
    tpu.vector_store %arg12[%c1_77, %c0_78, %c192_79], %164 {strides = array<i32>} : memref<2x65x256xf32, #tpu.memory_space<vmem>>, vector<1x65x64xf32>,
    %c0_80 = arith.constant 0 : index
    %c0_81 = arith.constant 0 : index
    %c0_82 = arith.constant 0 : index
    %165 = vector.load %arg4[%c0_80, %c0_81, %c0_82] : memref<2x256x128xf32, #tpu.memory_space<vmem>>, vector<1x256x128xf32>
    %166 = vector.shape_cast %165 : vector<1x256x128xf32> to vector<256x128xf32>
    %c1_83 = arith.constant 1 : index
    %c0_84 = arith.constant 0 : index
    %c0_85 = arith.constant 0 : index
    %167 = vector.load %arg4[%c1_83, %c0_84, %c0_85] : memref<2x256x128xf32, #tpu.memory_space<vmem>>, vector<1x256x128xf32>
    %168 = vector.shape_cast %167 : vector<1x256x128xf32> to vector<256x128xf32>
    %cst_86 = arith.constant 0.000000e+00 : f32
    %169 = vector.broadcast %cst_86 : f32 to vector<1x128xf32>
    %cst_87 = arith.constant 0.000000e+00 : f32
    %170 = vector.broadcast %cst_87 : f32 to vector<1x128xf32>
    %c0_88 = arith.constant 0 : index
    %c0_89 = arith.constant 0 : index
    %c0_90 = arith.constant 0 : index
    %171 = vector.load %arg12[%c0_88, %c0_89, %c0_90] : memref<2x65x256xf32, #tpu.memory_space<vmem>>, vector<1x65x256xf32>
    %172 = vector.shape_cast %171 : vector<1x65x256xf32> to vector<65x256xf32>
    %cst_91 = arith.constant dense<0.000000e+00> : vector<65x128xf32>
    %173 = tpu.matmul %172, %166, %cst_91 {dimension_numbers = #tpu.dot_dimension_numbers<[1], [0], [0], [1], [0, 0, 1, 1], [], []>} : vector<65x256xf32>, vector<256x128xf32>, vector<65x128xf32> -> vector<65x128xf32>
    %cst_92 = arith.constant dense<0.000000e+00> : vector<65x128xf32>
    %174 = tpu.matmul %172, %168, %cst_92 {dimension_numbers = #tpu.dot_dimension_numbers<[1], [0], [0], [1], [0, 0, 1, 1], [], []>} : vector<65x256xf32>, vector<256x128xf32>, vector<65x128xf32> -> vector<65x128xf32>
    %175 = vector.extract_strided_slice %173 {offsets = [0, 0], sizes = [64, 128], strides = [1, 1]} : vector<65x128xf32> to vector<64x128xf32>
    %176 = vector.extract_strided_slice %174 {offsets = [1, 0], sizes = [64, 128], strides = [1, 1]} : vector<65x128xf32> to vector<64x128xf32>
    %177 = arith.addf %175, %176 : vector<64x128xf32>
    %c0_93 = arith.constant 0 : index
    %c0_94 = arith.constant 0 : index
    %c0_95 = arith.constant 0 : index
    %178 = vector.load %arg13[%c0_93, %c0_94, %c0_95] : memref<2x64x128xf32, #tpu.memory_space<vmem>>, vector<1x64x128xf32>
    %179 = vector.shape_cast %178 : vector<1x64x128xf32> to vector<64x128xf32>
    %180 = vector.shape_cast %177 : vector<64x128xf32> to vector<1x64x128xf32>
    tpu.vector_store %arg13[%c0_93, %c0_94, %c0_95], %180 {strides = array<i32>} : memref<2x64x128xf32, #tpu.memory_space<vmem>>, vector<1x64x128xf32>,
    %cst_96 = arith.constant dense<0.000000e+00> : vector<128xf32>
    %181 = vector.multi_reduction <add>, %177, %cst_96 [0] : vector<64x128xf32> to vector<128xf32>
    %182 = vector.shape_cast %181 : vector<128xf32> to vector<1x128xf32>
    %183 = arith.addf %169, %182 : vector<1x128xf32>
    %184 = arith.mulf %177, %177 : vector<64x128xf32>
    %cst_97 = arith.constant dense<0.000000e+00> : vector<128xf32>
    %185 = vector.multi_reduction <add>, %184, %cst_97 [0] : vector<64x128xf32> to vector<128xf32>
    %186 = vector.shape_cast %185 : vector<128xf32> to vector<1x128xf32>
    %187 = arith.addf %170, %186 : vector<1x128xf32>
    %c1_98 = arith.constant 1 : index
    %c0_99 = arith.constant 0 : index
    %c0_100 = arith.constant 0 : index
    %188 = vector.load %arg12[%c1_98, %c0_99, %c0_100] : memref<2x65x256xf32, #tpu.memory_space<vmem>>, vector<1x65x256xf32>
    %189 = vector.shape_cast %188 : vector<1x65x256xf32> to vector<65x256xf32>
    %cst_101 = arith.constant dense<0.000000e+00> : vector<65x128xf32>
    %190 = tpu.matmul %189, %166, %cst_101 {dimension_numbers = #tpu.dot_dimension_numbers<[1], [0], [0], [1], [0, 0, 1, 1], [], []>} : vector<65x256xf32>, vector<256x128xf32>, vector<65x128xf32> -> vector<65x128xf32>
    %cst_102 = arith.constant dense<0.000000e+00> : vector<65x128xf32>
    %191 = tpu.matmul %189, %168, %cst_102 {dimension_numbers = #tpu.dot_dimension_numbers<[1], [0], [0], [1], [0, 0, 1, 1], [], []>} : vector<65x256xf32>, vector<256x128xf32>, vector<65x128xf32> -> vector<65x128xf32>
    %192 = vector.extract_strided_slice %190 {offsets = [0, 0], sizes = [64, 128], strides = [1, 1]} : vector<65x128xf32> to vector<64x128xf32>
    %193 = vector.extract_strided_slice %191 {offsets = [1, 0], sizes = [64, 128], strides = [1, 1]} : vector<65x128xf32> to vector<64x128xf32>
    %194 = arith.addf %192, %193 : vector<64x128xf32>
    %c1_103 = arith.constant 1 : index
    %c0_104 = arith.constant 0 : index
    %c0_105 = arith.constant 0 : index
    %195 = vector.load %arg13[%c1_103, %c0_104, %c0_105] : memref<2x64x128xf32, #tpu.memory_space<vmem>>, vector<1x64x128xf32>
    %196 = vector.shape_cast %195 : vector<1x64x128xf32> to vector<64x128xf32>
    %197 = vector.shape_cast %194 : vector<64x128xf32> to vector<1x64x128xf32>
    tpu.vector_store %arg13[%c1_103, %c0_104, %c0_105], %197 {strides = array<i32>} : memref<2x64x128xf32, #tpu.memory_space<vmem>>, vector<1x64x128xf32>,
    %cst_106 = arith.constant dense<0.000000e+00> : vector<128xf32>
    %198 = vector.multi_reduction <add>, %194, %cst_106 [0] : vector<64x128xf32> to vector<128xf32>
    %199 = vector.shape_cast %198 : vector<128xf32> to vector<1x128xf32>
    %200 = arith.addf %183, %199 : vector<1x128xf32>
    %201 = arith.mulf %194, %194 : vector<64x128xf32>
    %cst_107 = arith.constant dense<0.000000e+00> : vector<128xf32>
    %202 = vector.multi_reduction <add>, %201, %cst_107 [0] : vector<64x128xf32> to vector<128xf32>
    %203 = vector.shape_cast %202 : vector<128xf32> to vector<1x128xf32>
    %204 = arith.addf %187, %203 : vector<1x128xf32>
    %cst_108 = arith.constant 1.280000e+02 : f32
    %205 = vector.broadcast %cst_108 : f32 to vector<1x128xf32>
    %206 = arith.divf %200, %205 : vector<1x128xf32>
    %cst_109 = arith.constant 1.280000e+02 : f32
    %207 = vector.broadcast %cst_109 : f32 to vector<1x128xf32>
    %208 = arith.divf %204, %207 : vector<1x128xf32>
    %209 = arith.mulf %206, %206 : vector<1x128xf32>
    %210 = arith.subf %208, %209 : vector<1x128xf32>
    %cst_110 = arith.constant 0.000000e+00 : f32
    %211 = vector.broadcast %cst_110 : f32 to vector<1x128xf32>
    %212 = arith.maximumf %210, %211 : vector<1x128xf32>
    %c0_111 = arith.constant 0 : index
    %c0_112 = arith.constant 0 : index
    %213 = vector.load %arg5[%c0_111, %c0_112] : memref<1x128xf32, #tpu.memory_space<vmem>>, vector<1x128xf32>
    %cst_113 = arith.constant 9.99999974E-6 : f32
    %214 = vector.broadcast %cst_113 : f32 to vector<1x128xf32>
    %215 = arith.addf %212, %214 : vector<1x128xf32>
    %216 = math.rsqrt %215 : vector<1x128xf32>
    %217 = arith.mulf %213, %216 : vector<1x128xf32>
    %c0_114 = arith.constant 0 : index
    %c0_115 = arith.constant 0 : index
    %218 = vector.load %arg6[%c0_114, %c0_115] : memref<1x128xf32, #tpu.memory_space<vmem>>, vector<1x128xf32>
    %219 = arith.mulf %206, %217 : vector<1x128xf32>
    %220 = arith.subf %218, %219 : vector<1x128xf32>
    %c0_116 = arith.constant 0 : index
    %c0_117 = arith.constant 0 : index
    %c0_118 = arith.constant 0 : index
    %221 = vector.load %arg13[%c0_116, %c0_117, %c0_118] : memref<2x64x128xf32, #tpu.memory_space<vmem>>, vector<1x64x128xf32>
    %222 = vector.shape_cast %221 : vector<1x64x128xf32> to vector<64x128xf32>
    %223 = vector.broadcast %217 : vector<1x128xf32> to vector<64x128xf32>
    %224 = arith.mulf %222, %223 : vector<64x128xf32>
    %225 = vector.broadcast %220 : vector<1x128xf32> to vector<64x128xf32>
    %226 = arith.addf %224, %225 : vector<64x128xf32>
    %cst_119 = arith.constant 0.000000e+00 : f32
    %227 = vector.broadcast %cst_119 : f32 to vector<64x128xf32>
    %228 = arith.maximumf %226, %227 : vector<64x128xf32>
    %229 = vector.extract_strided_slice %228 {offsets = [0, 0], sizes = [61, 128], strides = [1, 1]} : vector<64x128xf32> to vector<61x128xf32>
    %230 = vector.extract_strided_slice %228 {offsets = [1, 0], sizes = [61, 128], strides = [1, 1]} : vector<64x128xf32> to vector<61x128xf32>
    %231 = arith.maximumf %229, %230 : vector<61x128xf32>
    %232 = vector.extract_strided_slice %228 {offsets = [2, 0], sizes = [61, 128], strides = [1, 1]} : vector<64x128xf32> to vector<61x128xf32>
    %233 = vector.extract_strided_slice %228 {offsets = [3, 0], sizes = [61, 128], strides = [1, 1]} : vector<64x128xf32> to vector<61x128xf32>
    %234 = arith.maximumf %232, %233 : vector<61x128xf32>
    %235 = arith.maximumf %231, %234 : vector<61x128xf32>
    %236 = tpu.iota {dimensions = array<i32: 0>} : vector<8x61xi32>
    %237 = tpu.iota {dimensions = array<i32: 1>} : vector<8x61xi32>
    %c8_i32_120 = arith.constant 8 : i32
    %238 = vector.broadcast %c8_i32_120 : i32 to vector<8x61xi32>
    %239 = arith.muli %238, %236 : vector<8x61xi32>
    %c0_i32_121 = arith.constant 0 : i32
    %240 = vector.broadcast %c0_i32_121 : i32 to vector<8x61xi32>
    %241 = arith.addi %239, %240 : vector<8x61xi32>
    %242 = arith.cmpi eq, %237, %241 : vector<8x61xi32>
    %243 = arith.extui %242 : vector<8x61xi1> to vector<8x61xi32>
    %244 = arith.sitofp %243 : vector<8x61xi32> to vector<8x61xf32>
    %c8_i32_122 = arith.constant 8 : i32
    %245 = vector.broadcast %c8_i32_122 : i32 to vector<8x61xi32>
    %246 = arith.muli %245, %236 : vector<8x61xi32>
    %c2_i32 = arith.constant 2 : i32
    %247 = vector.broadcast %c2_i32 : i32 to vector<8x61xi32>
    %248 = arith.addi %246, %247 : vector<8x61xi32>
    %249 = arith.cmpi eq, %237, %248 : vector<8x61xi32>
    %250 = arith.extui %249 : vector<8x61xi1> to vector<8x61xi32>
    %251 = arith.sitofp %250 : vector<8x61xi32> to vector<8x61xf32>
    %c8_i32_123 = arith.constant 8 : i32
    %252 = vector.broadcast %c8_i32_123 : i32 to vector<8x61xi32>
    %253 = arith.muli %252, %236 : vector<8x61xi32>
    %c4_i32 = arith.constant 4 : i32
    %254 = vector.broadcast %c4_i32 : i32 to vector<8x61xi32>
    %255 = arith.addi %253, %254 : vector<8x61xi32>
    %256 = arith.cmpi eq, %237, %255 : vector<8x61xi32>
    %257 = arith.extui %256 : vector<8x61xi1> to vector<8x61xi32>
    %258 = arith.sitofp %257 : vector<8x61xi32> to vector<8x61xf32>
    %c8_i32_124 = arith.constant 8 : i32
    %259 = vector.broadcast %c8_i32_124 : i32 to vector<8x61xi32>
    %260 = arith.muli %259, %236 : vector<8x61xi32>
    %c6_i32 = arith.constant 6 : i32
    %261 = vector.broadcast %c6_i32 : i32 to vector<8x61xi32>
    %262 = arith.addi %260, %261 : vector<8x61xi32>
    %263 = arith.cmpi eq, %237, %262 : vector<8x61xi32>
    %264 = arith.extui %263 : vector<8x61xi1> to vector<8x61xi32>
    %265 = arith.sitofp %264 : vector<8x61xi32> to vector<8x61xf32>
    %cst_125 = arith.constant dense<0.000000e+00> : vector<8x128xf32>
    %266 = tpu.matmul %244, %235, %cst_125 {dimension_numbers = #tpu.dot_dimension_numbers<[1], [0], [0], [1], [0, 0, 1, 1], [], []>} : vector<8x61xf32>, vector<61x128xf32>, vector<8x128xf32> -> vector<8x128xf32>
    %c0_126 = arith.constant 0 : index
    %c0_127 = arith.constant 0 : index
    %c0_128 = arith.constant 0 : index
    %267 = vector.load %arg14[%c0_126, %c0_127, %c0_128] : memref<2x8x512xf32, #tpu.memory_space<vmem>>, vector<1x8x128xf32>
    %268 = vector.shape_cast %267 : vector<1x8x128xf32> to vector<8x128xf32>
    %269 = vector.shape_cast %266 : vector<8x128xf32> to vector<1x8x128xf32>
    tpu.vector_store %arg14[%c0_126, %c0_127, %c0_128], %269 {strides = array<i32>} : memref<2x8x512xf32, #tpu.memory_space<vmem>>, vector<1x8x128xf32>,
    %cst_129 = arith.constant dense<0.000000e+00> : vector<8x128xf32>
    %270 = tpu.matmul %251, %235, %cst_129 {dimension_numbers = #tpu.dot_dimension_numbers<[1], [0], [0], [1], [0, 0, 1, 1], [], []>} : vector<8x61xf32>, vector<61x128xf32>, vector<8x128xf32> -> vector<8x128xf32>
    %c0_130 = arith.constant 0 : index
    %c0_131 = arith.constant 0 : index
    %c128_132 = arith.constant 128 : index
    %271 = vector.load %arg14[%c0_130, %c0_131, %c128_132] : memref<2x8x512xf32, #tpu.memory_space<vmem>>, vector<1x8x128xf32>
    %272 = vector.shape_cast %271 : vector<1x8x128xf32> to vector<8x128xf32>
    %273 = vector.shape_cast %270 : vector<8x128xf32> to vector<1x8x128xf32>
    tpu.vector_store %arg14[%c0_130, %c0_131, %c128_132], %273 {strides = array<i32>} : memref<2x8x512xf32, #tpu.memory_space<vmem>>, vector<1x8x128xf32>,
    %cst_133 = arith.constant dense<0.000000e+00> : vector<8x128xf32>
    %274 = tpu.matmul %258, %235, %cst_133 {dimension_numbers = #tpu.dot_dimension_numbers<[1], [0], [0], [1], [0, 0, 1, 1], [], []>} : vector<8x61xf32>, vector<61x128xf32>, vector<8x128xf32> -> vector<8x128xf32>
    %c0_134 = arith.constant 0 : index
    %c0_135 = arith.constant 0 : index
    %c256 = arith.constant 256 : index
    %275 = vector.load %arg14[%c0_134, %c0_135, %c256] : memref<2x8x512xf32, #tpu.memory_space<vmem>>, vector<1x8x128xf32>
    %276 = vector.shape_cast %275 : vector<1x8x128xf32> to vector<8x128xf32>
    %277 = vector.shape_cast %274 : vector<8x128xf32> to vector<1x8x128xf32>
    tpu.vector_store %arg14[%c0_134, %c0_135, %c256], %277 {strides = array<i32>} : memref<2x8x512xf32, #tpu.memory_space<vmem>>, vector<1x8x128xf32>,
    %cst_136 = arith.constant dense<0.000000e+00> : vector<8x128xf32>
    %278 = tpu.matmul %265, %235, %cst_136 {dimension_numbers = #tpu.dot_dimension_numbers<[1], [0], [0], [1], [0, 0, 1, 1], [], []>} : vector<8x61xf32>, vector<61x128xf32>, vector<8x128xf32> -> vector<8x128xf32>
    %c0_137 = arith.constant 0 : index
    %c0_138 = arith.constant 0 : index
    %c384 = arith.constant 384 : index
    %279 = vector.load %arg14[%c0_137, %c0_138, %c384] : memref<2x8x512xf32, #tpu.memory_space<vmem>>, vector<1x8x128xf32>
    %280 = vector.shape_cast %279 : vector<1x8x128xf32> to vector<8x128xf32>
    %281 = vector.shape_cast %278 : vector<8x128xf32> to vector<1x8x128xf32>
    tpu.vector_store %arg14[%c0_137, %c0_138, %c384], %281 {strides = array<i32>} : memref<2x8x512xf32, #tpu.memory_space<vmem>>, vector<1x8x128xf32>,
    %c1_139 = arith.constant 1 : index
    %c0_140 = arith.constant 0 : index
    %c0_141 = arith.constant 0 : index
    %282 = vector.load %arg13[%c1_139, %c0_140, %c0_141] : memref<2x64x128xf32, #tpu.memory_space<vmem>>, vector<1x64x128xf32>
    %283 = vector.shape_cast %282 : vector<1x64x128xf32> to vector<64x128xf32>
    %284 = vector.broadcast %217 : vector<1x128xf32> to vector<64x128xf32>
    %285 = arith.mulf %283, %284 : vector<64x128xf32>
    %286 = vector.broadcast %220 : vector<1x128xf32> to vector<64x128xf32>
    %287 = arith.addf %285, %286 : vector<64x128xf32>
    %cst_142 = arith.constant 0.000000e+00 : f32
    %288 = vector.broadcast %cst_142 : f32 to vector<64x128xf32>
    %289 = arith.maximumf %287, %288 : vector<64x128xf32>
    %290 = vector.extract_strided_slice %289 {offsets = [0, 0], sizes = [61, 128], strides = [1, 1]} : vector<64x128xf32> to vector<61x128xf32>
    %291 = vector.extract_strided_slice %289 {offsets = [1, 0], sizes = [61, 128], strides = [1, 1]} : vector<64x128xf32> to vector<61x128xf32>
    %292 = arith.maximumf %290, %291 : vector<61x128xf32>
    %293 = vector.extract_strided_slice %289 {offsets = [2, 0], sizes = [61, 128], strides = [1, 1]} : vector<64x128xf32> to vector<61x128xf32>
    %294 = vector.extract_strided_slice %289 {offsets = [3, 0], sizes = [61, 128], strides = [1, 1]} : vector<64x128xf32> to vector<61x128xf32>
    %295 = arith.maximumf %293, %294 : vector<61x128xf32>
    %296 = arith.maximumf %292, %295 : vector<61x128xf32>
    %cst_143 = arith.constant dense<0.000000e+00> : vector<8x128xf32>
    %297 = tpu.matmul %244, %296, %cst_143 {dimension_numbers = #tpu.dot_dimension_numbers<[1], [0], [0], [1], [0, 0, 1, 1], [], []>} : vector<8x61xf32>, vector<61x128xf32>, vector<8x128xf32> -> vector<8x128xf32>
    %c1_144 = arith.constant 1 : index
    %c0_145 = arith.constant 0 : index
    %c0_146 = arith.constant 0 : index
    %298 = vector.load %arg14[%c1_144, %c0_145, %c0_146] : memref<2x8x512xf32, #tpu.memory_space<vmem>>, vector<1x8x128xf32>
    %299 = vector.shape_cast %298 : vector<1x8x128xf32> to vector<8x128xf32>
    %300 = vector.shape_cast %297 : vector<8x128xf32> to vector<1x8x128xf32>
    tpu.vector_store %arg14[%c1_144, %c0_145, %c0_146], %300 {strides = array<i32>} : memref<2x8x512xf32, #tpu.memory_space<vmem>>, vector<1x8x128xf32>,
    %cst_147 = arith.constant dense<0.000000e+00> : vector<8x128xf32>
    %301 = tpu.matmul %251, %296, %cst_147 {dimension_numbers = #tpu.dot_dimension_numbers<[1], [0], [0], [1], [0, 0, 1, 1], [], []>} : vector<8x61xf32>, vector<61x128xf32>, vector<8x128xf32> -> vector<8x128xf32>
    %c1_148 = arith.constant 1 : index
    %c0_149 = arith.constant 0 : index
    %c128_150 = arith.constant 128 : index
    %302 = vector.load %arg14[%c1_148, %c0_149, %c128_150] : memref<2x8x512xf32, #tpu.memory_space<vmem>>, vector<1x8x128xf32>
    %303 = vector.shape_cast %302 : vector<1x8x128xf32> to vector<8x128xf32>
    %304 = vector.shape_cast %301 : vector<8x128xf32> to vector<1x8x128xf32>
    tpu.vector_store %arg14[%c1_148, %c0_149, %c128_150], %304 {strides = array<i32>} : memref<2x8x512xf32, #tpu.memory_space<vmem>>, vector<1x8x128xf32>,
    %cst_151 = arith.constant dense<0.000000e+00> : vector<8x128xf32>
    %305 = tpu.matmul %258, %296, %cst_151 {dimension_numbers = #tpu.dot_dimension_numbers<[1], [0], [0], [1], [0, 0, 1, 1], [], []>} : vector<8x61xf32>, vector<61x128xf32>, vector<8x128xf32> -> vector<8x128xf32>
    %c1_152 = arith.constant 1 : index
    %c0_153 = arith.constant 0 : index
    %c256_154 = arith.constant 256 : index
    %306 = vector.load %arg14[%c1_152, %c0_153, %c256_154] : memref<2x8x512xf32, #tpu.memory_space<vmem>>, vector<1x8x128xf32>
    %307 = vector.shape_cast %306 : vector<1x8x128xf32> to vector<8x128xf32>
    %308 = vector.shape_cast %305 : vector<8x128xf32> to vector<1x8x128xf32>
    tpu.vector_store %arg14[%c1_152, %c0_153, %c256_154], %308 {strides = array<i32>} : memref<2x8x512xf32, #tpu.memory_space<vmem>>, vector<1x8x128xf32>,
    %cst_155 = arith.constant dense<0.000000e+00> : vector<8x128xf32>
    %309 = tpu.matmul %265, %296, %cst_155 {dimension_numbers = #tpu.dot_dimension_numbers<[1], [0], [0], [1], [0, 0, 1, 1], [], []>} : vector<8x61xf32>, vector<61x128xf32>, vector<8x128xf32> -> vector<8x128xf32>
    %c1_156 = arith.constant 1 : index
    %c0_157 = arith.constant 0 : index
    %c384_158 = arith.constant 384 : index
    %310 = vector.load %arg14[%c1_156, %c0_157, %c384_158] : memref<2x8x512xf32, #tpu.memory_space<vmem>>, vector<1x8x128xf32>
    %311 = vector.shape_cast %310 : vector<1x8x128xf32> to vector<8x128xf32>
    %312 = vector.shape_cast %309 : vector<8x128xf32> to vector<1x8x128xf32>
    tpu.vector_store %arg14[%c1_156, %c0_157, %c384_158], %312 {strides = array<i32>} : memref<2x8x512xf32, #tpu.memory_space<vmem>>, vector<1x8x128xf32>,
    %c0_159 = arith.constant 0 : index
    %c0_160 = arith.constant 0 : index
    %c0_161 = arith.constant 0 : index
    %313 = vector.load %arg7[%c0_159, %c0_160, %c0_161] : memref<2x512x128xf32, #tpu.memory_space<vmem>>, vector<1x512x128xf32>
    %314 = vector.shape_cast %313 : vector<1x512x128xf32> to vector<512x128xf32>
    %c1_162 = arith.constant 1 : index
    %c0_163 = arith.constant 0 : index
    %c0_164 = arith.constant 0 : index
    %315 = vector.load %arg7[%c1_162, %c0_163, %c0_164] : memref<2x512x128xf32, #tpu.memory_space<vmem>>, vector<1x512x128xf32>
    %316 = vector.shape_cast %315 : vector<1x512x128xf32> to vector<512x128xf32>
    %cst_165 = arith.constant 0.000000e+00 : f32
    %317 = vector.broadcast %cst_165 : f32 to vector<1x128xf32>
    %cst_166 = arith.constant 0.000000e+00 : f32
    %318 = vector.broadcast %cst_166 : f32 to vector<1x128xf32>
    %c0_167 = arith.constant 0 : index
    %c0_168 = arith.constant 0 : index
    %c0_169 = arith.constant 0 : index
    %319 = vector.load %arg14[%c0_167, %c0_168, %c0_169] : memref<2x8x512xf32, #tpu.memory_space<vmem>>, vector<1x8x512xf32>
    %320 = vector.shape_cast %319 : vector<1x8x512xf32> to vector<8x512xf32>
    %cst_170 = arith.constant dense<0.000000e+00> : vector<8x128xf32>
    %321 = tpu.matmul %320, %314, %cst_170 {dimension_numbers = #tpu.dot_dimension_numbers<[1], [0], [0], [1], [0, 0, 1, 1], [], []>} : vector<8x512xf32>, vector<512x128xf32>, vector<8x128xf32> -> vector<8x128xf32>
    %cst_171 = arith.constant dense<0.000000e+00> : vector<8x128xf32>
    %322 = tpu.matmul %320, %316, %cst_171 {dimension_numbers = #tpu.dot_dimension_numbers<[1], [0], [0], [1], [0, 0, 1, 1], [], []>} : vector<8x512xf32>, vector<512x128xf32>, vector<8x128xf32> -> vector<8x128xf32>
    %323 = vector.extract_strided_slice %321 {offsets = [0, 0], sizes = [7, 128], strides = [1, 1]} : vector<8x128xf32> to vector<7x128xf32>
    %324 = vector.extract_strided_slice %322 {offsets = [1, 0], sizes = [7, 128], strides = [1, 1]} : vector<8x128xf32> to vector<7x128xf32>
    %325 = arith.addf %323, %324 : vector<7x128xf32>
    %c0_172 = arith.constant 0 : index
    %c0_173 = arith.constant 0 : index
    %c0_174 = arith.constant 0 : index
    %326 = vector.load %arg15[%c0_172, %c0_173, %c0_174] : memref<2x7x128xf32, #tpu.memory_space<vmem>>, vector<1x7x128xf32>
    %327 = vector.shape_cast %326 : vector<1x7x128xf32> to vector<7x128xf32>
    %328 = vector.shape_cast %325 : vector<7x128xf32> to vector<1x7x128xf32>
    tpu.vector_store %arg15[%c0_172, %c0_173, %c0_174], %328 {strides = array<i32>} : memref<2x7x128xf32, #tpu.memory_space<vmem>>, vector<1x7x128xf32>,
    %cst_175 = arith.constant dense<0.000000e+00> : vector<128xf32>
    %329 = vector.multi_reduction <add>, %325, %cst_175 [0] : vector<7x128xf32> to vector<128xf32>
    %330 = vector.shape_cast %329 : vector<128xf32> to vector<1x128xf32>
    %331 = arith.addf %317, %330 : vector<1x128xf32>
    %332 = arith.mulf %325, %325 : vector<7x128xf32>
    %cst_176 = arith.constant dense<0.000000e+00> : vector<128xf32>
    %333 = vector.multi_reduction <add>, %332, %cst_176 [0] : vector<7x128xf32> to vector<128xf32>
    %334 = vector.shape_cast %333 : vector<128xf32> to vector<1x128xf32>
    %335 = arith.addf %318, %334 : vector<1x128xf32>
    %c1_177 = arith.constant 1 : index
    %c0_178 = arith.constant 0 : index
    %c0_179 = arith.constant 0 : index
    %336 = vector.load %arg14[%c1_177, %c0_178, %c0_179] : memref<2x8x512xf32, #tpu.memory_space<vmem>>, vector<1x8x512xf32>
    %337 = vector.shape_cast %336 : vector<1x8x512xf32> to vector<8x512xf32>
    %cst_180 = arith.constant dense<0.000000e+00> : vector<8x128xf32>
    %338 = tpu.matmul %337, %314, %cst_180 {dimension_numbers = #tpu.dot_dimension_numbers<[1], [0], [0], [1], [0, 0, 1, 1], [], []>} : vector<8x512xf32>, vector<512x128xf32>, vector<8x128xf32> -> vector<8x128xf32>
    %cst_181 = arith.constant dense<0.000000e+00> : vector<8x128xf32>
    %339 = tpu.matmul %337, %316, %cst_181 {dimension_numbers = #tpu.dot_dimension_numbers<[1], [0], [0], [1], [0, 0, 1, 1], [], []>} : vector<8x512xf32>, vector<512x128xf32>, vector<8x128xf32> -> vector<8x128xf32>
    %340 = vector.extract_strided_slice %338 {offsets = [0, 0], sizes = [7, 128], strides = [1, 1]} : vector<8x128xf32> to vector<7x128xf32>
    %341 = vector.extract_strided_slice %339 {offsets = [1, 0], sizes = [7, 128], strides = [1, 1]} : vector<8x128xf32> to vector<7x128xf32>
    %342 = arith.addf %340, %341 : vector<7x128xf32>
    %c1_182 = arith.constant 1 : index
    %c0_183 = arith.constant 0 : index
    %c0_184 = arith.constant 0 : index
    %343 = vector.load %arg15[%c1_182, %c0_183, %c0_184] : memref<2x7x128xf32, #tpu.memory_space<vmem>>, vector<1x7x128xf32>
    %344 = vector.shape_cast %343 : vector<1x7x128xf32> to vector<7x128xf32>
    %345 = vector.shape_cast %342 : vector<7x128xf32> to vector<1x7x128xf32>
    tpu.vector_store %arg15[%c1_182, %c0_183, %c0_184], %345 {strides = array<i32>} : memref<2x7x128xf32, #tpu.memory_space<vmem>>, vector<1x7x128xf32>,
    %cst_185 = arith.constant dense<0.000000e+00> : vector<128xf32>
    %346 = vector.multi_reduction <add>, %342, %cst_185 [0] : vector<7x128xf32> to vector<128xf32>
    %347 = vector.shape_cast %346 : vector<128xf32> to vector<1x128xf32>
    %348 = arith.addf %331, %347 : vector<1x128xf32>
    %349 = arith.mulf %342, %342 : vector<7x128xf32>
    %cst_186 = arith.constant dense<0.000000e+00> : vector<128xf32>
    %350 = vector.multi_reduction <add>, %349, %cst_186 [0] : vector<7x128xf32> to vector<128xf32>
    %351 = vector.shape_cast %350 : vector<128xf32> to vector<1x128xf32>
    %352 = arith.addf %335, %351 : vector<1x128xf32>
    %cst_187 = arith.constant 1.400000e+01 : f32
    %353 = vector.broadcast %cst_187 : f32 to vector<1x128xf32>
    %354 = arith.divf %348, %353 : vector<1x128xf32>
    %cst_188 = arith.constant 1.400000e+01 : f32
    %355 = vector.broadcast %cst_188 : f32 to vector<1x128xf32>
    %356 = arith.divf %352, %355 : vector<1x128xf32>
    %357 = arith.mulf %354, %354 : vector<1x128xf32>
    %358 = arith.subf %356, %357 : vector<1x128xf32>
    %cst_189 = arith.constant 0.000000e+00 : f32
    %359 = vector.broadcast %cst_189 : f32 to vector<1x128xf32>
    %360 = arith.maximumf %358, %359 : vector<1x128xf32>
    %c0_190 = arith.constant 0 : index
    %c0_191 = arith.constant 0 : index
    %361 = vector.load %arg8[%c0_190, %c0_191] : memref<1x128xf32, #tpu.memory_space<vmem>>, vector<1x128xf32>
    %cst_192 = arith.constant 9.99999974E-6 : f32
    %362 = vector.broadcast %cst_192 : f32 to vector<1x128xf32>
    %363 = arith.addf %360, %362 : vector<1x128xf32>
    %364 = math.rsqrt %363 : vector<1x128xf32>
    %365 = arith.mulf %361, %364 : vector<1x128xf32>
    %c0_193 = arith.constant 0 : index
    %c0_194 = arith.constant 0 : index
    %366 = vector.load %arg9[%c0_193, %c0_194] : memref<1x128xf32, #tpu.memory_space<vmem>>, vector<1x128xf32>
    %367 = arith.mulf %354, %365 : vector<1x128xf32>
    %368 = arith.subf %366, %367 : vector<1x128xf32>
    %c0_195 = arith.constant 0 : index
    %c0_196 = arith.constant 0 : index
    %c0_197 = arith.constant 0 : index
    %369 = vector.load %arg15[%c0_195, %c0_196, %c0_197] : memref<2x7x128xf32, #tpu.memory_space<vmem>>, vector<1x7x128xf32>
    %370 = vector.shape_cast %369 : vector<1x7x128xf32> to vector<7x128xf32>
    %371 = vector.broadcast %365 : vector<1x128xf32> to vector<7x128xf32>
    %372 = arith.mulf %370, %371 : vector<7x128xf32>
    %373 = vector.broadcast %368 : vector<1x128xf32> to vector<7x128xf32>
    %374 = arith.addf %372, %373 : vector<7x128xf32>
    %cst_198 = arith.constant 0.000000e+00 : f32
    %375 = vector.broadcast %cst_198 : f32 to vector<7x128xf32>
    %376 = arith.maximumf %374, %375 : vector<7x128xf32>
    %377 = vector.extract_strided_slice %376 {offsets = [0, 0], sizes = [4, 128], strides = [1, 1]} : vector<7x128xf32> to vector<4x128xf32>
    %378 = vector.extract_strided_slice %376 {offsets = [1, 0], sizes = [4, 128], strides = [1, 1]} : vector<7x128xf32> to vector<4x128xf32>
    %379 = arith.maximumf %377, %378 : vector<4x128xf32>
    %380 = vector.extract_strided_slice %376 {offsets = [2, 0], sizes = [4, 128], strides = [1, 1]} : vector<7x128xf32> to vector<4x128xf32>
    %381 = vector.extract_strided_slice %376 {offsets = [3, 0], sizes = [4, 128], strides = [1, 1]} : vector<7x128xf32> to vector<4x128xf32>
    %382 = arith.maximumf %380, %381 : vector<4x128xf32>
    %383 = arith.maximumf %379, %382 : vector<4x128xf32>
    %384 = tpu.iota {dimensions = array<i32: 0>} : vector<2x4xi32>
    %385 = tpu.iota {dimensions = array<i32: 1>} : vector<2x4xi32>
    %c2_i32_199 = arith.constant 2 : i32
    %386 = vector.broadcast %c2_i32_199 : i32 to vector<2x4xi32>
    %387 = arith.muli %386, %384 : vector<2x4xi32>
    %388 = arith.cmpi eq, %385, %387 : vector<2x4xi32>
    %389 = arith.extui %388 : vector<2x4xi1> to vector<2x4xi32>
    %390 = arith.sitofp %389 : vector<2x4xi32> to vector<2x4xf32>
    %cst_200 = arith.constant dense<0.000000e+00> : vector<2x128xf32>
    %391 = tpu.matmul %390, %383, %cst_200 {dimension_numbers = #tpu.dot_dimension_numbers<[1], [0], [0], [1], [0, 0, 1, 1], [], []>} : vector<2x4xf32>, vector<4x128xf32>, vector<2x128xf32> -> vector<2x128xf32>
    %c0_201 = arith.constant 0 : index
    %c0_202 = arith.constant 0 : index
    %c0_203 = arith.constant 0 : index
    %392 = vector.load %arg10[%c0_201, %c0_202, %c0_203] : memref<2x2x128xf32, #tpu.memory_space<vmem>>, vector<1x2x128xf32>
    %393 = vector.shape_cast %392 : vector<1x2x128xf32> to vector<2x128xf32>
    %394 = vector.shape_cast %391 : vector<2x128xf32> to vector<1x2x128xf32>
    tpu.vector_store %arg10[%c0_201, %c0_202, %c0_203], %394 {strides = array<i32>} : memref<2x2x128xf32, #tpu.memory_space<vmem>>, vector<1x2x128xf32>,
    %c1_204 = arith.constant 1 : index
    %c0_205 = arith.constant 0 : index
    %c0_206 = arith.constant 0 : index
    %395 = vector.load %arg15[%c1_204, %c0_205, %c0_206] : memref<2x7x128xf32, #tpu.memory_space<vmem>>, vector<1x7x128xf32>
    %396 = vector.shape_cast %395 : vector<1x7x128xf32> to vector<7x128xf32>
    %397 = vector.broadcast %365 : vector<1x128xf32> to vector<7x128xf32>
    %398 = arith.mulf %396, %397 : vector<7x128xf32>
    %399 = vector.broadcast %368 : vector<1x128xf32> to vector<7x128xf32>
    %400 = arith.addf %398, %399 : vector<7x128xf32>
    %cst_207 = arith.constant 0.000000e+00 : f32
    %401 = vector.broadcast %cst_207 : f32 to vector<7x128xf32>
    %402 = arith.maximumf %400, %401 : vector<7x128xf32>
    %403 = vector.extract_strided_slice %402 {offsets = [0, 0], sizes = [4, 128], strides = [1, 1]} : vector<7x128xf32> to vector<4x128xf32>
    %404 = vector.extract_strided_slice %402 {offsets = [1, 0], sizes = [4, 128], strides = [1, 1]} : vector<7x128xf32> to vector<4x128xf32>
    %405 = arith.maximumf %403, %404 : vector<4x128xf32>
    %406 = vector.extract_strided_slice %402 {offsets = [2, 0], sizes = [4, 128], strides = [1, 1]} : vector<7x128xf32> to vector<4x128xf32>
    %407 = vector.extract_strided_slice %402 {offsets = [3, 0], sizes = [4, 128], strides = [1, 1]} : vector<7x128xf32> to vector<4x128xf32>
    %408 = arith.maximumf %406, %407 : vector<4x128xf32>
    %409 = arith.maximumf %405, %408 : vector<4x128xf32>
    %cst_208 = arith.constant dense<0.000000e+00> : vector<2x128xf32>
    %410 = tpu.matmul %390, %409, %cst_208 {dimension_numbers = #tpu.dot_dimension_numbers<[1], [0], [0], [1], [0, 0, 1, 1], [], []>} : vector<2x4xf32>, vector<4x128xf32>, vector<2x128xf32> -> vector<2x128xf32>
    %c1_209 = arith.constant 1 : index
    %c0_210 = arith.constant 0 : index
    %c0_211 = arith.constant 0 : index
    %411 = vector.load %arg10[%c1_209, %c0_210, %c0_211] : memref<2x2x128xf32, #tpu.memory_space<vmem>>, vector<1x2x128xf32>
    %412 = vector.shape_cast %411 : vector<1x2x128xf32> to vector<2x128xf32>
    %413 = vector.shape_cast %410 : vector<2x128xf32> to vector<1x2x128xf32>
    tpu.vector_store %arg10[%c1_209, %c0_210, %c0_211], %413 {strides = array<i32>} : memref<2x2x128xf32, #tpu.memory_space<vmem>>, vector<1x2x128xf32>,
    return
  }
}

</mosaic_0001>

<llo_original>
// kernel: cnn_frontend_forward.1
$region0: #{cnn_frontend_forward.1}
  #allocation0 [shape = 'u32[]', space=smem, size = 0x4, offset = 0x4, fixed_abs, tag = 'smem constant byte address 0x4 - core index']
  #allocation1 [shape = 'u32[144,128]{1,0:T(1,128)}', space=vmem, size = 0x12000, scoped, tag = 'internal scratch']
  #allocation2 [shape = 'f32[2,512,64]{2,1,0:T(8,128)}', space=vmem, size = 0x80000, scoped, tag = 'scratch operand']
  #allocation3 [shape = 'f32[2,65,256]{2,1,0:T(8,128)}', space=vmem, size = 0x24000, scoped, tag = 'scratch operand']
  #allocation4 [shape = 'f32[2,64,128]{2,1,0:T(8,128)}', space=vmem, size = 0x10000, scoped, tag = 'scratch operand']
  #allocation5 [shape = 'f32[2,8,512]{2,1,0:T(8,128)}', space=vmem, size = 0x8000, scoped, tag = 'scratch operand']
  #allocation6 [shape = 'f32[2,7,128]{2,1,0:T(8,128)}', space=vmem, size = 0x2000, scoped, tag = 'scratch operand']
  %s0 = inlined_call_operand.vmem [shape: f32[2,513,16], index: 0, kind: input, shape index: {}]
  %s1 = inlined_call_operand.vmem [shape: f32[2,16,64], index: 1, kind: input, shape index: {}]
  %s2 = inlined_call_operand.vmem [shape: f32[1,64], index: 2, kind: input, shape index: {}]
  %s3 = inlined_call_operand.vmem [shape: f32[1,64], index: 3, kind: input, shape index: {}]
  %s4 = inlined_call_operand.vmem [shape: f32[2,256,128], index: 4, kind: input, shape index: {}]
  %s5 = inlined_call_operand.vmem [shape: f32[1,128], index: 5, kind: input, shape index: {}]
  %s6 = inlined_call_operand.vmem [shape: f32[1,128], index: 6, kind: input, shape index: {}]
  %s7 = inlined_call_operand.vmem [shape: f32[2,512,128], index: 7, kind: input, shape index: {}]
  %s8 = inlined_call_operand.vmem [shape: f32[1,128], index: 8, kind: input, shape index: {}]
  %s9 = inlined_call_operand.vmem [shape: f32[1,128], index: 9, kind: input, shape index: {}]
  %s10 = inlined_call_operand.hbm [shape: f32[2,2,128], index: 10, kind: output, shape index: {}]
  %s11 = sld [smem:[#allocation0]]
  $region50: #{cnn_frontend_forward.1} parent=0
    _
  %s13 = ssub.s32 1, %s11
  %s14 = scalar_select 0, %s13, %s11
  $region1: #{cnn_frontend_forward.1} parent=0
    #allocation7 [shape = 'u8[2048]{0}', space=vmem, size = 0x800, scoped, tag = 'output window, operand 0, single buffered']
    #allocation8 [shape = 's32[1]{0}', space=sflag, size = 0x4, scoped, tag = 'scoped memory for cnn_frontend_forward.1']
    %15 = vsyncpa [#allocation8], 0
    // Predicated region
    $region2: #{cnn_frontend_forward.1} parent=1 // pred_check
      _
    $region3: #{cnn_frontend_forward.1} parent=1 // pred_check_branch
      %17 = sbr.rel (0) target = $region5
    $region4: #{cnn_frontend_forward.1} parent=1 // pred_region
      _
    $region5: #{cnn_frontend_forward.1} parent=1 // pred_fallthru
      _
    // Predicated region
    $region6: #{cnn_frontend_forward.1} parent=1 // pred_check
      _
    $region7: #{cnn_frontend_forward.1} parent=1 // pred_check_branch
      %19 = sbr.rel (0) target = $region9
    $region8: #{cnn_frontend_forward.1} parent=1 // pred_region
      _
    $region9: #{cnn_frontend_forward.1} parent=1 // pred_fallthru
      _
    // Predicated region
    $region10: #{cnn_frontend_forward.1} parent=1 // pred_check
      _
    $region11: #{cnn_frontend_forward.1} parent=1 // pred_check_branch
      %21 = sbr.rel (0) target = $region13
    $region12: #{cnn_frontend_forward.1} parent=1 // pred_region
      _
    $region13: #{cnn_frontend_forward.1} parent=1 // pred_fallthru
      _
    // Predicated region
    $region14: #{cnn_frontend_forward.1} parent=1 // pred_check
      _
    $region15: #{cnn_frontend_forward.1} parent=1 // pred_check_branch
      %23 = sbr.rel (0) target = $region17
    $region16: #{cnn_frontend_forward.1} parent=1 // pred_region
      _
    $region17: #{cnn_frontend_forward.1} parent=1 // pred_fallthru
      _
    // Predicated region
    $region18: #{cnn_frontend_forward.1} parent=1 // pred_check
      _
    $region19: #{cnn_frontend_forward.1} parent=1 // pred_check_branch
      %25 = sbr.rel (0) target = $region21
    $region20: #{cnn_frontend_forward.1} parent=1 // pred_region
      _
    $region21: #{cnn_frontend_forward.1} parent=1 // pred_fallthru
      _
    // Predicated region
    $region22: #{cnn_frontend_forward.1} parent=1 // pred_check
      _
    $region23: #{cnn_frontend_forward.1} parent=1 // pred_check_branch
      %27 = sbr.rel (0) target = $region25
    $region24: #{cnn_frontend_forward.1} parent=1 // pred_region
      _
    $region25: #{cnn_frontend_forward.1} parent=1 // pred_fallthru
      _
    // Predicated region
    $region26: #{cnn_frontend_forward.1} parent=1 // pred_check
      _
    $region27: #{cnn_frontend_forward.1} parent=1 // pred_check_branch
      %29 = sbr.rel (0) target = $region29
    $region28: #{cnn_frontend_forward.1} parent=1 // pred_region
      _
    $region29: #{cnn_frontend_forward.1} parent=1 // pred_fallthru
      _
    // Predicated region
    $region30: #{cnn_frontend_forward.1} parent=1 // pred_check
      _
    $region31: #{cnn_frontend_forward.1} parent=1 // pred_check_branch
      %31 = sbr.rel (0) target = $region33
    $region32: #{cnn_frontend_forward.1} parent=1 // pred_region
      _
    $region33: #{cnn_frontend_forward.1} parent=1 // pred_fallthru
      _
    // Predicated region
    $region34: #{cnn_frontend_forward.1} parent=1 // pred_check
      _
    $region35: #{cnn_frontend_forward.1} parent=1 // pred_check_branch
      %33 = sbr.rel (0) target = $region37
    $region36: #{cnn_frontend_forward.1} parent=1 // pred_region
      _
    $region37: #{cnn_frontend_forward.1} parent=1 // pred_fallthru
      _
    // Predicated region
    $region38: #{cnn_frontend_forward.1} parent=1 // pred_check
      _
    $region39: #{cnn_frontend_forward.1} parent=1 // pred_check_branch
      %35 = sbr.rel (0) target = $region41
    $region40: #{cnn_frontend_forward.1} parent=1 // pred_region
      _
    $region41: #{cnn_frontend_forward.1} parent=1 // pred_fallthru
      _
    %v36 = vld [vmem:[%s1] sm:$0xff]
    %v37 = vld [vmem:[%s1 + $0x8] sm:$0xff]
    %s38 = scalar_lea.vmem %s1, 16
    %v39 = vld [vmem:[%s38] sm:$0xff]
    %v40 = vld [vmem:[%s38 + $0x8] sm:$0xff]
    %v41 = vld [vmem:[%s0] sm:$0xff]
    %v42 = vld [vmem:[%s0 + $0x8] sm:$0xff]
    %v43 = vld [vmem:[%s0 + $0x10] sm:$0xff]
    %v44 = vld [vmem:[%s0 + $0x18] sm:$0xff]
    %v45 = vld [vmem:[%s0 + $0x20] sm:$0xff]
    %v46 = vld [vmem:[%s0 + $0x28] sm:$0xff]
    %v47 = vld [vmem:[%s0 + $0x30] sm:$0xff]
    %v48 = vld [vmem:[%s0 + $0x38] sm:$0xff]
    %v49 = vld [vmem:[%s0 + $0x40] sm:$0xff]
    %v50 = vld [vmem:[%s0 + $0x48] sm:$0xff]
    %v51 = vld [vmem:[%s0 + $0x50] sm:$0xff]
    %v52 = vld [vmem:[%s0 + $0x58] sm:$0xff]
    %v53 = vld [vmem:[%s0 + $0x60] sm:$0xff]
    %v54 = vld [vmem:[%s0 + $0x68] sm:$0xff]
    %v55 = vld [vmem:[%s0 + $0x70] sm:$0xff]
    %v56 = vld [vmem:[%s0 + $0x78] sm:$0xff]
    %v57 = vld [vmem:[%s0 + $0x80] sm:$0xff]
    %v58 = vld [vmem:[%s0 + $0x88] sm:$0xff]
    %v59 = vld [vmem:[%s0 + $0x90] sm:$0xff]
    %v60 = vld [vmem:[%s0 + $0x98] sm:$0xff]
    %v61 = vld [vmem:[%s0 + $0xa0] sm:$0xff]
    %v62 = vld [vmem:[%s0 + $0xa8] sm:$0xff]
    %v63 = vld [vmem:[%s0 + $0xb0] sm:$0xff]
    %v64 = vld [vmem:[%s0 + $0xb8] sm:$0xff]
    %v65 = vld [vmem:[%s0 + $0xc0] sm:$0xff]
    %v66 = vld [vmem:[%s0 + $0xc8] sm:$0xff]
    %v67 = vld [vmem:[%s0 + $0xd0] sm:$0xff]
    %v68 = vld [vmem:[%s0 + $0xd8] sm:$0xff]
    %v69 = vld [vmem:[%s0 + $0xe0] sm:$0xff]
    %v70 = vld [vmem:[%s0 + $0xe8] sm:$0xff]
    %v71 = vld [vmem:[%s0 + $0xf0] sm:$0xff]
    %v72 = vld [vmem:[%s0 + $0xf8] sm:$0xff]
    %v73 = vld [vmem:[%s0 + $0x100] sm:$0xff]
    %v74 = vld [vmem:[%s0 + $0x108] sm:$0xff]
    %v75 = vld [vmem:[%s0 + $0x110] sm:$0xff]
    %v76 = vld [vmem:[%s0 + $0x118] sm:$0xff]
    %v77 = vld [vmem:[%s0 + $0x120] sm:$0xff]
    %v78 = vld [vmem:[%s0 + $0x128] sm:$0xff]
    %v79 = vld [vmem:[%s0 + $0x130] sm:$0xff]
    %v80 = vld [vmem:[%s0 + $0x138] sm:$0xff]
    %v81 = vld [vmem:[%s0 + $0x140] sm:$0xff]
    %v82 = vld [vmem:[%s0 + $0x148] sm:$0xff]
    %v83 = vld [vmem:[%s0 + $0x150] sm:$0xff]
    %v84 = vld [vmem:[%s0 + $0x158] sm:$0xff]
    %v85 = vld [vmem:[%s0 + $0x160] sm:$0xff]
    %v86 = vld [vmem:[%s0 + $0x168] sm:$0xff]
    %v87 = vld [vmem:[%s0 + $0x170] sm:$0xff]
    %v88 = vld [vmem:[%s0 + $0x178] sm:$0xff]
    %v89 = vld [vmem:[%s0 + $0x180] sm:$0xff]
    %v90 = vld [vmem:[%s0 + $0x188] sm:$0xff]
    %v91 = vld [vmem:[%s0 + $0x190] sm:$0xff]
    %v92 = vld [vmem:[%s0 + $0x198] sm:$0xff]
    %v93 = vld [vmem:[%s0 + $0x1a0] sm:$0xff]
    %v94 = vld [vmem:[%s0 + $0x1a8] sm:$0xff]
    %v95 = vld [vmem:[%s0 + $0x1b0] sm:$0xff]
    %v96 = vld [vmem:[%s0 + $0x1b8] sm:$0xff]
    %v97 = vld [vmem:[%s0 + $0x1c0] sm:$0xff]
    %v98 = vld [vmem:[%s0 + $0x1c8] sm:$0xff]
    %v99 = vld [vmem:[%s0 + $0x1d0] sm:$0xff]
    %v100 = vld [vmem:[%s0 + $0x1d8] sm:$0xff]
    %v101 = vld [vmem:[%s0 + $0x1e0] sm:$0xff]
    %v102 = vld [vmem:[%s0 + $0x1e8] sm:$0xff]
    %v103 = vld [vmem:[%s0 + $0x1f0] sm:$0xff]
    %v104 = vld [vmem:[%s0 + $0x1f8] sm:$0xff]
    %v105 = vld [vmem:[%s0 + $0x200] sm:$0x1]
    %vm106 = vcmask 130048
    %v108 = vsel %vm106, %v41, 0
    %v111 = vsel %vm106, %v42, 0
    %v114 = vsel %vm106, %v43, 0
    %v117 = vsel %vm106, %v44, 0
    %v120 = vsel %vm106, %v45, 0
    %v123 = vsel %vm106, %v46, 0
    %v126 = vsel %vm106, %v47, 0
    %v129 = vsel %vm106, %v48, 0
    %v132 = vsel %vm106, %v49, 0
    %v135 = vsel %vm106, %v50, 0
    %v138 = vsel %vm106, %v51, 0
    %v141 = vsel %vm106, %v52, 0
    %v144 = vsel %vm106, %v53, 0
    %v147 = vsel %vm106, %v54, 0
    %v150 = vsel %vm106, %v55, 0
    %v153 = vsel %vm106, %v56, 0
    %v156 = vsel %vm106, %v57, 0
    %v159 = vsel %vm106, %v58, 0
    %v162 = vsel %vm106, %v59, 0
    %v165 = vsel %vm106, %v60, 0
    %v168 = vsel %vm106, %v61, 0
    %v171 = vsel %vm106, %v62, 0
    %v174 = vsel %vm106, %v63, 0
    %v177 = vsel %vm106, %v64, 0
    %v180 = vsel %vm106, %v65, 0
    %v183 = vsel %vm106, %v66, 0
    %v186 = vsel %vm106, %v67, 0
    %v189 = vsel %vm106, %v68, 0
    %v192 = vsel %vm106, %v69, 0
    %v195 = vsel %vm106, %v70, 0
    %v198 = vsel %vm106, %v71, 0
    %v201 = vsel %vm106, %v72, 0
    %v204 = vsel %vm106, %v73, 0
    %v207 = vsel %vm106, %v74, 0
    %v210 = vsel %vm106, %v75, 0
    %v213 = vsel %vm106, %v76, 0
    %v216 = vsel %vm106, %v77, 0
    %v219 = vsel %vm106, %v78, 0
    %v222 = vsel %vm106, %v79, 0
    %v225 = vsel %vm106, %v80, 0
    %v228 = vsel %vm106, %v81, 0
    %v231 = vsel %vm106, %v82, 0
    %v234 = vsel %vm106, %v83, 0
    %v237 = vsel %vm106, %v84, 0
    %v240 = vsel %vm106, %v85, 0
    %v243 = vsel %vm106, %v86, 0
    %v246 = vsel %vm106, %v87, 0
    %v249 = vsel %vm106, %v88, 0
    %v252 = vsel %vm106, %v89, 0
    %v255 = vsel %vm106, %v90, 0
    %v258 = vsel %vm106, %v91, 0
    %v261 = vsel %vm106, %v92, 0
    %v264 = vsel %vm106, %v93, 0
    %v267 = vsel %vm106, %v94, 0
    %v270 = vsel %vm106, %v95, 0
    %v273 = vsel %vm106, %v96, 0
    %v276 = vsel %vm106, %v97, 0
    %v279 = vsel %vm106, %v98, 0
    %v282 = vsel %vm106, %v99, 0
    %v285 = vsel %vm106, %v100, 0
    %v288 = vsel %vm106, %v101, 0
    %v291 = vsel %vm106, %v102, 0
    %v294 = vsel %vm106, %v103, 0
    %v297 = vsel %vm106, %v104, 0
    %v300 = vsel %vm106, %v105, 0
    %302 = vmatprep.subr.mxu0 0.0
    %303 = vmatpush1.msra.mxu0 0.0
    %304 = vmatprep.subr.mxu0 0.0
    %305 = vmatpush1.msra.mxu0 0.0
    %306 = vmatprep.subr.mxu0 0.0
    %307 = vmatpush1.msra.mxu0 0.0
    %308 = vmatprep.subr.mxu0 0.0
    %309 = vmatpush1.msra.mxu0 0.0
    %310 = vmatprep.subr.mxu0 0.0
    %311 = vmatpush1.msra.mxu0 0.0
    %312 = vmatprep.subr.mxu0 0.0
    %313 = vmatpush1.msra.mxu0 0.0
    %314 = vmatprep.subr.mxu0 0.0
    %315 = vmatpush1.msra.mxu0 0.0
    %316 = vmatprep.subr.mxu0 0.0
    %317 = vmatpush1.msra.mxu0 0.0
    %318 = vmatprep.subr.mxu0 0.0
    %319 = vmatpush1.msra.mxu0 0.0
    %320 = vmatprep.subr.mxu0 0.0
    %321 = vmatpush1.msra.mxu0 0.0
    %322 = vmatprep.subr.mxu0 0.0
    %323 = vmatpush1.msra.mxu0 0.0
    %324 = vmatprep.subr.mxu0 0.0
    %325 = vmatpush1.msra.mxu0 0.0
    %326 = vmatprep.subr.mxu0 0.0
    %327 = vmatpush1.msra.mxu0 0.0
    %328 = vmatprep.subr.mxu0 0.0
    %329 = vmatpush1.msra.mxu0 0.0
    %330 = vmatprep.subr.mxu0 0.0
    %331 = vmatpush1.msra.mxu0 %v37
    %332 = vmatprep.subr.mxu0 0.0
    %333 = vmatpush1.msra.mxu0 %v36
    %334 = vmatprep.subr.mxu0 0.0
    %335 = vmatpush2.msra.mxu0 0.0
    %336 = vmatprep.subr.mxu0 0.0
    %337 = vmatpush2.msra.mxu0 0.0
    %338 = vmatprep.subr.mxu0 0.0
    %339 = vmatpush2.msra.mxu0 0.0
    %340 = vmatprep.subr.mxu0 0.0
    %341 = vmatpush2.msra.mxu0 0.0
    %342 = vmatprep.subr.mxu0 0.0
    %343 = vmatpush2.msra.mxu0 0.0
    %344 = vmatprep.subr.mxu0 0.0
    %345 = vmatpush2.msra.mxu0 0.0
    %346 = vmatprep.subr.mxu0 0.0
    %347 = vmatpush2.msra.mxu0 0.0
    %348 = vmatprep.subr.mxu0 0.0
    %349 = vmatpush2.msra.mxu0 0.0
    %350 = vmatprep.subr.mxu0 0.0
    %351 = vmatpush2.msra.mxu0 0.0
    %352 = vmatprep.subr.mxu0 0.0
    %353 = vmatpush2.msra.mxu0 0.0
    %354 = vmatprep.subr.mxu0 0.0
    %355 = vmatpush2.msra.mxu0 0.0
    %356 = vmatprep.subr.mxu0 0.0
    %357 = vmatpush2.msra.mxu0 0.0
    %358 = vmatprep.subr.mxu0 0.0
    %359 = vmatpush2.msra.mxu0 0.0
    %360 = vmatprep.subr.mxu0 0.0
    %361 = vmatpush2.msra.mxu0 0.0
    %362 = vmatprep.subr.mxu0 0.0
    %363 = vmatpush2.msra.mxu0 0.0
    %364 = vmatprep.subr.mxu0 0.0
    %365 = vmatpush2.msra.mxu0 0.0
    %366 = vmatprep.mubr.f32.mxu0 0.0
    %367 = vmatmul.mubr.f32.gmra.mxu0 %v108
    %v368 = vpop.f32.mrf.mxu0
    %v369 = vadd.f32 0.0, %v368
    %v370 = vpop.f32.mrf.mxu0
    %371 = vmatprep.mubr.f32.mxu0 0.0
    %372 = vmatmul.mubr.f32.gmra.mxu0 %v111
    %v373 = vpop.f32.mrf.mxu0
    %v374 = vadd.f32 0.0, %v373
    %v375 = vpop.f32.mrf.mxu0
    %376 = vmatprep.mubr.f32.mxu0 0.0
    %377 = vmatmul.mubr.f32.gmra.mxu0 %v114
    %v378 = vpop.f32.mrf.mxu0
    %v379 = vadd.f32 0.0, %v378
    %v380 = vpop.f32.mrf.mxu0
    %381 = vmatprep.mubr.f32.mxu0 0.0
    %382 = vmatmul.mubr.f32.gmra.mxu0 %v117
    %v383 = vpop.f32.mrf.mxu0
    %v384 = vadd.f32 0.0, %v383
    %v385 = vpop.f32.mrf.mxu0
    %386 = vmatprep.mubr.f32.mxu0 0.0
    %387 = vmatmul.mubr.f32.gmra.mxu0 %v120
    %v388 = vpop.f32.mrf.mxu0
    %v389 = vadd.f32 0.0, %v388
    %v390 = vpop.f32.mrf.mxu0
    %391 = vmatprep.mubr.f32.mxu0 0.0
    %392 = vmatmul.mubr.f32.gmra.mxu0 %v123
    %v393 = vpop.f32.mrf.mxu0
    %v394 = vadd.f32 0.0, %v393
    %v395 = vpop.f32.mrf.mxu0
    %396 = vmatprep.mubr.f32.mxu0 0.0
    %397 = vmatmul.mubr.f32.gmra.mxu0 %v126
    %v398 = vpop.f32.mrf.mxu0
    %v399 = vadd.f32 0.0, %v398
    %v400 = vpop.f32.mrf.mxu0
    %401 = vmatprep.mubr.f32.mxu0 0.0
    %402 = vmatmul.mubr.f32.gmra.mxu0 %v129
    %v403 = vpop.f32.mrf.mxu0
    %v404 = vadd.f32 0.0, %v403
    %v405 = vpop.f32.mrf.mxu0
    %406 = vmatprep.mubr.f32.mxu0 0.0
    %407 = vmatmul.mubr.f32.gmra.mxu0 %v132
    %v408 = vpop.f32.mrf.mxu0
    %v409 = vadd.f32 0.0, %v408
    %v410 = vpop.f32.mrf.mxu0
    %411 = vmatprep.mubr.f32.mxu0 0.0
    %412 = vmatmul.mubr.f32.gmra.mxu0 %v135
    %v413 = vpop.f32.mrf.mxu0
    %v414 = vadd.f32 0.0, %v413
    %v415 = vpop.f32.mrf.mxu0
    %416 = vmatprep.mubr.f32.mxu0 0.0
    %417 = vmatmul.mubr.f32.gmra.mxu0 %v138
    %v418 = vpop.f32.mrf.mxu0
    %v419 = vadd.f32 0.0, %v418
    %v420 = vpop.f32.mrf.mxu0
    %421 = vmatprep.mubr.f32.mxu0 0.0
    %422 = vmatmul.mubr.f32.gmra.mxu0 %v141
    %v423 = vpop.f32.mrf.mxu0
    %v424 = vadd.f32 0.0, %v423
    %v425 = vpop.f32.mrf.mxu0
    %426 = vmatprep.mubr.f32.mxu0 0.0
    %427 = vmatmul.mubr.f32.gmra.mxu0 %v144
    %v428 = vpop.f32.mrf.mxu0
    %v429 = vadd.f32 0.0, %v428
    %v430 = vpop.f32.mrf.mxu0
    %431 = vmatprep.mubr.f32.mxu0 0.0
    %432 = vmatmul.mubr.f32.gmra.mxu0 %v147
    %v433 = vpop.f32.mrf.mxu0
    %v434 = vadd.f32 0.0, %v433
    %v435 = vpop.f32.mrf.mxu0
    %436 = vmatprep.mubr.f32.mxu0 0.0
    %437 = vmatmul.mubr.f32.gmra.mxu0 %v150
    %v438 = vpop.f32.mrf.mxu0
    %v439 = vadd.f32 0.0, %v438
    %v440 = vpop.f32.mrf.mxu0
    %441 = vmatprep.mubr.f32.mxu0 0.0
    %442 = vmatmul.mubr.f32.gmra.mxu0 %v153
    %v443 = vpop.f32.mrf.mxu0
    %v444 = vadd.f32 0.0, %v443
    %v445 = vpop.f32.mrf.mxu0
    %446 = vmatprep.mubr.f32.mxu0 0.0
    %447 = vmatmul.mubr.f32.gmra.mxu0 %v156
    %v448 = vpop.f32.mrf.mxu0
    %v449 = vadd.f32 0.0, %v448
    %v450 = vpop.f32.mrf.mxu0
    %451 = vmatprep.mubr.f32.mxu0 0.0
    %452 = vmatmul.mubr.f32.gmra.mxu0 %v159
    %v453 = vpop.f32.mrf.mxu0
    %v454 = vadd.f32 0.0, %v453
    %v455 = vpop.f32.mrf.mxu0
    %456 = vmatprep.mubr.f32.mxu0 0.0
    %457 = vmatmul.mubr.f32.gmra.mxu0 %v162
    %v458 = vpop.f32.mrf.mxu0
    %v459 = vadd.f32 0.0, %v458
    %v460 = vpop.f32.mrf.mxu0
    %461 = vmatprep.mubr.f32.mxu0 0.0
    %462 = vmatmul.mubr.f32.gmra.mxu0 %v165
    %v463 = vpop.f32.mrf.mxu0
    %v464 = vadd.f32 0.0, %v463
    %v465 = vpop.f32.mrf.mxu0
    %466 = vmatprep.mubr.f32.mxu0 0.0
    %467 = vmatmul.mubr.f32.gmra.mxu0 %v168
    %v468 = vpop.f32.mrf.mxu0
    %v469 = vadd.f32 0.0, %v468
    %v470 = vpop.f32.mrf.mxu0
    %471 = vmatprep.mubr.f32.mxu0 0.0
    %472 = vmatmul.mubr.f32.gmra.mxu0 %v171
    %v473 = vpop.f32.mrf.mxu0
    %v474 = vadd.f32 0.0, %v473
    %v475 = vpop.f32.mrf.mxu0
    %476 = vmatprep.mubr.f32.mxu0 0.0
    %477 = vmatmul.mubr.f32.gmra.mxu0 %v174
    %v478 = vpop.f32.mrf.mxu0
    %v479 = vadd.f32 0.0, %v478
    %v480 = vpop.f32.mrf.mxu0
    %481 = vmatprep.mubr.f32.mxu0 0.0
    %482 = vmatmul.mubr.f32.gmra.mxu0 %v177
    %v483 = vpop.f32.mrf.mxu0
    %v484 = vadd.f32 0.0, %v483
    %v485 = vpop.f32.mrf.mxu0
    %486 = vmatprep.mubr.f32.mxu0 0.0
    %487 = vmatmul.mubr.f32.gmra.mxu0 %v180
    %v488 = vpop.f32.mrf.mxu0
    %v489 = vadd.f32 0.0, %v488
    %v490 = vpop.f32.mrf.mxu0
    %491 = vmatprep.mubr.f32.mxu0 0.0
    %492 = vmatmul.mubr.f32.gmra.mxu0 %v183
    %v493 = vpop.f32.mrf.mxu0
    %v494 = vadd.f32 0.0, %v493
    %v495 = vpop.f32.mrf.mxu0
    %496 = vmatprep.mubr.f32.mxu0 0.0
    %497 = vmatmul.mubr.f32.gmra.mxu0 %v186
    %v498 = vpop.f32.mrf.mxu0
    %v499 = vadd.f32 0.0, %v498
    %v500 = vpop.f32.mrf.mxu0
    %501 = vmatprep.mubr.f32.mxu0 0.0
    %502 = vmatmul.mubr.f32.gmra.mxu0 %v189
    %v503 = vpop.f32.mrf.mxu0
    %v504 = vadd.f32 0.0, %v503
    %v505 = vpop.f32.mrf.mxu0
    %506 = vmatprep.mubr.f32.mxu0 0.0
    %507 = vmatmul.mubr.f32.gmra.mxu0 %v192
    %v508 = vpop.f32.mrf.mxu0
    %v509 = vadd.f32 0.0, %v508
    %v510 = vpop.f32.mrf.mxu0
    %511 = vmatprep.mubr.f32.mxu0 0.0
    %512 = vmatmul.mubr.f32.gmra.mxu0 %v195
    %v513 = vpop.f32.mrf.mxu0
    %v514 = vadd.f32 0.0, %v513
    %v515 = vpop.f32.mrf.mxu0
    %516 = vmatprep.mubr.f32.mxu0 0.0
    %517 = vmatmul.mubr.f32.gmra.mxu0 %v198
    %v518 = vpop.f32.mrf.mxu0
    %v519 = vadd.f32 0.0, %v518
    %v520 = vpop.f32.mrf.mxu0
    %521 = vmatprep.mubr.f32.mxu0 0.0
    %522 = vmatmul.mubr.f32.gmra.mxu0 %v201
    %v523 = vpop.f32.mrf.mxu0
    %v524 = vadd.f32 0.0, %v523
    %v525 = vpop.f32.mrf.mxu0
    %526 = vmatprep.mubr.f32.mxu0 0.0
    %527 = vmatmul.mubr.f32.gmra.mxu0 %v204
    %v528 = vpop.f32.mrf.mxu0
    %v529 = vadd.f32 0.0, %v528
    %v530 = vpop.f32.mrf.mxu0
    %531 = vmatprep.mubr.f32.mxu0 0.0
    %532 = vmatmul.mubr.f32.gmra.mxu0 %v207
    %v533 = vpop.f32.mrf.mxu0
    %v534 = vadd.f32 0.0, %v533
    %v535 = vpop.f32.mrf.mxu0
    %536 = vmatprep.mubr.f32.mxu0 0.0
    %537 = vmatmul.mubr.f32.gmra.mxu0 %v210
    %v538 = vpop.f32.mrf.mxu0
    %v539 = vadd.f32 0.0, %v538
    %v540 = vpop.f32.mrf.mxu0
    %541 = vmatprep.mubr.f32.mxu0 0.0
    %542 = vmatmul.mubr.f32.gmra.mxu0 %v213
    %v543 = vpop.f32.mrf.mxu0
    %v544 = vadd.f32 0.0, %v543
    %v545 = vpop.f32.mrf.mxu0
    %546 = vmatprep.mubr.f32.mxu0 0.0
    %547 = vmatmul.mubr.f32.gmra.mxu0 %v216
    %v548 = vpop.f32.mrf.mxu0
    %v549 = vadd.f32 0.0, %v548
    %v550 = vpop.f32.mrf.mxu0
    %551 = vmatprep.mubr.f32.mxu0 0.0
    %552 = vmatmul.mubr.f32.gmra.mxu0 %v219
    %v553 = vpop.f32.mrf.mxu0
    %v554 = vadd.f32 0.0, %v553
    %v555 = vpop.f32.mrf.mxu0
    %556 = vmatprep.mubr.f32.mxu0 0.0
    %557 = vmatmul.mubr.f32.gmra.mxu0 %v222
    %v558 = vpop.f32.mrf.mxu0
    %v559 = vadd.f32 0.0, %v558
    %v560 = vpop.f32.mrf.mxu0
    %561 = vmatprep.mubr.f32.mxu0 0.0
    %562 = vmatmul.mubr.f32.gmra.mxu0 %v225
    %v563 = vpop.f32.mrf.mxu0
    %v564 = vadd.f32 0.0, %v563
    %v565 = vpop.f32.mrf.mxu0
    %566 = vmatprep.mubr.f32.mxu0 0.0
    %567 = vmatmul.mubr.f32.gmra.mxu0 %v228
    %v568 = vpop.f32.mrf.mxu0
    %v569 = vadd.f32 0.0, %v568
    %v570 = vpop.f32.mrf.mxu0
    %571 = vmatprep.mubr.f32.mxu0 0.0
    %572 = vmatmul.mubr.f32.gmra.mxu0 %v231
    %v573 = vpop.f32.mrf.mxu0
    %v574 = vadd.f32 0.0, %v573
    %v575 = vpop.f32.mrf.mxu0
    %576 = vmatprep.mubr.f32.mxu0 0.0
    %577 = vmatmul.mubr.f32.gmra.mxu0 %v234
    %v578 = vpop.f32.mrf.mxu0
    %v579 = vadd.f32 0.0, %v578
    %v580 = vpop.f32.mrf.mxu0
    %581 = vmatprep.mubr.f32.mxu0 0.0
    %582 = vmatmul.mubr.f32.gmra.mxu0 %v237
    %v583 = vpop.f32.mrf.mxu0
    %v584 = vadd.f32 0.0, %v583
    %v585 = vpop.f32.mrf.mxu0
    %586 = vmatprep.mubr.f32.mxu0 0.0
    %587 = vmatmul.mubr.f32.gmra.mxu0 %v240
    %v588 = vpop.f32.mrf.mxu0
    %v589 = vadd.f32 0.0, %v588
    %v590 = vpop.f32.mrf.mxu0
    %591 = vmatprep.mubr.f32.mxu0 0.0
    %592 = vmatmul.mubr.f32.gmra.mxu0 %v243
    %v593 = vpop.f32.mrf.mxu0
    %v594 = vadd.f32 0.0, %v593
    %v595 = vpop.f32.mrf.mxu0
    %596 = vmatprep.mubr.f32.mxu0 0.0
    %597 = vmatmul.mubr.f32.gmra.mxu0 %v246
    %v598 = vpop.f32.mrf.mxu0
    %v599 = vadd.f32 0.0, %v598
    %v600 = vpop.f32.mrf.mxu0
    %601 = vmatprep.mubr.f32.mxu0 0.0
    %602 = vmatmul.mubr.f32.gmra.mxu0 %v249
    %v603 = vpop.f32.mrf.mxu0
    %v604 = vadd.f32 0.0, %v603
    %v605 = vpop.f32.mrf.mxu0
    %606 = vmatprep.mubr.f32.mxu0 0.0
    %607 = vmatmul.mubr.f32.gmra.mxu0 %v252
    %v608 = vpop.f32.mrf.mxu0
    %v609 = vadd.f32 0.0, %v608
    %v610 = vpop.f32.mrf.mxu0
    %611 = vmatprep.mubr.f32.mxu0 0.0
    %612 = vmatmul.mubr.f32.gmra.mxu0 %v255
    %v613 = vpop.f32.mrf.mxu0
    %v614 = vadd.f32 0.0, %v613
    %v615 = vpop.f32.mrf.mxu0
    %616 = vmatprep.mubr.f32.mxu0 0.0
    %617 = vmatmul.mubr.f32.gmra.mxu0 %v258
    %v618 = vpop.f32.mrf.mxu0
    %v619 = vadd.f32 0.0, %v618
    %v620 = vpop.f32.mrf.mxu0
    %621 = vmatprep.mubr.f32.mxu0 0.0
    %622 = vmatmul.mubr.f32.gmra.mxu0 %v261
    %v623 = vpop.f32.mrf.mxu0
    %v624 = vadd.f32 0.0, %v623
    %v625 = vpop.f32.mrf.mxu0
    %626 = vmatprep.mubr.f32.mxu0 0.0
    %627 = vmatmul.mubr.f32.gmra.mxu0 %v264
    %v628 = vpop.f32.mrf.mxu0
    %v629 = vadd.f32 0.0, %v628
    %v630 = vpop.f32.mrf.mxu0
    %631 = vmatprep.mubr.f32.mxu0 0.0
    %632 = vmatmul.mubr.f32.gmra.mxu0 %v267
    %v633 = vpop.f32.mrf.mxu0
    %v634 = vadd.f32 0.0, %v633
    %v635 = vpop.f32.mrf.mxu0
    %636 = vmatprep.mubr.f32.mxu0 0.0
    %637 = vmatmul.mubr.f32.gmra.mxu0 %v270
    %v638 = vpop.f32.mrf.mxu0
    %v639 = vadd.f32 0.0, %v638
    %v640 = vpop.f32.mrf.mxu0
    %641 = vmatprep.mubr.f32.mxu0 0.0
    %642 = vmatmul.mubr.f32.gmra.mxu0 %v273
    %v643 = vpop.f32.mrf.mxu0
    %v644 = vadd.f32 0.0, %v643
    %v645 = vpop.f32.mrf.mxu0
    %646 = vmatprep.mubr.f32.mxu0 0.0
    %647 = vmatmul.mubr.f32.gmra.mxu0 %v276
    %v648 = vpop.f32.mrf.mxu0
    %v649 = vadd.f32 0.0, %v648
    %v650 = vpop.f32.mrf.mxu0
    %651 = vmatprep.mubr.f32.mxu0 0.0
    %652 = vmatmul.mubr.f32.gmra.mxu0 %v279
    %v653 = vpop.f32.mrf.mxu0
    %v654 = vadd.f32 0.0, %v653
    %v655 = vpop.f32.mrf.mxu0
    %656 = vmatprep.mubr.f32.mxu0 0.0
    %657 = vmatmul.mubr.f32.gmra.mxu0 %v282
    %v658 = vpop.f32.mrf.mxu0
    %v659 = vadd.f32 0.0, %v658
    %v660 = vpop.f32.mrf.mxu0
    %661 = vmatprep.mubr.f32.mxu0 0.0
    %662 = vmatmul.mubr.f32.gmra.mxu0 %v285
    %v663 = vpop.f32.mrf.mxu0
    %v664 = vadd.f32 0.0, %v663
    %v665 = vpop.f32.mrf.mxu0
    %666 = vmatprep.mubr.f32.mxu0 0.0
    %667 = vmatmul.mubr.f32.gmra.mxu0 %v288
    %v668 = vpop.f32.mrf.mxu0
    %v669 = vadd.f32 0.0, %v668
    %v670 = vpop.f32.mrf.mxu0
    %671 = vmatprep.mubr.f32.mxu0 0.0
    %672 = vmatmul.mubr.f32.gmra.mxu0 %v291
    %v673 = vpop.f32.mrf.mxu0
    %v674 = vadd.f32 0.0, %v673
    %v675 = vpop.f32.mrf.mxu0
    %676 = vmatprep.mubr.f32.mxu0 0.0
    %677 = vmatmul.mubr.f32.gmra.mxu0 %v294
    %v678 = vpop.f32.mrf.mxu0
    %v679 = vadd.f32 0.0, %v678
    %v680 = vpop.f32.mrf.mxu0
    %681 = vmatprep.mubr.f32.mxu0 0.0
    %682 = vmatmul.mubr.f32.gmra.mxu0 %v297
    %v683 = vpop.f32.mrf.mxu0
    %v684 = vadd.f32 0.0, %v683
    %v685 = vpop.f32.mrf.mxu0
    %686 = vmatprep.mubr.f32.mxu0 0.0
    %687 = vmatmul.mubr.f32.gmra.mxu0 %v300
    %v688 = vpop.f32.mrf.mxu0
    %v689 = vpop.f32.mrf.mxu0
    %690 = vdwg.mxu0
    %691 = vmatprep.subr.mxu0 0.0
    %692 = vmatpush1.msra.mxu0 0.0
    %693 = vmatprep.subr.mxu0 0.0
    %694 = vmatpush1.msra.mxu0 0.0
    %695 = vmatprep.subr.mxu0 0.0
    %696 = vmatpush1.msra.mxu0 0.0
    %697 = vmatprep.subr.mxu0 0.0
    %698 = vmatpush1.msra.mxu0 0.0
    %699 = vmatprep.subr.mxu0 0.0
    %700 = vmatpush1.msra.mxu0 0.0
    %701 = vmatprep.subr.mxu0 0.0
    %702 = vmatpush1.msra.mxu0 0.0
    %703 = vmatprep.subr.mxu0 0.0
    %704 = vmatpush1.msra.mxu0 0.0
    %705 = vmatprep.subr.mxu0 0.0
    %706 = vmatpush1.msra.mxu0 0.0
    %707 = vmatprep.subr.mxu0 0.0
    %708 = vmatpush1.msra.mxu0 0.0
    %709 = vmatprep.subr.mxu0 0.0
    %710 = vmatpush1.msra.mxu0 0.0
    %711 = vmatprep.subr.mxu0 0.0
    %712 = vmatpush1.msra.mxu0 0.0
    %713 = vmatprep.subr.mxu0 0.0
    %714 = vmatpush1.msra.mxu0 0.0
    %715 = vmatprep.subr.mxu0 0.0
    %716 = vmatpush1.msra.mxu0 0.0
    %717 = vmatprep.subr.mxu0 0.0
    %718 = vmatpush1.msra.mxu0 0.0
    %719 = vmatprep.subr.mxu0 0.0
    %720 = vmatpush1.msra.mxu0 %v40
    %721 = vmatprep.subr.mxu0 0.0
    %722 = vmatpush1.msra.mxu0 %v39
    %723 = vmatprep.subr.mxu0 0.0
    %724 = vmatpush2.msra.mxu0 0.0
    %725 = vmatprep.subr.mxu0 0.0
    %726 = vmatpush2.msra.mxu0 0.0
    %727 = vmatprep.subr.mxu0 0.0
    %728 = vmatpush2.msra.mxu0 0.0
    %729 = vmatprep.subr.mxu0 0.0
    %730 = vmatpush2.msra.mxu0 0.0
    %731 = vmatprep.subr.mxu0 0.0
    %732 = vmatpush2.msra.mxu0 0.0
    %733 = vmatprep.subr.mxu0 0.0
    %734 = vmatpush2.msra.mxu0 0.0
    %735 = vmatprep.subr.mxu0 0.0
    %736 = vmatpush2.msra.mxu0 0.0
    %737 = vmatprep.subr.mxu0 0.0
    %738 = vmatpush2.msra.mxu0 0.0
    %739 = vmatprep.subr.mxu0 0.0
    %740 = vmatpush2.msra.mxu0 0.0
    %741 = vmatprep.subr.mxu0 0.0
    %742 = vmatpush2.msra.mxu0 0.0
    %743 = vmatprep.subr.mxu0 0.0
    %744 = vmatpush2.msra.mxu0 0.0
    %745 = vmatprep.subr.mxu0 0.0
    %746 = vmatpush2.msra.mxu0 0.0
    %747 = vmatprep.subr.mxu0 0.0
    %748 = vmatpush2.msra.mxu0 0.0
    %749 = vmatprep.subr.mxu0 0.0
    %750 = vmatpush2.msra.mxu0 0.0
    %751 = vmatprep.subr.mxu0 0.0
    %752 = vmatpush2.msra.mxu0 0.0
    %753 = vmatprep.subr.mxu0 0.0
    %754 = vmatpush2.msra.mxu0 0.0
    %755 = vmatprep.mubr.f32.mxu0 0.0
    %756 = vmatmul.mubr.f32.gmra.mxu0 %v108
    %v757 = vpop.f32.mrf.mxu0
    %v758 = vadd.f32 0.0, %v757
    %v759 = vpop.f32.mrf.mxu0
    %760 = vmatprep.mubr.f32.mxu0 0.0
    %761 = vmatmul.mubr.f32.gmra.mxu0 %v111
    %v762 = vpop.f32.mrf.mxu0
    %v763 = vadd.f32 0.0, %v762
    %v764 = vpop.f32.mrf.mxu0
    %765 = vmatprep.mubr.f32.mxu0 0.0
    %766 = vmatmul.mubr.f32.gmra.mxu0 %v114
    %v767 = vpop.f32.mrf.mxu0
    %v768 = vadd.f32 0.0, %v767
    %v769 = vpop.f32.mrf.mxu0
    %770 = vmatprep.mubr.f32.mxu0 0.0
    %771 = vmatmul.mubr.f32.gmra.mxu0 %v117
    %v772 = vpop.f32.mrf.mxu0
    %v773 = vadd.f32 0.0, %v772
    %v774 = vpop.f32.mrf.mxu0
    %775 = vmatprep.mubr.f32.mxu0 0.0
    %776 = vmatmul.mubr.f32.gmra.mxu0 %v120
    %v777 = vpop.f32.mrf.mxu0
    %v778 = vadd.f32 0.0, %v777
    %v779 = vpop.f32.mrf.mxu0
    %780 = vmatprep.mubr.f32.mxu0 0.0
    %781 = vmatmul.mubr.f32.gmra.mxu0 %v123
    %v782 = vpop.f32.mrf.mxu0
    %v783 = vadd.f32 0.0, %v782
    %v784 = vpop.f32.mrf.mxu0
    %785 = vmatprep.mubr.f32.mxu0 0.0
    %786 = vmatmul.mubr.f32.gmra.mxu0 %v126
    %v787 = vpop.f32.mrf.mxu0
    %v788 = vadd.f32 0.0, %v787
    %v789 = vpop.f32.mrf.mxu0
    %790 = vmatprep.mubr.f32.mxu0 0.0
    %791 = vmatmul.mubr.f32.gmra.mxu0 %v129
    %v792 = vpop.f32.mrf.mxu0
    %v793 = vadd.f32 0.0, %v792
    %v794 = vpop.f32.mrf.mxu0
    %795 = vmatprep.mubr.f32.mxu0 0.0
    %796 = vmatmul.mubr.f32.gmra.mxu0 %v132
    %v797 = vpop.f32.mrf.mxu0
    %v798 = vadd.f32 0.0, %v797
    %v799 = vpop.f32.mrf.mxu0
    %800 = vmatprep.mubr.f32.mxu0 0.0
    %801 = vmatmul.mubr.f32.gmra.mxu0 %v135
    %v802 = vpop.f32.mrf.mxu0
    %v803 = vadd.f32 0.0, %v802
    %v804 = vpop.f32.mrf.mxu0
    %805 = vmatprep.mubr.f32.mxu0 0.0
    %806 = vmatmul.mubr.f32.gmra.mxu0 %v138
    %v807 = vpop.f32.mrf.mxu0
    %v808 = vadd.f32 0.0, %v807
    %v809 = vpop.f32.mrf.mxu0
    %810 = vmatprep.mubr.f32.mxu0 0.0
    %811 = vmatmul.mubr.f32.gmra.mxu0 %v141
    %v812 = vpop.f32.mrf.mxu0
    %v813 = vadd.f32 0.0, %v812
    %v814 = vpop.f32.mrf.mxu0
    %815 = vmatprep.mubr.f32.mxu0 0.0
    %816 = vmatmul.mubr.f32.gmra.mxu0 %v144
    %v817 = vpop.f32.mrf.mxu0
    %v818 = vadd.f32 0.0, %v817
    %v819 = vpop.f32.mrf.mxu0
    %820 = vmatprep.mubr.f32.mxu0 0.0
    %821 = vmatmul.mubr.f32.gmra.mxu0 %v147
    %v822 = vpop.f32.mrf.mxu0
    %v823 = vadd.f32 0.0, %v822
    %v824 = vpop.f32.mrf.mxu0
    %825 = vmatprep.mubr.f32.mxu0 0.0
    %826 = vmatmul.mubr.f32.gmra.mxu0 %v150
    %v827 = vpop.f32.mrf.mxu0
    %v828 = vadd.f32 0.0, %v827
    %v829 = vpop.f32.mrf.mxu0
    %830 = vmatprep.mubr.f32.mxu0 0.0
    %831 = vmatmul.mubr.f32.gmra.mxu0 %v153
    %v832 = vpop.f32.mrf.mxu0
    %v833 = vadd.f32 0.0, %v832
    %v834 = vpop.f32.mrf.mxu0
    %835 = vmatprep.mubr.f32.mxu0 0.0
    %836 = vmatmul.mubr.f32.gmra.mxu0 %v156
    %v837 = vpop.f32.mrf.mxu0
    %v838 = vadd.f32 0.0, %v837
    %v839 = vpop.f32.mrf.mxu0
    %840 = vmatprep.mubr.f32.mxu0 0.0
    %841 = vmatmul.mubr.f32.gmra.mxu0 %v159
    %v842 = vpop.f32.mrf.mxu0
    %v843 = vadd.f32 0.0, %v842
    %v844 = vpop.f32.mrf.mxu0
    %845 = vmatprep.mubr.f32.mxu0 0.0
    %846 = vmatmul.mubr.f32.gmra.mxu0 %v162
    %v847 = vpop.f32.mrf.mxu0
    %v848 = vadd.f32 0.0, %v847
    %v849 = vpop.f32.mrf.mxu0
    %850 = vmatprep.mubr.f32.mxu0 0.0
    %851 = vmatmul.mubr.f32.gmra.mxu0 %v165
    %v852 = vpop.f32.mrf.mxu0
    %v853 = vadd.f32 0.0, %v852
    %v854 = vpop.f32.mrf.mxu0
    %855 = vmatprep.mubr.f32.mxu0 0.0
    %856 = vmatmul.mubr.f32.gmra.mxu0 %v168
    %v857 = vpop.f32.mrf.mxu0
    %v858 = vadd.f32 0.0, %v857
    %v859 = vpop.f32.mrf.mxu0
    %860 = vmatprep.mubr.f32.mxu0 0.0
    %861 = vmatmul.mubr.f32.gmra.mxu0 %v171
    %v862 = vpop.f32.mrf.mxu0
    %v863 = vadd.f32 0.0, %v862
    %v864 = vpop.f32.mrf.mxu0
    %865 = vmatprep.mubr.f32.mxu0 0.0
    %866 = vmatmul.mubr.f32.gmra.mxu0 %v174
    %v867 = vpop.f32.mrf.mxu0
    %v868 = vadd.f32 0.0, %v867
    %v869 = vpop.f32.mrf.mxu0
    %870 = vmatprep.mubr.f32.mxu0 0.0
    %871 = vmatmul.mubr.f32.gmra.mxu0 %v177
    %v872 = vpop.f32.mrf.mxu0
    %v873 = vadd.f32 0.0, %v872
    %v874 = vpop.f32.mrf.mxu0
    %875 = vmatprep.mubr.f32.mxu0 0.0
    %876 = vmatmul.mubr.f32.gmra.mxu0 %v180
    %v877 = vpop.f32.mrf.mxu0
    %v878 = vadd.f32 0.0, %v877
    %v879 = vpop.f32.mrf.mxu0
    %880 = vmatprep.mubr.f32.mxu0 0.0
    %881 = vmatmul.mubr.f32.gmra.mxu0 %v183
    %v882 = vpop.f32.mrf.mxu0
    %v883 = vadd.f32 0.0, %v882
    %v884 = vpop.f32.mrf.mxu0
    %885 = vmatprep.mubr.f32.mxu0 0.0
    %886 = vmatmul.mubr.f32.gmra.mxu0 %v186
    %v887 = vpop.f32.mrf.mxu0
    %v888 = vadd.f32 0.0, %v887
    %v889 = vpop.f32.mrf.mxu0
    %890 = vmatprep.mubr.f32.mxu0 0.0
    %891 = vmatmul.mubr.f32.gmra.mxu0 %v189
    %v892 = vpop.f32.mrf.mxu0
    %v893 = vadd.f32 0.0, %v892
    %v894 = vpop.f32.mrf.mxu0
    %895 = vmatprep.mubr.f32.mxu0 0.0
    %896 = vmatmul.mubr.f32.gmra.mxu0 %v192
    %v897 = vpop.f32.mrf.mxu0
    %v898 = vadd.f32 0.0, %v897
    %v899 = vpop.f32.mrf.mxu0
    %900 = vmatprep.mubr.f32.mxu0 0.0
    %901 = vmatmul.mubr.f32.gmra.mxu0 %v195
    %v902 = vpop.f32.mrf.mxu0
    %v903 = vadd.f32 0.0, %v902
    %v904 = vpop.f32.mrf.mxu0
    %905 = vmatprep.mubr.f32.mxu0 0.0
    %906 = vmatmul.mubr.f32.gmra.mxu0 %v198
    %v907 = vpop.f32.mrf.mxu0
    %v908 = vadd.f32 0.0, %v907
    %v909 = vpop.f32.mrf.mxu0
    %910 = vmatprep.mubr.f32.mxu0 0.0
    %911 = vmatmul.mubr.f32.gmra.mxu0 %v201
    %v912 = vpop.f32.mrf.mxu0
    %v913 = vadd.f32 0.0, %v912
    %v914 = vpop.f32.mrf.mxu0
    %915 = vmatprep.mubr.f32.mxu0 0.0
    %916 = vmatmul.mubr.f32.gmra.mxu0 %v204
    %v917 = vpop.f32.mrf.mxu0
    %v918 = vadd.f32 0.0, %v917
    %v919 = vpop.f32.mrf.mxu0
    %920 = vmatprep.mubr.f32.mxu0 0.0
    %921 = vmatmul.mubr.f32.gmra.mxu0 %v207
    %v922 = vpop.f32.mrf.mxu0
    %v923 = vadd.f32 0.0, %v922
    %v924 = vpop.f32.mrf.mxu0
    %925 = vmatprep.mubr.f32.mxu0 0.0
    %926 = vmatmul.mubr.f32.gmra.mxu0 %v210
    %v927 = vpop.f32.mrf.mxu0
    %v928 = vadd.f32 0.0, %v927
    %v929 = vpop.f32.mrf.mxu0
    %930 = vmatprep.mubr.f32.mxu0 0.0
    %931 = vmatmul.mubr.f32.gmra.mxu0 %v213
    %v932 = vpop.f32.mrf.mxu0
    %v933 = vadd.f32 0.0, %v932
    %v934 = vpop.f32.mrf.mxu0
    %935 = vmatprep.mubr.f32.mxu0 0.0
    %936 = vmatmul.mubr.f32.gmra.mxu0 %v216
    %v937 = vpop.f32.mrf.mxu0
    %v938 = vadd.f32 0.0, %v937
    %v939 = vpop.f32.mrf.mxu0
    %940 = vmatprep.mubr.f32.mxu0 0.0
    %941 = vmatmul.mubr.f32.gmra.mxu0 %v219
    %v942 = vpop.f32.mrf.mxu0
    %v943 = vadd.f32 0.0, %v942
    %v944 = vpop.f32.mrf.mxu0
    %945 = vmatprep.mubr.f32.mxu0 0.0
    %946 = vmatmul.mubr.f32.gmra.mxu0 %v222
    %v947 = vpop.f32.mrf.mxu0
    %v948 = vadd.f32 0.0, %v947
    %v949 = vpop.f32.mrf.mxu0
    %950 = vmatprep.mubr.f32.mxu0 0.0
    %951 = vmatmul.mubr.f32.gmra.mxu0 %v225
    %v952 = vpop.f32.mrf.mxu0
    %v953 = vadd.f32 0.0, %v952
    %v954 = vpop.f32.mrf.mxu0
    %955 = vmatprep.mubr.f32.mxu0 0.0
    %956 = vmatmul.mubr.f32.gmra.mxu0 %v228
    %v957 = vpop.f32.mrf.mxu0
    %v958 = vadd.f32 0.0, %v957
    %v959 = vpop.f32.mrf.mxu0
    %960 = vmatprep.mubr.f32.mxu0 0.0
    %961 = vmatmul.mubr.f32.gmra.mxu0 %v231
    %v962 = vpop.f32.mrf.mxu0
    %v963 = vadd.f32 0.0, %v962
    %v964 = vpop.f32.mrf.mxu0
    %965 = vmatprep.mubr.f32.mxu0 0.0
    %966 = vmatmul.mubr.f32.gmra.mxu0 %v234
    %v967 = vpop.f32.mrf.mxu0
    %v968 = vadd.f32 0.0, %v967
    %v969 = vpop.f32.mrf.mxu0
    %970 = vmatprep.mubr.f32.mxu0 0.0
    %971 = vmatmul.mubr.f32.gmra.mxu0 %v237
    %v972 = vpop.f32.mrf.mxu0
    %v973 = vadd.f32 0.0, %v972
    %v974 = vpop.f32.mrf.mxu0
    %975 = vmatprep.mubr.f32.mxu0 0.0
    %976 = vmatmul.mubr.f32.gmra.mxu0 %v240
    %v977 = vpop.f32.mrf.mxu0
    %v978 = vadd.f32 0.0, %v977
    %v979 = vpop.f32.mrf.mxu0
    %980 = vmatprep.mubr.f32.mxu0 0.0
    %981 = vmatmul.mubr.f32.gmra.mxu0 %v243
    %v982 = vpop.f32.mrf.mxu0
    %v983 = vadd.f32 0.0, %v982
    %v984 = vpop.f32.mrf.mxu0
    %985 = vmatprep.mubr.f32.mxu0 0.0
    %986 = vmatmul.mubr.f32.gmra.mxu0 %v246
    %v987 = vpop.f32.mrf.mxu0
    %v988 = vadd.f32 0.0, %v987
    %v989 = vpop.f32.mrf.mxu0
    %990 = vmatprep.mubr.f32.mxu0 0.0
    %991 = vmatmul.mubr.f32.gmra.mxu0 %v249
    %v992 = vpop.f32.mrf.mxu0
    %v993 = vadd.f32 0.0, %v992
    %v994 = vpop.f32.mrf.mxu0
    %995 = vmatprep.mubr.f32.mxu0 0.0
    %996 = vmatmul.mubr.f32.gmra.mxu0 %v252
    %v997 = vpop.f32.mrf.mxu0
    %v998 = vadd.f32 0.0, %v997
    %v999 = vpop.f32.mrf.mxu0
    %1000 = vmatprep.mubr.f32.mxu0 0.0
    %1001 = vmatmul.mubr.f32.gmra.mxu0 %v255
    %v1002 = vpop.f32.mrf.mxu0
    %v1003 = vadd.f32 0.0, %v1002
    %v1004 = vpop.f32.mrf.mxu0
    %1005 = vmatprep.mubr.f32.mxu0 0.0
    %1006 = vmatmul.mubr.f32.gmra.mxu0 %v258
    %v1007 = vpop.f32.mrf.mxu0
    %v1008 = vadd.f32 0.0, %v1007
    %v1009 = vpop.f32.mrf.mxu0
    %1010 = vmatprep.mubr.f32.mxu0 0.0
    %1011 = vmatmul.mubr.f32.gmra.mxu0 %v261
    %v1012 = vpop.f32.mrf.mxu0
    %v1013 = vadd.f32 0.0, %v1012
    %v1014 = vpop.f32.mrf.mxu0
    %1015 = vmatprep.mubr.f32.mxu0 0.0
    %1016 = vmatmul.mubr.f32.gmra.mxu0 %v264
    %v1017 = vpop.f32.mrf.mxu0
    %v1018 = vadd.f32 0.0, %v1017
    %v1019 = vpop.f32.mrf.mxu0
    %1020 = vmatprep.mubr.f32.mxu0 0.0
    %1021 = vmatmul.mubr.f32.gmra.mxu0 %v267
    %v1022 = vpop.f32.mrf.mxu0
    %v1023 = vadd.f32 0.0, %v1022
    %v1024 = vpop.f32.mrf.mxu0
    %1025 = vmatprep.mubr.f32.mxu0 0.0
    %1026 = vmatmul.mubr.f32.gmra.mxu0 %v270
    %v1027 = vpop.f32.mrf.mxu0
    %v1028 = vadd.f32 0.0, %v1027
    %v1029 = vpop.f32.mrf.mxu0
    %1030 = vmatprep.mubr.f32.mxu0 0.0
    %1031 = vmatmul.mubr.f32.gmra.mxu0 %v273
    %v1032 = vpop.f32.mrf.mxu0
    %v1033 = vadd.f32 0.0, %v1032
    %v1034 = vpop.f32.mrf.mxu0
    %1035 = vmatprep.mubr.f32.mxu0 0.0
    %1036 = vmatmul.mubr.f32.gmra.mxu0 %v276
    %v1037 = vpop.f32.mrf.mxu0
    %v1038 = vadd.f32 0.0, %v1037
    %v1039 = vpop.f32.mrf.mxu0
    %1040 = vmatprep.mubr.f32.mxu0 0.0
    %1041 = vmatmul.mubr.f32.gmra.mxu0 %v279
    %v1042 = vpop.f32.mrf.mxu0
    %v1043 = vadd.f32 0.0, %v1042
    %v1044 = vpop.f32.mrf.mxu0
    %1045 = vmatprep.mubr.f32.mxu0 0.0
    %1046 = vmatmul.mubr.f32.gmra.mxu0 %v282
    %v1047 = vpop.f32.mrf.mxu0
    %v1048 = vadd.f32 0.0, %v1047
    %v1049 = vpop.f32.mrf.mxu0
    %1050 = vmatprep.mubr.f32.mxu0 0.0
    %1051 = vmatmul.mubr.f32.gmra.mxu0 %v285
    %v1052 = vpop.f32.mrf.mxu0
    %v1053 = vadd.f32 0.0, %v1052
    %v1054 = vpop.f32.mrf.mxu0
    %1055 = vmatprep.mubr.f32.mxu0 0.0
    %1056 = vmatmul.mubr.f32.gmra.mxu0 %v288
    %v1057 = vpop.f32.mrf.mxu0
    %v1058 = vadd.f32 0.0, %v1057
    %v1059 = vpop.f32.mrf.mxu0
    %1060 = vmatprep.mubr.f32.mxu0 0.0
    %1061 = vmatmul.mubr.f32.gmra.mxu0 %v291
    %v1062 = vpop.f32.mrf.mxu0
    %v1063 = vadd.f32 0.0, %v1062
    %v1064 = vpop.f32.mrf.mxu0
    %1065 = vmatprep.mubr.f32.mxu0 0.0
    %1066 = vmatmul.mubr.f32.gmra.mxu0 %v294
    %v1067 = vpop.f32.mrf.mxu0
    %v1068 = vadd.f32 0.0, %v1067
    %v1069 = vpop.f32.mrf.mxu0
    %1070 = vmatprep.mubr.f32.mxu0 0.0
    %1071 = vmatmul.mubr.f32.gmra.mxu0 %v297
    %v1072 = vpop.f32.mrf.mxu0
    %v1073 = vadd.f32 0.0, %v1072
    %v1074 = vpop.f32.mrf.mxu0
    %1075 = vmatprep.mubr.f32.mxu0 0.0
    %1076 = vmatmul.mubr.f32.gmra.mxu0 %v300
    %v1077 = vpop.f32.mrf.mxu0
    %v1078 = vadd.f32 0.0, %v1077
    %v1079 = vpop.f32.mrf.mxu0
    %1080 = vdwg.mxu0
    %vm1146 = vcmask 1046528
    %v1147 = vrot.slane %v758, 1
    %v1148 = vrot.slane %v763, 1
    %v1149 = vsel %vm1146, %v1147, %v1148
    %v1150 = vrot.slane %v768, 1
    %v1151 = vsel %vm1146, %v1148, %v1150
    %v1152 = vrot.slane %v773, 1
    %v1153 = vsel %vm1146, %v1150, %v1152
    %v1154 = vrot.slane %v778, 1
    %v1155 = vsel %vm1146, %v1152, %v1154
    %v1156 = vrot.slane %v783, 1
    %v1157 = vsel %vm1146, %v1154, %v1156
    %v1158 = vrot.slane %v788, 1
    %v1159 = vsel %vm1146, %v1156, %v1158
    %v1160 = vrot.slane %v793, 1
    %v1161 = vsel %vm1146, %v1158, %v1160
    %v1162 = vrot.slane %v798, 1
    %v1163 = vsel %vm1146, %v1160, %v1162
    %v1164 = vrot.slane %v803, 1
    %v1165 = vsel %vm1146, %v1162, %v1164
    %v1166 = vrot.slane %v808, 1
    %v1167 = vsel %vm1146, %v1164, %v1166
    %v1168 = vrot.slane %v813, 1
    %v1169 = vsel %vm1146, %v1166, %v1168
    %v1170 = vrot.slane %v818, 1
    %v1171 = vsel %vm1146, %v1168, %v1170
    %v1172 = vrot.slane %v823, 1
    %v1173 = vsel %vm1146, %v1170, %v1172
    %v1174 = vrot.slane %v828, 1
    %v1175 = vsel %vm1146, %v1172, %v1174
    %v1176 = vrot.slane %v833, 1
    %v1177 = vsel %vm1146, %v1174, %v1176
    %v1178 = vrot.slane %v838, 1
    %v1179 = vsel %vm1146, %v1176, %v1178
    %v1180 = vrot.slane %v843, 1
    %v1181 = vsel %vm1146, %v1178, %v1180
    %v1182 = vrot.slane %v848, 1
    %v1183 = vsel %vm1146, %v1180, %v1182
    %v1184 = vrot.slane %v853, 1
    %v1185 = vsel %vm1146, %v1182, %v1184
    %v1186 = vrot.slane %v858, 1
    %v1187 = vsel %vm1146, %v1184, %v1186
    %v1188 = vrot.slane %v863, 1
    %v1189 = vsel %vm1146, %v1186, %v1188
    %v1190 = vrot.slane %v868, 1
    %v1191 = vsel %vm1146, %v1188, %v1190
    %v1192 = vrot.slane %v873, 1
    %v1193 = vsel %vm1146, %v1190, %v1192
    %v1194 = vrot.slane %v878, 1
    %v1195 = vsel %vm1146, %v1192, %v1194
    %v1196 = vrot.slane %v883, 1
    %v1197 = vsel %vm1146, %v1194, %v1196
    %v1198 = vrot.slane %v888, 1
    %v1199 = vsel %vm1146, %v1196, %v1198
    %v1200 = vrot.slane %v893, 1
    %v1201 = vsel %vm1146, %v1198, %v1200
    %v1202 = vrot.slane %v898, 1
    %v1203 = vsel %vm1146, %v1200, %v1202
    %v1204 = vrot.slane %v903, 1
    %v1205 = vsel %vm1146, %v1202, %v1204
    %v1206 = vrot.slane %v908, 1
    %v1207 = vsel %vm1146, %v1204, %v1206
    %v1208 = vrot.slane %v913, 1
    %v1209 = vsel %vm1146, %v1206, %v1208
    %v1210 = vrot.slane %v918, 1
    %v1211 = vsel %vm1146, %v1208, %v1210
    %v1212 = vrot.slane %v923, 1
    %v1213 = vsel %vm1146, %v1210, %v1212
    %v1214 = vrot.slane %v928, 1
    %v1215 = vsel %vm1146, %v1212, %v1214
    %v1216 = vrot.slane %v933, 1
    %v1217 = vsel %vm1146, %v1214, %v1216
    %v1218 = vrot.slane %v938, 1
    %v1219 = vsel %vm1146, %v1216, %v1218
    %v1220 = vrot.slane %v943, 1
    %v1221 = vsel %vm1146, %v1218, %v1220
    %v1222 = vrot.slane %v948, 1
    %v1223 = vsel %vm1146, %v1220, %v1222
    %v1224 = vrot.slane %v953, 1
    %v1225 = vsel %vm1146, %v1222, %v1224
    %v1226 = vrot.slane %v958, 1
    %v1227 = vsel %vm1146, %v1224, %v1226
    %v1228 = vrot.slane %v963, 1
    %v1229 = vsel %vm1146, %v1226, %v1228
    %v1230 = vrot.slane %v968, 1
    %v1231 = vsel %vm1146, %v1228, %v1230
    %v1232 = vrot.slane %v973, 1
    %v1233 = vsel %vm1146, %v1230, %v1232
    %v1234 = vrot.slane %v978, 1
    %v1235 = vsel %vm1146, %v1232, %v1234
    %v1236 = vrot.slane %v983, 1
    %v1237 = vsel %vm1146, %v1234, %v1236
    %v1238 = vrot.slane %v988, 1
    %v1239 = vsel %vm1146, %v1236, %v1238
    %v1240 = vrot.slane %v993, 1
    %v1241 = vsel %vm1146, %v1238, %v1240
    %v1242 = vrot.slane %v998, 1
    %v1243 = vsel %vm1146, %v1240, %v1242
    %v1244 = vrot.slane %v1003, 1
    %v1245 = vsel %vm1146, %v1242, %v1244
    %v1246 = vrot.slane %v1008, 1
    %v1247 = vsel %vm1146, %v1244, %v1246
    %v1248 = vrot.slane %v1013, 1
    %v1249 = vsel %vm1146, %v1246, %v1248
    %v1250 = vrot.slane %v1018, 1
    %v1251 = vsel %vm1146, %v1248, %v1250
    %v1252 = vrot.slane %v1023, 1
    %v1253 = vsel %vm1146, %v1250, %v1252
    %v1254 = vrot.slane %v1028, 1
    %v1255 = vsel %vm1146, %v1252, %v1254
    %v1256 = vrot.slane %v1033, 1
    %v1257 = vsel %vm1146, %v1254, %v1256
    %v1258 = vrot.slane %v1038, 1
    %v1259 = vsel %vm1146, %v1256, %v1258
    %v1260 = vrot.slane %v1043, 1
    %v1261 = vsel %vm1146, %v1258, %v1260
    %v1262 = vrot.slane %v1048, 1
    %v1263 = vsel %vm1146, %v1260, %v1262
    %v1264 = vrot.slane %v1053, 1
    %v1265 = vsel %vm1146, %v1262, %v1264
    %v1266 = vrot.slane %v1058, 1
    %v1267 = vsel %vm1146, %v1264, %v1266
    %v1268 = vrot.slane %v1063, 1
    %v1269 = vsel %vm1146, %v1266, %v1268
    %v1270 = vrot.slane %v1068, 1
    %v1271 = vsel %vm1146, %v1268, %v1270
    %v1272 = vrot.slane %v1073, 1
    %v1273 = vsel %vm1146, %v1270, %v1272
    %v1274 = vrot.slane %v1078, 1
    %v1275 = vsel %vm1146, %v1272, %v1274
    %v1340 = vadd.f32 %v369, %v1149
    %v1341 = vadd.f32 %v374, %v1151
    %v1342 = vadd.f32 %v379, %v1153
    %v1343 = vadd.f32 %v384, %v1155
    %v1344 = vadd.f32 %v389, %v1157
    %v1345 = vadd.f32 %v394, %v1159
    %v1346 = vadd.f32 %v399, %v1161
    %v1347 = vadd.f32 %v404, %v1163
    %v1348 = vadd.f32 %v409, %v1165
    %v1349 = vadd.f32 %v414, %v1167
    %v1350 = vadd.f32 %v419, %v1169
    %v1351 = vadd.f32 %v424, %v1171
    %v1352 = vadd.f32 %v429, %v1173
    %v1353 = vadd.f32 %v434, %v1175
    %v1354 = vadd.f32 %v439, %v1177
    %v1355 = vadd.f32 %v444, %v1179
    %v1356 = vadd.f32 %v449, %v1181
    %v1357 = vadd.f32 %v454, %v1183
    %v1358 = vadd.f32 %v459, %v1185
    %v1359 = vadd.f32 %v464, %v1187
    %v1360 = vadd.f32 %v469, %v1189
    %v1361 = vadd.f32 %v474, %v1191
    %v1362 = vadd.f32 %v479, %v1193
    %v1363 = vadd.f32 %v484, %v1195
    %v1364 = vadd.f32 %v489, %v1197
    %v1365 = vadd.f32 %v494, %v1199
    %v1366 = vadd.f32 %v499, %v1201
    %v1367 = vadd.f32 %v504, %v1203
    %v1368 = vadd.f32 %v509, %v1205
    %v1369 = vadd.f32 %v514, %v1207
    %v1370 = vadd.f32 %v519, %v1209
    %v1371 = vadd.f32 %v524, %v1211
    %v1372 = vadd.f32 %v529, %v1213
    %v1373 = vadd.f32 %v534, %v1215
    %v1374 = vadd.f32 %v539, %v1217
    %v1375 = vadd.f32 %v544, %v1219
    %v1376 = vadd.f32 %v549, %v1221
    %v1377 = vadd.f32 %v554, %v1223
    %v1378 = vadd.f32 %v559, %v1225
    %v1379 = vadd.f32 %v564, %v1227
    %v1380 = vadd.f32 %v569, %v1229
    %v1381 = vadd.f32 %v574, %v1231
    %v1382 = vadd.f32 %v579, %v1233
    %v1383 = vadd.f32 %v584, %v1235
    %v1384 = vadd.f32 %v589, %v1237
    %v1385 = vadd.f32 %v594, %v1239
    %v1386 = vadd.f32 %v599, %v1241
    %v1387 = vadd.f32 %v604, %v1243
    %v1388 = vadd.f32 %v609, %v1245
    %v1389 = vadd.f32 %v614, %v1247
    %v1390 = vadd.f32 %v619, %v1249
    %v1391 = vadd.f32 %v624, %v1251
    %v1392 = vadd.f32 %v629, %v1253
    %v1393 = vadd.f32 %v634, %v1255
    %v1394 = vadd.f32 %v639, %v1257
    %v1395 = vadd.f32 %v644, %v1259
    %v1396 = vadd.f32 %v649, %v1261
    %v1397 = vadd.f32 %v654, %v1263
    %v1398 = vadd.f32 %v659, %v1265
    %v1399 = vadd.f32 %v664, %v1267
    %v1400 = vadd.f32 %v669, %v1269
    %v1401 = vadd.f32 %v674, %v1271
    %v1402 = vadd.f32 %v679, %v1273
    %v1403 = vadd.f32 %v684, %v1275
    %vm1404 = vcmask 523264
    %1405 = vst.msk [vmem:[#allocation2] sm:$0xff] %vm1404, %v1340
    %1406 = vst.msk [vmem:[#allocation2 + $0x8] sm:$0xff] %vm1404, %v1341
    %1407 = vst.msk [vmem:[#allocation2 + $0x10] sm:$0xff] %vm1404, %v1342
    %1408 = vst.msk [vmem:[#allocation2 + $0x18] sm:$0xff] %vm1404, %v1343
    %1409 = vst.msk [vmem:[#allocation2 + $0x20] sm:$0xff] %vm1404, %v1344
    %1410 = vst.msk [vmem:[#allocation2 + $0x28] sm:$0xff] %vm1404, %v1345
    %1411 = vst.msk [vmem:[#allocation2 + $0x30] sm:$0xff] %vm1404, %v1346
    %1412 = vst.msk [vmem:[#allocation2 + $0x38] sm:$0xff] %vm1404, %v1347
    %1413 = vst.msk [vmem:[#allocation2 + $0x40] sm:$0xff] %vm1404, %v1348
    %1414 = vst.msk [vmem:[#allocation2 + $0x48] sm:$0xff] %vm1404, %v1349
    %1415 = vst.msk [vmem:[#allocation2 + $0x50] sm:$0xff] %vm1404, %v1350
    %1416 = vst.msk [vmem:[#allocation2 + $0x58] sm:$0xff] %vm1404, %v1351
    %1417 = vst.msk [vmem:[#allocation2 + $0x60] sm:$0xff] %vm1404, %v1352
    %1418 = vst.msk [vmem:[#allocation2 + $0x68] sm:$0xff] %vm1404, %v1353
    %1419 = vst.msk [vmem:[#allocation2 + $0x70] sm:$0xff] %vm1404, %v1354
    %1420 = vst.msk [vmem:[#allocation2 + $0x78] sm:$0xff] %vm1404, %v1355
    %1421 = vst.msk [vmem:[#allocation2 + $0x80] sm:$0xff] %vm1404, %v1356
    %1422 = vst.msk [vmem:[#allocation2 + $0x88] sm:$0xff] %vm1404, %v1357
    %1423 = vst.msk [vmem:[#allocation2 + $0x90] sm:$0xff] %vm1404, %v1358
    %1424 = vst.msk [vmem:[#allocation2 + $0x98] sm:$0xff] %vm1404, %v1359
    %1425 = vst.msk [vmem:[#allocation2 + $0xa0] sm:$0xff] %vm1404, %v1360
    %1426 = vst.msk [vmem:[#allocation2 + $0xa8] sm:$0xff] %vm1404, %v1361
    %1427 = vst.msk [vmem:[#allocation2 + $0xb0] sm:$0xff] %vm1404, %v1362
    %1428 = vst.msk [vmem:[#allocation2 + $0xb8] sm:$0xff] %vm1404, %v1363
    %1429 = vst.msk [vmem:[#allocation2 + $0xc0] sm:$0xff] %vm1404, %v1364
    %1430 = vst.msk [vmem:[#allocation2 + $0xc8] sm:$0xff] %vm1404, %v1365
    %1431 = vst.msk [vmem:[#allocation2 + $0xd0] sm:$0xff] %vm1404, %v1366
    %1432 = vst.msk [vmem:[#allocation2 + $0xd8] sm:$0xff] %vm1404, %v1367
    %1433 = vst.msk [vmem:[#allocation2 + $0xe0] sm:$0xff] %vm1404, %v1368
    %1434 = vst.msk [vmem:[#allocation2 + $0xe8] sm:$0xff] %vm1404, %v1369
    %1435 = vst.msk [vmem:[#allocation2 + $0xf0] sm:$0xff] %vm1404, %v1370
    %1436 = vst.msk [vmem:[#allocation2 + $0xf8] sm:$0xff] %vm1404, %v1371
    %1437 = vst.msk [vmem:[#allocation2 + $0x100] sm:$0xff] %vm1404, %v1372
    %1438 = vst.msk [vmem:[#allocation2 + $0x108] sm:$0xff] %vm1404, %v1373
    %1439 = vst.msk [vmem:[#allocation2 + $0x110] sm:$0xff] %vm1404, %v1374
    %1440 = vst.msk [vmem:[#allocation2 + $0x118] sm:$0xff] %vm1404, %v1375
    %1441 = vst.msk [vmem:[#allocation2 + $0x120] sm:$0xff] %vm1404, %v1376
    %1442 = vst.msk [vmem:[#allocation2 + $0x128] sm:$0xff] %vm1404, %v1377
    %1443 = vst.msk [vmem:[#allocation2 + $0x130] sm:$0xff] %vm1404, %v1378
    %1444 = vst.msk [vmem:[#allocation2 + $0x138] sm:$0xff] %vm1404, %v1379
    %1445 = vst.msk [vmem:[#allocation2 + $0x140] sm:$0xff] %vm1404, %v1380
    %1446 = vst.msk [vmem:[#allocation2 + $0x148] sm:$0xff] %vm1404, %v1381
    %1447 = vst.msk [vmem:[#allocation2 + $0x150] sm:$0xff] %vm1404, %v1382
    %1448 = vst.msk [vmem:[#allocation2 + $0x158] sm:$0xff] %vm1404, %v1383
    %1449 = vst.msk [vmem:[#allocation2 + $0x160] sm:$0xff] %vm1404, %v1384
    %1450 = vst.msk [vmem:[#allocation2 + $0x168] sm:$0xff] %vm1404, %v1385
    %1451 = vst.msk [vmem:[#allocation2 + $0x170] sm:$0xff] %vm1404, %v1386
    %1452 = vst.msk [vmem:[#allocation2 + $0x178] sm:$0xff] %vm1404, %v1387
    %1453 = vst.msk [vmem:[#allocation2 + $0x180] sm:$0xff] %vm1404, %v1388
    %1454 = vst.msk [vmem:[#allocation2 + $0x188] sm:$0xff] %vm1404, %v1389
    %1455 = vst.msk [vmem:[#allocation2 + $0x190] sm:$0xff] %vm1404, %v1390
    %1456 = vst.msk [vmem:[#allocation2 + $0x198] sm:$0xff] %vm1404, %v1391
    %1457 = vst.msk [vmem:[#allocation2 + $0x1a0] sm:$0xff] %vm1404, %v1392
    %1458 = vst.msk [vmem:[#allocation2 + $0x1a8] sm:$0xff] %vm1404, %v1393
    %1459 = vst.msk [vmem:[#allocation2 + $0x1b0] sm:$0xff] %vm1404, %v1394
    %1460 = vst.msk [vmem:[#allocation2 + $0x1b8] sm:$0xff] %vm1404, %v1395
    %1461 = vst.msk [vmem:[#allocation2 + $0x1c0] sm:$0xff] %vm1404, %v1396
    %1462 = vst.msk [vmem:[#allocation2 + $0x1c8] sm:$0xff] %vm1404, %v1397
    %1463 = vst.msk [vmem:[#allocation2 + $0x1d0] sm:$0xff] %vm1404, %v1398
    %1464 = vst.msk [vmem:[#allocation2 + $0x1d8] sm:$0xff] %vm1404, %v1399
    %1465 = vst.msk [vmem:[#allocation2 + $0x1e0] sm:$0xff] %vm1404, %v1400
    %1466 = vst.msk [vmem:[#allocation2 + $0x1e8] sm:$0xff] %vm1404, %v1401
    %1467 = vst.msk [vmem:[#allocation2 + $0x1f0] sm:$0xff] %vm1404, %v1402
    %1468 = vst.msk [vmem:[#allocation2 + $0x1f8] sm:$0xff] %vm1404, %v1403
    %v1469 = vsel %vm1404, %v1340, 0.0
    %v1470 = vsel %vm1404, %v1341, 0.0
    %v1471 = vadd.f32 %v1469, %v1470
    %v1472 = vsel %vm1404, %v1342, 0.0
    %v1473 = vadd.f32 %v1471, %v1472
    %v1474 = vsel %vm1404, %v1343, 0.0
    %v1475 = vadd.f32 %v1473, %v1474
    %v1476 = vsel %vm1404, %v1344, 0.0
    %v1477 = vadd.f32 %v1475, %v1476
    %v1478 = vsel %vm1404, %v1345, 0.0
    %v1479 = vadd.f32 %v1477, %v1478
    %v1480 = vsel %vm1404, %v1346, 0.0
    %v1481 = vadd.f32 %v1479, %v1480
    %v1482 = vsel %vm1404, %v1347, 0.0
    %v1483 = vadd.f32 %v1481, %v1482
    %v1484 = vsel %vm1404, %v1348, 0.0
    %v1485 = vadd.f32 %v1483, %v1484
    %v1486 = vsel %vm1404, %v1349, 0.0
    %v1487 = vadd.f32 %v1485, %v1486
    %v1488 = vsel %vm1404, %v1350, 0.0
    %v1489 = vadd.f32 %v1487, %v1488
    %v1490 = vsel %vm1404, %v1351, 0.0
    %v1491 = vadd.f32 %v1489, %v1490
    %v1492 = vsel %vm1404, %v1352, 0.0
    %v1493 = vadd.f32 %v1491, %v1492
    %v1494 = vsel %vm1404, %v1353, 0.0
    %v1495 = vadd.f32 %v1493, %v1494
    %v1496 = vsel %vm1404, %v1354, 0.0
    %v1497 = vadd.f32 %v1495, %v1496
    %v1498 = vsel %vm1404, %v1355, 0.0
    %v1499 = vadd.f32 %v1497, %v1498
    %v1500 = vsel %vm1404, %v1356, 0.0
    %v1501 = vadd.f32 %v1499, %v1500
    %v1502 = vsel %vm1404, %v1357, 0.0
    %v1503 = vadd.f32 %v1501, %v1502
    %v1504 = vsel %vm1404, %v1358, 0.0
    %v1505 = vadd.f32 %v1503, %v1504
    %v1506 = vsel %vm1404, %v1359, 0.0
    %v1507 = vadd.f32 %v1505, %v1506
    %v1508 = vsel %vm1404, %v1360, 0.0
    %v1509 = vadd.f32 %v1507, %v1508
    %v1510 = vsel %vm1404, %v1361, 0.0
    %v1511 = vadd.f32 %v1509, %v1510
    %v1512 = vsel %vm1404, %v1362, 0.0
    %v1513 = vadd.f32 %v1511, %v1512
    %v1514 = vsel %vm1404, %v1363, 0.0
    %v1515 = vadd.f32 %v1513, %v1514
    %v1516 = vsel %vm1404, %v1364, 0.0
    %v1517 = vadd.f32 %v1515, %v1516
    %v1518 = vsel %vm1404, %v1365, 0.0
    %v1519 = vadd.f32 %v1517, %v1518
    %v1520 = vsel %vm1404, %v1366, 0.0
    %v1521 = vadd.f32 %v1519, %v1520
    %v1522 = vsel %vm1404, %v1367, 0.0
    %v1523 = vadd.f32 %v1521, %v1522
    %v1524 = vsel %vm1404, %v1368, 0.0
    %v1525 = vadd.f32 %v1523, %v1524
    %v1526 = vsel %vm1404, %v1369, 0.0
    %v1527 = vadd.f32 %v1525, %v1526
    %v1528 = vsel %vm1404, %v1370, 0.0
    %v1529 = vadd.f32 %v1527, %v1528
    %v1530 = vsel %vm1404, %v1371, 0.0
    %v1531 = vadd.f32 %v1529, %v1530
    %v1532 = vsel %vm1404, %v1372, 0.0
    %v1533 = vadd.f32 %v1531, %v1532
    %v1534 = vsel %vm1404, %v1373, 0.0
    %v1535 = vadd.f32 %v1533, %v1534
    %v1536 = vsel %vm1404, %v1374, 0.0
    %v1537 = vadd.f32 %v1535, %v1536
    %v1538 = vsel %vm1404, %v1375, 0.0
    %v1539 = vadd.f32 %v1537, %v1538
    %v1540 = vsel %vm1404, %v1376, 0.0
    %v1541 = vadd.f32 %v1539, %v1540
    %v1542 = vsel %vm1404, %v1377, 0.0
    %v1543 = vadd.f32 %v1541, %v1542
    %v1544 = vsel %vm1404, %v1378, 0.0
    %v1545 = vadd.f32 %v1543, %v1544
    %v1546 = vsel %vm1404, %v1379, 0.0
    %v1547 = vadd.f32 %v1545, %v1546
    %v1548 = vsel %vm1404, %v1380, 0.0
    %v1549 = vadd.f32 %v1547, %v1548
    %v1550 = vsel %vm1404, %v1381, 0.0
    %v1551 = vadd.f32 %v1549, %v1550
    %v1552 = vsel %vm1404, %v1382, 0.0
    %v1553 = vadd.f32 %v1551, %v1552
    %v1554 = vsel %vm1404, %v1383, 0.0
    %v1555 = vadd.f32 %v1553, %v1554
    %v1556 = vsel %vm1404, %v1384, 0.0
    %v1557 = vadd.f32 %v1555, %v1556
    %v1558 = vsel %vm1404, %v1385, 0.0
    %v1559 = vadd.f32 %v1557, %v1558
    %v1560 = vsel %vm1404, %v1386, 0.0
    %v1561 = vadd.f32 %v1559, %v1560
    %v1562 = vsel %vm1404, %v1387, 0.0
    %v1563 = vadd.f32 %v1561, %v1562
    %v1564 = vsel %vm1404, %v1388, 0.0
    %v1565 = vadd.f32 %v1563, %v1564
    %v1566 = vsel %vm1404, %v1389, 0.0
    %v1567 = vadd.f32 %v1565, %v1566
    %v1568 = vsel %vm1404, %v1390, 0.0
    %v1569 = vadd.f32 %v1567, %v1568
    %v1570 = vsel %vm1404, %v1391, 0.0
    %v1571 = vadd.f32 %v1569, %v1570
    %v1572 = vsel %vm1404, %v1392, 0.0
    %v1573 = vadd.f32 %v1571, %v1572
    %v1574 = vsel %vm1404, %v1393, 0.0
    %v1575 = vadd.f32 %v1573, %v1574
    %v1576 = vsel %vm1404, %v1394, 0.0
    %v1577 = vadd.f32 %v1575, %v1576
    %v1578 = vsel %vm1404, %v1395, 0.0
    %v1579 = vadd.f32 %v1577, %v1578
    %v1580 = vsel %vm1404, %v1396, 0.0
    %v1581 = vadd.f32 %v1579, %v1580
    %v1582 = vsel %vm1404, %v1397, 0.0
    %v1583 = vadd.f32 %v1581, %v1582
    %v1584 = vsel %vm1404, %v1398, 0.0
    %v1585 = vadd.f32 %v1583, %v1584
    %v1586 = vsel %vm1404, %v1399, 0.0
    %v1587 = vadd.f32 %v1585, %v1586
    %v1588 = vsel %vm1404, %v1400, 0.0
    %v1589 = vadd.f32 %v1587, %v1588
    %v1590 = vsel %vm1404, %v1401, 0.0
    %v1591 = vadd.f32 %v1589, %v1590
    %v1592 = vsel %vm1404, %v1402, 0.0
    %v1593 = vadd.f32 %v1591, %v1592
    %v1594 = vsel %vm1404, %v1403, 0.0
    %v1595 = vadd.f32 %v1593, %v1594
    %v1596 = vrot.slane %v1595, 4
    %v1597 = vadd.f32 %v1595, %v1596
    %v1598 = vrot.slane %v1597, 2
    %v1599 = vadd.f32 %v1597, %v1598
    %v1600 = vrot.slane %v1599, 1
    %v1601 = vadd.f32 %v1599, %v1600
    %v1602 = vadd.f32 %v1601, 0.0
    %v1603 = vmul.f32 %v1340, %v1340
    %v1604 = vmul.f32 %v1341, %v1341
    %v1605 = vmul.f32 %v1342, %v1342
    %v1606 = vmul.f32 %v1343, %v1343
    %v1607 = vmul.f32 %v1344, %v1344
    %v1608 = vmul.f32 %v1345, %v1345
    %v1609 = vmul.f32 %v1346, %v1346
    %v1610 = vmul.f32 %v1347, %v1347
    %v1611 = vmul.f32 %v1348, %v1348
    %v1612 = vmul.f32 %v1349, %v1349
    %v1613 = vmul.f32 %v1350, %v1350
    %v1614 = vmul.f32 %v1351, %v1351
    %v1615 = vmul.f32 %v1352, %v1352
    %v1616 = vmul.f32 %v1353, %v1353
    %v1617 = vmul.f32 %v1354, %v1354
    %v1618 = vmul.f32 %v1355, %v1355
    %v1619 = vmul.f32 %v1356, %v1356
    %v1620 = vmul.f32 %v1357, %v1357
    %v1621 = vmul.f32 %v1358, %v1358
    %v1622 = vmul.f32 %v1359, %v1359
    %v1623 = vmul.f32 %v1360, %v1360
    %v1624 = vmul.f32 %v1361, %v1361
    %v1625 = vmul.f32 %v1362, %v1362
    %v1626 = vmul.f32 %v1363, %v1363
    %v1627 = vmul.f32 %v1364, %v1364
    %v1628 = vmul.f32 %v1365, %v1365
    %v1629 = vmul.f32 %v1366, %v1366
    %v1630 = vmul.f32 %v1367, %v1367
    %v1631 = vmul.f32 %v1368, %v1368
    %v1632 = vmul.f32 %v1369, %v1369
    %v1633 = vmul.f32 %v1370, %v1370
    %v1634 = vmul.f32 %v1371, %v1371
    %v1635 = vmul.f32 %v1372, %v1372
    %v1636 = vmul.f32 %v1373, %v1373
    %v1637 = vmul.f32 %v1374, %v1374
    %v1638 = vmul.f32 %v1375, %v1375
    %v1639 = vmul.f32 %v1376, %v1376
    %v1640 = vmul.f32 %v1377, %v1377
    %v1641 = vmul.f32 %v1378, %v1378
    %v1642 = vmul.f32 %v1379, %v1379
    %v1643 = vmul.f32 %v1380, %v1380
    %v1644 = vmul.f32 %v1381, %v1381
    %v1645 = vmul.f32 %v1382, %v1382
    %v1646 = vmul.f32 %v1383, %v1383
    %v1647 = vmul.f32 %v1384, %v1384
    %v1648 = vmul.f32 %v1385, %v1385
    %v1649 = vmul.f32 %v1386, %v1386
    %v1650 = vmul.f32 %v1387, %v1387
    %v1651 = vmul.f32 %v1388, %v1388
    %v1652 = vmul.f32 %v1389, %v1389
    %v1653 = vmul.f32 %v1390, %v1390
    %v1654 = vmul.f32 %v1391, %v1391
    %v1655 = vmul.f32 %v1392, %v1392
    %v1656 = vmul.f32 %v1393, %v1393
    %v1657 = vmul.f32 %v1394, %v1394
    %v1658 = vmul.f32 %v1395, %v1395
    %v1659 = vmul.f32 %v1396, %v1396
    %v1660 = vmul.f32 %v1397, %v1397
    %v1661 = vmul.f32 %v1398, %v1398
    %v1662 = vmul.f32 %v1399, %v1399
    %v1663 = vmul.f32 %v1400, %v1400
    %v1664 = vmul.f32 %v1401, %v1401
    %v1665 = vmul.f32 %v1402, %v1402
    %v1666 = vmul.f32 %v1403, %v1403
    %v1667 = vsel %vm1404, %v1603, 0.0
    %v1668 = vsel %vm1404, %v1604, 0.0
    %v1669 = vadd.f32 %v1667, %v1668
    %v1670 = vsel %vm1404, %v1605, 0.0
    %v1671 = vadd.f32 %v1669, %v1670
    %v1672 = vsel %vm1404, %v1606, 0.0
    %v1673 = vadd.f32 %v1671, %v1672
    %v1674 = vsel %vm1404, %v1607, 0.0
    %v1675 = vadd.f32 %v1673, %v1674
    %v1676 = vsel %vm1404, %v1608, 0.0
    %v1677 = vadd.f32 %v1675, %v1676
    %v1678 = vsel %vm1404, %v1609, 0.0
    %v1679 = vadd.f32 %v1677, %v1678
    %v1680 = vsel %vm1404, %v1610, 0.0
    %v1681 = vadd.f32 %v1679, %v1680
    %v1682 = vsel %vm1404, %v1611, 0.0
    %v1683 = vadd.f32 %v1681, %v1682
    %v1684 = vsel %vm1404, %v1612, 0.0
    %v1685 = vadd.f32 %v1683, %v1684
    %v1686 = vsel %vm1404, %v1613, 0.0
    %v1687 = vadd.f32 %v1685, %v1686
    %v1688 = vsel %vm1404, %v1614, 0.0
    %v1689 = vadd.f32 %v1687, %v1688
    %v1690 = vsel %vm1404, %v1615, 0.0
    %v1691 = vadd.f32 %v1689, %v1690
    %v1692 = vsel %vm1404, %v1616, 0.0
    %v1693 = vadd.f32 %v1691, %v1692
    %v1694 = vsel %vm1404, %v1617, 0.0
    %v1695 = vadd.f32 %v1693, %v1694
    %v1696 = vsel %vm1404, %v1618, 0.0
    %v1697 = vadd.f32 %v1695, %v1696
    %v1698 = vsel %vm1404, %v1619, 0.0
    %v1699 = vadd.f32 %v1697, %v1698
    %v1700 = vsel %vm1404, %v1620, 0.0
    %v1701 = vadd.f32 %v1699, %v1700
    %v1702 = vsel %vm1404, %v1621, 0.0
    %v1703 = vadd.f32 %v1701, %v1702
    %v1704 = vsel %vm1404, %v1622, 0.0
    %v1705 = vadd.f32 %v1703, %v1704
    %v1706 = vsel %vm1404, %v1623, 0.0
    %v1707 = vadd.f32 %v1705, %v1706
    %v1708 = vsel %vm1404, %v1624, 0.0
    %v1709 = vadd.f32 %v1707, %v1708
    %v1710 = vsel %vm1404, %v1625, 0.0
    %v1711 = vadd.f32 %v1709, %v1710
    %v1712 = vsel %vm1404, %v1626, 0.0
    %v1713 = vadd.f32 %v1711, %v1712
    %v1714 = vsel %vm1404, %v1627, 0.0
    %v1715 = vadd.f32 %v1713, %v1714
    %v1716 = vsel %vm1404, %v1628, 0.0
    %v1717 = vadd.f32 %v1715, %v1716
    %v1718 = vsel %vm1404, %v1629, 0.0
    %v1719 = vadd.f32 %v1717, %v1718
    %v1720 = vsel %vm1404, %v1630, 0.0
    %v1721 = vadd.f32 %v1719, %v1720
    %v1722 = vsel %vm1404, %v1631, 0.0
    %v1723 = vadd.f32 %v1721, %v1722
    %v1724 = vsel %vm1404, %v1632, 0.0
    %v1725 = vadd.f32 %v1723, %v1724
    %v1726 = vsel %vm1404, %v1633, 0.0
    %v1727 = vadd.f32 %v1725, %v1726
    %v1728 = vsel %vm1404, %v1634, 0.0
    %v1729 = vadd.f32 %v1727, %v1728
    %v1730 = vsel %vm1404, %v1635, 0.0
    %v1731 = vadd.f32 %v1729, %v1730
    %v1732 = vsel %vm1404, %v1636, 0.0
    %v1733 = vadd.f32 %v1731, %v1732
    %v1734 = vsel %vm1404, %v1637, 0.0
    %v1735 = vadd.f32 %v1733, %v1734
    %v1736 = vsel %vm1404, %v1638, 0.0
    %v1737 = vadd.f32 %v1735, %v1736
    %v1738 = vsel %vm1404, %v1639, 0.0
    %v1739 = vadd.f32 %v1737, %v1738
    %v1740 = vsel %vm1404, %v1640, 0.0
    %v1741 = vadd.f32 %v1739, %v1740
    %v1742 = vsel %vm1404, %v1641, 0.0
    %v1743 = vadd.f32 %v1741, %v1742
    %v1744 = vsel %vm1404, %v1642, 0.0
    %v1745 = vadd.f32 %v1743, %v1744
    %v1746 = vsel %vm1404, %v1643, 0.0
    %v1747 = vadd.f32 %v1745, %v1746
    %v1748 = vsel %vm1404, %v1644, 0.0
    %v1749 = vadd.f32 %v1747, %v1748
    %v1750 = vsel %vm1404, %v1645, 0.0
    %v1751 = vadd.f32 %v1749, %v1750
    %v1752 = vsel %vm1404, %v1646, 0.0
    %v1753 = vadd.f32 %v1751, %v1752
    %v1754 = vsel %vm1404, %v1647, 0.0
    %v1755 = vadd.f32 %v1753, %v1754
    %v1756 = vsel %vm1404, %v1648, 0.0
    %v1757 = vadd.f32 %v1755, %v1756
    %v1758 = vsel %vm1404, %v1649, 0.0
    %v1759 = vadd.f32 %v1757, %v1758
    %v1760 = vsel %vm1404, %v1650, 0.0
    %v1761 = vadd.f32 %v1759, %v1760
    %v1762 = vsel %vm1404, %v1651, 0.0
    %v1763 = vadd.f32 %v1761, %v1762
    %v1764 = vsel %vm1404, %v1652, 0.0
    %v1765 = vadd.f32 %v1763, %v1764
    %v1766 = vsel %vm1404, %v1653, 0.0
    %v1767 = vadd.f32 %v1765, %v1766
    %v1768 = vsel %vm1404, %v1654, 0.0
    %v1769 = vadd.f32 %v1767, %v1768
    %v1770 = vsel %vm1404, %v1655, 0.0
    %v1771 = vadd.f32 %v1769, %v1770
    %v1772 = vsel %vm1404, %v1656, 0.0
    %v1773 = vadd.f32 %v1771, %v1772
    %v1774 = vsel %vm1404, %v1657, 0.0
    %v1775 = vadd.f32 %v1773, %v1774
    %v1776 = vsel %vm1404, %v1658, 0.0
    %v1777 = vadd.f32 %v1775, %v1776
    %v1778 = vsel %vm1404, %v1659, 0.0
    %v1779 = vadd.f32 %v1777, %v1778
    %v1780 = vsel %vm1404, %v1660, 0.0
    %v1781 = vadd.f32 %v1779, %v1780
    %v1782 = vsel %vm1404, %v1661, 0.0
    %v1783 = vadd.f32 %v1781, %v1782
    %v1784 = vsel %vm1404, %v1662, 0.0
    %v1785 = vadd.f32 %v1783, %v1784
    %v1786 = vsel %vm1404, %v1663, 0.0
    %v1787 = vadd.f32 %v1785, %v1786
    %v1788 = vsel %vm1404, %v1664, 0.0
    %v1789 = vadd.f32 %v1787, %v1788
    %v1790 = vsel %vm1404, %v1665, 0.0
    %v1791 = vadd.f32 %v1789, %v1790
    %v1792 = vsel %vm1404, %v1666, 0.0
    %v1793 = vadd.f32 %v1791, %v1792
    %v1794 = vrot.slane %v1793, 4
    %v1795 = vadd.f32 %v1793, %v1794
    %v1796 = vrot.slane %v1795, 2
    %v1797 = vadd.f32 %v1795, %v1796
    %v1798 = vrot.slane %v1797, 1
    %v1799 = vadd.f32 %v1797, %v1798
    %v1800 = vadd.f32 %v1799, 0.0
    %s1801 = scalar_lea.vmem %s0, 520
    %v1802 = vld [vmem:[%s1801] sm:$0xff]
    %v1803 = vld [vmem:[%s1801 + $0x8] sm:$0xff]
    %v1804 = vld [vmem:[%s1801 + $0x10] sm:$0xff]
    %v1805 = vld [vmem:[%s1801 + $0x18] sm:$0xff]
    %v1806 = vld [vmem:[%s1801 + $0x20] sm:$0xff]
    %v1807 = vld [vmem:[%s1801 + $0x28] sm:$0xff]
    %v1808 = vld [vmem:[%s1801 + $0x30] sm:$0xff]
    %v1809 = vld [vmem:[%s1801 + $0x38] sm:$0xff]
    %v1810 = vld [vmem:[%s1801 + $0x40] sm:$0xff]
    %v1811 = vld [vmem:[%s1801 + $0x48] sm:$0xff]
    %v1812 = vld [vmem:[%s1801 + $0x50] sm:$0xff]
    %v1813 = vld [vmem:[%s1801 + $0x58] sm:$0xff]
    %v1814 = vld [vmem:[%s1801 + $0x60] sm:$0xff]
    %v1815 = vld [vmem:[%s1801 + $0x68] sm:$0xff]
    %v1816 = vld [vmem:[%s1801 + $0x70] sm:$0xff]
    %v1817 = vld [vmem:[%s1801 + $0x78] sm:$0xff]
    %v1818 = vld [vmem:[%s1801 + $0x80] sm:$0xff]
    %v1819 = vld [vmem:[%s1801 + $0x88] sm:$0xff]
    %v1820 = vld [vmem:[%s1801 + $0x90] sm:$0xff]
    %v1821 = vld [vmem:[%s1801 + $0x98] sm:$0xff]
    %v1822 = vld [vmem:[%s1801 + $0xa0] sm:$0xff]
    %v1823 = vld [vmem:[%s1801 + $0xa8] sm:$0xff]
    %v1824 = vld [vmem:[%s1801 + $0xb0] sm:$0xff]
    %v1825 = vld [vmem:[%s1801 + $0xb8] sm:$0xff]
    %v1826 = vld [vmem:[%s1801 + $0xc0] sm:$0xff]
    %v1827 = vld [vmem:[%s1801 + $0xc8] sm:$0xff]
    %v1828 = vld [vmem:[%s1801 + $0xd0] sm:$0xff]
    %v1829 = vld [vmem:[%s1801 + $0xd8] sm:$0xff]
    %v1830 = vld [vmem:[%s1801 + $0xe0] sm:$0xff]
    %v1831 = vld [vmem:[%s1801 + $0xe8] sm:$0xff]
    %v1832 = vld [vmem:[%s1801 + $0xf0] sm:$0xff]
    %v1833 = vld [vmem:[%s1801 + $0xf8] sm:$0xff]
    %v1834 = vld [vmem:[%s1801 + $0x100] sm:$0xff]
    %v1835 = vld [vmem:[%s1801 + $0x108] sm:$0xff]
    %v1836 = vld [vmem:[%s1801 + $0x110] sm:$0xff]
    %v1837 = vld [vmem:[%s1801 + $0x118] sm:$0xff]
    %v1838 = vld [vmem:[%s1801 + $0x120] sm:$0xff]
    %v1839 = vld [vmem:[%s1801 + $0x128] sm:$0xff]
    %v1840 = vld [vmem:[%s1801 + $0x130] sm:$0xff]
    %v1841 = vld [vmem:[%s1801 + $0x138] sm:$0xff]
    %v1842 = vld [vmem:[%s1801 + $0x140] sm:$0xff]
    %v1843 = vld [vmem:[%s1801 + $0x148] sm:$0xff]
    %v1844 = vld [vmem:[%s1801 + $0x150] sm:$0xff]
    %v1845 = vld [vmem:[%s1801 + $0x158] sm:$0xff]
    %v1846 = vld [vmem:[%s1801 + $0x160] sm:$0xff]
    %v1847 = vld [vmem:[%s1801 + $0x168] sm:$0xff]
    %v1848 = vld [vmem:[%s1801 + $0x170] sm:$0xff]
    %v1849 = vld [vmem:[%s1801 + $0x178] sm:$0xff]
    %v1850 = vld [vmem:[%s1801 + $0x180] sm:$0xff]
    %v1851 = vld [vmem:[%s1801 + $0x188] sm:$0xff]
    %v1852 = vld [vmem:[%s1801 + $0x190] sm:$0xff]
    %v1853 = vld [vmem:[%s1801 + $0x198] sm:$0xff]
    %v1854 = vld [vmem:[%s1801 + $0x1a0] sm:$0xff]
    %v1855 = vld [vmem:[%s1801 + $0x1a8] sm:$0xff]
    %v1856 = vld [vmem:[%s1801 + $0x1b0] sm:$0xff]
    %v1857 = vld [vmem:[%s1801 + $0x1b8] sm:$0xff]
    %v1858 = vld [vmem:[%s1801 + $0x1c0] sm:$0xff]
    %v1859 = vld [vmem:[%s1801 + $0x1c8] sm:$0xff]
    %v1860 = vld [vmem:[%s1801 + $0x1d0] sm:$0xff]
    %v1861 = vld [vmem:[%s1801 + $0x1d8] sm:$0xff]
    %v1862 = vld [vmem:[%s1801 + $0x1e0] sm:$0xff]
    %v1863 = vld [vmem:[%s1801 + $0x1e8] sm:$0xff]
    %v1864 = vld [vmem:[%s1801 + $0x1f0] sm:$0xff]
    %v1865 = vld [vmem:[%s1801 + $0x1f8] sm:$0xff]
    %v1866 = vld [vmem:[%s1801 + $0x200] sm:$0x1]
    %v1868 = vsel %vm106, %v1802, 0
    %v1871 = vsel %vm106, %v1803, 0
    %v1874 = vsel %vm106, %v1804, 0
    %v1877 = vsel %vm106, %v1805, 0
    %v1880 = vsel %vm106, %v1806, 0
    %v1883 = vsel %vm106, %v1807, 0
    %v1886 = vsel %vm106, %v1808, 0
    %v1889 = vsel %vm106, %v1809, 0
    %v1892 = vsel %vm106, %v1810, 0
    %v1895 = vsel %vm106, %v1811, 0
    %v1898 = vsel %vm106, %v1812, 0
    %v1901 = vsel %vm106, %v1813, 0
    %v1904 = vsel %vm106, %v1814, 0
    %v1907 = vsel %vm106, %v1815, 0
    %v1910 = vsel %vm106, %v1816, 0
    %v1913 = vsel %vm106, %v1817, 0
    %v1916 = vsel %vm106, %v1818, 0
    %v1919 = vsel %vm106, %v1819, 0
    %v1922 = vsel %vm106, %v1820, 0
    %v1925 = vsel %vm106, %v1821, 0
    %v1928 = vsel %vm106, %v1822, 0
    %v1931 = vsel %vm106, %v1823, 0
    %v1934 = vsel %vm106, %v1824, 0
    %v1937 = vsel %vm106, %v1825, 0
    %v1940 = vsel %vm106, %v1826, 0
    %v1943 = vsel %vm106, %v1827, 0
    %v1946 = vsel %vm106, %v1828, 0
    %v1949 = vsel %vm106, %v1829, 0
    %v1952 = vsel %vm106, %v1830, 0
    %v1955 = vsel %vm106, %v1831, 0
    %v1958 = vsel %vm106, %v1832, 0
    %v1961 = vsel %vm106, %v1833, 0
    %v1964 = vsel %vm106, %v1834, 0
    %v1967 = vsel %vm106, %v1835, 0
    %v1970 = vsel %vm106, %v1836, 0
    %v1973 = vsel %vm106, %v1837, 0
    %v1976 = vsel %vm106, %v1838, 0
    %v1979 = vsel %vm106, %v1839, 0
    %v1982 = vsel %vm106, %v1840, 0
    %v1985 = vsel %vm106, %v1841, 0
    %v1988 = vsel %vm106, %v1842, 0
    %v1991 = vsel %vm106, %v1843, 0
    %v1994 = vsel %vm106, %v1844, 0
    %v1997 = vsel %vm106, %v1845, 0
    %v2000 = vsel %vm106, %v1846, 0
    %v2003 = vsel %vm106, %v1847, 0
    %v2006 = vsel %vm106, %v1848, 0
    %v2009 = vsel %vm106, %v1849, 0
    %v2012 = vsel %vm106, %v1850, 0
    %v2015 = vsel %vm106, %v1851, 0
    %v2018 = vsel %vm106, %v1852, 0
    %v2021 = vsel %vm106, %v1853, 0
    %v2024 = vsel %vm106, %v1854, 0
    %v2027 = vsel %vm106, %v1855, 0
    %v2030 = vsel %vm106, %v1856, 0
    %v2033 = vsel %vm106, %v1857, 0
    %v2036 = vsel %vm106, %v1858, 0
    %v2039 = vsel %vm106, %v1859, 0
    %v2042 = vsel %vm106, %v1860, 0
    %v2045 = vsel %vm106, %v1861, 0
    %v2048 = vsel %vm106, %v1862, 0
    %v2051 = vsel %vm106, %v1863, 0
    %v2054 = vsel %vm106, %v1864, 0
    %v2057 = vsel %vm106, %v1865, 0
    %v2060 = vsel %vm106, %v1866, 0
    %2062 = vmatprep.subr.mxu0 0.0
    %2063 = vmatpush1.msra.mxu0 0.0
    %2064 = vmatprep.subr.mxu0 0.0
    %2065 = vmatpush1.msra.mxu0 0.0
    %2066 = vmatprep.subr.mxu0 0.0
    %2067 = vmatpush1.msra.mxu0 0.0
    %2068 = vmatprep.subr.mxu0 0.0
    %2069 = vmatpush1.msra.mxu0 0.0
    %2070 = vmatprep.subr.mxu0 0.0
    %2071 = vmatpush1.msra.mxu0 0.0
    %2072 = vmatprep.subr.mxu0 0.0
    %2073 = vmatpush1.msra.mxu0 0.0
    %2074 = vmatprep.subr.mxu0 0.0
    %2075 = vmatpush1.msra.mxu0 0.0
    %2076 = vmatprep.subr.mxu0 0.0
    %2077 = vmatpush1.msra.mxu0 0.0
    %2078 = vmatprep.subr.mxu0 0.0
    %2079 = vmatpush1.msra.mxu0 0.0
    %2080 = vmatprep.subr.mxu0 0.0
    %2081 = vmatpush1.msra.mxu0 0.0
    %2082 = vmatprep.subr.mxu0 0.0
    %2083 = vmatpush1.msra.mxu0 0.0
    %2084 = vmatprep.subr.mxu0 0.0
    %2085 = vmatpush1.msra.mxu0 0.0
    %2086 = vmatprep.subr.mxu0 0.0
    %2087 = vmatpush1.msra.mxu0 0.0
    %2088 = vmatprep.subr.mxu0 0.0
    %2089 = vmatpush1.msra.mxu0 0.0
    %2090 = vmatprep.subr.mxu0 0.0
    %2091 = vmatpush1.msra.mxu0 %v37
    %2092 = vmatprep.subr.mxu0 0.0
    %2093 = vmatpush1.msra.mxu0 %v36
    %2094 = vmatprep.subr.mxu0 0.0
    %2095 = vmatpush2.msra.mxu0 0.0
    %2096 = vmatprep.subr.mxu0 0.0
    %2097 = vmatpush2.msra.mxu0 0.0
    %2098 = vmatprep.subr.mxu0 0.0
    %2099 = vmatpush2.msra.mxu0 0.0
    %2100 = vmatprep.subr.mxu0 0.0
    %2101 = vmatpush2.msra.mxu0 0.0
    %2102 = vmatprep.subr.mxu0 0.0
    %2103 = vmatpush2.msra.mxu0 0.0
    %2104 = vmatprep.subr.mxu0 0.0
    %2105 = vmatpush2.msra.mxu0 0.0
    %2106 = vmatprep.subr.mxu0 0.0
    %2107 = vmatpush2.msra.mxu0 0.0
    %2108 = vmatprep.subr.mxu0 0.0
    %2109 = vmatpush2.msra.mxu0 0.0
    %2110 = vmatprep.subr.mxu0 0.0
    %2111 = vmatpush2.msra.mxu0 0.0
    %2112 = vmatprep.subr.mxu0 0.0
    %2113 = vmatpush2.msra.mxu0 0.0
    %2114 = vmatprep.subr.mxu0 0.0
    %2115 = vmatpush2.msra.mxu0 0.0
    %2116 = vmatprep.subr.mxu0 0.0
    %2117 = vmatpush2.msra.mxu0 0.0
    %2118 = vmatprep.subr.mxu0 0.0
    %2119 = vmatpush2.msra.mxu0 0.0
    %2120 = vmatprep.subr.mxu0 0.0
    %2121 = vmatpush2.msra.mxu0 0.0
    %2122 = vmatprep.subr.mxu0 0.0
    %2123 = vmatpush2.msra.mxu0 0.0
    %2124 = vmatprep.subr.mxu0 0.0
    %2125 = vmatpush2.msra.mxu0 0.0
    %2126 = vmatprep.mubr.f32.mxu0 0.0
    %2127 = vmatmul.mubr.f32.gmra.mxu0 %v1868
    %v2128 = vpop.f32.mrf.mxu0
    %v2129 = vadd.f32 0.0, %v2128
    %v2130 = vpop.f32.mrf.mxu0
    %2131 = vmatprep.mubr.f32.mxu0 0.0
    %2132 = vmatmul.mubr.f32.gmra.mxu0 %v1871
    %v2133 = vpop.f32.mrf.mxu0
    %v2134 = vadd.f32 0.0, %v2133
    %v2135 = vpop.f32.mrf.mxu0
    %2136 = vmatprep.mubr.f32.mxu0 0.0
    %2137 = vmatmul.mubr.f32.gmra.mxu0 %v1874
    %v2138 = vpop.f32.mrf.mxu0
    %v2139 = vadd.f32 0.0, %v2138
    %v2140 = vpop.f32.mrf.mxu0
    %2141 = vmatprep.mubr.f32.mxu0 0.0
    %2142 = vmatmul.mubr.f32.gmra.mxu0 %v1877
    %v2143 = vpop.f32.mrf.mxu0
    %v2144 = vadd.f32 0.0, %v2143
    %v2145 = vpop.f32.mrf.mxu0
    %2146 = vmatprep.mubr.f32.mxu0 0.0
    %2147 = vmatmul.mubr.f32.gmra.mxu0 %v1880
    %v2148 = vpop.f32.mrf.mxu0
    %v2149 = vadd.f32 0.0, %v2148
    %v2150 = vpop.f32.mrf.mxu0
    %2151 = vmatprep.mubr.f32.mxu0 0.0
    %2152 = vmatmul.mubr.f32.gmra.mxu0 %v1883
    %v2153 = vpop.f32.mrf.mxu0
    %v2154 = vadd.f32 0.0, %v2153
    %v2155 = vpop.f32.mrf.mxu0
    %2156 = vmatprep.mubr.f32.mxu0 0.0
    %2157 = vmatmul.mubr.f32.gmra.mxu0 %v1886
    %v2158 = vpop.f32.mrf.mxu0
    %v2159 = vadd.f32 0.0, %v2158
    %v2160 = vpop.f32.mrf.mxu0
    %2161 = vmatprep.mubr.f32.mxu0 0.0
    %2162 = vmatmul.mubr.f32.gmra.mxu0 %v1889
    %v2163 = vpop.f32.mrf.mxu0
    %v2164 = vadd.f32 0.0, %v2163
    %v2165 = vpop.f32.mrf.mxu0
    %2166 = vmatprep.mubr.f32.mxu0 0.0
    %2167 = vmatmul.mubr.f32.gmra.mxu0 %v1892
    %v2168 = vpop.f32.mrf.mxu0
    %v2169 = vadd.f32 0.0, %v2168
    %v2170 = vpop.f32.mrf.mxu0
    %2171 = vmatprep.mubr.f32.mxu0 0.0
    %2172 = vmatmul.mubr.f32.gmra.mxu0 %v1895
    %v2173 = vpop.f32.mrf.mxu0
    %v2174 = vadd.f32 0.0, %v2173
    %v2175 = vpop.f32.mrf.mxu0
    %2176 = vmatprep.mubr.f32.mxu0 0.0
    %2177 = vmatmul.mubr.f32.gmra.mxu0 %v1898
    %v2178 = vpop.f32.mrf.mxu0
    %v2179 = vadd.f32 0.0, %v2178
    %v2180 = vpop.f32.mrf.mxu0
    %2181 = vmatprep.mubr.f32.mxu0 0.0
    %2182 = vmatmul.mubr.f32.gmra.mxu0 %v1901
    %v2183 = vpop.f32.mrf.mxu0
    %v2184 = vadd.f32 0.0, %v2183
    %v2185 = vpop.f32.mrf.mxu0
    %2186 = vmatprep.mubr.f32.mxu0 0.0
    %2187 = vmatmul.mubr.f32.gmra.mxu0 %v1904
    %v2188 = vpop.f32.mrf.mxu0
    %v2189 = vadd.f32 0.0, %v2188
    %v2190 = vpop.f32.mrf.mxu0
    %2191 = vmatprep.mubr.f32.mxu0 0.0
    %2192 = vmatmul.mubr.f32.gmra.mxu0 %v1907
    %v2193 = vpop.f32.mrf.mxu0
    %v2194 = vadd.f32 0.0, %v2193
    %v2195 = vpop.f32.mrf.mxu0
    %2196 = vmatprep.mubr.f32.mxu0 0.0
    %2197 = vmatmul.mubr.f32.gmra.mxu0 %v1910
    %v2198 = vpop.f32.mrf.mxu0
    %v2199 = vadd.f32 0.0, %v2198
    %v2200 = vpop.f32.mrf.mxu0
    %2201 = vmatprep.mubr.f32.mxu0 0.0
    %2202 = vmatmul.mubr.f32.gmra.mxu0 %v1913
    %v2203 = vpop.f32.mrf.mxu0
    %v2204 = vadd.f32 0.0, %v2203
    %v2205 = vpop.f32.mrf.mxu0
    %2206 = vmatprep.mubr.f32.mxu0 0.0
    %2207 = vmatmul.mubr.f32.gmra.mxu0 %v1916
    %v2208 = vpop.f32.mrf.mxu0
    %v2209 = vadd.f32 0.0, %v2208
    %v2210 = vpop.f32.mrf.mxu0
    %2211 = vmatprep.mubr.f32.mxu0 0.0
    %2212 = vmatmul.mubr.f32.gmra.mxu0 %v1919
    %v2213 = vpop.f32.mrf.mxu0
    %v2214 = vadd.f32 0.0, %v2213
    %v2215 = vpop.f32.mrf.mxu0
    %2216 = vmatprep.mubr.f32.mxu0 0.0
    %2217 = vmatmul.mubr.f32.gmra.mxu0 %v1922
    %v2218 = vpop.f32.mrf.mxu0
    %v2219 = vadd.f32 0.0, %v2218
    %v2220 = vpop.f32.mrf.mxu0
    %2221 = vmatprep.mubr.f32.mxu0 0.0
    %2222 = vmatmul.mubr.f32.gmra.mxu0 %v1925
    %v2223 = vpop.f32.mrf.mxu0
    %v2224 = vadd.f32 0.0, %v2223
    %v2225 = vpop.f32.mrf.mxu0
    %2226 = vmatprep.mubr.f32.mxu0 0.0
    %2227 = vmatmul.mubr.f32.gmra.mxu0 %v1928
    %v2228 = vpop.f32.mrf.mxu0
    %v2229 = vadd.f32 0.0, %v2228
    %v2230 = vpop.f32.mrf.mxu0
    %2231 = vmatprep.mubr.f32.mxu0 0.0
    %2232 = vmatmul.mubr.f32.gmra.mxu0 %v1931
    %v2233 = vpop.f32.mrf.mxu0
    %v2234 = vadd.f32 0.0, %v2233
    %v2235 = vpop.f32.mrf.mxu0
    %2236 = vmatprep.mubr.f32.mxu0 0.0
    %2237 = vmatmul.mubr.f32.gmra.mxu0 %v1934
    %v2238 = vpop.f32.mrf.mxu0
    %v2239 = vadd.f32 0.0, %v2238
    %v2240 = vpop.f32.mrf.mxu0
    %2241 = vmatprep.mubr.f32.mxu0 0.0
    %2242 = vmatmul.mubr.f32.gmra.mxu0 %v1937
    %v2243 = vpop.f32.mrf.mxu0
    %v2244 = vadd.f32 0.0, %v2243
    %v2245 = vpop.f32.mrf.mxu0
    %2246 = vmatprep.mubr.f32.mxu0 0.0
    %2247 = vmatmul.mubr.f32.gmra.mxu0 %v1940
    %v2248 = vpop.f32.mrf.mxu0
    %v2249 = vadd.f32 0.0, %v2248
    %v2250 = vpop.f32.mrf.mxu0
    %2251 = vmatprep.mubr.f32.mxu0 0.0
    %2252 = vmatmul.mubr.f32.gmra.mxu0 %v1943
    %v2253 = vpop.f32.mrf.mxu0
    %v2254 = vadd.f32 0.0, %v2253
    %v2255 = vpop.f32.mrf.mxu0
    %2256 = vmatprep.mubr.f32.mxu0 0.0
    %2257 = vmatmul.mubr.f32.gmra.mxu0 %v1946
    %v2258 = vpop.f32.mrf.mxu0
    %v2259 = vadd.f32 0.0, %v2258
    %v2260 = vpop.f32.mrf.mxu0
    %2261 = vmatprep.mubr.f32.mxu0 0.0
    %2262 = vmatmul.mubr.f32.gmra.mxu0 %v1949
    %v2263 = vpop.f32.mrf.mxu0
    %v2264 = vadd.f32 0.0, %v2263
    %v2265 = vpop.f32.mrf.mxu0
    %2266 = vmatprep.mubr.f32.mxu0 0.0
    %2267 = vmatmul.mubr.f32.gmra.mxu0 %v1952
    %v2268 = vpop.f32.mrf.mxu0
    %v2269 = vadd.f32 0.0, %v2268
    %v2270 = vpop.f32.mrf.mxu0
    %2271 = vmatprep.mubr.f32.mxu0 0.0
    %2272 = vmatmul.mubr.f32.gmra.mxu0 %v1955
    %v2273 = vpop.f32.mrf.mxu0
    %v2274 = vadd.f32 0.0, %v2273
    %v2275 = vpop.f32.mrf.mxu0
    %2276 = vmatprep.mubr.f32.mxu0 0.0
    %2277 = vmatmul.mubr.f32.gmra.mxu0 %v1958
    %v2278 = vpop.f32.mrf.mxu0
    %v2279 = vadd.f32 0.0, %v2278
    %v2280 = vpop.f32.mrf.mxu0
    %2281 = vmatprep.mubr.f32.mxu0 0.0
    %2282 = vmatmul.mubr.f32.gmra.mxu0 %v1961
    %v2283 = vpop.f32.mrf.mxu0
    %v2284 = vadd.f32 0.0, %v2283
    %v2285 = vpop.f32.mrf.mxu0
    %2286 = vmatprep.mubr.f32.mxu0 0.0
    %2287 = vmatmul.mubr.f32.gmra.mxu0 %v1964
    %v2288 = vpop.f32.mrf.mxu0
    %v2289 = vadd.f32 0.0, %v2288
    %v2290 = vpop.f32.mrf.mxu0
    %2291 = vmatprep.mubr.f32.mxu0 0.0
    %2292 = vmatmul.mubr.f32.gmra.mxu0 %v1967
    %v2293 = vpop.f32.mrf.mxu0
    %v2294 = vadd.f32 0.0, %v2293
    %v2295 = vpop.f32.mrf.mxu0
    %2296 = vmatprep.mubr.f32.mxu0 0.0
    %2297 = vmatmul.mubr.f32.gmra.mxu0 %v1970
    %v2298 = vpop.f32.mrf.mxu0
    %v2299 = vadd.f32 0.0, %v2298
    %v2300 = vpop.f32.mrf.mxu0
    %2301 = vmatprep.mubr.f32.mxu0 0.0
    %2302 = vmatmul.mubr.f32.gmra.mxu0 %v1973
    %v2303 = vpop.f32.mrf.mxu0
    %v2304 = vadd.f32 0.0, %v2303
    %v2305 = vpop.f32.mrf.mxu0
    %2306 = vmatprep.mubr.f32.mxu0 0.0
    %2307 = vmatmul.mubr.f32.gmra.mxu0 %v1976
    %v2308 = vpop.f32.mrf.mxu0
    %v2309 = vadd.f32 0.0, %v2308
    %v2310 = vpop.f32.mrf.mxu0
    %2311 = vmatprep.mubr.f32.mxu0 0.0
    %2312 = vmatmul.mubr.f32.gmra.mxu0 %v1979
    %v2313 = vpop.f32.mrf.mxu0
    %v2314 = vadd.f32 0.0, %v2313
    %v2315 = vpop.f32.mrf.mxu0
    %2316 = vmatprep.mubr.f32.mxu0 0.0
    %2317 = vmatmul.mubr.f32.gmra.mxu0 %v1982
    %v2318 = vpop.f32.mrf.mxu0
    %v2319 = vadd.f32 0.0, %v2318
    %v2320 = vpop.f32.mrf.mxu0
    %2321 = vmatprep.mubr.f32.mxu0 0.0
    %2322 = vmatmul.mubr.f32.gmra.mxu0 %v1985
    %v2323 = vpop.f32.mrf.mxu0
    %v2324 = vadd.f32 0.0, %v2323
    %v2325 = vpop.f32.mrf.mxu0
    %2326 = vmatprep.mubr.f32.mxu0 0.0
    %2327 = vmatmul.mubr.f32.gmra.mxu0 %v1988
    %v2328 = vpop.f32.mrf.mxu0
    %v2329 = vadd.f32 0.0, %v2328
    %v2330 = vpop.f32.mrf.mxu0
    %2331 = vmatprep.mubr.f32.mxu0 0.0
    %2332 = vmatmul.mubr.f32.gmra.mxu0 %v1991
    %v2333 = vpop.f32.mrf.mxu0
    %v2334 = vadd.f32 0.0, %v2333
    %v2335 = vpop.f32.mrf.mxu0
    %2336 = vmatprep.mubr.f32.mxu0 0.0
    %2337 = vmatmul.mubr.f32.gmra.mxu0 %v1994
    %v2338 = vpop.f32.mrf.mxu0
    %v2339 = vadd.f32 0.0, %v2338
    %v2340 = vpop.f32.mrf.mxu0
    %2341 = vmatprep.mubr.f32.mxu0 0.0
    %2342 = vmatmul.mubr.f32.gmra.mxu0 %v1997
    %v2343 = vpop.f32.mrf.mxu0
    %v2344 = vadd.f32 0.0, %v2343
    %v2345 = vpop.f32.mrf.mxu0
    %2346 = vmatprep.mubr.f32.mxu0 0.0
    %2347 = vmatmul.mubr.f32.gmra.mxu0 %v2000
    %v2348 = vpop.f32.mrf.mxu0
    %v2349 = vadd.f32 0.0, %v2348
    %v2350 = vpop.f32.mrf.mxu0
    %2351 = vmatprep.mubr.f32.mxu0 0.0
    %2352 = vmatmul.mubr.f32.gmra.mxu0 %v2003
    %v2353 = vpop.f32.mrf.mxu0
    %v2354 = vadd.f32 0.0, %v2353
    %v2355 = vpop.f32.mrf.mxu0
    %2356 = vmatprep.mubr.f32.mxu0 0.0
    %2357 = vmatmul.mubr.f32.gmra.mxu0 %v2006
    %v2358 = vpop.f32.mrf.mxu0
    %v2359 = vadd.f32 0.0, %v2358
    %v2360 = vpop.f32.mrf.mxu0
    %2361 = vmatprep.mubr.f32.mxu0 0.0
    %2362 = vmatmul.mubr.f32.gmra.mxu0 %v2009
    %v2363 = vpop.f32.mrf.mxu0
    %v2364 = vadd.f32 0.0, %v2363
    %v2365 = vpop.f32.mrf.mxu0
    %2366 = vmatprep.mubr.f32.mxu0 0.0
    %2367 = vmatmul.mubr.f32.gmra.mxu0 %v2012
    %v2368 = vpop.f32.mrf.mxu0
    %v2369 = vadd.f32 0.0, %v2368
    %v2370 = vpop.f32.mrf.mxu0
    %2371 = vmatprep.mubr.f32.mxu0 0.0
    %2372 = vmatmul.mubr.f32.gmra.mxu0 %v2015
    %v2373 = vpop.f32.mrf.mxu0
    %v2374 = vadd.f32 0.0, %v2373
    %v2375 = vpop.f32.mrf.mxu0
    %2376 = vmatprep.mubr.f32.mxu0 0.0
    %2377 = vmatmul.mubr.f32.gmra.mxu0 %v2018
    %v2378 = vpop.f32.mrf.mxu0
    %v2379 = vadd.f32 0.0, %v2378
    %v2380 = vpop.f32.mrf.mxu0
    %2381 = vmatprep.mubr.f32.mxu0 0.0
    %2382 = vmatmul.mubr.f32.gmra.mxu0 %v2021
    %v2383 = vpop.f32.mrf.mxu0
    %v2384 = vadd.f32 0.0, %v2383
    %v2385 = vpop.f32.mrf.mxu0
    %2386 = vmatprep.mubr.f32.mxu0 0.0
    %2387 = vmatmul.mubr.f32.gmra.mxu0 %v2024
    %v2388 = vpop.f32.mrf.mxu0
    %v2389 = vadd.f32 0.0, %v2388
    %v2390 = vpop.f32.mrf.mxu0
    %2391 = vmatprep.mubr.f32.mxu0 0.0
    %2392 = vmatmul.mubr.f32.gmra.mxu0 %v2027
    %v2393 = vpop.f32.mrf.mxu0
    %v2394 = vadd.f32 0.0, %v2393
    %v2395 = vpop.f32.mrf.mxu0
    %2396 = vmatprep.mubr.f32.mxu0 0.0
    %2397 = vmatmul.mubr.f32.gmra.mxu0 %v2030
    %v2398 = vpop.f32.mrf.mxu0
    %v2399 = vadd.f32 0.0, %v2398
    %v2400 = vpop.f32.mrf.mxu0
    %2401 = vmatprep.mubr.f32.mxu0 0.0
    %2402 = vmatmul.mubr.f32.gmra.mxu0 %v2033
    %v2403 = vpop.f32.mrf.mxu0
    %v2404 = vadd.f32 0.0, %v2403
    %v2405 = vpop.f32.mrf.mxu0
    %2406 = vmatprep.mubr.f32.mxu0 0.0
    %2407 = vmatmul.mubr.f32.gmra.mxu0 %v2036
    %v2408 = vpop.f32.mrf.mxu0
    %v2409 = vadd.f32 0.0, %v2408
    %v2410 = vpop.f32.mrf.mxu0
    %2411 = vmatprep.mubr.f32.mxu0 0.0
    %2412 = vmatmul.mubr.f32.gmra.mxu0 %v2039
    %v2413 = vpop.f32.mrf.mxu0
    %v2414 = vadd.f32 0.0, %v2413
    %v2415 = vpop.f32.mrf.mxu0
    %2416 = vmatprep.mubr.f32.mxu0 0.0
    %2417 = vmatmul.mubr.f32.gmra.mxu0 %v2042
    %v2418 = vpop.f32.mrf.mxu0
    %v2419 = vadd.f32 0.0, %v2418
    %v2420 = vpop.f32.mrf.mxu0
    %2421 = vmatprep.mubr.f32.mxu0 0.0
    %2422 = vmatmul.mubr.f32.gmra.mxu0 %v2045
    %v2423 = vpop.f32.mrf.mxu0
    %v2424 = vadd.f32 0.0, %v2423
    %v2425 = vpop.f32.mrf.mxu0
    %2426 = vmatprep.mubr.f32.mxu0 0.0
    %2427 = vmatmul.mubr.f32.gmra.mxu0 %v2048
    %v2428 = vpop.f32.mrf.mxu0
    %v2429 = vadd.f32 0.0, %v2428
    %v2430 = vpop.f32.mrf.mxu0
    %2431 = vmatprep.mubr.f32.mxu0 0.0
    %2432 = vmatmul.mubr.f32.gmra.mxu0 %v2051
    %v2433 = vpop.f32.mrf.mxu0
    %v2434 = vadd.f32 0.0, %v2433
    %v2435 = vpop.f32.mrf.mxu0
    %2436 = vmatprep.mubr.f32.mxu0 0.0
    %2437 = vmatmul.mubr.f32.gmra.mxu0 %v2054
    %v2438 = vpop.f32.mrf.mxu0
    %v2439 = vadd.f32 0.0, %v2438
    %v2440 = vpop.f32.mrf.mxu0
    %2441 = vmatprep.mubr.f32.mxu0 0.0
    %2442 = vmatmul.mubr.f32.gmra.mxu0 %v2057
    %v2443 = vpop.f32.mrf.mxu0
    %v2444 = vadd.f32 0.0, %v2443
    %v2445 = vpop.f32.mrf.mxu0
    %2446 = vmatprep.mubr.f32.mxu0 0.0
    %2447 = vmatmul.mubr.f32.gmra.mxu0 %v2060
    %v2448 = vpop.f32.mrf.mxu0
    %v2449 = vpop.f32.mrf.mxu0
    %2450 = vdwg.mxu0
    %2451 = vmatprep.subr.mxu0 0.0
    %2452 = vmatpush1.msra.mxu0 0.0
    %2453 = vmatprep.subr.mxu0 0.0
    %2454 = vmatpush1.msra.mxu0 0.0
    %2455 = vmatprep.subr.mxu0 0.0
    %2456 = vmatpush1.msra.mxu0 0.0
    %2457 = vmatprep.subr.mxu0 0.0
    %2458 = vmatpush1.msra.mxu0 0.0
    %2459 = vmatprep.subr.mxu0 0.0
    %2460 = vmatpush1.msra.mxu0 0.0
    %2461 = vmatprep.subr.mxu0 0.0
    %2462 = vmatpush1.msra.mxu0 0.0
    %2463 = vmatprep.subr.mxu0 0.0
    %2464 = vmatpush1.msra.mxu0 0.0
    %2465 = vmatprep.subr.mxu0 0.0
    %2466 = vmatpush1.msra.mxu0 0.0
    %2467 = vmatprep.subr.mxu0 0.0
    %2468 = vmatpush1.msra.mxu0 0.0
    %2469 = vmatprep.subr.mxu0 0.0
    %2470 = vmatpush1.msra.mxu0 0.0
    %2471 = vmatprep.subr.mxu0 0.0
    %2472 = vmatpush1.msra.mxu0 0.0
    %2473 = vmatprep.subr.mxu0 0.0
    %2474 = vmatpush1.msra.mxu0 0.0
    %2475 = vmatprep.subr.mxu0 0.0
    %2476 = vmatpush1.msra.mxu0 0.0
    %2477 = vmatprep.subr.mxu0 0.0
    %2478 = vmatpush1.msra.mxu0 0.0
    %2479 = vmatprep.subr.mxu0 0.0
    %2480 = vmatpush1.msra.mxu0 %v40
    %2481 = vmatprep.subr.mxu0 0.0
    %2482 = vmatpush1.msra.mxu0 %v39
    %2483 = vmatprep.subr.mxu0 0.0
    %2484 = vmatpush2.msra.mxu0 0.0
    %2485 = vmatprep.subr.mxu0 0.0
    %2486 = vmatpush2.msra.mxu0 0.0
    %2487 = vmatprep.subr.mxu0 0.0
    %2488 = vmatpush2.msra.mxu0 0.0
    %2489 = vmatprep.subr.mxu0 0.0
    %2490 = vmatpush2.msra.mxu0 0.0
    %2491 = vmatprep.subr.mxu0 0.0
    %2492 = vmatpush2.msra.mxu0 0.0
    %2493 = vmatprep.subr.mxu0 0.0
    %2494 = vmatpush2.msra.mxu0 0.0
    %2495 = vmatprep.subr.mxu0 0.0
    %2496 = vmatpush2.msra.mxu0 0.0
    %2497 = vmatprep.subr.mxu0 0.0
    %2498 = vmatpush2.msra.mxu0 0.0
    %2499 = vmatprep.subr.mxu0 0.0
    %2500 = vmatpush2.msra.mxu0 0.0
    %2501 = vmatprep.subr.mxu0 0.0
    %2502 = vmatpush2.msra.mxu0 0.0
    %2503 = vmatprep.subr.mxu0 0.0
    %2504 = vmatpush2.msra.mxu0 0.0
    %2505 = vmatprep.subr.mxu0 0.0
    %2506 = vmatpush2.msra.mxu0 0.0
    %2507 = vmatprep.subr.mxu0 0.0
    %2508 = vmatpush2.msra.mxu0 0.0
    %2509 = vmatprep.subr.mxu0 0.0
    %2510 = vmatpush2.msra.mxu0 0.0
    %2511 = vmatprep.subr.mxu0 0.0
    %2512 = vmatpush2.msra.mxu0 0.0
    %2513 = vmatprep.subr.mxu0 0.0
    %2514 = vmatpush2.msra.mxu0 0.0
    %2515 = vmatprep.mubr.f32.mxu0 0.0
    %2516 = vmatmul.mubr.f32.gmra.mxu0 %v1868
    %v2517 = vpop.f32.mrf.mxu0
    %v2518 = vadd.f32 0.0, %v2517
    %v2519 = vpop.f32.mrf.mxu0
    %2520 = vmatprep.mubr.f32.mxu0 0.0
    %2521 = vmatmul.mubr.f32.gmra.mxu0 %v1871
    %v2522 = vpop.f32.mrf.mxu0
    %v2523 = vadd.f32 0.0, %v2522
    %v2524 = vpop.f32.mrf.mxu0
    %2525 = vmatprep.mubr.f32.mxu0 0.0
    %2526 = vmatmul.mubr.f32.gmra.mxu0 %v1874
    %v2527 = vpop.f32.mrf.mxu0
    %v2528 = vadd.f32 0.0, %v2527
    %v2529 = vpop.f32.mrf.mxu0
    %2530 = vmatprep.mubr.f32.mxu0 0.0
    %2531 = vmatmul.mubr.f32.gmra.mxu0 %v1877
    %v2532 = vpop.f32.mrf.mxu0
    %v2533 = vadd.f32 0.0, %v2532
    %v2534 = vpop.f32.mrf.mxu0
    %2535 = vmatprep.mubr.f32.mxu0 0.0
    %2536 = vmatmul.mubr.f32.gmra.mxu0 %v1880
    %v2537 = vpop.f32.mrf.mxu0
    %v2538 = vadd.f32 0.0, %v2537
    %v2539 = vpop.f32.mrf.mxu0
    %2540 = vmatprep.mubr.f32.mxu0 0.0
    %2541 = vmatmul.mubr.f32.gmra.mxu0 %v1883
    %v2542 = vpop.f32.mrf.mxu0
    %v2543 = vadd.f32 0.0, %v2542
    %v2544 = vpop.f32.mrf.mxu0
    %2545 = vmatprep.mubr.f32.mxu0 0.0
    %2546 = vmatmul.mubr.f32.gmra.mxu0 %v1886
    %v2547 = vpop.f32.mrf.mxu0
    %v2548 = vadd.f32 0.0, %v2547
    %v2549 = vpop.f32.mrf.mxu0
    %2550 = vmatprep.mubr.f32.mxu0 0.0
    %2551 = vmatmul.mubr.f32.gmra.mxu0 %v1889
    %v2552 = vpop.f32.mrf.mxu0
    %v2553 = vadd.f32 0.0, %v2552
    %v2554 = vpop.f32.mrf.mxu0
    %2555 = vmatprep.mubr.f32.mxu0 0.0
    %2556 = vmatmul.mubr.f32.gmra.mxu0 %v1892
    %v2557 = vpop.f32.mrf.mxu0
    %v2558 = vadd.f32 0.0, %v2557
    %v2559 = vpop.f32.mrf.mxu0
    %2560 = vmatprep.mubr.f32.mxu0 0.0
    %2561 = vmatmul.mubr.f32.gmra.mxu0 %v1895
    %v2562 = vpop.f32.mrf.mxu0
    %v2563 = vadd.f32 0.0, %v2562
    %v2564 = vpop.f32.mrf.mxu0
    %2565 = vmatprep.mubr.f32.mxu0 0.0
    %2566 = vmatmul.mubr.f32.gmra.mxu0 %v1898
    %v2567 = vpop.f32.mrf.mxu0
    %v2568 = vadd.f32 0.0, %v2567
    %v2569 = vpop.f32.mrf.mxu0
    %2570 = vmatprep.mubr.f32.mxu0 0.0
    %2571 = vmatmul.mubr.f32.gmra.mxu0 %v1901
    %v2572 = vpop.f32.mrf.mxu0
    %v2573 = vadd.f32 0.0, %v2572
    %v2574 = vpop.f32.mrf.mxu0
    %2575 = vmatprep.mubr.f32.mxu0 0.0
    %2576 = vmatmul.mubr.f32.gmra.mxu0 %v1904
    %v2577 = vpop.f32.mrf.mxu0
    %v2578 = vadd.f32 0.0, %v2577
    %v2579 = vpop.f32.mrf.mxu0
    %2580 = vmatprep.mubr.f32.mxu0 0.0
    %2581 = vmatmul.mubr.f32.gmra.mxu0 %v1907
    %v2582 = vpop.f32.mrf.mxu0
    %v2583 = vadd.f32 0.0, %v2582
    %v2584 = vpop.f32.mrf.mxu0
    %2585 = vmatprep.mubr.f32.mxu0 0.0
    %2586 = vmatmul.mubr.f32.gmra.mxu0 %v1910
    %v2587 = vpop.f32.mrf.mxu0
    %v2588 = vadd.f32 0.0, %v2587
    %v2589 = vpop.f32.mrf.mxu0
    %2590 = vmatprep.mubr.f32.mxu0 0.0
    %2591 = vmatmul.mubr.f32.gmra.mxu0 %v1913
    %v2592 = vpop.f32.mrf.mxu0
    %v2593 = vadd.f32 0.0, %v2592
    %v2594 = vpop.f32.mrf.mxu0
    %2595 = vmatprep.mubr.f32.mxu0 0.0
    %2596 = vmatmul.mubr.f32.gmra.mxu0 %v1916
    %v2597 = vpop.f32.mrf.mxu0
    %v2598 = vadd.f32 0.0, %v2597
    %v2599 = vpop.f32.mrf.mxu0
    %2600 = vmatprep.mubr.f32.mxu0 0.0
    %2601 = vmatmul.mubr.f32.gmra.mxu0 %v1919
    %v2602 = vpop.f32.mrf.mxu0
    %v2603 = vadd.f32 0.0, %v2602
    %v2604 = vpop.f32.mrf.mxu0
    %2605 = vmatprep.mubr.f32.mxu0 0.0
    %2606 = vmatmul.mubr.f32.gmra.mxu0 %v1922
    %v2607 = vpop.f32.mrf.mxu0
    %v2608 = vadd.f32 0.0, %v2607
    %v2609 = vpop.f32.mrf.mxu0
    %2610 = vmatprep.mubr.f32.mxu0 0.0
    %2611 = vmatmul.mubr.f32.gmra.mxu0 %v1925
    %v2612 = vpop.f32.mrf.mxu0
    %v2613 = vadd.f32 0.0, %v2612
    %v2614 = vpop.f32.mrf.mxu0
    %2615 = vmatprep.mubr.f32.mxu0 0.0
    %2616 = vmatmul.mubr.f32.gmra.mxu0 %v1928
    %v2617 = vpop.f32.mrf.mxu0
    %v2618 = vadd.f32 0.0, %v2617
    %v2619 = vpop.f32.mrf.mxu0
    %2620 = vmatprep.mubr.f32.mxu0 0.0
    %2621 = vmatmul.mubr.f32.gmra.mxu0 %v1931
    %v2622 = vpop.f32.mrf.mxu0
    %v2623 = vadd.f32 0.0, %v2622
    %v2624 = vpop.f32.mrf.mxu0
    %2625 = vmatprep.mubr.f32.mxu0 0.0
    %2626 = vmatmul.mubr.f32.gmra.mxu0 %v1934
    %v2627 = vpop.f32.mrf.mxu0
    %v2628 = vadd.f32 0.0, %v2627
    %v2629 = vpop.f32.mrf.mxu0
    %2630 = vmatprep.mubr.f32.mxu0 0.0
    %2631 = vmatmul.mubr.f32.gmra.mxu0 %v1937
    %v2632 = vpop.f32.mrf.mxu0
    %v2633 = vadd.f32 0.0, %v2632
    %v2634 = vpop.f32.mrf.mxu0
    %2635 = vmatprep.mubr.f32.mxu0 0.0
    %2636 = vmatmul.mubr.f32.gmra.mxu0 %v1940
    %v2637 = vpop.f32.mrf.mxu0
    %v2638 = vadd.f32 0.0, %v2637
    %v2639 = vpop.f32.mrf.mxu0
    %2640 = vmatprep.mubr.f32.mxu0 0.0
    %2641 = vmatmul.mubr.f32.gmra.mxu0 %v1943
    %v2642 = vpop.f32.mrf.mxu0
    %v2643 = vadd.f32 0.0, %v2642
    %v2644 = vpop.f32.mrf.mxu0
    %2645 = vmatprep.mubr.f32.mxu0 0.0
    %2646 = vmatmul.mubr.f32.gmra.mxu0 %v1946
    %v2647 = vpop.f32.mrf.mxu0
    %v2648 = vadd.f32 0.0, %v2647
    %v2649 = vpop.f32.mrf.mxu0
    %2650 = vmatprep.mubr.f32.mxu0 0.0
    %2651 = vmatmul.mubr.f32.gmra.mxu0 %v1949
    %v2652 = vpop.f32.mrf.mxu0
    %v2653 = vadd.f32 0.0, %v2652
    %v2654 = vpop.f32.mrf.mxu0
    %2655 = vmatprep.mubr.f32.mxu0 0.0
    %2656 = vmatmul.mubr.f32.gmra.mxu0 %v1952
    %v2657 = vpop.f32.mrf.mxu0
    %v2658 = vadd.f32 0.0, %v2657
    %v2659 = vpop.f32.mrf.mxu0
    %2660 = vmatprep.mubr.f32.mxu0 0.0
    %2661 = vmatmul.mubr.f32.gmra.mxu0 %v1955
    %v2662 = vpop.f32.mrf.mxu0
    %v2663 = vadd.f32 0.0, %v2662
    %v2664 = vpop.f32.mrf.mxu0
    %2665 = vmatprep.mubr.f32.mxu0 0.0
    %2666 = vmatmul.mubr.f32.gmra.mxu0 %v1958
    %v2667 = vpop.f32.mrf.mxu0
    %v2668 = vadd.f32 0.0, %v2667
    %v2669 = vpop.f32.mrf.mxu0
    %2670 = vmatprep.mubr.f32.mxu0 0.0
    %2671 = vmatmul.mubr.f32.gmra.mxu0 %v1961
    %v2672 = vpop.f32.mrf.mxu0
    %v2673 = vadd.f32 0.0, %v2672
    %v2674 = vpop.f32.mrf.mxu0
    %2675 = vmatprep.mubr.f32.mxu0 0.0
    %2676 = vmatmul.mubr.f32.gmra.mxu0 %v1964
    %v2677 = vpop.f32.mrf.mxu0
    %v2678 = vadd.f32 0.0, %v2677
    %v2679 = vpop.f32.mrf.mxu0
    %2680 = vmatprep.mubr.f32.mxu0 0.0
    %2681 = vmatmul.mubr.f32.gmra.mxu0 %v1967
    %v2682 = vpop.f32.mrf.mxu0
    %v2683 = vadd.f32 0.0, %v2682
    %v2684 = vpop.f32.mrf.mxu0
    %2685 = vmatprep.mubr.f32.mxu0 0.0
    %2686 = vmatmul.mubr.f32.gmra.mxu0 %v1970
    %v2687 = vpop.f32.mrf.mxu0
    %v2688 = vadd.f32 0.0, %v2687
    %v2689 = vpop.f32.mrf.mxu0
    %2690 = vmatprep.mubr.f32.mxu0 0.0
    %2691 = vmatmul.mubr.f32.gmra.mxu0 %v1973
    %v2692 = vpop.f32.mrf.mxu0
    %v2693 = vadd.f32 0.0, %v2692
    %v2694 = vpop.f32.mrf.mxu0
    %2695 = vmatprep.mubr.f32.mxu0 0.0
    %2696 = vmatmul.mubr.f32.gmra.mxu0 %v1976
    %v2697 = vpop.f32.mrf.mxu0
    %v2698 = vadd.f32 0.0, %v2697
    %v2699 = vpop.f32.mrf.mxu0
    %2700 = vmatprep.mubr.f32.mxu0 0.0
    %2701 = vmatmul.mubr.f32.gmra.mxu0 %v1979
    %v2702 = vpop.f32.mrf.mxu0
    %v2703 = vadd.f32 0.0, %v2702
    %v2704 = vpop.f32.mrf.mxu0
    %2705 = vmatprep.mubr.f32.mxu0 0.0
    %2706 = vmatmul.mubr.f32.gmra.mxu0 %v1982
    %v2707 = vpop.f32.mrf.mxu0
    %v2708 = vadd.f32 0.0, %v2707
    %v2709 = vpop.f32.mrf.mxu0
    %2710 = vmatprep.mubr.f32.mxu0 0.0
    %2711 = vmatmul.mubr.f32.gmra.mxu0 %v1985
    %v2712 = vpop.f32.mrf.mxu0
    %v2713 = vadd.f32 0.0, %v2712
    %v2714 = vpop.f32.mrf.mxu0
    %2715 = vmatprep.mubr.f32.mxu0 0.0
    %2716 = vmatmul.mubr.f32.gmra.mxu0 %v1988
    %v2717 = vpop.f32.mrf.mxu0
    %v2718 = vadd.f32 0.0, %v2717
    %v2719 = vpop.f32.mrf.mxu0
    %2720 = vmatprep.mubr.f32.mxu0 0.0
    %2721 = vmatmul.mubr.f32.gmra.mxu0 %v1991
    %v2722 = vpop.f32.mrf.mxu0
    %v2723 = vadd.f32 0.0, %v2722
    %v2724 = vpop.f32.mrf.mxu0
    %2725 = vmatprep.mubr.f32.mxu0 0.0
    %2726 = vmatmul.mubr.f32.gmra.mxu0 %v1994
    %v2727 = vpop.f32.mrf.mxu0
    %v2728 = vadd.f32 0.0, %v2727
    %v2729 = vpop.f32.mrf.mxu0
    %2730 = vmatprep.mubr.f32.mxu0 0.0
    %2731 = vmatmul.mubr.f32.gmra.mxu0 %v1997
    %v2732 = vpop.f32.mrf.mxu0
    %v2733 = vadd.f32 0.0, %v2732
    %v2734 = vpop.f32.mrf.mxu0
    %2735 = vmatprep.mubr.f32.mxu0 0.0
    %2736 = vmatmul.mubr.f32.gmra.mxu0 %v2000
    %v2737 = vpop.f32.mrf.mxu0
    %v2738 = vadd.f32 0.0, %v2737
    %v2739 = vpop.f32.mrf.mxu0
    %2740 = vmatprep.mubr.f32.mxu0 0.0
    %2741 = vmatmul.mubr.f32.gmra.mxu0 %v2003
    %v2742 = vpop.f32.mrf.mxu0
    %v2743 = vadd.f32 0.0, %v2742
    %v2744 = vpop.f32.mrf.mxu0
    %2745 = vmatprep.mubr.f32.mxu0 0.0
    %2746 = vmatmul.mubr.f32.gmra.mxu0 %v2006
    %v2747 = vpop.f32.mrf.mxu0
    %v2748 = vadd.f32 0.0, %v2747
    %v2749 = vpop.f32.mrf.mxu0
    %2750 = vmatprep.mubr.f32.mxu0 0.0
    %2751 = vmatmul.mubr.f32.gmra.mxu0 %v2009
    %v2752 = vpop.f32.mrf.mxu0
    %v2753 = vadd.f32 0.0, %v2752
    %v2754 = vpop.f32.mrf.mxu0
    %2755 = vmatprep.mubr.f32.mxu0 0.0
    %2756 = vmatmul.mubr.f32.gmra.mxu0 %v2012
    %v2757 = vpop.f32.mrf.mxu0
    %v2758 = vadd.f32 0.0, %v2757
    %v2759 = vpop.f32.mrf.mxu0
    %2760 = vmatprep.mubr.f32.mxu0 0.0
    %2761 = vmatmul.mubr.f32.gmra.mxu0 %v2015
    %v2762 = vpop.f32.mrf.mxu0
    %v2763 = vadd.f32 0.0, %v2762
    %v2764 = vpop.f32.mrf.mxu0
    %2765 = vmatprep.mubr.f32.mxu0 0.0
    %2766 = vmatmul.mubr.f32.gmra.mxu0 %v2018
    %v2767 = vpop.f32.mrf.mxu0
    %v2768 = vadd.f32 0.0, %v2767
    %v2769 = vpop.f32.mrf.mxu0
    %2770 = vmatprep.mubr.f32.mxu0 0.0
    %2771 = vmatmul.mubr.f32.gmra.mxu0 %v2021
    %v2772 = vpop.f32.mrf.mxu0
    %v2773 = vadd.f32 0.0, %v2772
    %v2774 = vpop.f32.mrf.mxu0
    %2775 = vmatprep.mubr.f32.mxu0 0.0
    %2776 = vmatmul.mubr.f32.gmra.mxu0 %v2024
    %v2777 = vpop.f32.mrf.mxu0
    %v2778 = vadd.f32 0.0, %v2777
    %v2779 = vpop.f32.mrf.mxu0
    %2780 = vmatprep.mubr.f32.mxu0 0.0
    %2781 = vmatmul.mubr.f32.gmra.mxu0 %v2027
    %v2782 = vpop.f32.mrf.mxu0
    %v2783 = vadd.f32 0.0, %v2782
    %v2784 = vpop.f32.mrf.mxu0
    %2785 = vmatprep.mubr.f32.mxu0 0.0
    %2786 = vmatmul.mubr.f32.gmra.mxu0 %v2030
    %v2787 = vpop.f32.mrf.mxu0
    %v2788 = vadd.f32 0.0, %v2787
    %v2789 = vpop.f32.mrf.mxu0
    %2790 = vmatprep.mubr.f32.mxu0 0.0
    %2791 = vmatmul.mubr.f32.gmra.mxu0 %v2033
    %v2792 = vpop.f32.mrf.mxu0
    %v2793 = vadd.f32 0.0, %v2792
    %v2794 = vpop.f32.mrf.mxu0
    %2795 = vmatprep.mubr.f32.mxu0 0.0
    %2796 = vmatmul.mubr.f32.gmra.mxu0 %v2036
    %v2797 = vpop.f32.mrf.mxu0
    %v2798 = vadd.f32 0.0, %v2797
    %v2799 = vpop.f32.mrf.mxu0
    %2800 = vmatprep.mubr.f32.mxu0 0.0
    %2801 = vmatmul.mubr.f32.gmra.mxu0 %v2039
    %v2802 = vpop.f32.mrf.mxu0
    %v2803 = vadd.f32 0.0, %v2802
    %v2804 = vpop.f32.mrf.mxu0
    %2805 = vmatprep.mubr.f32.mxu0 0.0
    %2806 = vmatmul.mubr.f32.gmra.mxu0 %v2042
    %v2807 = vpop.f32.mrf.mxu0
    %v2808 = vadd.f32 0.0, %v2807
    %v2809 = vpop.f32.mrf.mxu0
    %2810 = vmatprep.mubr.f32.mxu0 0.0
    %2811 = vmatmul.mubr.f32.gmra.mxu0 %v2045
    %v2812 = vpop.f32.mrf.mxu0
    %v2813 = vadd.f32 0.0, %v2812
    %v2814 = vpop.f32.mrf.mxu0
    %2815 = vmatprep.mubr.f32.mxu0 0.0
    %2816 = vmatmul.mubr.f32.gmra.mxu0 %v2048
    %v2817 = vpop.f32.mrf.mxu0
    %v2818 = vadd.f32 0.0, %v2817
    %v2819 = vpop.f32.mrf.mxu0
    %2820 = vmatprep.mubr.f32.mxu0 0.0
    %2821 = vmatmul.mubr.f32.gmra.mxu0 %v2051
    %v2822 = vpop.f32.mrf.mxu0
    %v2823 = vadd.f32 0.0, %v2822
    %v2824 = vpop.f32.mrf.mxu0
    %2825 = vmatprep.mubr.f32.mxu0 0.0
    %2826 = vmatmul.mubr.f32.gmra.mxu0 %v2054
    %v2827 = vpop.f32.mrf.mxu0
    %v2828 = vadd.f32 0.0, %v2827
    %v2829 = vpop.f32.mrf.mxu0
    %2830 = vmatprep.mubr.f32.mxu0 0.0
    %2831 = vmatmul.mubr.f32.gmra.mxu0 %v2057
    %v2832 = vpop.f32.mrf.mxu0
    %v2833 = vadd.f32 0.0, %v2832
    %v2834 = vpop.f32.mrf.mxu0
    %2835 = vmatprep.mubr.f32.mxu0 0.0
    %2836 = vmatmul.mubr.f32.gmra.mxu0 %v2060
    %v2837 = vpop.f32.mrf.mxu0
    %v2838 = vadd.f32 0.0, %v2837
    %v2839 = vpop.f32.mrf.mxu0
    %2840 = vdwg.mxu0
    %v2906 = vrot.slane %v2518, 1
    %v2907 = vrot.slane %v2523, 1
    %v2908 = vsel %vm1146, %v2906, %v2907
    %v2909 = vrot.slane %v2528, 1
    %v2910 = vsel %vm1146, %v2907, %v2909
    %v2911 = vrot.slane %v2533, 1
    %v2912 = vsel %vm1146, %v2909, %v2911
    %v2913 = vrot.slane %v2538, 1
    %v2914 = vsel %vm1146, %v2911, %v2913
    %v2915 = vrot.slane %v2543, 1
    %v2916 = vsel %vm1146, %v2913, %v2915
    %v2917 = vrot.slane %v2548, 1
    %v2918 = vsel %vm1146, %v2915, %v2917
    %v2919 = vrot.slane %v2553, 1
    %v2920 = vsel %vm1146, %v2917, %v2919
    %v2921 = vrot.slane %v2558, 1
    %v2922 = vsel %vm1146, %v2919, %v2921
    %v2923 = vrot.slane %v2563, 1
    %v2924 = vsel %vm1146, %v2921, %v2923
    %v2925 = vrot.slane %v2568, 1
    %v2926 = vsel %vm1146, %v2923, %v2925
    %v2927 = vrot.slane %v2573, 1
    %v2928 = vsel %vm1146, %v2925, %v2927
    %v2929 = vrot.slane %v2578, 1
    %v2930 = vsel %vm1146, %v2927, %v2929
    %v2931 = vrot.slane %v2583, 1
    %v2932 = vsel %vm1146, %v2929, %v2931
    %v2933 = vrot.slane %v2588, 1
    %v2934 = vsel %vm1146, %v2931, %v2933
    %v2935 = vrot.slane %v2593, 1
    %v2936 = vsel %vm1146, %v2933, %v2935
    %v2937 = vrot.slane %v2598, 1
    %v2938 = vsel %vm1146, %v2935, %v2937
    %v2939 = vrot.slane %v2603, 1
    %v2940 = vsel %vm1146, %v2937, %v2939
    %v2941 = vrot.slane %v2608, 1
    %v2942 = vsel %vm1146, %v2939, %v2941
    %v2943 = vrot.slane %v2613, 1
    %v2944 = vsel %vm1146, %v2941, %v2943
    %v2945 = vrot.slane %v2618, 1
    %v2946 = vsel %vm1146, %v2943, %v2945
    %v2947 = vrot.slane %v2623, 1
    %v2948 = vsel %vm1146, %v2945, %v2947
    %v2949 = vrot.slane %v2628, 1
    %v2950 = vsel %vm1146, %v2947, %v2949
    %v2951 = vrot.slane %v2633, 1
    %v2952 = vsel %vm1146, %v2949, %v2951
    %v2953 = vrot.slane %v2638, 1
    %v2954 = vsel %vm1146, %v2951, %v2953
    %v2955 = vrot.slane %v2643, 1
    %v2956 = vsel %vm1146, %v2953, %v2955
    %v2957 = vrot.slane %v2648, 1
    %v2958 = vsel %vm1146, %v2955, %v2957
    %v2959 = vrot.slane %v2653, 1
    %v2960 = vsel %vm1146, %v2957, %v2959
    %v2961 = vrot.slane %v2658, 1
    %v2962 = vsel %vm1146, %v2959, %v2961
    %v2963 = vrot.slane %v2663, 1
    %v2964 = vsel %vm1146, %v2961, %v2963
    %v2965 = vrot.slane %v2668, 1
    %v2966 = vsel %vm1146, %v2963, %v2965
    %v2967 = vrot.slane %v2673, 1
    %v2968 = vsel %vm1146, %v2965, %v2967
    %v2969 = vrot.slane %v2678, 1
    %v2970 = vsel %vm1146, %v2967, %v2969
    %v2971 = vrot.slane %v2683, 1
    %v2972 = vsel %vm1146, %v2969, %v2971
    %v2973 = vrot.slane %v2688, 1
    %v2974 = vsel %vm1146, %v2971, %v2973
    %v2975 = vrot.slane %v2693, 1
    %v2976 = vsel %vm1146, %v2973, %v2975
    %v2977 = vrot.slane %v2698, 1
    %v2978 = vsel %vm1146, %v2975, %v2977
    %v2979 = vrot.slane %v2703, 1
    %v2980 = vsel %vm1146, %v2977, %v2979
    %v2981 = vrot.slane %v2708, 1
    %v2982 = vsel %vm1146, %v2979, %v2981
    %v2983 = vrot.slane %v2713, 1
    %v2984 = vsel %vm1146, %v2981, %v2983
    %v2985 = vrot.slane %v2718, 1
    %v2986 = vsel %vm1146, %v2983, %v2985
    %v2987 = vrot.slane %v2723, 1
    %v2988 = vsel %vm1146, %v2985, %v2987
    %v2989 = vrot.slane %v2728, 1
    %v2990 = vsel %vm1146, %v2987, %v2989
    %v2991 = vrot.slane %v2733, 1
    %v2992 = vsel %vm1146, %v2989, %v2991
    %v2993 = vrot.slane %v2738, 1
    %v2994 = vsel %vm1146, %v2991, %v2993
    %v2995 = vrot.slane %v2743, 1
    %v2996 = vsel %vm1146, %v2993, %v2995
    %v2997 = vrot.slane %v2748, 1
    %v2998 = vsel %vm1146, %v2995, %v2997
    %v2999 = vrot.slane %v2753, 1
    %v3000 = vsel %vm1146, %v2997, %v2999
    %v3001 = vrot.slane %v2758, 1
    %v3002 = vsel %vm1146, %v2999, %v3001
    %v3003 = vrot.slane %v2763, 1
    %v3004 = vsel %vm1146, %v3001, %v3003
    %v3005 = vrot.slane %v2768, 1
    %v3006 = vsel %vm1146, %v3003, %v3005
    %v3007 = vrot.slane %v2773, 1
    %v3008 = vsel %vm1146, %v3005, %v3007
    %v3009 = vrot.slane %v2778, 1
    %v3010 = vsel %vm1146, %v3007, %v3009
    %v3011 = vrot.slane %v2783, 1
    %v3012 = vsel %vm1146, %v3009, %v3011
    %v3013 = vrot.slane %v2788, 1
    %v3014 = vsel %vm1146, %v3011, %v3013
    %v3015 = vrot.slane %v2793, 1
    %v3016 = vsel %vm1146, %v3013, %v3015
    %v3017 = vrot.slane %v2798, 1
    %v3018 = vsel %vm1146, %v3015, %v3017
    %v3019 = vrot.slane %v2803, 1
    %v3020 = vsel %vm1146, %v3017, %v3019
    %v3021 = vrot.slane %v2808, 1
    %v3022 = vsel %vm1146, %v3019, %v3021
    %v3023 = vrot.slane %v2813, 1
    %v3024 = vsel %vm1146, %v3021, %v3023
    %v3025 = vrot.slane %v2818, 1
    %v3026 = vsel %vm1146, %v3023, %v3025
    %v3027 = vrot.slane %v2823, 1
    %v3028 = vsel %vm1146, %v3025, %v3027
    %v3029 = vrot.slane %v2828, 1
    %v3030 = vsel %vm1146, %v3027, %v3029
    %v3031 = vrot.slane %v2833, 1
    %v3032 = vsel %vm1146, %v3029, %v3031
    %v3033 = vrot.slane %v2838, 1
    %v3034 = vsel %vm1146, %v3031, %v3033
    %v3099 = vadd.f32 %v2129, %v2908
    %v3100 = vadd.f32 %v2134, %v2910
    %v3101 = vadd.f32 %v2139, %v2912
    %v3102 = vadd.f32 %v2144, %v2914
    %v3103 = vadd.f32 %v2149, %v2916
    %v3104 = vadd.f32 %v2154, %v2918
    %v3105 = vadd.f32 %v2159, %v2920
    %v3106 = vadd.f32 %v2164, %v2922
    %v3107 = vadd.f32 %v2169, %v2924
    %v3108 = vadd.f32 %v2174, %v2926
    %v3109 = vadd.f32 %v2179, %v2928
    %v3110 = vadd.f32 %v2184, %v2930
    %v3111 = vadd.f32 %v2189, %v2932
    %v3112 = vadd.f32 %v2194, %v2934
    %v3113 = vadd.f32 %v2199, %v2936
    %v3114 = vadd.f32 %v2204, %v2938
    %v3115 = vadd.f32 %v2209, %v2940
    %v3116 = vadd.f32 %v2214, %v2942
    %v3117 = vadd.f32 %v2219, %v2944
    %v3118 = vadd.f32 %v2224, %v2946
    %v3119 = vadd.f32 %v2229, %v2948
    %v3120 = vadd.f32 %v2234, %v2950
    %v3121 = vadd.f32 %v2239, %v2952
    %v3122 = vadd.f32 %v2244, %v2954
    %v3123 = vadd.f32 %v2249, %v2956
    %v3124 = vadd.f32 %v2254, %v2958
    %v3125 = vadd.f32 %v2259, %v2960
    %v3126 = vadd.f32 %v2264, %v2962
    %v3127 = vadd.f32 %v2269, %v2964
    %v3128 = vadd.f32 %v2274, %v2966
    %v3129 = vadd.f32 %v2279, %v2968
    %v3130 = vadd.f32 %v2284, %v2970
    %v3131 = vadd.f32 %v2289, %v2972
    %v3132 = vadd.f32 %v2294, %v2974
    %v3133 = vadd.f32 %v2299, %v2976
    %v3134 = vadd.f32 %v2304, %v2978
    %v3135 = vadd.f32 %v2309, %v2980
    %v3136 = vadd.f32 %v2314, %v2982
    %v3137 = vadd.f32 %v2319, %v2984
    %v3138 = vadd.f32 %v2324, %v2986
    %v3139 = vadd.f32 %v2329, %v2988
    %v3140 = vadd.f32 %v2334, %v2990
    %v3141 = vadd.f32 %v2339, %v2992
    %v3142 = vadd.f32 %v2344, %v2994
    %v3143 = vadd.f32 %v2349, %v2996
    %v3144 = vadd.f32 %v2354, %v2998
    %v3145 = vadd.f32 %v2359, %v3000
    %v3146 = vadd.f32 %v2364, %v3002
    %v3147 = vadd.f32 %v2369, %v3004
    %v3148 = vadd.f32 %v2374, %v3006
    %v3149 = vadd.f32 %v2379, %v3008
    %v3150 = vadd.f32 %v2384, %v3010
    %v3151 = vadd.f32 %v2389, %v3012
    %v3152 = vadd.f32 %v2394, %v3014
    %v3153 = vadd.f32 %v2399, %v3016
    %v3154 = vadd.f32 %v2404, %v3018
    %v3155 = vadd.f32 %v2409, %v3020
    %v3156 = vadd.f32 %v2414, %v3022
    %v3157 = vadd.f32 %v2419, %v3024
    %v3158 = vadd.f32 %v2424, %v3026
    %v3159 = vadd.f32 %v2429, %v3028
    %v3160 = vadd.f32 %v2434, %v3030
    %v3161 = vadd.f32 %v2439, %v3032
    %v3162 = vadd.f32 %v2444, %v3034
    %s3163 = scalar_lea.vmem [#allocation2], 512
    %3164 = vst.msk [vmem:[%s3163] sm:$0xff] %vm1404, %v3099
    %3165 = vst.msk [vmem:[%s3163 + $0x8] sm:$0xff] %vm1404, %v3100
    %3166 = vst.msk [vmem:[%s3163 + $0x10] sm:$0xff] %vm1404, %v3101
    %3167 = vst.msk [vmem:[%s3163 + $0x18] sm:$0xff] %vm1404, %v3102
    %3168 = vst.msk [vmem:[%s3163 + $0x20] sm:$0xff] %vm1404, %v3103
    %3169 = vst.msk [vmem:[%s3163 + $0x28] sm:$0xff] %vm1404, %v3104
    %3170 = vst.msk [vmem:[%s3163 + $0x30] sm:$0xff] %vm1404, %v3105
    %3171 = vst.msk [vmem:[%s3163 + $0x38] sm:$0xff] %vm1404, %v3106
    %3172 = vst.msk [vmem:[%s3163 + $0x40] sm:$0xff] %vm1404, %v3107
    %3173 = vst.msk [vmem:[%s3163 + $0x48] sm:$0xff] %vm1404, %v3108
    %3174 = vst.msk [vmem:[%s3163 + $0x50] sm:$0xff] %vm1404, %v3109
    %3175 = vst.msk [vmem:[%s3163 + $0x58] sm:$0xff] %vm1404, %v3110
    %3176 = vst.msk [vmem:[%s3163 + $0x60] sm:$0xff] %vm1404, %v3111
    %3177 = vst.msk [vmem:[%s3163 + $0x68] sm:$0xff] %vm1404, %v3112
    %3178 = vst.msk [vmem:[%s3163 + $0x70] sm:$0xff] %vm1404, %v3113
    %3179 = vst.msk [vmem:[%s3163 + $0x78] sm:$0xff] %vm1404, %v3114
    %3180 = vst.msk [vmem:[%s3163 + $0x80] sm:$0xff] %vm1404, %v3115
    %3181 = vst.msk [vmem:[%s3163 + $0x88] sm:$0xff] %vm1404, %v3116
    %3182 = vst.msk [vmem:[%s3163 + $0x90] sm:$0xff] %vm1404, %v3117
    %3183 = vst.msk [vmem:[%s3163 + $0x98] sm:$0xff] %vm1404, %v3118
    %3184 = vst.msk [vmem:[%s3163 + $0xa0] sm:$0xff] %vm1404, %v3119
    %3185 = vst.msk [vmem:[%s3163 + $0xa8] sm:$0xff] %vm1404, %v3120
    %3186 = vst.msk [vmem:[%s3163 + $0xb0] sm:$0xff] %vm1404, %v3121
    %3187 = vst.msk [vmem:[%s3163 + $0xb8] sm:$0xff] %vm1404, %v3122
    %3188 = vst.msk [vmem:[%s3163 + $0xc0] sm:$0xff] %vm1404, %v3123
    %3189 = vst.msk [vmem:[%s3163 + $0xc8] sm:$0xff] %vm1404, %v3124
    %3190 = vst.msk [vmem:[%s3163 + $0xd0] sm:$0xff] %vm1404, %v3125
    %3191 = vst.msk [vmem:[%s3163 + $0xd8] sm:$0xff] %vm1404, %v3126
    %3192 = vst.msk [vmem:[%s3163 + $0xe0] sm:$0xff] %vm1404, %v3127
    %3193 = vst.msk [vmem:[%s3163 + $0xe8] sm:$0xff] %vm1404, %v3128
    %3194 = vst.msk [vmem:[%s3163 + $0xf0] sm:$0xff] %vm1404, %v3129
    %3195 = vst.msk [vmem:[%s3163 + $0xf8] sm:$0xff] %vm1404, %v3130
    %3196 = vst.msk [vmem:[%s3163 + $0x100] sm:$0xff] %vm1404, %v3131
    %3197 = vst.msk [vmem:[%s3163 + $0x108] sm:$0xff] %vm1404, %v3132
    %3198 = vst.msk [vmem:[%s3163 + $0x110] sm:$0xff] %vm1404, %v3133
    %3199 = vst.msk [vmem:[%s3163 + $0x118] sm:$0xff] %vm1404, %v3134
    %3200 = vst.msk [vmem:[%s3163 + $0x120] sm:$0xff] %vm1404, %v3135
    %3201 = vst.msk [vmem:[%s3163 + $0x128] sm:$0xff] %vm1404, %v3136
    %3202 = vst.msk [vmem:[%s3163 + $0x130] sm:$0xff] %vm1404, %v3137
    %3203 = vst.msk [vmem:[%s3163 + $0x138] sm:$0xff] %vm1404, %v3138
    %3204 = vst.msk [vmem:[%s3163 + $0x140] sm:$0xff] %vm1404, %v3139
    %3205 = vst.msk [vmem:[%s3163 + $0x148] sm:$0xff] %vm1404, %v3140
    %3206 = vst.msk [vmem:[%s3163 + $0x150] sm:$0xff] %vm1404, %v3141
    %3207 = vst.msk [vmem:[%s3163 + $0x158] sm:$0xff] %vm1404, %v3142
    %3208 = vst.msk [vmem:[%s3163 + $0x160] sm:$0xff] %vm1404, %v3143
    %3209 = vst.msk [vmem:[%s3163 + $0x168] sm:$0xff] %vm1404, %v3144
    %3210 = vst.msk [vmem:[%s3163 + $0x170] sm:$0xff] %vm1404, %v3145
    %3211 = vst.msk [vmem:[%s3163 + $0x178] sm:$0xff] %vm1404, %v3146
    %3212 = vst.msk [vmem:[%s3163 + $0x180] sm:$0xff] %vm1404, %v3147
    %3213 = vst.msk [vmem:[%s3163 + $0x188] sm:$0xff] %vm1404, %v3148
    %3214 = vst.msk [vmem:[%s3163 + $0x190] sm:$0xff] %vm1404, %v3149
    %3215 = vst.msk [vmem:[%s3163 + $0x198] sm:$0xff] %vm1404, %v3150
    %3216 = vst.msk [vmem:[%s3163 + $0x1a0] sm:$0xff] %vm1404, %v3151
    %3217 = vst.msk [vmem:[%s3163 + $0x1a8] sm:$0xff] %vm1404, %v3152
    %3218 = vst.msk [vmem:[%s3163 + $0x1b0] sm:$0xff] %vm1404, %v3153
    %3219 = vst.msk [vmem:[%s3163 + $0x1b8] sm:$0xff] %vm1404, %v3154
    %3220 = vst.msk [vmem:[%s3163 + $0x1c0] sm:$0xff] %vm1404, %v3155
    %3221 = vst.msk [vmem:[%s3163 + $0x1c8] sm:$0xff] %vm1404, %v3156
    %3222 = vst.msk [vmem:[%s3163 + $0x1d0] sm:$0xff] %vm1404, %v3157
    %3223 = vst.msk [vmem:[%s3163 + $0x1d8] sm:$0xff] %vm1404, %v3158
    %3224 = vst.msk [vmem:[%s3163 + $0x1e0] sm:$0xff] %vm1404, %v3159
    %3225 = vst.msk [vmem:[%s3163 + $0x1e8] sm:$0xff] %vm1404, %v3160
    %3226 = vst.msk [vmem:[%s3163 + $0x1f0] sm:$0xff] %vm1404, %v3161
    %3227 = vst.msk [vmem:[%s3163 + $0x1f8] sm:$0xff] %vm1404, %v3162
    %v3228 = vsel %vm1404, %v3099, 0.0
    %v3229 = vsel %vm1404, %v3100, 0.0
    %v3230 = vadd.f32 %v3228, %v3229
    %v3231 = vsel %vm1404, %v3101, 0.0
    %v3232 = vadd.f32 %v3230, %v3231
    %v3233 = vsel %vm1404, %v3102, 0.0
    %v3234 = vadd.f32 %v3232, %v3233
    %v3235 = vsel %vm1404, %v3103, 0.0
    %v3236 = vadd.f32 %v3234, %v3235
    %v3237 = vsel %vm1404, %v3104, 0.0
    %v3238 = vadd.f32 %v3236, %v3237
    %v3239 = vsel %vm1404, %v3105, 0.0
    %v3240 = vadd.f32 %v3238, %v3239
    %v3241 = vsel %vm1404, %v3106, 0.0
    %v3242 = vadd.f32 %v3240, %v3241
    %v3243 = vsel %vm1404, %v3107, 0.0
    %v3244 = vadd.f32 %v3242, %v3243
    %v3245 = vsel %vm1404, %v3108, 0.0
    %v3246 = vadd.f32 %v3244, %v3245
    %v3247 = vsel %vm1404, %v3109, 0.0
    %v3248 = vadd.f32 %v3246, %v3247
    %v3249 = vsel %vm1404, %v3110, 0.0
    %v3250 = vadd.f32 %v3248, %v3249
    %v3251 = vsel %vm1404, %v3111, 0.0
    %v3252 = vadd.f32 %v3250, %v3251
    %v3253 = vsel %vm1404, %v3112, 0.0
    %v3254 = vadd.f32 %v3252, %v3253
    %v3255 = vsel %vm1404, %v3113, 0.0
    %v3256 = vadd.f32 %v3254, %v3255
    %v3257 = vsel %vm1404, %v3114, 0.0
    %v3258 = vadd.f32 %v3256, %v3257
    %v3259 = vsel %vm1404, %v3115, 0.0
    %v3260 = vadd.f32 %v3258, %v3259
    %v3261 = vsel %vm1404, %v3116, 0.0
    %v3262 = vadd.f32 %v3260, %v3261
    %v3263 = vsel %vm1404, %v3117, 0.0
    %v3264 = vadd.f32 %v3262, %v3263
    %v3265 = vsel %vm1404, %v3118, 0.0
    %v3266 = vadd.f32 %v3264, %v3265
    %v3267 = vsel %vm1404, %v3119, 0.0
    %v3268 = vadd.f32 %v3266, %v3267
    %v3269 = vsel %vm1404, %v3120, 0.0
    %v3270 = vadd.f32 %v3268, %v3269
    %v3271 = vsel %vm1404, %v3121, 0.0
    %v3272 = vadd.f32 %v3270, %v3271
    %v3273 = vsel %vm1404, %v3122, 0.0
    %v3274 = vadd.f32 %v3272, %v3273
    %v3275 = vsel %vm1404, %v3123, 0.0
    %v3276 = vadd.f32 %v3274, %v3275
    %v3277 = vsel %vm1404, %v3124, 0.0
    %v3278 = vadd.f32 %v3276, %v3277
    %v3279 = vsel %vm1404, %v3125, 0.0
    %v3280 = vadd.f32 %v3278, %v3279
    %v3281 = vsel %vm1404, %v3126, 0.0
    %v3282 = vadd.f32 %v3280, %v3281
    %v3283 = vsel %vm1404, %v3127, 0.0
    %v3284 = vadd.f32 %v3282, %v3283
    %v3285 = vsel %vm1404, %v3128, 0.0
    %v3286 = vadd.f32 %v3284, %v3285
    %v3287 = vsel %vm1404, %v3129, 0.0
    %v3288 = vadd.f32 %v3286, %v3287
    %v3289 = vsel %vm1404, %v3130, 0.0
    %v3290 = vadd.f32 %v3288, %v3289
    %v3291 = vsel %vm1404, %v3131, 0.0
    %v3292 = vadd.f32 %v3290, %v3291
    %v3293 = vsel %vm1404, %v3132, 0.0
    %v3294 = vadd.f32 %v3292, %v3293
    %v3295 = vsel %vm1404, %v3133, 0.0
    %v3296 = vadd.f32 %v3294, %v3295
    %v3297 = vsel %vm1404, %v3134, 0.0
    %v3298 = vadd.f32 %v3296, %v3297
    %v3299 = vsel %vm1404, %v3135, 0.0
    %v3300 = vadd.f32 %v3298, %v3299
    %v3301 = vsel %vm1404, %v3136, 0.0
    %v3302 = vadd.f32 %v3300, %v3301
    %v3303 = vsel %vm1404, %v3137, 0.0
    %v3304 = vadd.f32 %v3302, %v3303
    %v3305 = vsel %vm1404, %v3138, 0.0
    %v3306 = vadd.f32 %v3304, %v3305
    %v3307 = vsel %vm1404, %v3139, 0.0
    %v3308 = vadd.f32 %v3306, %v3307
    %v3309 = vsel %vm1404, %v3140, 0.0
    %v3310 = vadd.f32 %v3308, %v3309
    %v3311 = vsel %vm1404, %v3141, 0.0
    %v3312 = vadd.f32 %v3310, %v3311
    %v3313 = vsel %vm1404, %v3142, 0.0
    %v3314 = vadd.f32 %v3312, %v3313
    %v3315 = vsel %vm1404, %v3143, 0.0
    %v3316 = vadd.f32 %v3314, %v3315
    %v3317 = vsel %vm1404, %v3144, 0.0
    %v3318 = vadd.f32 %v3316, %v3317
    %v3319 = vsel %vm1404, %v3145, 0.0
    %v3320 = vadd.f32 %v3318, %v3319
    %v3321 = vsel %vm1404, %v3146, 0.0
    %v3322 = vadd.f32 %v3320, %v3321
    %v3323 = vsel %vm1404, %v3147, 0.0
    %v3324 = vadd.f32 %v3322, %v3323
    %v3325 = vsel %vm1404, %v3148, 0.0
    %v3326 = vadd.f32 %v3324, %v3325
    %v3327 = vsel %vm1404, %v3149, 0.0
    %v3328 = vadd.f32 %v3326, %v3327
    %v3329 = vsel %vm1404, %v3150, 0.0
    %v3330 = vadd.f32 %v3328, %v3329
    %v3331 = vsel %vm1404, %v3151, 0.0
    %v3332 = vadd.f32 %v3330, %v3331
    %v3333 = vsel %vm1404, %v3152, 0.0
    %v3334 = vadd.f32 %v3332, %v3333
    %v3335 = vsel %vm1404, %v3153, 0.0
    %v3336 = vadd.f32 %v3334, %v3335
    %v3337 = vsel %vm1404, %v3154, 0.0
    %v3338 = vadd.f32 %v3336, %v3337
    %v3339 = vsel %vm1404, %v3155, 0.0
    %v3340 = vadd.f32 %v3338, %v3339
    %v3341 = vsel %vm1404, %v3156, 0.0
    %v3342 = vadd.f32 %v3340, %v3341
    %v3343 = vsel %vm1404, %v3157, 0.0
    %v3344 = vadd.f32 %v3342, %v3343
    %v3345 = vsel %vm1404, %v3158, 0.0
    %v3346 = vadd.f32 %v3344, %v3345
    %v3347 = vsel %vm1404, %v3159, 0.0
    %v3348 = vadd.f32 %v3346, %v3347
    %v3349 = vsel %vm1404, %v3160, 0.0
    %v3350 = vadd.f32 %v3348, %v3349
    %v3351 = vsel %vm1404, %v3161, 0.0
    %v3352 = vadd.f32 %v3350, %v3351
    %v3353 = vsel %vm1404, %v3162, 0.0
    %v3354 = vadd.f32 %v3352, %v3353
    %v3355 = vrot.slane %v3354, 4
    %v3356 = vadd.f32 %v3354, %v3355
    %v3357 = vrot.slane %v3356, 2
    %v3358 = vadd.f32 %v3356, %v3357
    %v3359 = vrot.slane %v3358, 1
    %v3360 = vadd.f32 %v3358, %v3359
    %v3361 = vadd.f32 %v1602, %v3360
    %v3362 = vmul.f32 %v3099, %v3099
    %v3363 = vmul.f32 %v3100, %v3100
    %v3364 = vmul.f32 %v3101, %v3101
    %v3365 = vmul.f32 %v3102, %v3102
    %v3366 = vmul.f32 %v3103, %v3103
    %v3367 = vmul.f32 %v3104, %v3104
    %v3368 = vmul.f32 %v3105, %v3105
    %v3369 = vmul.f32 %v3106, %v3106
    %v3370 = vmul.f32 %v3107, %v3107
    %v3371 = vmul.f32 %v3108, %v3108
    %v3372 = vmul.f32 %v3109, %v3109
    %v3373 = vmul.f32 %v3110, %v3110
    %v3374 = vmul.f32 %v3111, %v3111
    %v3375 = vmul.f32 %v3112, %v3112
    %v3376 = vmul.f32 %v3113, %v3113
    %v3377 = vmul.f32 %v3114, %v3114
    %v3378 = vmul.f32 %v3115, %v3115
    %v3379 = vmul.f32 %v3116, %v3116
    %v3380 = vmul.f32 %v3117, %v3117
    %v3381 = vmul.f32 %v3118, %v3118
    %v3382 = vmul.f32 %v3119, %v3119
    %v3383 = vmul.f32 %v3120, %v3120
    %v3384 = vmul.f32 %v3121, %v3121
    %v3385 = vmul.f32 %v3122, %v3122
    %v3386 = vmul.f32 %v3123, %v3123
    %v3387 = vmul.f32 %v3124, %v3124
    %v3388 = vmul.f32 %v3125, %v3125
    %v3389 = vmul.f32 %v3126, %v3126
    %v3390 = vmul.f32 %v3127, %v3127
    %v3391 = vmul.f32 %v3128, %v3128
    %v3392 = vmul.f32 %v3129, %v3129
    %v3393 = vmul.f32 %v3130, %v3130
    %v3394 = vmul.f32 %v3131, %v3131
    %v3395 = vmul.f32 %v3132, %v3132
    %v3396 = vmul.f32 %v3133, %v3133
    %v3397 = vmul.f32 %v3134, %v3134
    %v3398 = vmul.f32 %v3135, %v3135
    %v3399 = vmul.f32 %v3136, %v3136
    %v3400 = vmul.f32 %v3137, %v3137
    %v3401 = vmul.f32 %v3138, %v3138
    %v3402 = vmul.f32 %v3139, %v3139
    %v3403 = vmul.f32 %v3140, %v3140
    %v3404 = vmul.f32 %v3141, %v3141
    %v3405 = vmul.f32 %v3142, %v3142
    %v3406 = vmul.f32 %v3143, %v3143
    %v3407 = vmul.f32 %v3144, %v3144
    %v3408 = vmul.f32 %v3145, %v3145
    %v3409 = vmul.f32 %v3146, %v3146
    %v3410 = vmul.f32 %v3147, %v3147
    %v3411 = vmul.f32 %v3148, %v3148
    %v3412 = vmul.f32 %v3149, %v3149
    %v3413 = vmul.f32 %v3150, %v3150
    %v3414 = vmul.f32 %v3151, %v3151
    %v3415 = vmul.f32 %v3152, %v3152
    %v3416 = vmul.f32 %v3153, %v3153
    %v3417 = vmul.f32 %v3154, %v3154
    %v3418 = vmul.f32 %v3155, %v3155
    %v3419 = vmul.f32 %v3156, %v3156
    %v3420 = vmul.f32 %v3157, %v3157
    %v3421 = vmul.f32 %v3158, %v3158
    %v3422 = vmul.f32 %v3159, %v3159
    %v3423 = vmul.f32 %v3160, %v3160
    %v3424 = vmul.f32 %v3161, %v3161
    %v3425 = vmul.f32 %v3162, %v3162
    %v3426 = vsel %vm1404, %v3362, 0.0
    %v3427 = vsel %vm1404, %v3363, 0.0
    %v3428 = vadd.f32 %v3426, %v3427
    %v3429 = vsel %vm1404, %v3364, 0.0
    %v3430 = vadd.f32 %v3428, %v3429
    %v3431 = vsel %vm1404, %v3365, 0.0
    %v3432 = vadd.f32 %v3430, %v3431
    %v3433 = vsel %vm1404, %v3366, 0.0
    %v3434 = vadd.f32 %v3432, %v3433
    %v3435 = vsel %vm1404, %v3367, 0.0
    %v3436 = vadd.f32 %v3434, %v3435
    %v3437 = vsel %vm1404, %v3368, 0.0
    %v3438 = vadd.f32 %v3436, %v3437
    %v3439 = vsel %vm1404, %v3369, 0.0
    %v3440 = vadd.f32 %v3438, %v3439
    %v3441 = vsel %vm1404, %v3370, 0.0
    %v3442 = vadd.f32 %v3440, %v3441
    %v3443 = vsel %vm1404, %v3371, 0.0
    %v3444 = vadd.f32 %v3442, %v3443
    %v3445 = vsel %vm1404, %v3372, 0.0
    %v3446 = vadd.f32 %v3444, %v3445
    %v3447 = vsel %vm1404, %v3373, 0.0
    %v3448 = vadd.f32 %v3446, %v3447
    %v3449 = vsel %vm1404, %v3374, 0.0
    %v3450 = vadd.f32 %v3448, %v3449
    %v3451 = vsel %vm1404, %v3375, 0.0
    %v3452 = vadd.f32 %v3450, %v3451
    %v3453 = vsel %vm1404, %v3376, 0.0
    %v3454 = vadd.f32 %v3452, %v3453
    %v3455 = vsel %vm1404, %v3377, 0.0
    %v3456 = vadd.f32 %v3454, %v3455
    %v3457 = vsel %vm1404, %v3378, 0.0
    %v3458 = vadd.f32 %v3456, %v3457
    %v3459 = vsel %vm1404, %v3379, 0.0
    %v3460 = vadd.f32 %v3458, %v3459
    %v3461 = vsel %vm1404, %v3380, 0.0
    %v3462 = vadd.f32 %v3460, %v3461
    %v3463 = vsel %vm1404, %v3381, 0.0
    %v3464 = vadd.f32 %v3462, %v3463
    %v3465 = vsel %vm1404, %v3382, 0.0
    %v3466 = vadd.f32 %v3464, %v3465
    %v3467 = vsel %vm1404, %v3383, 0.0
    %v3468 = vadd.f32 %v3466, %v3467
    %v3469 = vsel %vm1404, %v3384, 0.0
    %v3470 = vadd.f32 %v3468, %v3469
    %v3471 = vsel %vm1404, %v3385, 0.0
    %v3472 = vadd.f32 %v3470, %v3471
    %v3473 = vsel %vm1404, %v3386, 0.0
    %v3474 = vadd.f32 %v3472, %v3473
    %v3475 = vsel %vm1404, %v3387, 0.0
    %v3476 = vadd.f32 %v3474, %v3475
    %v3477 = vsel %vm1404, %v3388, 0.0
    %v3478 = vadd.f32 %v3476, %v3477
    %v3479 = vsel %vm1404, %v3389, 0.0
    %v3480 = vadd.f32 %v3478, %v3479
    %v3481 = vsel %vm1404, %v3390, 0.0
    %v3482 = vadd.f32 %v3480, %v3481
    %v3483 = vsel %vm1404, %v3391, 0.0
    %v3484 = vadd.f32 %v3482, %v3483
    %v3485 = vsel %vm1404, %v3392, 0.0
    %v3486 = vadd.f32 %v3484, %v3485
    %v3487 = vsel %vm1404, %v3393, 0.0
    %v3488 = vadd.f32 %v3486, %v3487
    %v3489 = vsel %vm1404, %v3394, 0.0
    %v3490 = vadd.f32 %v3488, %v3489
    %v3491 = vsel %vm1404, %v3395, 0.0
    %v3492 = vadd.f32 %v3490, %v3491
    %v3493 = vsel %vm1404, %v3396, 0.0
    %v3494 = vadd.f32 %v3492, %v3493
    %v3495 = vsel %vm1404, %v3397, 0.0
    %v3496 = vadd.f32 %v3494, %v3495
    %v3497 = vsel %vm1404, %v3398, 0.0
    %v3498 = vadd.f32 %v3496, %v3497
    %v3499 = vsel %vm1404, %v3399, 0.0
    %v3500 = vadd.f32 %v3498, %v3499
    %v3501 = vsel %vm1404, %v3400, 0.0
    %v3502 = vadd.f32 %v3500, %v3501
    %v3503 = vsel %vm1404, %v3401, 0.0
    %v3504 = vadd.f32 %v3502, %v3503
    %v3505 = vsel %vm1404, %v3402, 0.0
    %v3506 = vadd.f32 %v3504, %v3505
    %v3507 = vsel %vm1404, %v3403, 0.0
    %v3508 = vadd.f32 %v3506, %v3507
    %v3509 = vsel %vm1404, %v3404, 0.0
    %v3510 = vadd.f32 %v3508, %v3509
    %v3511 = vsel %vm1404, %v3405, 0.0
    %v3512 = vadd.f32 %v3510, %v3511
    %v3513 = vsel %vm1404, %v3406, 0.0
    %v3514 = vadd.f32 %v3512, %v3513
    %v3515 = vsel %vm1404, %v3407, 0.0
    %v3516 = vadd.f32 %v3514, %v3515
    %v3517 = vsel %vm1404, %v3408, 0.0
    %v3518 = vadd.f32 %v3516, %v3517
    %v3519 = vsel %vm1404, %v3409, 0.0
    %v3520 = vadd.f32 %v3518, %v3519
    %v3521 = vsel %vm1404, %v3410, 0.0
    %v3522 = vadd.f32 %v3520, %v3521
    %v3523 = vsel %vm1404, %v3411, 0.0
    %v3524 = vadd.f32 %v3522, %v3523
    %v3525 = vsel %vm1404, %v3412, 0.0
    %v3526 = vadd.f32 %v3524, %v3525
    %v3527 = vsel %vm1404, %v3413, 0.0
    %v3528 = vadd.f32 %v3526, %v3527
    %v3529 = vsel %vm1404, %v3414, 0.0
    %v3530 = vadd.f32 %v3528, %v3529
    %v3531 = vsel %vm1404, %v3415, 0.0
    %v3532 = vadd.f32 %v3530, %v3531
    %v3533 = vsel %vm1404, %v3416, 0.0
    %v3534 = vadd.f32 %v3532, %v3533
    %v3535 = vsel %vm1404, %v3417, 0.0
    %v3536 = vadd.f32 %v3534, %v3535
    %v3537 = vsel %vm1404, %v3418, 0.0
    %v3538 = vadd.f32 %v3536, %v3537
    %v3539 = vsel %vm1404, %v3419, 0.0
    %v3540 = vadd.f32 %v3538, %v3539
    %v3541 = vsel %vm1404, %v3420, 0.0
    %v3542 = vadd.f32 %v3540, %v3541
    %v3543 = vsel %vm1404, %v3421, 0.0
    %v3544 = vadd.f32 %v3542, %v3543
    %v3545 = vsel %vm1404, %v3422, 0.0
    %v3546 = vadd.f32 %v3544, %v3545
    %v3547 = vsel %vm1404, %v3423, 0.0
    %v3548 = vadd.f32 %v3546, %v3547
    %v3549 = vsel %vm1404, %v3424, 0.0
    %v3550 = vadd.f32 %v3548, %v3549
    %v3551 = vsel %vm1404, %v3425, 0.0
    %v3552 = vadd.f32 %v3550, %v3551
    %v3553 = vrot.slane %v3552, 4
    %v3554 = vadd.f32 %v3552, %v3553
    %v3555 = vrot.slane %v3554, 2
    %v3556 = vadd.f32 %v3554, %v3555
    %v3557 = vrot.slane %v3556, 1
    %v3558 = vadd.f32 %v3556, %v3557
    %v3559 = vadd.f32 %v1800, %v3558
    %v3560 = vrcp.pop 1024.0
    %v3561 = vmul.f32 %v3361, %v3560
    %v3562 = vmul.f32 %v3559, %v3560
    %v3563 = vmul.f32 %v3561, %v3561
    %v3564 = vsub.f32 %v3562, %v3563
    %v3565 = vmax.f32 %v3564, 0.0
    %v3566 = vld [vmem:[%s2] sm:$0x1]
    %v3567 = vadd.f32 %v3565, 1e-05
    %v3568 = vrsqrt.pop %v3567
    %v3569 = vmul.f32 %v3566, %v3568
    %v3570 = vld [vmem:[%s3] sm:$0x1]
    %v3571 = vmul.f32 %v3561, %v3569
    %v3572 = vsub.f32 %v3570, %v3571
    %v3573 = vlaneseq
    %v3574 = vshrl.u32 %v3573, 7
    %v3575 = vadd.s32 %v3574, 8
    %v3576 = vadd.s32 %v3574, 16
    %v3577 = vadd.s32 %v3574, 24
    %v3578 = vadd.s32 %v3574, 32
    %v3579 = vadd.s32 %v3574, 40
    %v3580 = vadd.s32 %v3574, 48
    %v3581 = vadd.s32 %v3574, 56
    %v3582 = vadd.s32 %v3574, 64
    %v3583 = vadd.s32 %v3574, 72
    %v3584 = vadd.s32 %v3574, 80
    %v3585 = vadd.s32 %v3574, 88
    %v3586 = vadd.s32 %v3574, 96
    %v3587 = vadd.s32 %v3574, 104
    %v3588 = vadd.s32 %v3574, 112
    %v3589 = vadd.s32 %v3574, 120
    %v3590 = vadd.s32 %v3574, 128
    %v3591 = vadd.s32 %v3574, 136
    %v3592 = vadd.s32 %v3574, 144
    %v3593 = vadd.s32 %v3574, 152
    %v3594 = vadd.s32 %v3574, 160
    %v3595 = vadd.s32 %v3574, 168
    %v3596 = vadd.s32 %v3574, 176
    %v3597 = vadd.s32 %v3574, 184
    %v3598 = vadd.s32 %v3574, 192
    %v3599 = vadd.s32 %v3574, 200
    %v3600 = vadd.s32 %v3574, 208
    %v3601 = vadd.s32 %v3574, 216
    %v3602 = vadd.s32 %v3574, 224
    %v3603 = vadd.s32 %v3574, 232
    %v3604 = vadd.s32 %v3574, 240
    %v3605 = vadd.s32 %v3574, 248
    %v3606 = vadd.s32 %v3574, 256
    %v3607 = vadd.s32 %v3574, 264
    %v3608 = vadd.s32 %v3574, 272
    %v3609 = vadd.s32 %v3574, 280
    %v3610 = vadd.s32 %v3574, 288
    %v3611 = vadd.s32 %v3574, 296
    %v3612 = vadd.s32 %v3574, 304
    %v3613 = vadd.s32 %v3574, 312
    %v3614 = vadd.s32 %v3574, 320
    %v3615 = vadd.s32 %v3574, 328
    %v3616 = vadd.s32 %v3574, 336
    %v3617 = vadd.s32 %v3574, 344
    %v3618 = vadd.s32 %v3574, 352
    %v3619 = vadd.s32 %v3574, 360
    %v3620 = vadd.s32 %v3574, 368
    %v3621 = vadd.s32 %v3574, 376
    %v3622 = vadd.s32 %v3574, 384
    %v3623 = vadd.s32 %v3574, 392
    %v3624 = vadd.s32 %v3574, 400
    %v3625 = vadd.s32 %v3574, 408
    %v3626 = vadd.s32 %v3574, 416
    %v3627 = vadd.s32 %v3574, 424
    %v3628 = vadd.s32 %v3574, 432
    %v3629 = vadd.s32 %v3574, 440
    %v3630 = vadd.s32 %v3574, 448
    %v3631 = vadd.s32 %v3574, 456
    %v3632 = vadd.s32 %v3574, 464
    %v3633 = vadd.s32 %v3574, 472
    %v3634 = vadd.s32 %v3574, 480
    %v3635 = vadd.s32 %v3574, 488
    %v3636 = vadd.s32 %v3574, 496
    %v3637 = vadd.s32 %v3574, 504
    %vm3638 = vcmp.ge.s32.totalorder %v3574, 1
    %vm3639 = vcmp.ge.s32.totalorder %v3575, 1
    %vm3640 = vcmp.ge.s32.totalorder %v3576, 1
    %vm3641 = vcmp.ge.s32.totalorder %v3577, 1
    %vm3642 = vcmp.ge.s32.totalorder %v3578, 1
    %vm3643 = vcmp.ge.s32.totalorder %v3579, 1
    %vm3644 = vcmp.ge.s32.totalorder %v3580, 1
    %vm3645 = vcmp.ge.s32.totalorder %v3581, 1
    %vm3646 = vcmp.ge.s32.totalorder %v3582, 1
    %vm3647 = vcmp.ge.s32.totalorder %v3583, 1
    %vm3648 = vcmp.ge.s32.totalorder %v3584, 1
    %vm3649 = vcmp.ge.s32.totalorder %v3585, 1
    %vm3650 = vcmp.ge.s32.totalorder %v3586, 1
    %vm3651 = vcmp.ge.s32.totalorder %v3587, 1
    %vm3652 = vcmp.ge.s32.totalorder %v3588, 1
    %vm3653 = vcmp.ge.s32.totalorder %v3589, 1
    %vm3654 = vcmp.ge.s32.totalorder %v3590, 1
    %vm3655 = vcmp.ge.s32.totalorder %v3591, 1
    %vm3656 = vcmp.ge.s32.totalorder %v3592, 1
    %vm3657 = vcmp.ge.s32.totalorder %v3593, 1
    %vm3658 = vcmp.ge.s32.totalorder %v3594, 1
    %vm3659 = vcmp.ge.s32.totalorder %v3595, 1
    %vm3660 = vcmp.ge.s32.totalorder %v3596, 1
    %vm3661 = vcmp.ge.s32.totalorder %v3597, 1
    %vm3662 = vcmp.ge.s32.totalorder %v3598, 1
    %vm3663 = vcmp.ge.s32.totalorder %v3599, 1
    %vm3664 = vcmp.ge.s32.totalorder %v3600, 1
    %vm3665 = vcmp.ge.s32.totalorder %v3601, 1
    %vm3666 = vcmp.ge.s32.totalorder %v3602, 1
    %vm3667 = vcmp.ge.s32.totalorder %v3603, 1
    %vm3668 = vcmp.ge.s32.totalorder %v3604, 1
    %vm3669 = vcmp.ge.s32.totalorder %v3605, 1
    %vm3670 = vcmp.ge.s32.totalorder %v3606, 1
    %vm3671 = vcmp.ge.s32.totalorder %v3607, 1
    %vm3672 = vcmp.ge.s32.totalorder %v3608, 1
    %vm3673 = vcmp.ge.s32.totalorder %v3609, 1
    %vm3674 = vcmp.ge.s32.totalorder %v3610, 1
    %vm3675 = vcmp.ge.s32.totalorder %v3611, 1
    %vm3676 = vcmp.ge.s32.totalorder %v3612, 1
    %vm3677 = vcmp.ge.s32.totalorder %v3613, 1
    %vm3678 = vcmp.ge.s32.totalorder %v3614, 1
    %vm3679 = vcmp.ge.s32.totalorder %v3615, 1
    %vm3680 = vcmp.ge.s32.totalorder %v3616, 1
    %vm3681 = vcmp.ge.s32.totalorder %v3617, 1
    %vm3682 = vcmp.ge.s32.totalorder %v3618, 1
    %vm3683 = vcmp.ge.s32.totalorder %v3619, 1
    %vm3684 = vcmp.ge.s32.totalorder %v3620, 1
    %vm3685 = vcmp.ge.s32.totalorder %v3621, 1
    %vm3686 = vcmp.ge.s32.totalorder %v3622, 1
    %vm3687 = vcmp.ge.s32.totalorder %v3623, 1
    %vm3688 = vcmp.ge.s32.totalorder %v3624, 1
    %vm3689 = vcmp.ge.s32.totalorder %v3625, 1
    %vm3690 = vcmp.ge.s32.totalorder %v3626, 1
    %vm3691 = vcmp.ge.s32.totalorder %v3627, 1
    %vm3692 = vcmp.ge.s32.totalorder %v3628, 1
    %vm3693 = vcmp.ge.s32.totalorder %v3629, 1
    %vm3694 = vcmp.ge.s32.totalorder %v3630, 1
    %vm3695 = vcmp.ge.s32.totalorder %v3631, 1
    %vm3696 = vcmp.ge.s32.totalorder %v3632, 1
    %vm3697 = vcmp.ge.s32.totalorder %v3633, 1
    %vm3698 = vcmp.ge.s32.totalorder %v3634, 1
    %vm3699 = vcmp.ge.s32.totalorder %v3635, 1
    %vm3700 = vcmp.ge.s32.totalorder %v3636, 1
    %vm3701 = vcmp.ge.s32.totalorder %v3637, 1
    %vm3702 = vcmp.le.s32.totalorder %v3574, 509
    %vm3703 = vcmp.le.s32.totalorder %v3575, 509
    %vm3704 = vcmp.le.s32.totalorder %v3576, 509
    %vm3705 = vcmp.le.s32.totalorder %v3577, 509
    %vm3706 = vcmp.le.s32.totalorder %v3578, 509
    %vm3707 = vcmp.le.s32.totalorder %v3579, 509
    %vm3708 = vcmp.le.s32.totalorder %v3580, 509
    %vm3709 = vcmp.le.s32.totalorder %v3581, 509
    %vm3710 = vcmp.le.s32.totalorder %v3582, 509
    %vm3711 = vcmp.le.s32.totalorder %v3583, 509
    %vm3712 = vcmp.le.s32.totalorder %v3584, 509
    %vm3713 = vcmp.le.s32.totalorder %v3585, 509
    %vm3714 = vcmp.le.s32.totalorder %v3586, 509
    %vm3715 = vcmp.le.s32.totalorder %v3587, 509
    %vm3716 = vcmp.le.s32.totalorder %v3588, 509
    %vm3717 = vcmp.le.s32.totalorder %v3589, 509
    %vm3718 = vcmp.le.s32.totalorder %v3590, 509
    %vm3719 = vcmp.le.s32.totalorder %v3591, 509
    %vm3720 = vcmp.le.s32.totalorder %v3592, 509
    %vm3721 = vcmp.le.s32.totalorder %v3593, 509
    %vm3722 = vcmp.le.s32.totalorder %v3594, 509
    %vm3723 = vcmp.le.s32.totalorder %v3595, 509
    %vm3724 = vcmp.le.s32.totalorder %v3596, 509
    %vm3725 = vcmp.le.s32.totalorder %v3597, 509
    %vm3726 = vcmp.le.s32.totalorder %v3598, 509
    %vm3727 = vcmp.le.s32.totalorder %v3599, 509
    %vm3728 = vcmp.le.s32.totalorder %v3600, 509
    %vm3729 = vcmp.le.s32.totalorder %v3601, 509
    %vm3730 = vcmp.le.s32.totalorder %v3602, 509
    %vm3731 = vcmp.le.s32.totalorder %v3603, 509
    %vm3732 = vcmp.le.s32.totalorder %v3604, 509
    %vm3733 = vcmp.le.s32.totalorder %v3605, 509
    %vm3734 = vcmp.le.s32.totalorder %v3606, 509
    %vm3735 = vcmp.le.s32.totalorder %v3607, 509
    %vm3736 = vcmp.le.s32.totalorder %v3608, 509
    %vm3737 = vcmp.le.s32.totalorder %v3609, 509
    %vm3738 = vcmp.le.s32.totalorder %v3610, 509
    %vm3739 = vcmp.le.s32.totalorder %v3611, 509
    %vm3740 = vcmp.le.s32.totalorder %v3612, 509
    %vm3741 = vcmp.le.s32.totalorder %v3613, 509
    %vm3742 = vcmp.le.s32.totalorder %v3614, 509
    %vm3743 = vcmp.le.s32.totalorder %v3615, 509
    %vm3744 = vcmp.le.s32.totalorder %v3616, 509
    %vm3745 = vcmp.le.s32.totalorder %v3617, 509
    %vm3746 = vcmp.le.s32.totalorder %v3618, 509
    %vm3747 = vcmp.le.s32.totalorder %v3619, 509
    %vm3748 = vcmp.le.s32.totalorder %v3620, 509
    %vm3749 = vcmp.le.s32.totalorder %v3621, 509
    %vm3750 = vcmp.le.s32.totalorder %v3622, 509
    %vm3751 = vcmp.le.s32.totalorder %v3623, 509
    %vm3752 = vcmp.le.s32.totalorder %v3624, 509
    %vm3753 = vcmp.le.s32.totalorder %v3625, 509
    %vm3754 = vcmp.le.s32.totalorder %v3626, 509
    %vm3755 = vcmp.le.s32.totalorder %v3627, 509
    %vm3756 = vcmp.le.s32.totalorder %v3628, 509
    %vm3757 = vcmp.le.s32.totalorder %v3629, 509
    %vm3758 = vcmp.le.s32.totalorder %v3630, 509
    %vm3759 = vcmp.le.s32.totalorder %v3631, 509
    %vm3760 = vcmp.le.s32.totalorder %v3632, 509
    %vm3761 = vcmp.le.s32.totalorder %v3633, 509
    %vm3762 = vcmp.le.s32.totalorder %v3634, 509
    %vm3763 = vcmp.le.s32.totalorder %v3635, 509
    %vm3764 = vcmp.le.s32.totalorder %v3636, 509
    %vm3765 = vcmp.le.s32.totalorder %v3637, 509
    %v3766 = vld [vmem:[#allocation2] sm:$0xff]
    %v3767 = vld [vmem:[#allocation2 + $0x8] sm:$0xff]
    %v3768 = vld [vmem:[#allocation2 + $0x10] sm:$0xff]
    %v3769 = vld [vmem:[#allocation2 + $0x18] sm:$0xff]
    %v3770 = vld [vmem:[#allocation2 + $0x20] sm:$0xff]
    %v3771 = vld [vmem:[#allocation2 + $0x28] sm:$0xff]
    %v3772 = vld [vmem:[#allocation2 + $0x30] sm:$0xff]
    %v3773 = vld [vmem:[#allocation2 + $0x38] sm:$0xff]
    %v3774 = vld [vmem:[#allocation2 + $0x40] sm:$0xff]
    %v3775 = vld [vmem:[#allocation2 + $0x48] sm:$0xff]
    %v3776 = vld [vmem:[#allocation2 + $0x50] sm:$0xff]
    %v3777 = vld [vmem:[#allocation2 + $0x58] sm:$0xff]
    %v3778 = vld [vmem:[#allocation2 + $0x60] sm:$0xff]
    %v3779 = vld [vmem:[#allocation2 + $0x68] sm:$0xff]
    %v3780 = vld [vmem:[#allocation2 + $0x70] sm:$0xff]
    %v3781 = vld [vmem:[#allocation2 + $0x78] sm:$0xff]
    %v3782 = vld [vmem:[#allocation2 + $0x80] sm:$0xff]
    %v3783 = vld [vmem:[#allocation2 + $0x88] sm:$0xff]
    %v3784 = vld [vmem:[#allocation2 + $0x90] sm:$0xff]
    %v3785 = vld [vmem:[#allocation2 + $0x98] sm:$0xff]
    %v3786 = vld [vmem:[#allocation2 + $0xa0] sm:$0xff]
    %v3787 = vld [vmem:[#allocation2 + $0xa8] sm:$0xff]
    %v3788 = vld [vmem:[#allocation2 + $0xb0] sm:$0xff]
    %v3789 = vld [vmem:[#allocation2 + $0xb8] sm:$0xff]
    %v3790 = vld [vmem:[#allocation2 + $0xc0] sm:$0xff]
    %v3791 = vld [vmem:[#allocation2 + $0xc8] sm:$0xff]
    %v3792 = vld [vmem:[#allocation2 + $0xd0] sm:$0xff]
    %v3793 = vld [vmem:[#allocation2 + $0xd8] sm:$0xff]
    %v3794 = vld [vmem:[#allocation2 + $0xe0] sm:$0xff]
    %v3795 = vld [vmem:[#allocation2 + $0xe8] sm:$0xff]
    %v3796 = vld [vmem:[#allocation2 + $0xf0] sm:$0xff]
    %v3797 = vld [vmem:[#allocation2 + $0xf8] sm:$0xff]
    %v3798 = vld [vmem:[#allocation2 + $0x100] sm:$0xff]
    %v3799 = vld [vmem:[#allocation2 + $0x108] sm:$0xff]
    %v3800 = vld [vmem:[#allocation2 + $0x110] sm:$0xff]
    %v3801 = vld [vmem:[#allocation2 + $0x118] sm:$0xff]
    %v3802 = vld [vmem:[#allocation2 + $0x120] sm:$0xff]
    %v3803 = vld [vmem:[#allocation2 + $0x128] sm:$0xff]
    %v3804 = vld [vmem:[#allocation2 + $0x130] sm:$0xff]
    %v3805 = vld [vmem:[#allocation2 + $0x138] sm:$0xff]
    %v3806 = vld [vmem:[#allocation2 + $0x140] sm:$0xff]
    %v3807 = vld [vmem:[#allocation2 + $0x148] sm:$0xff]
    %v3808 = vld [vmem:[#allocation2 + $0x150] sm:$0xff]
    %v3809 = vld [vmem:[#allocation2 + $0x158] sm:$0xff]
    %v3810 = vld [vmem:[#allocation2 + $0x160] sm:$0xff]
    %v3811 = vld [vmem:[#allocation2 + $0x168] sm:$0xff]
    %v3812 = vld [vmem:[#allocation2 + $0x170] sm:$0xff]
    %v3813 = vld [vmem:[#allocation2 + $0x178] sm:$0xff]
    %v3814 = vld [vmem:[#allocation2 + $0x180] sm:$0xff]
    %v3815 = vld [vmem:[#allocation2 + $0x188] sm:$0xff]
    %v3816 = vld [vmem:[#allocation2 + $0x190] sm:$0xff]
    %v3817 = vld [vmem:[#allocation2 + $0x198] sm:$0xff]
    %v3818 = vld [vmem:[#allocation2 + $0x1a0] sm:$0xff]
    %v3819 = vld [vmem:[#allocation2 + $0x1a8] sm:$0xff]
    %v3820 = vld [vmem:[#allocation2 + $0x1b0] sm:$0xff]
    %v3821 = vld [vmem:[#allocation2 + $0x1b8] sm:$0xff]
    %v3822 = vld [vmem:[#allocation2 + $0x1c0] sm:$0xff]
    %v3823 = vld [vmem:[#allocation2 + $0x1c8] sm:$0xff]
    %v3824 = vld [vmem:[#allocation2 + $0x1d0] sm:$0xff]
    %v3825 = vld [vmem:[#allocation2 + $0x1d8] sm:$0xff]
    %v3826 = vld [vmem:[#allocation2 + $0x1e0] sm:$0xff]
    %v3827 = vld [vmem:[#allocation2 + $0x1e8] sm:$0xff]
    %v3828 = vld [vmem:[#allocation2 + $0x1f0] sm:$0xff]
    %v3829 = vld [vmem:[#allocation2 + $0x1f8] sm:$0xff]
    %v3831 = vlaneseq
    %v3832 = vshrl.u32 %v3831, 7
    %v3833 = vsub.s32 0, %v3832
    %v3834 = vrot.slane %v3569, %v3833
    %v3836 = vmul.f32 %v3766, %v3834
    %v3837 = vmul.f32 %v3767, %v3834
    %v3838 = vmul.f32 %v3768, %v3834
    %v3839 = vmul.f32 %v3769, %v3834
    %v3840 = vmul.f32 %v3770, %v3834
    %v3841 = vmul.f32 %v3771, %v3834
    %v3842 = vmul.f32 %v3772, %v3834
    %v3843 = vmul.f32 %v3773, %v3834
    %v3844 = vmul.f32 %v3774, %v3834
    %v3845 = vmul.f32 %v3775, %v3834
    %v3846 = vmul.f32 %v3776, %v3834
    %v3847 = vmul.f32 %v3777, %v3834
    %v3848 = vmul.f32 %v3778, %v3834
    %v3849 = vmul.f32 %v3779, %v3834
    %v3850 = vmul.f32 %v3780, %v3834
    %v3851 = vmul.f32 %v3781, %v3834
    %v3852 = vmul.f32 %v3782, %v3834
    %v3853 = vmul.f32 %v3783, %v3834
    %v3854 = vmul.f32 %v3784, %v3834
    %v3855 = vmul.f32 %v3785, %v3834
    %v3856 = vmul.f32 %v3786, %v3834
    %v3857 = vmul.f32 %v3787, %v3834
    %v3858 = vmul.f32 %v3788, %v3834
    %v3859 = vmul.f32 %v3789, %v3834
    %v3860 = vmul.f32 %v3790, %v3834
    %v3861 = vmul.f32 %v3791, %v3834
    %v3862 = vmul.f32 %v3792, %v3834
    %v3863 = vmul.f32 %v3793, %v3834
    %v3864 = vmul.f32 %v3794, %v3834
    %v3865 = vmul.f32 %v3795, %v3834
    %v3866 = vmul.f32 %v3796, %v3834
    %v3867 = vmul.f32 %v3797, %v3834
    %v3868 = vmul.f32 %v3798, %v3834
    %v3869 = vmul.f32 %v3799, %v3834
    %v3870 = vmul.f32 %v3800, %v3834
    %v3871 = vmul.f32 %v3801, %v3834
    %v3872 = vmul.f32 %v3802, %v3834
    %v3873 = vmul.f32 %v3803, %v3834
    %v3874 = vmul.f32 %v3804, %v3834
    %v3875 = vmul.f32 %v3805, %v3834
    %v3876 = vmul.f32 %v3806, %v3834
    %v3877 = vmul.f32 %v3807, %v3834
    %v3878 = vmul.f32 %v3808, %v3834
    %v3879 = vmul.f32 %v3809, %v3834
    %v3880 = vmul.f32 %v3810, %v3834
    %v3881 = vmul.f32 %v3811, %v3834
    %v3882 = vmul.f32 %v3812, %v3834
    %v3883 = vmul.f32 %v3813, %v3834
    %v3884 = vmul.f32 %v3814, %v3834
    %v3885 = vmul.f32 %v3815, %v3834
    %v3886 = vmul.f32 %v3816, %v3834
    %v3887 = vmul.f32 %v3817, %v3834
    %v3888 = vmul.f32 %v3818, %v3834
    %v3889 = vmul.f32 %v3819, %v3834
    %v3890 = vmul.f32 %v3820, %v3834
    %v3891 = vmul.f32 %v3821, %v3834
    %v3892 = vmul.f32 %v3822, %v3834
    %v3893 = vmul.f32 %v3823, %v3834
    %v3894 = vmul.f32 %v3824, %v3834
    %v3895 = vmul.f32 %v3825, %v3834
    %v3896 = vmul.f32 %v3826, %v3834
    %v3897 = vmul.f32 %v3827, %v3834
    %v3898 = vmul.f32 %v3828, %v3834
    %v3899 = vmul.f32 %v3829, %v3834
    %v3901 = vlaneseq
    %v3902 = vshrl.u32 %v3901, 7
    %v3903 = vsub.s32 0, %v3902
    %v3904 = vrot.slane %v3572, %v3903
    %v3906 = vadd.f32 %v3836, %v3904
    %v3907 = vadd.f32 %v3837, %v3904
    %v3908 = vadd.f32 %v3838, %v3904
    %v3909 = vadd.f32 %v3839, %v3904
    %v3910 = vadd.f32 %v3840, %v3904
    %v3911 = vadd.f32 %v3841, %v3904
    %v3912 = vadd.f32 %v3842, %v3904
    %v3913 = vadd.f32 %v3843, %v3904
    %v3914 = vadd.f32 %v3844, %v3904
    %v3915 = vadd.f32 %v3845, %v3904
    %v3916 = vadd.f32 %v3846, %v3904
    %v3917 = vadd.f32 %v3847, %v3904
    %v3918 = vadd.f32 %v3848, %v3904
    %v3919 = vadd.f32 %v3849, %v3904
    %v3920 = vadd.f32 %v3850, %v3904
    %v3921 = vadd.f32 %v3851, %v3904
    %v3922 = vadd.f32 %v3852, %v3904
    %v3923 = vadd.f32 %v3853, %v3904
    %v3924 = vadd.f32 %v3854, %v3904
    %v3925 = vadd.f32 %v3855, %v3904
    %v3926 = vadd.f32 %v3856, %v3904
    %v3927 = vadd.f32 %v3857, %v3904
    %v3928 = vadd.f32 %v3858, %v3904
    %v3929 = vadd.f32 %v3859, %v3904
    %v3930 = vadd.f32 %v3860, %v3904
    %v3931 = vadd.f32 %v3861, %v3904
    %v3932 = vadd.f32 %v3862, %v3904
    %v3933 = vadd.f32 %v3863, %v3904
    %v3934 = vadd.f32 %v3864, %v3904
    %v3935 = vadd.f32 %v3865, %v3904
    %v3936 = vadd.f32 %v3866, %v3904
    %v3937 = vadd.f32 %v3867, %v3904
    %v3938 = vadd.f32 %v3868, %v3904
    %v3939 = vadd.f32 %v3869, %v3904
    %v3940 = vadd.f32 %v3870, %v3904
    %v3941 = vadd.f32 %v3871, %v3904
    %v3942 = vadd.f32 %v3872, %v3904
    %v3943 = vadd.f32 %v3873, %v3904
    %v3944 = vadd.f32 %v3874, %v3904
    %v3945 = vadd.f32 %v3875, %v3904
    %v3946 = vadd.f32 %v3876, %v3904
    %v3947 = vadd.f32 %v3877, %v3904
    %v3948 = vadd.f32 %v3878, %v3904
    %v3949 = vadd.f32 %v3879, %v3904
    %v3950 = vadd.f32 %v3880, %v3904
    %v3951 = vadd.f32 %v3881, %v3904
    %v3952 = vadd.f32 %v3882, %v3904
    %v3953 = vadd.f32 %v3883, %v3904
    %v3954 = vadd.f32 %v3884, %v3904
    %v3955 = vadd.f32 %v3885, %v3904
    %v3956 = vadd.f32 %v3886, %v3904
    %v3957 = vadd.f32 %v3887, %v3904
    %v3958 = vadd.f32 %v3888, %v3904
    %v3959 = vadd.f32 %v3889, %v3904
    %v3960 = vadd.f32 %v3890, %v3904
    %v3961 = vadd.f32 %v3891, %v3904
    %v3962 = vadd.f32 %v3892, %v3904
    %v3963 = vadd.f32 %v3893, %v3904
    %v3964 = vadd.f32 %v3894, %v3904
    %v3965 = vadd.f32 %v3895, %v3904
    %v3966 = vadd.f32 %v3896, %v3904
    %v3967 = vadd.f32 %v3897, %v3904
    %v3968 = vadd.f32 %v3898, %v3904
    %v3969 = vadd.f32 %v3899, %v3904
    %v3970 = vmax.f32 %v3906, 0.0
    %v3971 = vmax.f32 %v3907, 0.0
    %v3972 = vmax.f32 %v3908, 0.0
    %v3973 = vmax.f32 %v3909, 0.0
    %v3974 = vmax.f32 %v3910, 0.0
    %v3975 = vmax.f32 %v3911, 0.0
    %v3976 = vmax.f32 %v3912, 0.0
    %v3977 = vmax.f32 %v3913, 0.0
    %v3978 = vmax.f32 %v3914, 0.0
    %v3979 = vmax.f32 %v3915, 0.0
    %v3980 = vmax.f32 %v3916, 0.0
    %v3981 = vmax.f32 %v3917, 0.0
    %v3982 = vmax.f32 %v3918, 0.0
    %v3983 = vmax.f32 %v3919, 0.0
    %v3984 = vmax.f32 %v3920, 0.0
    %v3985 = vmax.f32 %v3921, 0.0
    %v3986 = vmax.f32 %v3922, 0.0
    %v3987 = vmax.f32 %v3923, 0.0
    %v3988 = vmax.f32 %v3924, 0.0
    %v3989 = vmax.f32 %v3925, 0.0
    %v3990 = vmax.f32 %v3926, 0.0
    %v3991 = vmax.f32 %v3927, 0.0
    %v3992 = vmax.f32 %v3928, 0.0
    %v3993 = vmax.f32 %v3929, 0.0
    %v3994 = vmax.f32 %v3930, 0.0
    %v3995 = vmax.f32 %v3931, 0.0
    %v3996 = vmax.f32 %v3932, 0.0
    %v3997 = vmax.f32 %v3933, 0.0
    %v3998 = vmax.f32 %v3934, 0.0
    %v3999 = vmax.f32 %v3935, 0.0
    %v4000 = vmax.f32 %v3936, 0.0
    %v4001 = vmax.f32 %v3937, 0.0
    %v4002 = vmax.f32 %v3938, 0.0
    %v4003 = vmax.f32 %v3939, 0.0
    %v4004 = vmax.f32 %v3940, 0.0
    %v4005 = vmax.f32 %v3941, 0.0
    %v4006 = vmax.f32 %v3942, 0.0
    %v4007 = vmax.f32 %v3943, 0.0
    %v4008 = vmax.f32 %v3944, 0.0
    %v4009 = vmax.f32 %v3945, 0.0
    %v4010 = vmax.f32 %v3946, 0.0
    %v4011 = vmax.f32 %v3947, 0.0
    %v4012 = vmax.f32 %v3948, 0.0
    %v4013 = vmax.f32 %v3949, 0.0
    %v4014 = vmax.f32 %v3950, 0.0
    %v4015 = vmax.f32 %v3951, 0.0
    %v4016 = vmax.f32 %v3952, 0.0
    %v4017 = vmax.f32 %v3953, 0.0
    %v4018 = vmax.f32 %v3954, 0.0
    %v4019 = vmax.f32 %v3955, 0.0
    %v4020 = vmax.f32 %v3956, 0.0
    %v4021 = vmax.f32 %v3957, 0.0
    %v4022 = vmax.f32 %v3958, 0.0
    %v4023 = vmax.f32 %v3959, 0.0
    %v4024 = vmax.f32 %v3960, 0.0
    %v4025 = vmax.f32 %v3961, 0.0
    %v4026 = vmax.f32 %v3962, 0.0
    %v4027 = vmax.f32 %v3963, 0.0
    %v4028 = vmax.f32 %v3964, 0.0
    %v4029 = vmax.f32 %v3965, 0.0
    %v4030 = vmax.f32 %v3966, 0.0
    %v4031 = vmax.f32 %v3967, 0.0
    %v4032 = vmax.f32 %v3968, 0.0
    %v4033 = vmax.f32 %v3969, 0.0
    %v4034 = vrot.slane %v3970, 7
    %v4035 = vrot.slane %v3971, 7
    %v4036 = vrot.slane %v3972, 7
    %v4037 = vrot.slane %v3973, 7
    %v4038 = vrot.slane %v3974, 7
    %v4039 = vrot.slane %v3975, 7
    %v4040 = vrot.slane %v3976, 7
    %v4041 = vrot.slane %v3977, 7
    %v4042 = vrot.slane %v3978, 7
    %v4043 = vrot.slane %v3979, 7
    %v4044 = vrot.slane %v3980, 7
    %v4045 = vrot.slane %v3981, 7
    %v4046 = vrot.slane %v3982, 7
    %v4047 = vrot.slane %v3983, 7
    %v4048 = vrot.slane %v3984, 7
    %v4049 = vrot.slane %v3985, 7
    %v4050 = vrot.slane %v3986, 7
    %v4051 = vrot.slane %v3987, 7
    %v4052 = vrot.slane %v3988, 7
    %v4053 = vrot.slane %v3989, 7
    %v4054 = vrot.slane %v3990, 7
    %v4055 = vrot.slane %v3991, 7
    %v4056 = vrot.slane %v3992, 7
    %v4057 = vrot.slane %v3993, 7
    %v4058 = vrot.slane %v3994, 7
    %v4059 = vrot.slane %v3995, 7
    %v4060 = vrot.slane %v3996, 7
    %v4061 = vrot.slane %v3997, 7
    %v4062 = vrot.slane %v3998, 7
    %v4063 = vrot.slane %v3999, 7
    %v4064 = vrot.slane %v4000, 7
    %v4065 = vrot.slane %v4001, 7
    %v4066 = vrot.slane %v4002, 7
    %v4067 = vrot.slane %v4003, 7
    %v4068 = vrot.slane %v4004, 7
    %v4069 = vrot.slane %v4005, 7
    %v4070 = vrot.slane %v4006, 7
    %v4071 = vrot.slane %v4007, 7
    %v4072 = vrot.slane %v4008, 7
    %v4073 = vrot.slane %v4009, 7
    %v4074 = vrot.slane %v4010, 7
    %v4075 = vrot.slane %v4011, 7
    %v4076 = vrot.slane %v4012, 7
    %v4077 = vrot.slane %v4013, 7
    %v4078 = vrot.slane %v4014, 7
    %v4079 = vrot.slane %v4015, 7
    %v4080 = vrot.slane %v4016, 7
    %v4081 = vrot.slane %v4017, 7
    %v4082 = vrot.slane %v4018, 7
    %v4083 = vrot.slane %v4019, 7
    %v4084 = vrot.slane %v4020, 7
    %v4085 = vrot.slane %v4021, 7
    %v4086 = vrot.slane %v4022, 7
    %v4087 = vrot.slane %v4023, 7
    %v4088 = vrot.slane %v4024, 7
    %v4089 = vrot.slane %v4025, 7
    %v4090 = vrot.slane %v4026, 7
    %v4091 = vrot.slane %v4027, 7
    %v4092 = vrot.slane %v4028, 7
    %v4093 = vrot.slane %v4029, 7
    %v4094 = vrot.slane %v4030, 7
    %v4095 = vrot.slane %v4031, 7
    %v4096 = vrot.slane %v4032, 7
    %v4097 = vrot.slane %v4033, 7
    %vm4098 = vcmp.lt.s32.totalorder %v3574, 1
    %v4099 = vsel %vm4098, %v4096, %v4097
    %v4100 = vsel %vm4098, %v4095, %v4096
    %v4101 = vsel %vm4098, %v4094, %v4095
    %v4102 = vsel %vm4098, %v4093, %v4094
    %v4103 = vsel %vm4098, %v4092, %v4093
    %v4104 = vsel %vm4098, %v4091, %v4092
    %v4105 = vsel %vm4098, %v4090, %v4091
    %v4106 = vsel %vm4098, %v4089, %v4090
    %v4107 = vsel %vm4098, %v4088, %v4089
    %v4108 = vsel %vm4098, %v4087, %v4088
    %v4109 = vsel %vm4098, %v4086, %v4087
    %v4110 = vsel %vm4098, %v4085, %v4086
    %v4111 = vsel %vm4098, %v4084, %v4085
    %v4112 = vsel %vm4098, %v4083, %v4084
    %v4113 = vsel %vm4098, %v4082, %v4083
    %v4114 = vsel %vm4098, %v4081, %v4082
    %v4115 = vsel %vm4098, %v4080, %v4081
    %v4116 = vsel %vm4098, %v4079, %v4080
    %v4117 = vsel %vm4098, %v4078, %v4079
    %v4118 = vsel %vm4098, %v4077, %v4078
    %v4119 = vsel %vm4098, %v4076, %v4077
    %v4120 = vsel %vm4098, %v4075, %v4076
    %v4121 = vsel %vm4098, %v4074, %v4075
    %v4122 = vsel %vm4098, %v4073, %v4074
    %v4123 = vsel %vm4098, %v4072, %v4073
    %v4124 = vsel %vm4098, %v4071, %v4072
    %v4125 = vsel %vm4098, %v4070, %v4071
    %v4126 = vsel %vm4098, %v4069, %v4070
    %v4127 = vsel %vm4098, %v4068, %v4069
    %v4128 = vsel %vm4098, %v4067, %v4068
    %v4129 = vsel %vm4098, %v4066, %v4067
    %v4130 = vsel %vm4098, %v4065, %v4066
    %v4131 = vsel %vm4098, %v4064, %v4065
    %v4132 = vsel %vm4098, %v4063, %v4064
    %v4133 = vsel %vm4098, %v4062, %v4063
    %v4134 = vsel %vm4098, %v4061, %v4062
    %v4135 = vsel %vm4098, %v4060, %v4061
    %v4136 = vsel %vm4098, %v4059, %v4060
    %v4137 = vsel %vm4098, %v4058, %v4059
    %v4138 = vsel %vm4098, %v4057, %v4058
    %v4139 = vsel %vm4098, %v4056, %v4057
    %v4140 = vsel %vm4098, %v4055, %v4056
    %v4141 = vsel %vm4098, %v4054, %v4055
    %v4142 = vsel %vm4098, %v4053, %v4054
    %v4143 = vsel %vm4098, %v4052, %v4053
    %v4144 = vsel %vm4098, %v4051, %v4052
    %v4145 = vsel %vm4098, %v4050, %v4051
    %v4146 = vsel %vm4098, %v4049, %v4050
    %v4147 = vsel %vm4098, %v4048, %v4049
    %v4148 = vsel %vm4098, %v4047, %v4048
    %v4149 = vsel %vm4098, %v4046, %v4047
    %v4150 = vsel %vm4098, %v4045, %v4046
    %v4151 = vsel %vm4098, %v4044, %v4045
    %v4152 = vsel %vm4098, %v4043, %v4044
    %v4153 = vsel %vm4098, %v4042, %v4043
    %v4154 = vsel %vm4098, %v4041, %v4042
    %v4155 = vsel %vm4098, %v4040, %v4041
    %v4156 = vsel %vm4098, %v4039, %v4040
    %v4157 = vsel %vm4098, %v4038, %v4039
    %v4158 = vsel %vm4098, %v4037, %v4038
    %v4159 = vsel %vm4098, %v4036, %v4037
    %v4160 = vsel %vm4098, %v4035, %v4036
    %v4161 = vsel %vm4098, %v4034, %v4035
    %v4162 = vsel %vm4098, %v4097, %v4034
    %v4163 = vsel %vm3638, %v4162, 0.0
    %v4164 = vsel %vm3639, %v4161, 0.0
    %v4165 = vsel %vm3640, %v4160, 0.0
    %v4166 = vsel %vm3641, %v4159, 0.0
    %v4167 = vsel %vm3642, %v4158, 0.0
    %v4168 = vsel %vm3643, %v4157, 0.0
    %v4169 = vsel %vm3644, %v4156, 0.0
    %v4170 = vsel %vm3645, %v4155, 0.0
    %v4171 = vsel %vm3646, %v4154, 0.0
    %v4172 = vsel %vm3647, %v4153, 0.0
    %v4173 = vsel %vm3648, %v4152, 0.0
    %v4174 = vsel %vm3649, %v4151, 0.0
    %v4175 = vsel %vm3650, %v4150, 0.0
    %v4176 = vsel %vm3651, %v4149, 0.0
    %v4177 = vsel %vm3652, %v4148, 0.0
    %v4178 = vsel %vm3653, %v4147, 0.0
    %v4179 = vsel %vm3654, %v4146, 0.0
    %v4180 = vsel %vm3655, %v4145, 0.0
    %v4181 = vsel %vm3656, %v4144, 0.0
    %v4182 = vsel %vm3657, %v4143, 0.0
    %v4183 = vsel %vm3658, %v4142, 0.0
    %v4184 = vsel %vm3659, %v4141, 0.0
    %v4185 = vsel %vm3660, %v4140, 0.0
    %v4186 = vsel %vm3661, %v4139, 0.0
    %v4187 = vsel %vm3662, %v4138, 0.0
    %v4188 = vsel %vm3663, %v4137, 0.0
    %v4189 = vsel %vm3664, %v4136, 0.0
    %v4190 = vsel %vm3665, %v4135, 0.0
    %v4191 = vsel %vm3666, %v4134, 0.0
    %v4192 = vsel %vm3667, %v4133, 0.0
    %v4193 = vsel %vm3668, %v4132, 0.0
    %v4194 = vsel %vm3669, %v4131, 0.0
    %v4195 = vsel %vm3670, %v4130, 0.0
    %v4196 = vsel %vm3671, %v4129, 0.0
    %v4197 = vsel %vm3672, %v4128, 0.0
    %v4198 = vsel %vm3673, %v4127, 0.0
    %v4199 = vsel %vm3674, %v4126, 0.0
    %v4200 = vsel %vm3675, %v4125, 0.0
    %v4201 = vsel %vm3676, %v4124, 0.0
    %v4202 = vsel %vm3677, %v4123, 0.0
    %v4203 = vsel %vm3678, %v4122, 0.0
    %v4204 = vsel %vm3679, %v4121, 0.0
    %v4205 = vsel %vm3680, %v4120, 0.0
    %v4206 = vsel %vm3681, %v4119, 0.0
    %v4207 = vsel %vm3682, %v4118, 0.0
    %v4208 = vsel %vm3683, %v4117, 0.0
    %v4209 = vsel %vm3684, %v4116, 0.0
    %v4210 = vsel %vm3685, %v4115, 0.0
    %v4211 = vsel %vm3686, %v4114, 0.0
    %v4212 = vsel %vm3687, %v4113, 0.0
    %v4213 = vsel %vm3688, %v4112, 0.0
    %v4214 = vsel %vm3689, %v4111, 0.0
    %v4215 = vsel %vm3690, %v4110, 0.0
    %v4216 = vsel %vm3691, %v4109, 0.0
    %v4217 = vsel %vm3692, %v4108, 0.0
    %v4218 = vsel %vm3693, %v4107, 0.0
    %v4219 = vsel %vm3694, %v4106, 0.0
    %v4220 = vsel %vm3695, %v4105, 0.0
    %v4221 = vsel %vm3696, %v4104, 0.0
    %v4222 = vsel %vm3697, %v4103, 0.0
    %v4223 = vsel %vm3698, %v4102, 0.0
    %v4224 = vsel %vm3699, %v4101, 0.0
    %v4225 = vsel %vm3700, %v4100, 0.0
    %v4226 = vsel %vm3701, %v4099, 0.0
    %v4227 = vrot.slane %v3970, 2
    %v4228 = vrot.slane %v3971, 2
    %v4229 = vrot.slane %v3972, 2
    %v4230 = vrot.slane %v3973, 2
    %v4231 = vrot.slane %v3974, 2
    %v4232 = vrot.slane %v3975, 2
    %v4233 = vrot.slane %v3976, 2
    %v4234 = vrot.slane %v3977, 2
    %v4235 = vrot.slane %v3978, 2
    %v4236 = vrot.slane %v3979, 2
    %v4237 = vrot.slane %v3980, 2
    %v4238 = vrot.slane %v3981, 2
    %v4239 = vrot.slane %v3982, 2
    %v4240 = vrot.slane %v3983, 2
    %v4241 = vrot.slane %v3984, 2
    %v4242 = vrot.slane %v3985, 2
    %v4243 = vrot.slane %v3986, 2
    %v4244 = vrot.slane %v3987, 2
    %v4245 = vrot.slane %v3988, 2
    %v4246 = vrot.slane %v3989, 2
    %v4247 = vrot.slane %v3990, 2
    %v4248 = vrot.slane %v3991, 2
    %v4249 = vrot.slane %v3992, 2
    %v4250 = vrot.slane %v3993, 2
    %v4251 = vrot.slane %v3994, 2
    %v4252 = vrot.slane %v3995, 2
    %v4253 = vrot.slane %v3996, 2
    %v4254 = vrot.slane %v3997, 2
    %v4255 = vrot.slane %v3998, 2
    %v4256 = vrot.slane %v3999, 2
    %v4257 = vrot.slane %v4000, 2
    %v4258 = vrot.slane %v4001, 2
    %v4259 = vrot.slane %v4002, 2
    %v4260 = vrot.slane %v4003, 2
    %v4261 = vrot.slane %v4004, 2
    %v4262 = vrot.slane %v4005, 2
    %v4263 = vrot.slane %v4006, 2
    %v4264 = vrot.slane %v4007, 2
    %v4265 = vrot.slane %v4008, 2
    %v4266 = vrot.slane %v4009, 2
    %v4267 = vrot.slane %v4010, 2
    %v4268 = vrot.slane %v4011, 2
    %v4269 = vrot.slane %v4012, 2
    %v4270 = vrot.slane %v4013, 2
    %v4271 = vrot.slane %v4014, 2
    %v4272 = vrot.slane %v4015, 2
    %v4273 = vrot.slane %v4016, 2
    %v4274 = vrot.slane %v4017, 2
    %v4275 = vrot.slane %v4018, 2
    %v4276 = vrot.slane %v4019, 2
    %v4277 = vrot.slane %v4020, 2
    %v4278 = vrot.slane %v4021, 2
    %v4279 = vrot.slane %v4022, 2
    %v4280 = vrot.slane %v4023, 2
    %v4281 = vrot.slane %v4024, 2
    %v4282 = vrot.slane %v4025, 2
    %v4283 = vrot.slane %v4026, 2
    %v4284 = vrot.slane %v4027, 2
    %v4285 = vrot.slane %v4028, 2
    %v4286 = vrot.slane %v4029, 2
    %v4287 = vrot.slane %v4030, 2
    %v4288 = vrot.slane %v4031, 2
    %v4289 = vrot.slane %v4032, 2
    %v4290 = vrot.slane %v4033, 2
    %vm4291 = vcmp.lt.s32.totalorder %v3574, 6
    %v4292 = vsel %vm4291, %v4289, %v4290
    %v4293 = vsel %vm4291, %v4288, %v4289
    %v4294 = vsel %vm4291, %v4287, %v4288
    %v4295 = vsel %vm4291, %v4286, %v4287
    %v4296 = vsel %vm4291, %v4285, %v4286
    %v4297 = vsel %vm4291, %v4284, %v4285
    %v4298 = vsel %vm4291, %v4283, %v4284
    %v4299 = vsel %vm4291, %v4282, %v4283
    %v4300 = vsel %vm4291, %v4281, %v4282
    %v4301 = vsel %vm4291, %v4280, %v4281
    %v4302 = vsel %vm4291, %v4279, %v4280
    %v4303 = vsel %vm4291, %v4278, %v4279
    %v4304 = vsel %vm4291, %v4277, %v4278
    %v4305 = vsel %vm4291, %v4276, %v4277
    %v4306 = vsel %vm4291, %v4275, %v4276
    %v4307 = vsel %vm4291, %v4274, %v4275
    %v4308 = vsel %vm4291, %v4273, %v4274
    %v4309 = vsel %vm4291, %v4272, %v4273
    %v4310 = vsel %vm4291, %v4271, %v4272
    %v4311 = vsel %vm4291, %v4270, %v4271
    %v4312 = vsel %vm4291, %v4269, %v4270
    %v4313 = vsel %vm4291, %v4268, %v4269
    %v4314 = vsel %vm4291, %v4267, %v4268
    %v4315 = vsel %vm4291, %v4266, %v4267
    %v4316 = vsel %vm4291, %v4265, %v4266
    %v4317 = vsel %vm4291, %v4264, %v4265
    %v4318 = vsel %vm4291, %v4263, %v4264
    %v4319 = vsel %vm4291, %v4262, %v4263
    %v4320 = vsel %vm4291, %v4261, %v4262
    %v4321 = vsel %vm4291, %v4260, %v4261
    %v4322 = vsel %vm4291, %v4259, %v4260
    %v4323 = vsel %vm4291, %v4258, %v4259
    %v4324 = vsel %vm4291, %v4257, %v4258
    %v4325 = vsel %vm4291, %v4256, %v4257
    %v4326 = vsel %vm4291, %v4255, %v4256
    %v4327 = vsel %vm4291, %v4254, %v4255
    %v4328 = vsel %vm4291, %v4253, %v4254
    %v4329 = vsel %vm4291, %v4252, %v4253
    %v4330 = vsel %vm4291, %v4251, %v4252
    %v4331 = vsel %vm4291, %v4250, %v4251
    %v4332 = vsel %vm4291, %v4249, %v4250
    %v4333 = vsel %vm4291, %v4248, %v4249
    %v4334 = vsel %vm4291, %v4247, %v4248
    %v4335 = vsel %vm4291, %v4246, %v4247
    %v4336 = vsel %vm4291, %v4245, %v4246
    %v4337 = vsel %vm4291, %v4244, %v4245
    %v4338 = vsel %vm4291, %v4243, %v4244
    %v4339 = vsel %vm4291, %v4242, %v4243
    %v4340 = vsel %vm4291, %v4241, %v4242
    %v4341 = vsel %vm4291, %v4240, %v4241
    %v4342 = vsel %vm4291, %v4239, %v4240
    %v4343 = vsel %vm4291, %v4238, %v4239
    %v4344 = vsel %vm4291, %v4237, %v4238
    %v4345 = vsel %vm4291, %v4236, %v4237
    %v4346 = vsel %vm4291, %v4235, %v4236
    %v4347 = vsel %vm4291, %v4234, %v4235
    %v4348 = vsel %vm4291, %v4233, %v4234
    %v4349 = vsel %vm4291, %v4232, %v4233
    %v4350 = vsel %vm4291, %v4231, %v4232
    %v4351 = vsel %vm4291, %v4230, %v4231
    %v4352 = vsel %vm4291, %v4229, %v4230
    %v4353 = vsel %vm4291, %v4228, %v4229
    %v4354 = vsel %vm4291, %v4227, %v4228
    %v4355 = vsel %vm4291, %v4290, %v4227
    %v4356 = vsel %vm3702, %v4354, 0.0
    %v4357 = vsel %vm3703, %v4353, 0.0
    %v4358 = vsel %vm3704, %v4352, 0.0
    %v4359 = vsel %vm3705, %v4351, 0.0
    %v4360 = vsel %vm3706, %v4350, 0.0
    %v4361 = vsel %vm3707, %v4349, 0.0
    %v4362 = vsel %vm3708, %v4348, 0.0
    %v4363 = vsel %vm3709, %v4347, 0.0
    %v4364 = vsel %vm3710, %v4346, 0.0
    %v4365 = vsel %vm3711, %v4345, 0.0
    %v4366 = vsel %vm3712, %v4344, 0.0
    %v4367 = vsel %vm3713, %v4343, 0.0
    %v4368 = vsel %vm3714, %v4342, 0.0
    %v4369 = vsel %vm3715, %v4341, 0.0
    %v4370 = vsel %vm3716, %v4340, 0.0
    %v4371 = vsel %vm3717, %v4339, 0.0
    %v4372 = vsel %vm3718, %v4338, 0.0
    %v4373 = vsel %vm3719, %v4337, 0.0
    %v4374 = vsel %vm3720, %v4336, 0.0
    %v4375 = vsel %vm3721, %v4335, 0.0
    %v4376 = vsel %vm3722, %v4334, 0.0
    %v4377 = vsel %vm3723, %v4333, 0.0
    %v4378 = vsel %vm3724, %v4332, 0.0
    %v4379 = vsel %vm3725, %v4331, 0.0
    %v4380 = vsel %vm3726, %v4330, 0.0
    %v4381 = vsel %vm3727, %v4329, 0.0
    %v4382 = vsel %vm3728, %v4328, 0.0
    %v4383 = vsel %vm3729, %v4327, 0.0
    %v4384 = vsel %vm3730, %v4326, 0.0
    %v4385 = vsel %vm3731, %v4325, 0.0
    %v4386 = vsel %vm3732, %v4324, 0.0
    %v4387 = vsel %vm3733, %v4323, 0.0
    %v4388 = vsel %vm3734, %v4322, 0.0
    %v4389 = vsel %vm3735, %v4321, 0.0
    %v4390 = vsel %vm3736, %v4320, 0.0
    %v4391 = vsel %vm3737, %v4319, 0.0
    %v4392 = vsel %vm3738, %v4318, 0.0
    %v4393 = vsel %vm3739, %v4317, 0.0
    %v4394 = vsel %vm3740, %v4316, 0.0
    %v4395 = vsel %vm3741, %v4315, 0.0
    %v4396 = vsel %vm3742, %v4314, 0.0
    %v4397 = vsel %vm3743, %v4313, 0.0
    %v4398 = vsel %vm3744, %v4312, 0.0
    %v4399 = vsel %vm3745, %v4311, 0.0
    %v4400 = vsel %vm3746, %v4310, 0.0
    %v4401 = vsel %vm3747, %v4309, 0.0
    %v4402 = vsel %vm3748, %v4308, 0.0
    %v4403 = vsel %vm3749, %v4307, 0.0
    %v4404 = vsel %vm3750, %v4306, 0.0
    %v4405 = vsel %vm3751, %v4305, 0.0
    %v4406 = vsel %vm3752, %v4304, 0.0
    %v4407 = vsel %vm3753, %v4303, 0.0
    %v4408 = vsel %vm3754, %v4302, 0.0
    %v4409 = vsel %vm3755, %v4301, 0.0
    %v4410 = vsel %vm3756, %v4300, 0.0
    %v4411 = vsel %vm3757, %v4299, 0.0
    %v4412 = vsel %vm3758, %v4298, 0.0
    %v4413 = vsel %vm3759, %v4297, 0.0
    %v4414 = vsel %vm3760, %v4296, 0.0
    %v4415 = vsel %vm3761, %v4295, 0.0
    %v4416 = vsel %vm3762, %v4294, 0.0
    %v4417 = vsel %vm3763, %v4293, 0.0
    %v4418 = vsel %vm3764, %v4292, 0.0
    %v4419 = vsel %vm3765, %v4355, 0.0
    %v4484 = vrot.slane %v3970, 1
    %v4485 = vrot.slane %v3971, 1
    %v4486 = vsel %vm1146, %v4484, %v4485
    %v4487 = vrot.slane %v3972, 1
    %v4488 = vsel %vm1146, %v4485, %v4487
    %v4489 = vrot.slane %v3973, 1
    %v4490 = vsel %vm1146, %v4487, %v4489
    %v4491 = vrot.slane %v3974, 1
    %v4492 = vsel %vm1146, %v4489, %v4491
    %v4493 = vrot.slane %v3975, 1
    %v4494 = vsel %vm1146, %v4491, %v4493
    %v4495 = vrot.slane %v3976, 1
    %v4496 = vsel %vm1146, %v4493, %v4495
    %v4497 = vrot.slane %v3977, 1
    %v4498 = vsel %vm1146, %v4495, %v4497
    %v4499 = vrot.slane %v3978, 1
    %v4500 = vsel %vm1146, %v4497, %v4499
    %v4501 = vrot.slane %v3979, 1
    %v4502 = vsel %vm1146, %v4499, %v4501
    %v4503 = vrot.slane %v3980, 1
    %v4504 = vsel %vm1146, %v4501, %v4503
    %v4505 = vrot.slane %v3981, 1
    %v4506 = vsel %vm1146, %v4503, %v4505
    %v4507 = vrot.slane %v3982, 1
    %v4508 = vsel %vm1146, %v4505, %v4507
    %v4509 = vrot.slane %v3983, 1
    %v4510 = vsel %vm1146, %v4507, %v4509
    %v4511 = vrot.slane %v3984, 1
    %v4512 = vsel %vm1146, %v4509, %v4511
    %v4513 = vrot.slane %v3985, 1
    %v4514 = vsel %vm1146, %v4511, %v4513
    %v4515 = vrot.slane %v3986, 1
    %v4516 = vsel %vm1146, %v4513, %v4515
    %v4517 = vrot.slane %v3987, 1
    %v4518 = vsel %vm1146, %v4515, %v4517
    %v4519 = vrot.slane %v3988, 1
    %v4520 = vsel %vm1146, %v4517, %v4519
    %v4521 = vrot.slane %v3989, 1
    %v4522 = vsel %vm1146, %v4519, %v4521
    %v4523 = vrot.slane %v3990, 1
    %v4524 = vsel %vm1146, %v4521, %v4523
    %v4525 = vrot.slane %v3991, 1
    %v4526 = vsel %vm1146, %v4523, %v4525
    %v4527 = vrot.slane %v3992, 1
    %v4528 = vsel %vm1146, %v4525, %v4527
    %v4529 = vrot.slane %v3993, 1
    %v4530 = vsel %vm1146, %v4527, %v4529
    %v4531 = vrot.slane %v3994, 1
    %v4532 = vsel %vm1146, %v4529, %v4531
    %v4533 = vrot.slane %v3995, 1
    %v4534 = vsel %vm1146, %v4531, %v4533
    %v4535 = vrot.slane %v3996, 1
    %v4536 = vsel %vm1146, %v4533, %v4535
    %v4537 = vrot.slane %v3997, 1
    %v4538 = vsel %vm1146, %v4535, %v4537
    %v4539 = vrot.slane %v3998, 1
    %v4540 = vsel %vm1146, %v4537, %v4539
    %v4541 = vrot.slane %v3999, 1
    %v4542 = vsel %vm1146, %v4539, %v4541
    %v4543 = vrot.slane %v4000, 1
    %v4544 = vsel %vm1146, %v4541, %v4543
    %v4545 = vrot.slane %v4001, 1
    %v4546 = vsel %vm1146, %v4543, %v4545
    %v4547 = vrot.slane %v4002, 1
    %v4548 = vsel %vm1146, %v4545, %v4547
    %v4549 = vrot.slane %v4003, 1
    %v4550 = vsel %vm1146, %v4547, %v4549
    %v4551 = vrot.slane %v4004, 1
    %v4552 = vsel %vm1146, %v4549, %v4551
    %v4553 = vrot.slane %v4005, 1
    %v4554 = vsel %vm1146, %v4551, %v4553
    %v4555 = vrot.slane %v4006, 1
    %v4556 = vsel %vm1146, %v4553, %v4555
    %v4557 = vrot.slane %v4007, 1
    %v4558 = vsel %vm1146, %v4555, %v4557
    %v4559 = vrot.slane %v4008, 1
    %v4560 = vsel %vm1146, %v4557, %v4559
    %v4561 = vrot.slane %v4009, 1
    %v4562 = vsel %vm1146, %v4559, %v4561
    %v4563 = vrot.slane %v4010, 1
    %v4564 = vsel %vm1146, %v4561, %v4563
    %v4565 = vrot.slane %v4011, 1
    %v4566 = vsel %vm1146, %v4563, %v4565
    %v4567 = vrot.slane %v4012, 1
    %v4568 = vsel %vm1146, %v4565, %v4567
    %v4569 = vrot.slane %v4013, 1
    %v4570 = vsel %vm1146, %v4567, %v4569
    %v4571 = vrot.slane %v4014, 1
    %v4572 = vsel %vm1146, %v4569, %v4571
    %v4573 = vrot.slane %v4015, 1
    %v4574 = vsel %vm1146, %v4571, %v4573
    %v4575 = vrot.slane %v4016, 1
    %v4576 = vsel %vm1146, %v4573, %v4575
    %v4577 = vrot.slane %v4017, 1
    %v4578 = vsel %vm1146, %v4575, %v4577
    %v4579 = vrot.slane %v4018, 1
    %v4580 = vsel %vm1146, %v4577, %v4579
    %v4581 = vrot.slane %v4019, 1
    %v4582 = vsel %vm1146, %v4579, %v4581
    %v4583 = vrot.slane %v4020, 1
    %v4584 = vsel %vm1146, %v4581, %v4583
    %v4585 = vrot.slane %v4021, 1
    %v4586 = vsel %vm1146, %v4583, %v4585
    %v4587 = vrot.slane %v4022, 1
    %v4588 = vsel %vm1146, %v4585, %v4587
    %v4589 = vrot.slane %v4023, 1
    %v4590 = vsel %vm1146, %v4587, %v4589
    %v4591 = vrot.slane %v4024, 1
    %v4592 = vsel %vm1146, %v4589, %v4591
    %v4593 = vrot.slane %v4025, 1
    %v4594 = vsel %vm1146, %v4591, %v4593
    %v4595 = vrot.slane %v4026, 1
    %v4596 = vsel %vm1146, %v4593, %v4595
    %v4597 = vrot.slane %v4027, 1
    %v4598 = vsel %vm1146, %v4595, %v4597
    %v4599 = vrot.slane %v4028, 1
    %v4600 = vsel %vm1146, %v4597, %v4599
    %v4601 = vrot.slane %v4029, 1
    %v4602 = vsel %vm1146, %v4599, %v4601
    %v4603 = vrot.slane %v4030, 1
    %v4604 = vsel %vm1146, %v4601, %v4603
    %v4605 = vrot.slane %v4031, 1
    %v4606 = vsel %vm1146, %v4603, %v4605
    %v4607 = vrot.slane %v4032, 1
    %v4608 = vsel %vm1146, %v4605, %v4607
    %v4609 = vrot.slane %v4033, 1
    %v4610 = vsel %vm1146, %v4607, %v4609
    %v4675 = vmax.f32 %v3970, %v4486
    %v4676 = vmax.f32 %v3971, %v4488
    %v4677 = vmax.f32 %v3972, %v4490
    %v4678 = vmax.f32 %v3973, %v4492
    %v4679 = vmax.f32 %v3974, %v4494
    %v4680 = vmax.f32 %v3975, %v4496
    %v4681 = vmax.f32 %v3976, %v4498
    %v4682 = vmax.f32 %v3977, %v4500
    %v4683 = vmax.f32 %v3978, %v4502
    %v4684 = vmax.f32 %v3979, %v4504
    %v4685 = vmax.f32 %v3980, %v4506
    %v4686 = vmax.f32 %v3981, %v4508
    %v4687 = vmax.f32 %v3982, %v4510
    %v4688 = vmax.f32 %v3983, %v4512
    %v4689 = vmax.f32 %v3984, %v4514
    %v4690 = vmax.f32 %v3985, %v4516
    %v4691 = vmax.f32 %v3986, %v4518
    %v4692 = vmax.f32 %v3987, %v4520
    %v4693 = vmax.f32 %v3988, %v4522
    %v4694 = vmax.f32 %v3989, %v4524
    %v4695 = vmax.f32 %v3990, %v4526
    %v4696 = vmax.f32 %v3991, %v4528
    %v4697 = vmax.f32 %v3992, %v4530
    %v4698 = vmax.f32 %v3993, %v4532
    %v4699 = vmax.f32 %v3994, %v4534
    %v4700 = vmax.f32 %v3995, %v4536
    %v4701 = vmax.f32 %v3996, %v4538
    %v4702 = vmax.f32 %v3997, %v4540
    %v4703 = vmax.f32 %v3998, %v4542
    %v4704 = vmax.f32 %v3999, %v4544
    %v4705 = vmax.f32 %v4000, %v4546
    %v4706 = vmax.f32 %v4001, %v4548
    %v4707 = vmax.f32 %v4002, %v4550
    %v4708 = vmax.f32 %v4003, %v4552
    %v4709 = vmax.f32 %v4004, %v4554
    %v4710 = vmax.f32 %v4005, %v4556
    %v4711 = vmax.f32 %v4006, %v4558
    %v4712 = vmax.f32 %v4007, %v4560
    %v4713 = vmax.f32 %v4008, %v4562
    %v4714 = vmax.f32 %v4009, %v4564
    %v4715 = vmax.f32 %v4010, %v4566
    %v4716 = vmax.f32 %v4011, %v4568
    %v4717 = vmax.f32 %v4012, %v4570
    %v4718 = vmax.f32 %v4013, %v4572
    %v4719 = vmax.f32 %v4014, %v4574
    %v4720 = vmax.f32 %v4015, %v4576
    %v4721 = vmax.f32 %v4016, %v4578
    %v4722 = vmax.f32 %v4017, %v4580
    %v4723 = vmax.f32 %v4018, %v4582
    %v4724 = vmax.f32 %v4019, %v4584
    %v4725 = vmax.f32 %v4020, %v4586
    %v4726 = vmax.f32 %v4021, %v4588
    %v4727 = vmax.f32 %v4022, %v4590
    %v4728 = vmax.f32 %v4023, %v4592
    %v4729 = vmax.f32 %v4024, %v4594
    %v4730 = vmax.f32 %v4025, %v4596
    %v4731 = vmax.f32 %v4026, %v4598
    %v4732 = vmax.f32 %v4027, %v4600
    %v4733 = vmax.f32 %v4028, %v4602
    %v4734 = vmax.f32 %v4029, %v4604
    %v4735 = vmax.f32 %v4030, %v4606
    %v4736 = vmax.f32 %v4031, %v4608
    %v4737 = vmax.f32 %v4032, %v4610
    %v4738 = vmax.f32 %v4033, %v4609
    %v4739 = vmax.f32 %v4163, %v4356
    %v4740 = vmax.f32 %v4164, %v4357
    %v4741 = vmax.f32 %v4165, %v4358
    %v4742 = vmax.f32 %v4166, %v4359
    %v4743 = vmax.f32 %v4167, %v4360
    %v4744 = vmax.f32 %v4168, %v4361
    %v4745 = vmax.f32 %v4169, %v4362
    %v4746 = vmax.f32 %v4170, %v4363
    %v4747 = vmax.f32 %v4171, %v4364
    %v4748 = vmax.f32 %v4172, %v4365
    %v4749 = vmax.f32 %v4173, %v4366
    %v4750 = vmax.f32 %v4174, %v4367
    %v4751 = vmax.f32 %v4175, %v4368
    %v4752 = vmax.f32 %v4176, %v4369
    %v4753 = vmax.f32 %v4177, %v4370
    %v4754 = vmax.f32 %v4178, %v4371
    %v4755 = vmax.f32 %v4179, %v4372
    %v4756 = vmax.f32 %v4180, %v4373
    %v4757 = vmax.f32 %v4181, %v4374
    %v4758 = vmax.f32 %v4182, %v4375
    %v4759 = vmax.f32 %v4183, %v4376
    %v4760 = vmax.f32 %v4184, %v4377
    %v4761 = vmax.f32 %v4185, %v4378
    %v4762 = vmax.f32 %v4186, %v4379
    %v4763 = vmax.f32 %v4187, %v4380
    %v4764 = vmax.f32 %v4188, %v4381
    %v4765 = vmax.f32 %v4189, %v4382
    %v4766 = vmax.f32 %v4190, %v4383
    %v4767 = vmax.f32 %v4191, %v4384
    %v4768 = vmax.f32 %v4192, %v4385
    %v4769 = vmax.f32 %v4193, %v4386
    %v4770 = vmax.f32 %v4194, %v4387
    %v4771 = vmax.f32 %v4195, %v4388
    %v4772 = vmax.f32 %v4196, %v4389
    %v4773 = vmax.f32 %v4197, %v4390
    %v4774 = vmax.f32 %v4198, %v4391
    %v4775 = vmax.f32 %v4199, %v4392
    %v4776 = vmax.f32 %v4200, %v4393
    %v4777 = vmax.f32 %v4201, %v4394
    %v4778 = vmax.f32 %v4202, %v4395
    %v4779 = vmax.f32 %v4203, %v4396
    %v4780 = vmax.f32 %v4204, %v4397
    %v4781 = vmax.f32 %v4205, %v4398
    %v4782 = vmax.f32 %v4206, %v4399
    %v4783 = vmax.f32 %v4207, %v4400
    %v4784 = vmax.f32 %v4208, %v4401
    %v4785 = vmax.f32 %v4209, %v4402
    %v4786 = vmax.f32 %v4210, %v4403
    %v4787 = vmax.f32 %v4211, %v4404
    %v4788 = vmax.f32 %v4212, %v4405
    %v4789 = vmax.f32 %v4213, %v4406
    %v4790 = vmax.f32 %v4214, %v4407
    %v4791 = vmax.f32 %v4215, %v4408
    %v4792 = vmax.f32 %v4216, %v4409
    %v4793 = vmax.f32 %v4217, %v4410
    %v4794 = vmax.f32 %v4218, %v4411
    %v4795 = vmax.f32 %v4219, %v4412
    %v4796 = vmax.f32 %v4220, %v4413
    %v4797 = vmax.f32 %v4221, %v4414
    %v4798 = vmax.f32 %v4222, %v4415
    %v4799 = vmax.f32 %v4223, %v4416
    %v4800 = vmax.f32 %v4224, %v4417
    %v4801 = vmax.f32 %v4225, %v4418
    %v4802 = vmax.f32 %v4226, %v4419
    %v4803 = vmax.f32 %v4675, %v4739
    %v4804 = vmax.f32 %v4676, %v4740
    %v4805 = vmax.f32 %v4677, %v4741
    %v4806 = vmax.f32 %v4678, %v4742
    %v4807 = vmax.f32 %v4679, %v4743
    %v4808 = vmax.f32 %v4680, %v4744
    %v4809 = vmax.f32 %v4681, %v4745
    %v4810 = vmax.f32 %v4682, %v4746
    %v4811 = vmax.f32 %v4683, %v4747
    %v4812 = vmax.f32 %v4684, %v4748
    %v4813 = vmax.f32 %v4685, %v4749
    %v4814 = vmax.f32 %v4686, %v4750
    %v4815 = vmax.f32 %v4687, %v4751
    %v4816 = vmax.f32 %v4688, %v4752
    %v4817 = vmax.f32 %v4689, %v4753
    %v4818 = vmax.f32 %v4690, %v4754
    %v4819 = vmax.f32 %v4691, %v4755
    %v4820 = vmax.f32 %v4692, %v4756
    %v4821 = vmax.f32 %v4693, %v4757
    %v4822 = vmax.f32 %v4694, %v4758
    %v4823 = vmax.f32 %v4695, %v4759
    %v4824 = vmax.f32 %v4696, %v4760
    %v4825 = vmax.f32 %v4697, %v4761
    %v4826 = vmax.f32 %v4698, %v4762
    %v4827 = vmax.f32 %v4699, %v4763
    %v4828 = vmax.f32 %v4700, %v4764
    %v4829 = vmax.f32 %v4701, %v4765
    %v4830 = vmax.f32 %v4702, %v4766
    %v4831 = vmax.f32 %v4703, %v4767
    %v4832 = vmax.f32 %v4704, %v4768
    %v4833 = vmax.f32 %v4705, %v4769
    %v4834 = vmax.f32 %v4706, %v4770
    %v4835 = vmax.f32 %v4707, %v4771
    %v4836 = vmax.f32 %v4708, %v4772
    %v4837 = vmax.f32 %v4709, %v4773
    %v4838 = vmax.f32 %v4710, %v4774
    %v4839 = vmax.f32 %v4711, %v4775
    %v4840 = vmax.f32 %v4712, %v4776
    %v4841 = vmax.f32 %v4713, %v4777
    %v4842 = vmax.f32 %v4714, %v4778
    %v4843 = vmax.f32 %v4715, %v4779
    %v4844 = vmax.f32 %v4716, %v4780
    %v4845 = vmax.f32 %v4717, %v4781
    %v4846 = vmax.f32 %v4718, %v4782
    %v4847 = vmax.f32 %v4719, %v4783
    %v4848 = vmax.f32 %v4720, %v4784
    %v4849 = vmax.f32 %v4721, %v4785
    %v4850 = vmax.f32 %v4722, %v4786
    %v4851 = vmax.f32 %v4723, %v4787
    %v4852 = vmax.f32 %v4724, %v4788
    %v4853 = vmax.f32 %v4725, %v4789
    %v4854 = vmax.f32 %v4726, %v4790
    %v4855 = vmax.f32 %v4727, %v4791
    %v4856 = vmax.f32 %v4728, %v4792
    %v4857 = vmax.f32 %v4729, %v4793
    %v4858 = vmax.f32 %v4730, %v4794
    %v4859 = vmax.f32 %v4731, %v4795
    %v4860 = vmax.f32 %v4732, %v4796
    %v4861 = vmax.f32 %v4733, %v4797
    %v4862 = vmax.f32 %v4734, %v4798
    %v4863 = vmax.f32 %v4735, %v4799
    %v4864 = vmax.f32 %v4736, %v4800
    %v4865 = vmax.f32 %v4737, %v4801
    %v4866 = vmax.f32 %v4738, %v4802
    %v4867 = vlaneseq
    %v4868 = vand.u32 %v4867, 127
    %v4869 = vadd.s32 %v4868, 128
    %v4870 = vadd.s32 %v4868, 256
    %v4871 = vadd.s32 %v4868, 384
    %v4872 = vmul.u32 %v3574, 8
    %v4873 = vmul.u32 %v3575, 8
    %v4874 = vmul.u32 %v3576, 8
    %v4875 = vmul.u32 %v3577, 8
    %v4876 = vmul.u32 %v3578, 8
    %v4877 = vmul.u32 %v3579, 8
    %v4878 = vmul.u32 %v3580, 8
    %v4879 = vmul.u32 %v3581, 8
    %v4880 = vmul.u32 %v3582, 8
    %v4881 = vadd.s32 %v4872, 4294967290
    %v4882 = vadd.s32 %v4873, 4294967290
    %v4883 = vadd.s32 %v4874, 4294967290
    %v4884 = vadd.s32 %v4875, 4294967290
    %v4885 = vadd.s32 %v4876, 4294967290
    %v4886 = vadd.s32 %v4877, 4294967290
    %v4887 = vadd.s32 %v4878, 4294967290
    %v4888 = vadd.s32 %v4879, 4294967290
    %v4889 = vadd.s32 %v4880, 4294967290
    %vm4890 = vcmp.eq.s32.totalorder %v4868, %v4881
    %vm4891 = vcmp.eq.s32.totalorder %v4869, %v4881
    %vm4892 = vcmp.eq.s32.totalorder %v4870, %v4881
    %vm4893 = vcmp.eq.s32.totalorder %v4871, %v4881
    %vm4894 = vcmp.eq.s32.totalorder %v4868, %v4882
    %vm4895 = vcmp.eq.s32.totalorder %v4869, %v4882
    %vm4896 = vcmp.eq.s32.totalorder %v4870, %v4882
    %vm4897 = vcmp.eq.s32.totalorder %v4871, %v4882
    %vm4898 = vcmp.eq.s32.totalorder %v4868, %v4883
    %vm4899 = vcmp.eq.s32.totalorder %v4869, %v4883
    %vm4900 = vcmp.eq.s32.totalorder %v4870, %v4883
    %vm4901 = vcmp.eq.s32.totalorder %v4871, %v4883
    %vm4902 = vcmp.eq.s32.totalorder %v4868, %v4884
    %vm4903 = vcmp.eq.s32.totalorder %v4869, %v4884
    %vm4904 = vcmp.eq.s32.totalorder %v4870, %v4884
    %vm4905 = vcmp.eq.s32.totalorder %v4871, %v4884
    %vm4906 = vcmp.eq.s32.totalorder %v4868, %v4885
    %vm4907 = vcmp.eq.s32.totalorder %v4869, %v4885
    %vm4908 = vcmp.eq.s32.totalorder %v4870, %v4885
    %vm4909 = vcmp.eq.s32.totalorder %v4871, %v4885
    %vm4910 = vcmp.eq.s32.totalorder %v4868, %v4886
    %vm4911 = vcmp.eq.s32.totalorder %v4869, %v4886
    %vm4912 = vcmp.eq.s32.totalorder %v4870, %v4886
    %vm4913 = vcmp.eq.s32.totalorder %v4871, %v4886
    %vm4914 = vcmp.eq.s32.totalorder %v4868, %v4887
    %vm4915 = vcmp.eq.s32.totalorder %v4869, %v4887
    %vm4916 = vcmp.eq.s32.totalorder %v4870, %v4887
    %vm4917 = vcmp.eq.s32.totalorder %v4871, %v4887
    %vm4918 = vcmp.eq.s32.totalorder %v4868, %v4888
    %vm4919 = vcmp.eq.s32.totalorder %v4869, %v4888
    %vm4920 = vcmp.eq.s32.totalorder %v4870, %v4888
    %vm4921 = vcmp.eq.s32.totalorder %v4871, %v4888
    %vm4922 = vcmp.eq.s32.totalorder %v4868, %v4889
    %vm4923 = vcmp.eq.s32.totalorder %v4869, %v4889
    %vm4924 = vcmp.eq.s32.totalorder %v4870, %v4889
    %vm4925 = vcmp.eq.s32.totalorder %v4871, %v4889
    %v4926 = vsel %vm4890, 1, 0
    %v4927 = vsel %vm4891, 1, 0
    %v4928 = vsel %vm4892, 1, 0
    %v4929 = vsel %vm4893, 1, 0
    %v4930 = vsel %vm4894, 1, 0
    %v4931 = vsel %vm4895, 1, 0
    %v4932 = vsel %vm4896, 1, 0
    %v4933 = vsel %vm4897, 1, 0
    %v4934 = vsel %vm4898, 1, 0
    %v4935 = vsel %vm4899, 1, 0
    %v4936 = vsel %vm4900, 1, 0
    %v4937 = vsel %vm4901, 1, 0
    %v4938 = vsel %vm4902, 1, 0
    %v4939 = vsel %vm4903, 1, 0
    %v4940 = vsel %vm4904, 1, 0
    %v4941 = vsel %vm4905, 1, 0
    %v4942 = vsel %vm4906, 1, 0
    %v4943 = vsel %vm4907, 1, 0
    %v4944 = vsel %vm4908, 1, 0
    %v4945 = vsel %vm4909, 1, 0
    %v4946 = vsel %vm4910, 1, 0
    %v4947 = vsel %vm4911, 1, 0
    %v4948 = vsel %vm4912, 1, 0
    %v4949 = vsel %vm4913, 1, 0
    %v4950 = vsel %vm4914, 1, 0
    %v4951 = vsel %vm4915, 1, 0
    %v4952 = vsel %vm4916, 1, 0
    %v4953 = vsel %vm4917, 1, 0
    %v4954 = vsel %vm4918, 1, 0
    %v4955 = vsel %vm4919, 1, 0
    %v4956 = vsel %vm4920, 1, 0
    %v4957 = vsel %vm4921, 1, 0
    %v4958 = vsel %vm4922, 1, 0
    %v4959 = vsel %vm4923, 1, 0
    %v4960 = vsel %vm4924, 1, 0
    %v4961 = vsel %vm4925, 1, 0
    %v4962 = vcvt.s32.f32 %v4926
    %v4963 = vcvt.s32.f32 %v4927
    %v4964 = vcvt.s32.f32 %v4928
    %v4965 = vcvt.s32.f32 %v4929
    %v4966 = vcvt.s32.f32 %v4930
    %v4967 = vcvt.s32.f32 %v4931
    %v4968 = vcvt.s32.f32 %v4932
    %v4969 = vcvt.s32.f32 %v4933
    %v4970 = vcvt.s32.f32 %v4934
    %v4971 = vcvt.s32.f32 %v4935
    %v4972 = vcvt.s32.f32 %v4936
    %v4973 = vcvt.s32.f32 %v4937
    %v4974 = vcvt.s32.f32 %v4938
    %v4975 = vcvt.s32.f32 %v4939
    %v4976 = vcvt.s32.f32 %v4940
    %v4977 = vcvt.s32.f32 %v4941
    %v4978 = vcvt.s32.f32 %v4942
    %v4979 = vcvt.s32.f32 %v4943
    %v4980 = vcvt.s32.f32 %v4944
    %v4981 = vcvt.s32.f32 %v4945
    %v4982 = vcvt.s32.f32 %v4946
    %v4983 = vcvt.s32.f32 %v4947
    %v4984 = vcvt.s32.f32 %v4948
    %v4985 = vcvt.s32.f32 %v4949
    %v4986 = vcvt.s32.f32 %v4950
    %v4987 = vcvt.s32.f32 %v4951
    %v4988 = vcvt.s32.f32 %v4952
    %v4989 = vcvt.s32.f32 %v4953
    %v4990 = vcvt.s32.f32 %v4954
    %v4991 = vcvt.s32.f32 %v4955
    %v4992 = vcvt.s32.f32 %v4956
    %v4993 = vcvt.s32.f32 %v4957
    %v4994 = vcvt.s32.f32 %v4958
    %v4995 = vcvt.s32.f32 %v4959
    %v4996 = vcvt.s32.f32 %v4960
    %v4997 = vcvt.s32.f32 %v4961
    %v4998 = vadd.s32 %v4872, 4294967292
    %v4999 = vadd.s32 %v4873, 4294967292
    %v5000 = vadd.s32 %v4874, 4294967292
    %v5001 = vadd.s32 %v4875, 4294967292
    %v5002 = vadd.s32 %v4876, 4294967292
    %v5003 = vadd.s32 %v4877, 4294967292
    %v5004 = vadd.s32 %v4878, 4294967292
    %v5005 = vadd.s32 %v4879, 4294967292
    %v5006 = vadd.s32 %v4880, 4294967292
    %vm5007 = vcmp.eq.s32.totalorder %v4868, %v4998
    %vm5008 = vcmp.eq.s32.totalorder %v4869, %v4998
    %vm5009 = vcmp.eq.s32.totalorder %v4870, %v4998
    %vm5010 = vcmp.eq.s32.totalorder %v4871, %v4998
    %vm5011 = vcmp.eq.s32.totalorder %v4868, %v4999
    %vm5012 = vcmp.eq.s32.totalorder %v4869, %v4999
    %vm5013 = vcmp.eq.s32.totalorder %v4870, %v4999
    %vm5014 = vcmp.eq.s32.totalorder %v4871, %v4999
    %vm5015 = vcmp.eq.s32.totalorder %v4868, %v5000
    %vm5016 = vcmp.eq.s32.totalorder %v4869, %v5000
    %vm5017 = vcmp.eq.s32.totalorder %v4870, %v5000
    %vm5018 = vcmp.eq.s32.totalorder %v4871, %v5000
    %vm5019 = vcmp.eq.s32.totalorder %v4868, %v5001
    %vm5020 = vcmp.eq.s32.totalorder %v4869, %v5001
    %vm5021 = vcmp.eq.s32.totalorder %v4870, %v5001
    %vm5022 = vcmp.eq.s32.totalorder %v4871, %v5001
    %vm5023 = vcmp.eq.s32.totalorder %v4868, %v5002
    %vm5024 = vcmp.eq.s32.totalorder %v4869, %v5002
    %vm5025 = vcmp.eq.s32.totalorder %v4870, %v5002
    %vm5026 = vcmp.eq.s32.totalorder %v4871, %v5002
    %vm5027 = vcmp.eq.s32.totalorder %v4868, %v5003
    %vm5028 = vcmp.eq.s32.totalorder %v4869, %v5003
    %vm5029 = vcmp.eq.s32.totalorder %v4870, %v5003
    %vm5030 = vcmp.eq.s32.totalorder %v4871, %v5003
    %vm5031 = vcmp.eq.s32.totalorder %v4868, %v5004
    %vm5032 = vcmp.eq.s32.totalorder %v4869, %v5004
    %vm5033 = vcmp.eq.s32.totalorder %v4870, %v5004
    %vm5034 = vcmp.eq.s32.totalorder %v4871, %v5004
    %vm5035 = vcmp.eq.s32.totalorder %v4868, %v5005
    %vm5036 = vcmp.eq.s32.totalorder %v4869, %v5005
    %vm5037 = vcmp.eq.s32.totalorder %v4870, %v5005
    %vm5038 = vcmp.eq.s32.totalorder %v4871, %v5005
    %vm5039 = vcmp.eq.s32.totalorder %v4868, %v5006
    %vm5040 = vcmp.eq.s32.totalorder %v4869, %v5006
    %vm5041 = vcmp.eq.s32.totalorder %v4870, %v5006
    %vm5042 = vcmp.eq.s32.totalorder %v4871, %v5006
    %v5043 = vsel %vm5007, 1, 0
    %v5044 = vsel %vm5008, 1, 0
    %v5045 = vsel %vm5009, 1, 0
    %v5046 = vsel %vm5010, 1, 0
    %v5047 = vsel %vm5011, 1, 0
    %v5048 = vsel %vm5012, 1, 0
    %v5049 = vsel %vm5013, 1, 0
    %v5050 = vsel %vm5014, 1, 0
    %v5051 = vsel %vm5015, 1, 0
    %v5052 = vsel %vm5016, 1, 0
    %v5053 = vsel %vm5017, 1, 0
    %v5054 = vsel %vm5018, 1, 0
    %v5055 = vsel %vm5019, 1, 0
    %v5056 = vsel %vm5020, 1, 0
    %v5057 = vsel %vm5021, 1, 0
    %v5058 = vsel %vm5022, 1, 0
    %v5059 = vsel %vm5023, 1, 0
    %v5060 = vsel %vm5024, 1, 0
    %v5061 = vsel %vm5025, 1, 0
    %v5062 = vsel %vm5026, 1, 0
    %v5063 = vsel %vm5027, 1, 0
    %v5064 = vsel %vm5028, 1, 0
    %v5065 = vsel %vm5029, 1, 0
    %v5066 = vsel %vm5030, 1, 0
    %v5067 = vsel %vm5031, 1, 0
    %v5068 = vsel %vm5032, 1, 0
    %v5069 = vsel %vm5033, 1, 0
    %v5070 = vsel %vm5034, 1, 0
    %v5071 = vsel %vm5035, 1, 0
    %v5072 = vsel %vm5036, 1, 0
    %v5073 = vsel %vm5037, 1, 0
    %v5074 = vsel %vm5038, 1, 0
    %v5075 = vsel %vm5039, 1, 0
    %v5076 = vsel %vm5040, 1, 0
    %v5077 = vsel %vm5041, 1, 0
    %v5078 = vsel %vm5042, 1, 0
    %v5079 = vcvt.s32.f32 %v5043
    %v5080 = vcvt.s32.f32 %v5044
    %v5081 = vcvt.s32.f32 %v5045
    %v5082 = vcvt.s32.f32 %v5046
    %v5083 = vcvt.s32.f32 %v5047
    %v5084 = vcvt.s32.f32 %v5048
    %v5085 = vcvt.s32.f32 %v5049
    %v5086 = vcvt.s32.f32 %v5050
    %v5087 = vcvt.s32.f32 %v5051
    %v5088 = vcvt.s32.f32 %v5052
    %v5089 = vcvt.s32.f32 %v5053
    %v5090 = vcvt.s32.f32 %v5054
    %v5091 = vcvt.s32.f32 %v5055
    %v5092 = vcvt.s32.f32 %v5056
    %v5093 = vcvt.s32.f32 %v5057
    %v5094 = vcvt.s32.f32 %v5058
    %v5095 = vcvt.s32.f32 %v5059
    %v5096 = vcvt.s32.f32 %v5060
    %v5097 = vcvt.s32.f32 %v5061
    %v5098 = vcvt.s32.f32 %v5062
    %v5099 = vcvt.s32.f32 %v5063
    %v5100 = vcvt.s32.f32 %v5064
    %v5101 = vcvt.s32.f32 %v5065
    %v5102 = vcvt.s32.f32 %v5066
    %v5103 = vcvt.s32.f32 %v5067
    %v5104 = vcvt.s32.f32 %v5068
    %v5105 = vcvt.s32.f32 %v5069
    %v5106 = vcvt.s32.f32 %v5070
    %v5107 = vcvt.s32.f32 %v5071
    %v5108 = vcvt.s32.f32 %v5072
    %v5109 = vcvt.s32.f32 %v5073
    %v5110 = vcvt.s32.f32 %v5074
    %v5111 = vcvt.s32.f32 %v5075
    %v5112 = vcvt.s32.f32 %v5076
    %v5113 = vcvt.s32.f32 %v5077
    %v5114 = vcvt.s32.f32 %v5078
    %v5115 = vadd.s32 %v4872, 4294967294
    %v5116 = vadd.s32 %v4873, 4294967294
    %v5117 = vadd.s32 %v4874, 4294967294
    %v5118 = vadd.s32 %v4875, 4294967294
    %v5119 = vadd.s32 %v4876, 4294967294
    %v5120 = vadd.s32 %v4877, 4294967294
    %v5121 = vadd.s32 %v4878, 4294967294
    %v5122 = vadd.s32 %v4879, 4294967294
    %v5123 = vadd.s32 %v4880, 4294967294
    %vm5124 = vcmp.eq.s32.totalorder %v4868, %v5115
    %vm5125 = vcmp.eq.s32.totalorder %v4869, %v5115
    %vm5126 = vcmp.eq.s32.totalorder %v4870, %v5115
    %vm5127 = vcmp.eq.s32.totalorder %v4871, %v5115
    %vm5128 = vcmp.eq.s32.totalorder %v4868, %v5116
    %vm5129 = vcmp.eq.s32.totalorder %v4869, %v5116
    %vm5130 = vcmp.eq.s32.totalorder %v4870, %v5116
    %vm5131 = vcmp.eq.s32.totalorder %v4871, %v5116
    %vm5132 = vcmp.eq.s32.totalorder %v4868, %v5117
    %vm5133 = vcmp.eq.s32.totalorder %v4869, %v5117
    %vm5134 = vcmp.eq.s32.totalorder %v4870, %v5117
    %vm5135 = vcmp.eq.s32.totalorder %v4871, %v5117
    %vm5136 = vcmp.eq.s32.totalorder %v4868, %v5118
    %vm5137 = vcmp.eq.s32.totalorder %v4869, %v5118
    %vm5138 = vcmp.eq.s32.totalorder %v4870, %v5118
    %vm5139 = vcmp.eq.s32.totalorder %v4871, %v5118
    %vm5140 = vcmp.eq.s32.totalorder %v4868, %v5119
    %vm5141 = vcmp.eq.s32.totalorder %v4869, %v5119
    %vm5142 = vcmp.eq.s32.totalorder %v4870, %v5119
    %vm5143 = vcmp.eq.s32.totalorder %v4871, %v5119
    %vm5144 = vcmp.eq.s32.totalorder %v4868, %v5120
    %vm5145 = vcmp.eq.s32.totalorder %v4869, %v5120
    %vm5146 = vcmp.eq.s32.totalorder %v4870, %v5120
    %vm5147 = vcmp.eq.s32.totalorder %v4871, %v5120
    %vm5148 = vcmp.eq.s32.totalorder %v4868, %v5121
    %vm5149 = vcmp.eq.s32.totalorder %v4869, %v5121
    %vm5150 = vcmp.eq.s32.totalorder %v4870, %v5121
    %vm5151 = vcmp.eq.s32.totalorder %v4871, %v5121
    %vm5152 = vcmp.eq.s32.totalorder %v4868, %v5122
    %vm5153 = vcmp.eq.s32.totalorder %v4869, %v5122
    %vm5154 = vcmp.eq.s32.totalorder %v4870, %v5122
    %vm5155 = vcmp.eq.s32.totalorder %v4871, %v5122
    %vm5156 = vcmp.eq.s32.totalorder %v4868, %v5123
    %vm5157 = vcmp.eq.s32.totalorder %v4869, %v5123
    %vm5158 = vcmp.eq.s32.totalorder %v4870, %v5123
    %vm5159 = vcmp.eq.s32.totalorder %v4871, %v5123
    %v5160 = vsel %vm5124, 1, 0
    %v5161 = vsel %vm5125, 1, 0
    %v5162 = vsel %vm5126, 1, 0
    %v5163 = vsel %vm5127, 1, 0
    %v5164 = vsel %vm5128, 1, 0
    %v5165 = vsel %vm5129, 1, 0
    %v5166 = vsel %vm5130, 1, 0
    %v5167 = vsel %vm5131, 1, 0
    %v5168 = vsel %vm5132, 1, 0
    %v5169 = vsel %vm5133, 1, 0
    %v5170 = vsel %vm5134, 1, 0
    %v5171 = vsel %vm5135, 1, 0
    %v5172 = vsel %vm5136, 1, 0
    %v5173 = vsel %vm5137, 1, 0
    %v5174 = vsel %vm5138, 1, 0
    %v5175 = vsel %vm5139, 1, 0
    %v5176 = vsel %vm5140, 1, 0
    %v5177 = vsel %vm5141, 1, 0
    %v5178 = vsel %vm5142, 1, 0
    %v5179 = vsel %vm5143, 1, 0
    %v5180 = vsel %vm5144, 1, 0
    %v5181 = vsel %vm5145, 1, 0
    %v5182 = vsel %vm5146, 1, 0
    %v5183 = vsel %vm5147, 1, 0
    %v5184 = vsel %vm5148, 1, 0
    %v5185 = vsel %vm5149, 1, 0
    %v5186 = vsel %vm5150, 1, 0
    %v5187 = vsel %vm5151, 1, 0
    %v5188 = vsel %vm5152, 1, 0
    %v5189 = vsel %vm5153, 1, 0
    %v5190 = vsel %vm5154, 1, 0
    %v5191 = vsel %vm5155, 1, 0
    %v5192 = vsel %vm5156, 1, 0
    %v5193 = vsel %vm5157, 1, 0
    %v5194 = vsel %vm5158, 1, 0
    %v5195 = vsel %vm5159, 1, 0
    %v5196 = vcvt.s32.f32 %v5160
    %v5197 = vcvt.s32.f32 %v5161
    %v5198 = vcvt.s32.f32 %v5162
    %v5199 = vcvt.s32.f32 %v5163
    %v5200 = vcvt.s32.f32 %v5164
    %v5201 = vcvt.s32.f32 %v5165
    %v5202 = vcvt.s32.f32 %v5166
    %v5203 = vcvt.s32.f32 %v5167
    %v5204 = vcvt.s32.f32 %v5168
    %v5205 = vcvt.s32.f32 %v5169
    %v5206 = vcvt.s32.f32 %v5170
    %v5207 = vcvt.s32.f32 %v5171
    %v5208 = vcvt.s32.f32 %v5172
    %v5209 = vcvt.s32.f32 %v5173
    %v5210 = vcvt.s32.f32 %v5174
    %v5211 = vcvt.s32.f32 %v5175
    %v5212 = vcvt.s32.f32 %v5176
    %v5213 = vcvt.s32.f32 %v5177
    %v5214 = vcvt.s32.f32 %v5178
    %v5215 = vcvt.s32.f32 %v5179
    %v5216 = vcvt.s32.f32 %v5180
    %v5217 = vcvt.s32.f32 %v5181
    %v5218 = vcvt.s32.f32 %v5182
    %v5219 = vcvt.s32.f32 %v5183
    %v5220 = vcvt.s32.f32 %v5184
    %v5221 = vcvt.s32.f32 %v5185
    %v5222 = vcvt.s32.f32 %v5186
    %v5223 = vcvt.s32.f32 %v5187
    %v5224 = vcvt.s32.f32 %v5188
    %v5225 = vcvt.s32.f32 %v5189
    %v5226 = vcvt.s32.f32 %v5190
    %v5227 = vcvt.s32.f32 %v5191
    %v5228 = vcvt.s32.f32 %v5192
    %v5229 = vcvt.s32.f32 %v5193
    %v5230 = vcvt.s32.f32 %v5194
    %v5231 = vcvt.s32.f32 %v5195
    %vm5232 = vcmp.eq.s32.totalorder %v4868, %v4872
    %vm5233 = vcmp.eq.s32.totalorder %v4869, %v4872
    %vm5234 = vcmp.eq.s32.totalorder %v4870, %v4872
    %vm5235 = vcmp.eq.s32.totalorder %v4871, %v4872
    %vm5236 = vcmp.eq.s32.totalorder %v4868, %v4873
    %vm5237 = vcmp.eq.s32.totalorder %v4869, %v4873
    %vm5238 = vcmp.eq.s32.totalorder %v4870, %v4873
    %vm5239 = vcmp.eq.s32.totalorder %v4871, %v4873
    %vm5240 = vcmp.eq.s32.totalorder %v4868, %v4874
    %vm5241 = vcmp.eq.s32.totalorder %v4869, %v4874
    %vm5242 = vcmp.eq.s32.totalorder %v4870, %v4874
    %vm5243 = vcmp.eq.s32.totalorder %v4871, %v4874
    %vm5244 = vcmp.eq.s32.totalorder %v4868, %v4875
    %vm5245 = vcmp.eq.s32.totalorder %v4869, %v4875
    %vm5246 = vcmp.eq.s32.totalorder %v4870, %v4875
    %vm5247 = vcmp.eq.s32.totalorder %v4871, %v4875
    %vm5248 = vcmp.eq.s32.totalorder %v4868, %v4876
    %vm5249 = vcmp.eq.s32.totalorder %v4869, %v4876
    %vm5250 = vcmp.eq.s32.totalorder %v4870, %v4876
    %vm5251 = vcmp.eq.s32.totalorder %v4871, %v4876
    %vm5252 = vcmp.eq.s32.totalorder %v4868, %v4877
    %vm5253 = vcmp.eq.s32.totalorder %v4869, %v4877
    %vm5254 = vcmp.eq.s32.totalorder %v4870, %v4877
    %vm5255 = vcmp.eq.s32.totalorder %v4871, %v4877
    %vm5256 = vcmp.eq.s32.totalorder %v4868, %v4878
    %vm5257 = vcmp.eq.s32.totalorder %v4869, %v4878
    %vm5258 = vcmp.eq.s32.totalorder %v4870, %v4878
    %vm5259 = vcmp.eq.s32.totalorder %v4871, %v4878
    %vm5260 = vcmp.eq.s32.totalorder %v4868, %v4879
    %vm5261 = vcmp.eq.s32.totalorder %v4869, %v4879
    %vm5262 = vcmp.eq.s32.totalorder %v4870, %v4879
    %vm5263 = vcmp.eq.s32.totalorder %v4871, %v4879
    %vm5264 = vcmp.eq.s32.totalorder %v4868, %v4880
    %vm5265 = vcmp.eq.s32.totalorder %v4869, %v4880
    %vm5266 = vcmp.eq.s32.totalorder %v4870, %v4880
    %vm5267 = vcmp.eq.s32.totalorder %v4871, %v4880
    %v5268 = vsel %vm5232, 1, 0
    %v5269 = vsel %vm5233, 1, 0
    %v5270 = vsel %vm5234, 1, 0
    %v5271 = vsel %vm5235, 1, 0
    %v5272 = vsel %vm5236, 1, 0
    %v5273 = vsel %vm5237, 1, 0
    %v5274 = vsel %vm5238, 1, 0
    %v5275 = vsel %vm5239, 1, 0
    %v5276 = vsel %vm5240, 1, 0
    %v5277 = vsel %vm5241, 1, 0
    %v5278 = vsel %vm5242, 1, 0
    %v5279 = vsel %vm5243, 1, 0
    %v5280 = vsel %vm5244, 1, 0
    %v5281 = vsel %vm5245, 1, 0
    %v5282 = vsel %vm5246, 1, 0
    %v5283 = vsel %vm5247, 1, 0
    %v5284 = vsel %vm5248, 1, 0
    %v5285 = vsel %vm5249, 1, 0
    %v5286 = vsel %vm5250, 1, 0
    %v5287 = vsel %vm5251, 1, 0
    %v5288 = vsel %vm5252, 1, 0
    %v5289 = vsel %vm5253, 1, 0
    %v5290 = vsel %vm5254, 1, 0
    %v5291 = vsel %vm5255, 1, 0
    %v5292 = vsel %vm5256, 1, 0
    %v5293 = vsel %vm5257, 1, 0
    %v5294 = vsel %vm5258, 1, 0
    %v5295 = vsel %vm5259, 1, 0
    %v5296 = vsel %vm5260, 1, 0
    %v5297 = vsel %vm5261, 1, 0
    %v5298 = vsel %vm5262, 1, 0
    %v5299 = vsel %vm5263, 1, 0
    %v5300 = vsel %vm5264, 1, 0
    %v5301 = vsel %vm5265, 1, 0
    %v5302 = vsel %vm5266, 1, 0
    %v5303 = vsel %vm5267, 1, 0
    %v5304 = vcvt.s32.f32 %v5268
    %v5305 = vcvt.s32.f32 %v5269
    %v5306 = vcvt.s32.f32 %v5270
    %v5307 = vcvt.s32.f32 %v5271
    %v5308 = vcvt.s32.f32 %v5272
    %v5309 = vcvt.s32.f32 %v5273
    %v5310 = vcvt.s32.f32 %v5274
    %v5311 = vcvt.s32.f32 %v5275
    %v5312 = vcvt.s32.f32 %v5276
    %v5313 = vcvt.s32.f32 %v5277
    %v5314 = vcvt.s32.f32 %v5278
    %v5315 = vcvt.s32.f32 %v5279
    %v5316 = vcvt.s32.f32 %v5280
    %v5317 = vcvt.s32.f32 %v5281
    %v5318 = vcvt.s32.f32 %v5282
    %v5319 = vcvt.s32.f32 %v5283
    %v5320 = vcvt.s32.f32 %v5284
    %v5321 = vcvt.s32.f32 %v5285
    %v5322 = vcvt.s32.f32 %v5286
    %v5323 = vcvt.s32.f32 %v5287
    %v5324 = vcvt.s32.f32 %v5288
    %v5325 = vcvt.s32.f32 %v5289
    %v5326 = vcvt.s32.f32 %v5290
    %v5327 = vcvt.s32.f32 %v5291
    %v5328 = vcvt.s32.f32 %v5292
    %v5329 = vcvt.s32.f32 %v5293
    %v5330 = vcvt.s32.f32 %v5294
    %v5331 = vcvt.s32.f32 %v5295
    %v5332 = vcvt.s32.f32 %v5296
    %v5333 = vcvt.s32.f32 %v5297
    %v5334 = vcvt.s32.f32 %v5298
    %v5335 = vcvt.s32.f32 %v5299
    %v5336 = vcvt.s32.f32 %v5300
    %v5337 = vcvt.s32.f32 %v5301
    %v5338 = vcvt.s32.f32 %v5302
    %v5339 = vcvt.s32.f32 %v5303
    %vm5340 = vcmask 1039360
    %v5342 = vsel %vm5340, %v4965, 0
    %v5345 = vsel %vm5340, %v4969, 0
    %v5348 = vsel %vm5340, %v4973, 0
    %v5351 = vsel %vm5340, %v4977, 0
    %v5354 = vsel %vm5340, %v4981, 0
    %v5357 = vsel %vm5340, %v4985, 0
    %v5360 = vsel %vm5340, %v4989, 0
    %v5363 = vsel %vm5340, %v4993, 0
    %v5366 = vsel %vm5340, %v4997, 0
    %v5369 = vsel %vm1146, %v4866, 0
    %5371 = vmatprep.subr.mxu0 0.0
    %5372 = vmatpush1.msra.mxu0 %v4818
    %5373 = vmatprep.subr.mxu0 0.0
    %5374 = vmatpush1.msra.mxu0 %v4817
    %5375 = vmatprep.subr.mxu0 0.0
    %5376 = vmatpush1.msra.mxu0 %v4816
    %5377 = vmatprep.subr.mxu0 0.0
    %5378 = vmatpush1.msra.mxu0 %v4815
    %5379 = vmatprep.subr.mxu0 0.0
    %5380 = vmatpush1.msra.mxu0 %v4814
    %5381 = vmatprep.subr.mxu0 0.0
    %5382 = vmatpush1.msra.mxu0 %v4813
    %5383 = vmatprep.subr.mxu0 0.0
    %5384 = vmatpush1.msra.mxu0 %v4812
    %5385 = vmatprep.subr.mxu0 0.0
    %5386 = vmatpush1.msra.mxu0 %v4811
    %5387 = vmatprep.subr.mxu0 0.0
    %5388 = vmatpush1.msra.mxu0 %v4810
    %5389 = vmatprep.subr.mxu0 0.0
    %5390 = vmatpush1.msra.mxu0 %v4809
    %5391 = vmatprep.subr.mxu0 0.0
    %5392 = vmatpush1.msra.mxu0 %v4808
    %5393 = vmatprep.subr.mxu0 0.0
    %5394 = vmatpush1.msra.mxu0 %v4807
    %5395 = vmatprep.subr.mxu0 0.0
    %5396 = vmatpush1.msra.mxu0 %v4806
    %5397 = vmatprep.subr.mxu0 0.0
    %5398 = vmatpush1.msra.mxu0 %v4805
    %5399 = vmatprep.subr.mxu0 0.0
    %5400 = vmatpush1.msra.mxu0 %v4804
    %5401 = vmatprep.subr.mxu0 0.0
    %5402 = vmatpush1.msra.mxu0 %v4803
    %5403 = vmatprep.subr.mxu0 0.0
    %5404 = vmatpush2.msra.mxu0 %v4834
    %5405 = vmatprep.subr.mxu0 0.0
    %5406 = vmatpush2.msra.mxu0 %v4833
    %5407 = vmatprep.subr.mxu0 0.0
    %5408 = vmatpush2.msra.mxu0 %v4832
    %5409 = vmatprep.subr.mxu0 0.0
    %5410 = vmatpush2.msra.mxu0 %v4831
    %5411 = vmatprep.subr.mxu0 0.0
    %5412 = vmatpush2.msra.mxu0 %v4830
    %5413 = vmatprep.subr.mxu0 0.0
    %5414 = vmatpush2.msra.mxu0 %v4829
    %5415 = vmatprep.subr.mxu0 0.0
    %5416 = vmatpush2.msra.mxu0 %v4828
    %5417 = vmatprep.subr.mxu0 0.0
    %5418 = vmatpush2.msra.mxu0 %v4827
    %5419 = vmatprep.subr.mxu0 0.0
    %5420 = vmatpush2.msra.mxu0 %v4826
    %5421 = vmatprep.subr.mxu0 0.0
    %5422 = vmatpush2.msra.mxu0 %v4825
    %5423 = vmatprep.subr.mxu0 0.0
    %5424 = vmatpush2.msra.mxu0 %v4824
    %5425 = vmatprep.subr.mxu0 0.0
    %5426 = vmatpush2.msra.mxu0 %v4823
    %5427 = vmatprep.subr.mxu0 0.0
    %5428 = vmatpush2.msra.mxu0 %v4822
    %5429 = vmatprep.subr.mxu0 0.0
    %5430 = vmatpush2.msra.mxu0 %v4821
    %5431 = vmatprep.subr.mxu0 0.0
    %5432 = vmatpush2.msra.mxu0 %v4820
    %5433 = vmatprep.subr.mxu0 0.0
    %5434 = vmatpush2.msra.mxu0 %v4819
    %5435 = vmatprep.mubr.f32.mxu0 %v4963
    %5436 = vmatmul.mubr.f32.gmra.mxu0 %v4962
    %v5437 = vpop.f32.mrf.mxu0
    %v5438 = vadd.f32 0.0, %v5437
    %v5439 = vpop.f32.mrf.mxu0
    %5440 = vmatprep.mubr.f32.mxu0 %v4967
    %5441 = vmatmul.mubr.f32.gmra.mxu0 %v4966
    %v5442 = vpop.f32.mrf.mxu0
    %v5443 = vadd.f32 0.0, %v5442
    %v5444 = vpop.f32.mrf.mxu0
    %5445 = vmatprep.mubr.f32.mxu0 %v4971
    %5446 = vmatmul.mubr.f32.gmra.mxu0 %v4970
    %v5447 = vpop.f32.mrf.mxu0
    %v5448 = vadd.f32 0.0, %v5447
    %v5449 = vpop.f32.mrf.mxu0
    %5450 = vmatprep.mubr.f32.mxu0 %v4975
    %5451 = vmatmul.mubr.f32.gmra.mxu0 %v4974
    %v5452 = vpop.f32.mrf.mxu0
    %v5453 = vadd.f32 0.0, %v5452
    %v5454 = vpop.f32.mrf.mxu0
    %5455 = vmatprep.mubr.f32.mxu0 %v4979
    %5456 = vmatmul.mubr.f32.gmra.mxu0 %v4978
    %v5457 = vpop.f32.mrf.mxu0
    %v5458 = vadd.f32 0.0, %v5457
    %v5459 = vpop.f32.mrf.mxu0
    %5460 = vmatprep.mubr.f32.mxu0 %v4983
    %5461 = vmatmul.mubr.f32.gmra.mxu0 %v4982
    %v5462 = vpop.f32.mrf.mxu0
    %v5463 = vadd.f32 0.0, %v5462
    %v5464 = vpop.f32.mrf.mxu0
    %5465 = vmatprep.mubr.f32.mxu0 %v4987
    %5466 = vmatmul.mubr.f32.gmra.mxu0 %v4986
    %v5467 = vpop.f32.mrf.mxu0
    %v5468 = vadd.f32 0.0, %v5467
    %v5469 = vpop.f32.mrf.mxu0
    %5470 = vmatprep.mubr.f32.mxu0 %v4991
    %5471 = vmatmul.mubr.f32.gmra.mxu0 %v4990
    %v5472 = vpop.f32.mrf.mxu0
    %v5473 = vadd.f32 0.0, %v5472
    %v5474 = vpop.f32.mrf.mxu0
    %5475 = vmatprep.mubr.f32.mxu0 %v4995
    %5476 = vmatmul.mubr.f32.gmra.mxu0 %v4994
    %v5477 = vpop.f32.mrf.mxu0
    %v5478 = vadd.f32 0.0, %v5477
    %v5479 = vpop.f32.mrf.mxu0
    %5480 = vdwg.mxu0
    %5481 = vmatprep.subr.mxu0 0.0
    %5482 = vmatpush1.msra.mxu0 %v4850
    %5483 = vmatprep.subr.mxu0 0.0
    %5484 = vmatpush1.msra.mxu0 %v4849
    %5485 = vmatprep.subr.mxu0 0.0
    %5486 = vmatpush1.msra.mxu0 %v4848
    %5487 = vmatprep.subr.mxu0 0.0
    %5488 = vmatpush1.msra.mxu0 %v4847
    %5489 = vmatprep.subr.mxu0 0.0
    %5490 = vmatpush1.msra.mxu0 %v4846
    %5491 = vmatprep.subr.mxu0 0.0
    %5492 = vmatpush1.msra.mxu0 %v4845
    %5493 = vmatprep.subr.mxu0 0.0
    %5494 = vmatpush1.msra.mxu0 %v4844
    %5495 = vmatprep.subr.mxu0 0.0
    %5496 = vmatpush1.msra.mxu0 %v4843
    %5497 = vmatprep.subr.mxu0 0.0
    %5498 = vmatpush1.msra.mxu0 %v4842
    %5499 = vmatprep.subr.mxu0 0.0
    %5500 = vmatpush1.msra.mxu0 %v4841
    %5501 = vmatprep.subr.mxu0 0.0
    %5502 = vmatpush1.msra.mxu0 %v4840
    %5503 = vmatprep.subr.mxu0 0.0
    %5504 = vmatpush1.msra.mxu0 %v4839
    %5505 = vmatprep.subr.mxu0 0.0
    %5506 = vmatpush1.msra.mxu0 %v4838
    %5507 = vmatprep.subr.mxu0 0.0
    %5508 = vmatpush1.msra.mxu0 %v4837
    %5509 = vmatprep.subr.mxu0 0.0
    %5510 = vmatpush1.msra.mxu0 %v4836
    %5511 = vmatprep.subr.mxu0 0.0
    %5512 = vmatpush1.msra.mxu0 %v4835
    %5513 = vmatprep.subr.mxu0 0.0
    %5514 = vmatpush2.msra.mxu0 %v5369
    %5515 = vmatprep.subr.mxu0 0.0
    %5516 = vmatpush2.msra.mxu0 %v4865
    %5517 = vmatprep.subr.mxu0 0.0
    %5518 = vmatpush2.msra.mxu0 %v4864
    %5519 = vmatprep.subr.mxu0 0.0
    %5520 = vmatpush2.msra.mxu0 %v4863
    %5521 = vmatprep.subr.mxu0 0.0
    %5522 = vmatpush2.msra.mxu0 %v4862
    %5523 = vmatprep.subr.mxu0 0.0
    %5524 = vmatpush2.msra.mxu0 %v4861
    %5525 = vmatprep.subr.mxu0 0.0
    %5526 = vmatpush2.msra.mxu0 %v4860
    %5527 = vmatprep.subr.mxu0 0.0
    %5528 = vmatpush2.msra.mxu0 %v4859
    %5529 = vmatprep.subr.mxu0 0.0
    %5530 = vmatpush2.msra.mxu0 %v4858
    %5531 = vmatprep.subr.mxu0 0.0
    %5532 = vmatpush2.msra.mxu0 %v4857
    %5533 = vmatprep.subr.mxu0 0.0
    %5534 = vmatpush2.msra.mxu0 %v4856
    %5535 = vmatprep.subr.mxu0 0.0
    %5536 = vmatpush2.msra.mxu0 %v4855
    %5537 = vmatprep.subr.mxu0 0.0
    %5538 = vmatpush2.msra.mxu0 %v4854
    %5539 = vmatprep.subr.mxu0 0.0
    %5540 = vmatpush2.msra.mxu0 %v4853
    %5541 = vmatprep.subr.mxu0 0.0
    %5542 = vmatpush2.msra.mxu0 %v4852
    %5543 = vmatprep.subr.mxu0 0.0
    %5544 = vmatpush2.msra.mxu0 %v4851
    %5545 = vmatprep.mubr.f32.mxu0 %v5342
    %5546 = vmatmul.mubr.f32.gmra.mxu0 %v4964
    %v5547 = vpop.f32.mrf.mxu0
    %v5548 = vadd.f32 %v5438, %v5547
    %v5549 = vpop.f32.mrf.mxu0
    %5550 = vmatprep.mubr.f32.mxu0 %v5345
    %5551 = vmatmul.mubr.f32.gmra.mxu0 %v4968
    %v5552 = vpop.f32.mrf.mxu0
    %v5553 = vadd.f32 %v5443, %v5552
    %v5554 = vpop.f32.mrf.mxu0
    %5555 = vmatprep.mubr.f32.mxu0 %v5348
    %5556 = vmatmul.mubr.f32.gmra.mxu0 %v4972
    %v5557 = vpop.f32.mrf.mxu0
    %v5558 = vadd.f32 %v5448, %v5557
    %v5559 = vpop.f32.mrf.mxu0
    %5560 = vmatprep.mubr.f32.mxu0 %v5351
    %5561 = vmatmul.mubr.f32.gmra.mxu0 %v4976
    %v5562 = vpop.f32.mrf.mxu0
    %v5563 = vadd.f32 %v5453, %v5562
    %v5564 = vpop.f32.mrf.mxu0
    %5565 = vmatprep.mubr.f32.mxu0 %v5354
    %5566 = vmatmul.mubr.f32.gmra.mxu0 %v4980
    %v5567 = vpop.f32.mrf.mxu0
    %v5568 = vadd.f32 %v5458, %v5567
    %v5569 = vpop.f32.mrf.mxu0
    %5570 = vmatprep.mubr.f32.mxu0 %v5357
    %5571 = vmatmul.mubr.f32.gmra.mxu0 %v4984
    %v5572 = vpop.f32.mrf.mxu0
    %v5573 = vadd.f32 %v5463, %v5572
    %v5574 = vpop.f32.mrf.mxu0
    %5575 = vmatprep.mubr.f32.mxu0 %v5360
    %5576 = vmatmul.mubr.f32.gmra.mxu0 %v4988
    %v5577 = vpop.f32.mrf.mxu0
    %v5578 = vadd.f32 %v5468, %v5577
    %v5579 = vpop.f32.mrf.mxu0
    %5580 = vmatprep.mubr.f32.mxu0 %v5363
    %5581 = vmatmul.mubr.f32.gmra.mxu0 %v4992
    %v5582 = vpop.f32.mrf.mxu0
    %v5583 = vadd.f32 %v5473, %v5582
    %v5584 = vpop.f32.mrf.mxu0
    %5585 = vmatprep.mubr.f32.mxu0 %v5366
    %5586 = vmatmul.mubr.f32.gmra.mxu0 %v4996
    %v5587 = vpop.f32.mrf.mxu0
    %v5588 = vadd.f32 %v5478, %v5587
    %v5589 = vpop.f32.mrf.mxu0
    %5590 = vdwg.mxu0
    %5591 = vst.msk [vmem:[#allocation3] sm:$0xff] %vm1404, %v5548
    %5592 = vst.msk [vmem:[#allocation3 + $0x10] sm:$0xff] %vm1404, %v5553
    %5593 = vst.msk [vmem:[#allocation3 + $0x20] sm:$0xff] %vm1404, %v5558
    %5594 = vst.msk [vmem:[#allocation3 + $0x30] sm:$0xff] %vm1404, %v5563
    %5595 = vst.msk [vmem:[#allocation3 + $0x40] sm:$0xff] %vm1404, %v5568
    %5596 = vst.msk [vmem:[#allocation3 + $0x50] sm:$0xff] %vm1404, %v5573
    %5597 = vst.msk [vmem:[#allocation3 + $0x60] sm:$0xff] %vm1404, %v5578
    %5598 = vst.msk [vmem:[#allocation3 + $0x70] sm:$0xff] %vm1404, %v5583
    %vm5599 = vcmask 516096
    %5600 = vst.msk [vmem:[#allocation3 + $0x80] sm:$0x1] %vm5599, %v5588
    %v5602 = vsel %vm5340, %v5082, 0
    %v5605 = vsel %vm5340, %v5086, 0
    %v5608 = vsel %vm5340, %v5090, 0
    %v5611 = vsel %vm5340, %v5094, 0
    %v5614 = vsel %vm5340, %v5098, 0
    %v5617 = vsel %vm5340, %v5102, 0
    %v5620 = vsel %vm5340, %v5106, 0
    %v5623 = vsel %vm5340, %v5110, 0
    %v5626 = vsel %vm5340, %v5114, 0
    %5628 = vmatprep.subr.mxu0 0.0
    %5629 = vmatpush1.msra.mxu0 %v4818
    %5630 = vmatprep.subr.mxu0 0.0
    %5631 = vmatpush1.msra.mxu0 %v4817
    %5632 = vmatprep.subr.mxu0 0.0
    %5633 = vmatpush1.msra.mxu0 %v4816
    %5634 = vmatprep.subr.mxu0 0.0
    %5635 = vmatpush1.msra.mxu0 %v4815
    %5636 = vmatprep.subr.mxu0 0.0
    %5637 = vmatpush1.msra.mxu0 %v4814
    %5638 = vmatprep.subr.mxu0 0.0
    %5639 = vmatpush1.msra.mxu0 %v4813
    %5640 = vmatprep.subr.mxu0 0.0
    %5641 = vmatpush1.msra.mxu0 %v4812
    %5642 = vmatprep.subr.mxu0 0.0
    %5643 = vmatpush1.msra.mxu0 %v4811
    %5644 = vmatprep.subr.mxu0 0.0
    %5645 = vmatpush1.msra.mxu0 %v4810
    %5646 = vmatprep.subr.mxu0 0.0
    %5647 = vmatpush1.msra.mxu0 %v4809
    %5648 = vmatprep.subr.mxu0 0.0
    %5649 = vmatpush1.msra.mxu0 %v4808
    %5650 = vmatprep.subr.mxu0 0.0
    %5651 = vmatpush1.msra.mxu0 %v4807
    %5652 = vmatprep.subr.mxu0 0.0
    %5653 = vmatpush1.msra.mxu0 %v4806
    %5654 = vmatprep.subr.mxu0 0.0
    %5655 = vmatpush1.msra.mxu0 %v4805
    %5656 = vmatprep.subr.mxu0 0.0
    %5657 = vmatpush1.msra.mxu0 %v4804
    %5658 = vmatprep.subr.mxu0 0.0
    %5659 = vmatpush1.msra.mxu0 %v4803
    %5660 = vmatprep.subr.mxu0 0.0
    %5661 = vmatpush2.msra.mxu0 %v4834
    %5662 = vmatprep.subr.mxu0 0.0
    %5663 = vmatpush2.msra.mxu0 %v4833
    %5664 = vmatprep.subr.mxu0 0.0
    %5665 = vmatpush2.msra.mxu0 %v4832
    %5666 = vmatprep.subr.mxu0 0.0
    %5667 = vmatpush2.msra.mxu0 %v4831
    %5668 = vmatprep.subr.mxu0 0.0
    %5669 = vmatpush2.msra.mxu0 %v4830
    %5670 = vmatprep.subr.mxu0 0.0
    %5671 = vmatpush2.msra.mxu0 %v4829
    %5672 = vmatprep.subr.mxu0 0.0
    %5673 = vmatpush2.msra.mxu0 %v4828
    %5674 = vmatprep.subr.mxu0 0.0
    %5675 = vmatpush2.msra.mxu0 %v4827
    %5676 = vmatprep.subr.mxu0 0.0
    %5677 = vmatpush2.msra.mxu0 %v4826
    %5678 = vmatprep.subr.mxu0 0.0
    %5679 = vmatpush2.msra.mxu0 %v4825
    %5680 = vmatprep.subr.mxu0 0.0
    %5681 = vmatpush2.msra.mxu0 %v4824
    %5682 = vmatprep.subr.mxu0 0.0
    %5683 = vmatpush2.msra.mxu0 %v4823
    %5684 = vmatprep.subr.mxu0 0.0
    %5685 = vmatpush2.msra.mxu0 %v4822
    %5686 = vmatprep.subr.mxu0 0.0
    %5687 = vmatpush2.msra.mxu0 %v4821
    %5688 = vmatprep.subr.mxu0 0.0
    %5689 = vmatpush2.msra.mxu0 %v4820
    %5690 = vmatprep.subr.mxu0 0.0
    %5691 = vmatpush2.msra.mxu0 %v4819
    %5692 = vmatprep.mubr.f32.mxu0 %v5080
    %5693 = vmatmul.mubr.f32.gmra.mxu0 %v5079
    %v5694 = vpop.f32.mrf.mxu0
    %v5695 = vadd.f32 0.0, %v5694
    %v5696 = vpop.f32.mrf.mxu0
    %5697 = vmatprep.mubr.f32.mxu0 %v5084
    %5698 = vmatmul.mubr.f32.gmra.mxu0 %v5083
    %v5699 = vpop.f32.mrf.mxu0
    %v5700 = vadd.f32 0.0, %v5699
    %v5701 = vpop.f32.mrf.mxu0
    %5702 = vmatprep.mubr.f32.mxu0 %v5088
    %5703 = vmatmul.mubr.f32.gmra.mxu0 %v5087
    %v5704 = vpop.f32.mrf.mxu0
    %v5705 = vadd.f32 0.0, %v5704
    %v5706 = vpop.f32.mrf.mxu0
    %5707 = vmatprep.mubr.f32.mxu0 %v5092
    %5708 = vmatmul.mubr.f32.gmra.mxu0 %v5091
    %v5709 = vpop.f32.mrf.mxu0
    %v5710 = vadd.f32 0.0, %v5709
    %v5711 = vpop.f32.mrf.mxu0
    %5712 = vmatprep.mubr.f32.mxu0 %v5096
    %5713 = vmatmul.mubr.f32.gmra.mxu0 %v5095
    %v5714 = vpop.f32.mrf.mxu0
    %v5715 = vadd.f32 0.0, %v5714
    %v5716 = vpop.f32.mrf.mxu0
    %5717 = vmatprep.mubr.f32.mxu0 %v5100
    %5718 = vmatmul.mubr.f32.gmra.mxu0 %v5099
    %v5719 = vpop.f32.mrf.mxu0
    %v5720 = vadd.f32 0.0, %v5719
    %v5721 = vpop.f32.mrf.mxu0
    %5722 = vmatprep.mubr.f32.mxu0 %v5104
    %5723 = vmatmul.mubr.f32.gmra.mxu0 %v5103
    %v5724 = vpop.f32.mrf.mxu0
    %v5725 = vadd.f32 0.0, %v5724
    %v5726 = vpop.f32.mrf.mxu0
    %5727 = vmatprep.mubr.f32.mxu0 %v5108
    %5728 = vmatmul.mubr.f32.gmra.mxu0 %v5107
    %v5729 = vpop.f32.mrf.mxu0
    %v5730 = vadd.f32 0.0, %v5729
    %v5731 = vpop.f32.mrf.mxu0
    %5732 = vmatprep.mubr.f32.mxu0 %v5112
    %5733 = vmatmul.mubr.f32.gmra.mxu0 %v5111
    %v5734 = vpop.f32.mrf.mxu0
    %v5735 = vadd.f32 0.0, %v5734
    %v5736 = vpop.f32.mrf.mxu0
    %5737 = vdwg.mxu0
    %5738 = vmatprep.subr.mxu0 0.0
    %5739 = vmatpush1.msra.mxu0 %v4850
    %5740 = vmatprep.subr.mxu0 0.0
    %5741 = vmatpush1.msra.mxu0 %v4849
    %5742 = vmatprep.subr.mxu0 0.0
    %5743 = vmatpush1.msra.mxu0 %v4848
    %5744 = vmatprep.subr.mxu0 0.0
    %5745 = vmatpush1.msra.mxu0 %v4847
    %5746 = vmatprep.subr.mxu0 0.0
    %5747 = vmatpush1.msra.mxu0 %v4846
    %5748 = vmatprep.subr.mxu0 0.0
    %5749 = vmatpush1.msra.mxu0 %v4845
    %5750 = vmatprep.subr.mxu0 0.0
    %5751 = vmatpush1.msra.mxu0 %v4844
    %5752 = vmatprep.subr.mxu0 0.0
    %5753 = vmatpush1.msra.mxu0 %v4843
    %5754 = vmatprep.subr.mxu0 0.0
    %5755 = vmatpush1.msra.mxu0 %v4842
    %5756 = vmatprep.subr.mxu0 0.0
    %5757 = vmatpush1.msra.mxu0 %v4841
    %5758 = vmatprep.subr.mxu0 0.0
    %5759 = vmatpush1.msra.mxu0 %v4840
    %5760 = vmatprep.subr.mxu0 0.0
    %5761 = vmatpush1.msra.mxu0 %v4839
    %5762 = vmatprep.subr.mxu0 0.0
    %5763 = vmatpush1.msra.mxu0 %v4838
    %5764 = vmatprep.subr.mxu0 0.0
    %5765 = vmatpush1.msra.mxu0 %v4837
    %5766 = vmatprep.subr.mxu0 0.0
    %5767 = vmatpush1.msra.mxu0 %v4836
    %5768 = vmatprep.subr.mxu0 0.0
    %5769 = vmatpush1.msra.mxu0 %v4835
    %5770 = vmatprep.subr.mxu0 0.0
    %5771 = vmatpush2.msra.mxu0 %v5369
    %5772 = vmatprep.subr.mxu0 0.0
    %5773 = vmatpush2.msra.mxu0 %v4865
    %5774 = vmatprep.subr.mxu0 0.0
    %5775 = vmatpush2.msra.mxu0 %v4864
    %5776 = vmatprep.subr.mxu0 0.0
    %5777 = vmatpush2.msra.mxu0 %v4863
    %5778 = vmatprep.subr.mxu0 0.0
    %5779 = vmatpush2.msra.mxu0 %v4862
    %5780 = vmatprep.subr.mxu0 0.0
    %5781 = vmatpush2.msra.mxu0 %v4861
    %5782 = vmatprep.subr.mxu0 0.0
    %5783 = vmatpush2.msra.mxu0 %v4860
    %5784 = vmatprep.subr.mxu0 0.0
    %5785 = vmatpush2.msra.mxu0 %v4859
    %5786 = vmatprep.subr.mxu0 0.0
    %5787 = vmatpush2.msra.mxu0 %v4858
    %5788 = vmatprep.subr.mxu0 0.0
    %5789 = vmatpush2.msra.mxu0 %v4857
    %5790 = vmatprep.subr.mxu0 0.0
    %5791 = vmatpush2.msra.mxu0 %v4856
    %5792 = vmatprep.subr.mxu0 0.0
    %5793 = vmatpush2.msra.mxu0 %v4855
    %5794 = vmatprep.subr.mxu0 0.0
    %5795 = vmatpush2.msra.mxu0 %v4854
    %5796 = vmatprep.subr.mxu0 0.0
    %5797 = vmatpush2.msra.mxu0 %v4853
    %5798 = vmatprep.subr.mxu0 0.0
    %5799 = vmatpush2.msra.mxu0 %v4852
    %5800 = vmatprep.subr.mxu0 0.0
    %5801 = vmatpush2.msra.mxu0 %v4851
    %5802 = vmatprep.mubr.f32.mxu0 %v5602
    %5803 = vmatmul.mubr.f32.gmra.mxu0 %v5081
    %v5804 = vpop.f32.mrf.mxu0
    %v5805 = vadd.f32 %v5695, %v5804
    %v5806 = vpop.f32.mrf.mxu0
    %5807 = vmatprep.mubr.f32.mxu0 %v5605
    %5808 = vmatmul.mubr.f32.gmra.mxu0 %v5085
    %v5809 = vpop.f32.mrf.mxu0
    %v5810 = vadd.f32 %v5700, %v5809
    %v5811 = vpop.f32.mrf.mxu0
    %5812 = vmatprep.mubr.f32.mxu0 %v5608
    %5813 = vmatmul.mubr.f32.gmra.mxu0 %v5089
    %v5814 = vpop.f32.mrf.mxu0
    %v5815 = vadd.f32 %v5705, %v5814
    %v5816 = vpop.f32.mrf.mxu0
    %5817 = vmatprep.mubr.f32.mxu0 %v5611
    %5818 = vmatmul.mubr.f32.gmra.mxu0 %v5093
    %v5819 = vpop.f32.mrf.mxu0
    %v5820 = vadd.f32 %v5710, %v5819
    %v5821 = vpop.f32.mrf.mxu0
    %5822 = vmatprep.mubr.f32.mxu0 %v5614
    %5823 = vmatmul.mubr.f32.gmra.mxu0 %v5097
    %v5824 = vpop.f32.mrf.mxu0
    %v5825 = vadd.f32 %v5715, %v5824
    %v5826 = vpop.f32.mrf.mxu0
    %5827 = vmatprep.mubr.f32.mxu0 %v5617
    %5828 = vmatmul.mubr.f32.gmra.mxu0 %v5101
    %v5829 = vpop.f32.mrf.mxu0
    %v5830 = vadd.f32 %v5720, %v5829
    %v5831 = vpop.f32.mrf.mxu0
    %5832 = vmatprep.mubr.f32.mxu0 %v5620
    %5833 = vmatmul.mubr.f32.gmra.mxu0 %v5105
    %v5834 = vpop.f32.mrf.mxu0
    %v5835 = vadd.f32 %v5725, %v5834
    %v5836 = vpop.f32.mrf.mxu0
    %5837 = vmatprep.mubr.f32.mxu0 %v5623
    %5838 = vmatmul.mubr.f32.gmra.mxu0 %v5109
    %v5839 = vpop.f32.mrf.mxu0
    %v5840 = vadd.f32 %v5730, %v5839
    %v5841 = vpop.f32.mrf.mxu0
    %5842 = vmatprep.mubr.f32.mxu0 %v5626
    %5843 = vmatmul.mubr.f32.gmra.mxu0 %v5113
    %v5844 = vpop.f32.mrf.mxu0
    %v5845 = vadd.f32 %v5735, %v5844
    %v5846 = vpop.f32.mrf.mxu0
    %5847 = vdwg.mxu0
    %5857 = vrot.lane.b32.xlu0 %v5805, 64
    %v5858 = vpop.permute.xlu0 %5857
    %5859 = vrot.lane.b32.xlu0 %v5810, 64
    %v5860 = vpop.permute.xlu0 %5859
    %5861 = vrot.lane.b32.xlu0 %v5815, 64
    %v5862 = vpop.permute.xlu0 %5861
    %5863 = vrot.lane.b32.xlu0 %v5820, 64
    %v5864 = vpop.permute.xlu0 %5863
    %5865 = vrot.lane.b32.xlu0 %v5825, 64
    %v5866 = vpop.permute.xlu0 %5865
    %5867 = vrot.lane.b32.xlu0 %v5830, 64
    %v5868 = vpop.permute.xlu0 %5867
    %5869 = vrot.lane.b32.xlu0 %v5835, 64
    %v5870 = vpop.permute.xlu0 %5869
    %5871 = vrot.lane.b32.xlu0 %v5840, 64
    %v5872 = vpop.permute.xlu0 %5871
    %5873 = vrot.lane.b32.xlu0 %v5845, 64
    %v5874 = vpop.permute.xlu0 %5873
    %vm5884 = vcmask 1048064
    %5885 = vst.msk [vmem:[#allocation3] sm:$0xff] %vm5884, %v5858
    %5886 = vst.msk [vmem:[#allocation3 + $0x10] sm:$0xff] %vm5884, %v5860
    %5887 = vst.msk [vmem:[#allocation3 + $0x20] sm:$0xff] %vm5884, %v5862
    %5888 = vst.msk [vmem:[#allocation3 + $0x30] sm:$0xff] %vm5884, %v5864
    %5889 = vst.msk [vmem:[#allocation3 + $0x40] sm:$0xff] %vm5884, %v5866
    %5890 = vst.msk [vmem:[#allocation3 + $0x50] sm:$0xff] %vm5884, %v5868
    %5891 = vst.msk [vmem:[#allocation3 + $0x60] sm:$0xff] %vm5884, %v5870
    %5892 = vst.msk [vmem:[#allocation3 + $0x70] sm:$0xff] %vm5884, %v5872
    %vm5893 = vcmask 1040896
    %5894 = vst.msk [vmem:[#allocation3 + $0x80] sm:$0x1] %vm5893, %v5874
    %v5896 = vsel %vm5340, %v5199, 0
    %v5899 = vsel %vm5340, %v5203, 0
    %v5902 = vsel %vm5340, %v5207, 0
    %v5905 = vsel %vm5340, %v5211, 0
    %v5908 = vsel %vm5340, %v5215, 0
    %v5911 = vsel %vm5340, %v5219, 0
    %v5914 = vsel %vm5340, %v5223, 0
    %v5917 = vsel %vm5340, %v5227, 0
    %v5920 = vsel %vm5340, %v5231, 0
    %5922 = vmatprep.subr.mxu0 0.0
    %5923 = vmatpush1.msra.mxu0 %v4818
    %5924 = vmatprep.subr.mxu0 0.0
    %5925 = vmatpush1.msra.mxu0 %v4817
    %5926 = vmatprep.subr.mxu0 0.0
    %5927 = vmatpush1.msra.mxu0 %v4816
    %5928 = vmatprep.subr.mxu0 0.0
    %5929 = vmatpush1.msra.mxu0 %v4815
    %5930 = vmatprep.subr.mxu0 0.0
    %5931 = vmatpush1.msra.mxu0 %v4814
    %5932 = vmatprep.subr.mxu0 0.0
    %5933 = vmatpush1.msra.mxu0 %v4813
    %5934 = vmatprep.subr.mxu0 0.0
    %5935 = vmatpush1.msra.mxu0 %v4812
    %5936 = vmatprep.subr.mxu0 0.0
    %5937 = vmatpush1.msra.mxu0 %v4811
    %5938 = vmatprep.subr.mxu0 0.0
    %5939 = vmatpush1.msra.mxu0 %v4810
    %5940 = vmatprep.subr.mxu0 0.0
    %5941 = vmatpush1.msra.mxu0 %v4809
    %5942 = vmatprep.subr.mxu0 0.0
    %5943 = vmatpush1.msra.mxu0 %v4808
    %5944 = vmatprep.subr.mxu0 0.0
    %5945 = vmatpush1.msra.mxu0 %v4807
    %5946 = vmatprep.subr.mxu0 0.0
    %5947 = vmatpush1.msra.mxu0 %v4806
    %5948 = vmatprep.subr.mxu0 0.0
    %5949 = vmatpush1.msra.mxu0 %v4805
    %5950 = vmatprep.subr.mxu0 0.0
    %5951 = vmatpush1.msra.mxu0 %v4804
    %5952 = vmatprep.subr.mxu0 0.0
    %5953 = vmatpush1.msra.mxu0 %v4803
    %5954 = vmatprep.subr.mxu0 0.0
    %5955 = vmatpush2.msra.mxu0 %v4834
    %5956 = vmatprep.subr.mxu0 0.0
    %5957 = vmatpush2.msra.mxu0 %v4833
    %5958 = vmatprep.subr.mxu0 0.0
    %5959 = vmatpush2.msra.mxu0 %v4832
    %5960 = vmatprep.subr.mxu0 0.0
    %5961 = vmatpush2.msra.mxu0 %v4831
    %5962 = vmatprep.subr.mxu0 0.0
    %5963 = vmatpush2.msra.mxu0 %v4830
    %5964 = vmatprep.subr.mxu0 0.0
    %5965 = vmatpush2.msra.mxu0 %v4829
    %5966 = vmatprep.subr.mxu0 0.0
    %5967 = vmatpush2.msra.mxu0 %v4828
    %5968 = vmatprep.subr.mxu0 0.0
    %5969 = vmatpush2.msra.mxu0 %v4827
    %5970 = vmatprep.subr.mxu0 0.0
    %5971 = vmatpush2.msra.mxu0 %v4826
    %5972 = vmatprep.subr.mxu0 0.0
    %5973 = vmatpush2.msra.mxu0 %v4825
    %5974 = vmatprep.subr.mxu0 0.0
    %5975 = vmatpush2.msra.mxu0 %v4824
    %5976 = vmatprep.subr.mxu0 0.0
    %5977 = vmatpush2.msra.mxu0 %v4823
    %5978 = vmatprep.subr.mxu0 0.0
    %5979 = vmatpush2.msra.mxu0 %v4822
    %5980 = vmatprep.subr.mxu0 0.0
    %5981 = vmatpush2.msra.mxu0 %v4821
    %5982 = vmatprep.subr.mxu0 0.0
    %5983 = vmatpush2.msra.mxu0 %v4820
    %5984 = vmatprep.subr.mxu0 0.0
    %5985 = vmatpush2.msra.mxu0 %v4819
    %5986 = vmatprep.mubr.f32.mxu0 %v5197
    %5987 = vmatmul.mubr.f32.gmra.mxu0 %v5196
    %v5988 = vpop.f32.mrf.mxu0
    %v5989 = vadd.f32 0.0, %v5988
    %v5990 = vpop.f32.mrf.mxu0
    %5991 = vmatprep.mubr.f32.mxu0 %v5201
    %5992 = vmatmul.mubr.f32.gmra.mxu0 %v5200
    %v5993 = vpop.f32.mrf.mxu0
    %v5994 = vadd.f32 0.0, %v5993
    %v5995 = vpop.f32.mrf.mxu0
    %5996 = vmatprep.mubr.f32.mxu0 %v5205
    %5997 = vmatmul.mubr.f32.gmra.mxu0 %v5204
    %v5998 = vpop.f32.mrf.mxu0
    %v5999 = vadd.f32 0.0, %v5998
    %v6000 = vpop.f32.mrf.mxu0
    %6001 = vmatprep.mubr.f32.mxu0 %v5209
    %6002 = vmatmul.mubr.f32.gmra.mxu0 %v5208
    %v6003 = vpop.f32.mrf.mxu0
    %v6004 = vadd.f32 0.0, %v6003
    %v6005 = vpop.f32.mrf.mxu0
    %6006 = vmatprep.mubr.f32.mxu0 %v5213
    %6007 = vmatmul.mubr.f32.gmra.mxu0 %v5212
    %v6008 = vpop.f32.mrf.mxu0
    %v6009 = vadd.f32 0.0, %v6008
    %v6010 = vpop.f32.mrf.mxu0
    %6011 = vmatprep.mubr.f32.mxu0 %v5217
    %6012 = vmatmul.mubr.f32.gmra.mxu0 %v5216
    %v6013 = vpop.f32.mrf.mxu0
    %v6014 = vadd.f32 0.0, %v6013
    %v6015 = vpop.f32.mrf.mxu0
    %6016 = vmatprep.mubr.f32.mxu0 %v5221
    %6017 = vmatmul.mubr.f32.gmra.mxu0 %v5220
    %v6018 = vpop.f32.mrf.mxu0
    %v6019 = vadd.f32 0.0, %v6018
    %v6020 = vpop.f32.mrf.mxu0
    %6021 = vmatprep.mubr.f32.mxu0 %v5225
    %6022 = vmatmul.mubr.f32.gmra.mxu0 %v5224
    %v6023 = vpop.f32.mrf.mxu0
    %v6024 = vadd.f32 0.0, %v6023
    %v6025 = vpop.f32.mrf.mxu0
    %6026 = vmatprep.mubr.f32.mxu0 %v5229
    %6027 = vmatmul.mubr.f32.gmra.mxu0 %v5228
    %v6028 = vpop.f32.mrf.mxu0
    %v6029 = vadd.f32 0.0, %v6028
    %v6030 = vpop.f32.mrf.mxu0
    %6031 = vdwg.mxu0
    %6032 = vmatprep.subr.mxu0 0.0
    %6033 = vmatpush1.msra.mxu0 %v4850
    %6034 = vmatprep.subr.mxu0 0.0
    %6035 = vmatpush1.msra.mxu0 %v4849
    %6036 = vmatprep.subr.mxu0 0.0
    %6037 = vmatpush1.msra.mxu0 %v4848
    %6038 = vmatprep.subr.mxu0 0.0
    %6039 = vmatpush1.msra.mxu0 %v4847
    %6040 = vmatprep.subr.mxu0 0.0
    %6041 = vmatpush1.msra.mxu0 %v4846
    %6042 = vmatprep.subr.mxu0 0.0
    %6043 = vmatpush1.msra.mxu0 %v4845
    %6044 = vmatprep.subr.mxu0 0.0
    %6045 = vmatpush1.msra.mxu0 %v4844
    %6046 = vmatprep.subr.mxu0 0.0
    %6047 = vmatpush1.msra.mxu0 %v4843
    %6048 = vmatprep.subr.mxu0 0.0
    %6049 = vmatpush1.msra.mxu0 %v4842
    %6050 = vmatprep.subr.mxu0 0.0
    %6051 = vmatpush1.msra.mxu0 %v4841
    %6052 = vmatprep.subr.mxu0 0.0
    %6053 = vmatpush1.msra.mxu0 %v4840
    %6054 = vmatprep.subr.mxu0 0.0
    %6055 = vmatpush1.msra.mxu0 %v4839
    %6056 = vmatprep.subr.mxu0 0.0
    %6057 = vmatpush1.msra.mxu0 %v4838
    %6058 = vmatprep.subr.mxu0 0.0
    %6059 = vmatpush1.msra.mxu0 %v4837
    %6060 = vmatprep.subr.mxu0 0.0
    %6061 = vmatpush1.msra.mxu0 %v4836
    %6062 = vmatprep.subr.mxu0 0.0
    %6063 = vmatpush1.msra.mxu0 %v4835
    %6064 = vmatprep.subr.mxu0 0.0
    %6065 = vmatpush2.msra.mxu0 %v5369
    %6066 = vmatprep.subr.mxu0 0.0
    %6067 = vmatpush2.msra.mxu0 %v4865
    %6068 = vmatprep.subr.mxu0 0.0
    %6069 = vmatpush2.msra.mxu0 %v4864
    %6070 = vmatprep.subr.mxu0 0.0
    %6071 = vmatpush2.msra.mxu0 %v4863
    %6072 = vmatprep.subr.mxu0 0.0
    %6073 = vmatpush2.msra.mxu0 %v4862
    %6074 = vmatprep.subr.mxu0 0.0
    %6075 = vmatpush2.msra.mxu0 %v4861
    %6076 = vmatprep.subr.mxu0 0.0
    %6077 = vmatpush2.msra.mxu0 %v4860
    %6078 = vmatprep.subr.mxu0 0.0
    %6079 = vmatpush2.msra.mxu0 %v4859
    %6080 = vmatprep.subr.mxu0 0.0
    %6081 = vmatpush2.msra.mxu0 %v4858
    %6082 = vmatprep.subr.mxu0 0.0
    %6083 = vmatpush2.msra.mxu0 %v4857
    %6084 = vmatprep.subr.mxu0 0.0
    %6085 = vmatpush2.msra.mxu0 %v4856
    %6086 = vmatprep.subr.mxu0 0.0
    %6087 = vmatpush2.msra.mxu0 %v4855
    %6088 = vmatprep.subr.mxu0 0.0
    %6089 = vmatpush2.msra.mxu0 %v4854
    %6090 = vmatprep.subr.mxu0 0.0
    %6091 = vmatpush2.msra.mxu0 %v4853
    %6092 = vmatprep.subr.mxu0 0.0
    %6093 = vmatpush2.msra.mxu0 %v4852
    %6094 = vmatprep.subr.mxu0 0.0
    %6095 = vmatpush2.msra.mxu0 %v4851
    %6096 = vmatprep.mubr.f32.mxu0 %v5896
    %6097 = vmatmul.mubr.f32.gmra.mxu0 %v5198
    %v6098 = vpop.f32.mrf.mxu0
    %v6099 = vadd.f32 %v5989, %v6098
    %v6100 = vpop.f32.mrf.mxu0
    %6101 = vmatprep.mubr.f32.mxu0 %v5899
    %6102 = vmatmul.mubr.f32.gmra.mxu0 %v5202
    %v6103 = vpop.f32.mrf.mxu0
    %v6104 = vadd.f32 %v5994, %v6103
    %v6105 = vpop.f32.mrf.mxu0
    %6106 = vmatprep.mubr.f32.mxu0 %v5902
    %6107 = vmatmul.mubr.f32.gmra.mxu0 %v5206
    %v6108 = vpop.f32.mrf.mxu0
    %v6109 = vadd.f32 %v5999, %v6108
    %v6110 = vpop.f32.mrf.mxu0
    %6111 = vmatprep.mubr.f32.mxu0 %v5905
    %6112 = vmatmul.mubr.f32.gmra.mxu0 %v5210
    %v6113 = vpop.f32.mrf.mxu0
    %v6114 = vadd.f32 %v6004, %v6113
    %v6115 = vpop.f32.mrf.mxu0
    %6116 = vmatprep.mubr.f32.mxu0 %v5908
    %6117 = vmatmul.mubr.f32.gmra.mxu0 %v5214
    %v6118 = vpop.f32.mrf.mxu0
    %v6119 = vadd.f32 %v6009, %v6118
    %v6120 = vpop.f32.mrf.mxu0
    %6121 = vmatprep.mubr.f32.mxu0 %v5911
    %6122 = vmatmul.mubr.f32.gmra.mxu0 %v5218
    %v6123 = vpop.f32.mrf.mxu0
    %v6124 = vadd.f32 %v6014, %v6123
    %v6125 = vpop.f32.mrf.mxu0
    %6126 = vmatprep.mubr.f32.mxu0 %v5914
    %6127 = vmatmul.mubr.f32.gmra.mxu0 %v5222
    %v6128 = vpop.f32.mrf.mxu0
    %v6129 = vadd.f32 %v6019, %v6128
    %v6130 = vpop.f32.mrf.mxu0
    %6131 = vmatprep.mubr.f32.mxu0 %v5917
    %6132 = vmatmul.mubr.f32.gmra.mxu0 %v5226
    %v6133 = vpop.f32.mrf.mxu0
    %v6134 = vadd.f32 %v6024, %v6133
    %v6135 = vpop.f32.mrf.mxu0
    %6136 = vmatprep.mubr.f32.mxu0 %v5920
    %6137 = vmatmul.mubr.f32.gmra.mxu0 %v5230
    %v6138 = vpop.f32.mrf.mxu0
    %v6139 = vadd.f32 %v6029, %v6138
    %v6140 = vpop.f32.mrf.mxu0
    %6141 = vdwg.mxu0
    %6142 = vst.msk [vmem:[#allocation3 + $0x8] sm:$0xff] %vm1404, %v6099
    %6143 = vst.msk [vmem:[#allocation3 + $0x18] sm:$0xff] %vm1404, %v6104
    %6144 = vst.msk [vmem:[#allocation3 + $0x28] sm:$0xff] %vm1404, %v6109
    %6145 = vst.msk [vmem:[#allocation3 + $0x38] sm:$0xff] %vm1404, %v6114
    %6146 = vst.msk [vmem:[#allocation3 + $0x48] sm:$0xff] %vm1404, %v6119
    %6147 = vst.msk [vmem:[#allocation3 + $0x58] sm:$0xff] %vm1404, %v6124
    %6148 = vst.msk [vmem:[#allocation3 + $0x68] sm:$0xff] %vm1404, %v6129
    %6149 = vst.msk [vmem:[#allocation3 + $0x78] sm:$0xff] %vm1404, %v6134
    %6150 = vst.msk [vmem:[#allocation3 + $0x88] sm:$0x1] %vm5599, %v6139
    %v6152 = vsel %vm5340, %v5307, 0
    %v6155 = vsel %vm5340, %v5311, 0
    %v6158 = vsel %vm5340, %v5315, 0
    %v6161 = vsel %vm5340, %v5319, 0
    %v6164 = vsel %vm5340, %v5323, 0
    %v6167 = vsel %vm5340, %v5327, 0
    %v6170 = vsel %vm5340, %v5331, 0
    %v6173 = vsel %vm5340, %v5335, 0
    %v6176 = vsel %vm5340, %v5339, 0
    %6178 = vmatprep.subr.mxu0 0.0
    %6179 = vmatpush1.msra.mxu0 %v4818
    %6180 = vmatprep.subr.mxu0 0.0
    %6181 = vmatpush1.msra.mxu0 %v4817
    %6182 = vmatprep.subr.mxu0 0.0
    %6183 = vmatpush1.msra.mxu0 %v4816
    %6184 = vmatprep.subr.mxu0 0.0
    %6185 = vmatpush1.msra.mxu0 %v4815
    %6186 = vmatprep.subr.mxu0 0.0
    %6187 = vmatpush1.msra.mxu0 %v4814
    %6188 = vmatprep.subr.mxu0 0.0
    %6189 = vmatpush1.msra.mxu0 %v4813
    %6190 = vmatprep.subr.mxu0 0.0
    %6191 = vmatpush1.msra.mxu0 %v4812
    %6192 = vmatprep.subr.mxu0 0.0
    %6193 = vmatpush1.msra.mxu0 %v4811
    %6194 = vmatprep.subr.mxu0 0.0
    %6195 = vmatpush1.msra.mxu0 %v4810
    %6196 = vmatprep.subr.mxu0 0.0
    %6197 = vmatpush1.msra.mxu0 %v4809
    %6198 = vmatprep.subr.mxu0 0.0
    %6199 = vmatpush1.msra.mxu0 %v4808
    %6200 = vmatprep.subr.mxu0 0.0
    %6201 = vmatpush1.msra.mxu0 %v4807
    %6202 = vmatprep.subr.mxu0 0.0
    %6203 = vmatpush1.msra.mxu0 %v4806
    %6204 = vmatprep.subr.mxu0 0.0
    %6205 = vmatpush1.msra.mxu0 %v4805
    %6206 = vmatprep.subr.mxu0 0.0
    %6207 = vmatpush1.msra.mxu0 %v4804
    %6208 = vmatprep.subr.mxu0 0.0
    %6209 = vmatpush1.msra.mxu0 %v4803
    %6210 = vmatprep.subr.mxu0 0.0
    %6211 = vmatpush2.msra.mxu0 %v4834
    %6212 = vmatprep.subr.mxu0 0.0
    %6213 = vmatpush2.msra.mxu0 %v4833
    %6214 = vmatprep.subr.mxu0 0.0
    %6215 = vmatpush2.msra.mxu0 %v4832
    %6216 = vmatprep.subr.mxu0 0.0
    %6217 = vmatpush2.msra.mxu0 %v4831
    %6218 = vmatprep.subr.mxu0 0.0
    %6219 = vmatpush2.msra.mxu0 %v4830
    %6220 = vmatprep.subr.mxu0 0.0
    %6221 = vmatpush2.msra.mxu0 %v4829
    %6222 = vmatprep.subr.mxu0 0.0
    %6223 = vmatpush2.msra.mxu0 %v4828
    %6224 = vmatprep.subr.mxu0 0.0
    %6225 = vmatpush2.msra.mxu0 %v4827
    %6226 = vmatprep.subr.mxu0 0.0
    %6227 = vmatpush2.msra.mxu0 %v4826
    %6228 = vmatprep.subr.mxu0 0.0
    %6229 = vmatpush2.msra.mxu0 %v4825
    %6230 = vmatprep.subr.mxu0 0.0
    %6231 = vmatpush2.msra.mxu0 %v4824
    %6232 = vmatprep.subr.mxu0 0.0
    %6233 = vmatpush2.msra.mxu0 %v4823
    %6234 = vmatprep.subr.mxu0 0.0
    %6235 = vmatpush2.msra.mxu0 %v4822
    %6236 = vmatprep.subr.mxu0 0.0
    %6237 = vmatpush2.msra.mxu0 %v4821
    %6238 = vmatprep.subr.mxu0 0.0
    %6239 = vmatpush2.msra.mxu0 %v4820
    %6240 = vmatprep.subr.mxu0 0.0
    %6241 = vmatpush2.msra.mxu0 %v4819
    %6242 = vmatprep.mubr.f32.mxu0 %v5305
    %6243 = vmatmul.mubr.f32.gmra.mxu0 %v5304
    %v6244 = vpop.f32.mrf.mxu0
    %v6245 = vadd.f32 0.0, %v6244
    %v6246 = vpop.f32.mrf.mxu0
    %6247 = vmatprep.mubr.f32.mxu0 %v5309
    %6248 = vmatmul.mubr.f32.gmra.mxu0 %v5308
    %v6249 = vpop.f32.mrf.mxu0
    %v6250 = vadd.f32 0.0, %v6249
    %v6251 = vpop.f32.mrf.mxu0
    %6252 = vmatprep.mubr.f32.mxu0 %v5313
    %6253 = vmatmul.mubr.f32.gmra.mxu0 %v5312
    %v6254 = vpop.f32.mrf.mxu0
    %v6255 = vadd.f32 0.0, %v6254
    %v6256 = vpop.f32.mrf.mxu0
    %6257 = vmatprep.mubr.f32.mxu0 %v5317
    %6258 = vmatmul.mubr.f32.gmra.mxu0 %v5316
    %v6259 = vpop.f32.mrf.mxu0
    %v6260 = vadd.f32 0.0, %v6259
    %v6261 = vpop.f32.mrf.mxu0
    %6262 = vmatprep.mubr.f32.mxu0 %v5321
    %6263 = vmatmul.mubr.f32.gmra.mxu0 %v5320
    %v6264 = vpop.f32.mrf.mxu0
    %v6265 = vadd.f32 0.0, %v6264
    %v6266 = vpop.f32.mrf.mxu0
    %6267 = vmatprep.mubr.f32.mxu0 %v5325
    %6268 = vmatmul.mubr.f32.gmra.mxu0 %v5324
    %v6269 = vpop.f32.mrf.mxu0
    %v6270 = vadd.f32 0.0, %v6269
    %v6271 = vpop.f32.mrf.mxu0
    %6272 = vmatprep.mubr.f32.mxu0 %v5329
    %6273 = vmatmul.mubr.f32.gmra.mxu0 %v5328
    %v6274 = vpop.f32.mrf.mxu0
    %v6275 = vadd.f32 0.0, %v6274
    %v6276 = vpop.f32.mrf.mxu0
    %6277 = vmatprep.mubr.f32.mxu0 %v5333
    %6278 = vmatmul.mubr.f32.gmra.mxu0 %v5332
    %v6279 = vpop.f32.mrf.mxu0
    %v6280 = vadd.f32 0.0, %v6279
    %v6281 = vpop.f32.mrf.mxu0
    %6282 = vmatprep.mubr.f32.mxu0 %v5337
    %6283 = vmatmul.mubr.f32.gmra.mxu0 %v5336
    %v6284 = vpop.f32.mrf.mxu0
    %v6285 = vadd.f32 0.0, %v6284
    %v6286 = vpop.f32.mrf.mxu0
    %6287 = vdwg.mxu0
    %6288 = vmatprep.subr.mxu0 0.0
    %6289 = vmatpush1.msra.mxu0 %v4850
    %6290 = vmatprep.subr.mxu0 0.0
    %6291 = vmatpush1.msra.mxu0 %v4849
    %6292 = vmatprep.subr.mxu0 0.0
    %6293 = vmatpush1.msra.mxu0 %v4848
    %6294 = vmatprep.subr.mxu0 0.0
    %6295 = vmatpush1.msra.mxu0 %v4847
    %6296 = vmatprep.subr.mxu0 0.0
    %6297 = vmatpush1.msra.mxu0 %v4846
    %6298 = vmatprep.subr.mxu0 0.0
    %6299 = vmatpush1.msra.mxu0 %v4845
    %6300 = vmatprep.subr.mxu0 0.0
    %6301 = vmatpush1.msra.mxu0 %v4844
    %6302 = vmatprep.subr.mxu0 0.0
    %6303 = vmatpush1.msra.mxu0 %v4843
    %6304 = vmatprep.subr.mxu0 0.0
    %6305 = vmatpush1.msra.mxu0 %v4842
    %6306 = vmatprep.subr.mxu0 0.0
    %6307 = vmatpush1.msra.mxu0 %v4841
    %6308 = vmatprep.subr.mxu0 0.0
    %6309 = vmatpush1.msra.mxu0 %v4840
    %6310 = vmatprep.subr.mxu0 0.0
    %6311 = vmatpush1.msra.mxu0 %v4839
    %6312 = vmatprep.subr.mxu0 0.0
    %6313 = vmatpush1.msra.mxu0 %v4838
    %6314 = vmatprep.subr.mxu0 0.0
    %6315 = vmatpush1.msra.mxu0 %v4837
    %6316 = vmatprep.subr.mxu0 0.0
    %6317 = vmatpush1.msra.mxu0 %v4836
    %6318 = vmatprep.subr.mxu0 0.0
    %6319 = vmatpush1.msra.mxu0 %v4835
    %6320 = vmatprep.subr.mxu0 0.0
    %6321 = vmatpush2.msra.mxu0 %v5369
    %6322 = vmatprep.subr.mxu0 0.0
    %6323 = vmatpush2.msra.mxu0 %v4865
    %6324 = vmatprep.subr.mxu0 0.0
    %6325 = vmatpush2.msra.mxu0 %v4864
    %6326 = vmatprep.subr.mxu0 0.0
    %6327 = vmatpush2.msra.mxu0 %v4863
    %6328 = vmatprep.subr.mxu0 0.0
    %6329 = vmatpush2.msra.mxu0 %v4862
    %6330 = vmatprep.subr.mxu0 0.0
    %6331 = vmatpush2.msra.mxu0 %v4861
    %6332 = vmatprep.subr.mxu0 0.0
    %6333 = vmatpush2.msra.mxu0 %v4860
    %6334 = vmatprep.subr.mxu0 0.0
    %6335 = vmatpush2.msra.mxu0 %v4859
    %6336 = vmatprep.subr.mxu0 0.0
    %6337 = vmatpush2.msra.mxu0 %v4858
    %6338 = vmatprep.subr.mxu0 0.0
    %6339 = vmatpush2.msra.mxu0 %v4857
    %6340 = vmatprep.subr.mxu0 0.0
    %6341 = vmatpush2.msra.mxu0 %v4856
    %6342 = vmatprep.subr.mxu0 0.0
    %6343 = vmatpush2.msra.mxu0 %v4855
    %6344 = vmatprep.subr.mxu0 0.0
    %6345 = vmatpush2.msra.mxu0 %v4854
    %6346 = vmatprep.subr.mxu0 0.0
    %6347 = vmatpush2.msra.mxu0 %v4853
    %6348 = vmatprep.subr.mxu0 0.0
    %6349 = vmatpush2.msra.mxu0 %v4852
    %6350 = vmatprep.subr.mxu0 0.0
    %6351 = vmatpush2.msra.mxu0 %v4851
    %6352 = vmatprep.mubr.f32.mxu0 %v6152
    %6353 = vmatmul.mubr.f32.gmra.mxu0 %v5306
    %v6354 = vpop.f32.mrf.mxu0
    %v6355 = vadd.f32 %v6245, %v6354
    %v6356 = vpop.f32.mrf.mxu0
    %6357 = vmatprep.mubr.f32.mxu0 %v6155
    %6358 = vmatmul.mubr.f32.gmra.mxu0 %v5310
    %v6359 = vpop.f32.mrf.mxu0
    %v6360 = vadd.f32 %v6250, %v6359
    %v6361 = vpop.f32.mrf.mxu0
    %6362 = vmatprep.mubr.f32.mxu0 %v6158
    %6363 = vmatmul.mubr.f32.gmra.mxu0 %v5314
    %v6364 = vpop.f32.mrf.mxu0
    %v6365 = vadd.f32 %v6255, %v6364
    %v6366 = vpop.f32.mrf.mxu0
    %6367 = vmatprep.mubr.f32.mxu0 %v6161
    %6368 = vmatmul.mubr.f32.gmra.mxu0 %v5318
    %v6369 = vpop.f32.mrf.mxu0
    %v6370 = vadd.f32 %v6260, %v6369
    %v6371 = vpop.f32.mrf.mxu0
    %6372 = vmatprep.mubr.f32.mxu0 %v6164
    %6373 = vmatmul.mubr.f32.gmra.mxu0 %v5322
    %v6374 = vpop.f32.mrf.mxu0
    %v6375 = vadd.f32 %v6265, %v6374
    %v6376 = vpop.f32.mrf.mxu0
    %6377 = vmatprep.mubr.f32.mxu0 %v6167
    %6378 = vmatmul.mubr.f32.gmra.mxu0 %v5326
    %v6379 = vpop.f32.mrf.mxu0
    %v6380 = vadd.f32 %v6270, %v6379
    %v6381 = vpop.f32.mrf.mxu0
    %6382 = vmatprep.mubr.f32.mxu0 %v6170
    %6383 = vmatmul.mubr.f32.gmra.mxu0 %v5330
    %v6384 = vpop.f32.mrf.mxu0
    %v6385 = vadd.f32 %v6275, %v6384
    %v6386 = vpop.f32.mrf.mxu0
    %6387 = vmatprep.mubr.f32.mxu0 %v6173
    %6388 = vmatmul.mubr.f32.gmra.mxu0 %v5334
    %v6389 = vpop.f32.mrf.mxu0
    %v6390 = vadd.f32 %v6280, %v6389
    %v6391 = vpop.f32.mrf.mxu0
    %6392 = vmatprep.mubr.f32.mxu0 %v6176
    %6393 = vmatmul.mubr.f32.gmra.mxu0 %v5338
    %v6394 = vpop.f32.mrf.mxu0
    %v6395 = vadd.f32 %v6285, %v6394
    %v6396 = vpop.f32.mrf.mxu0
    %6397 = vdwg.mxu0
    %6407 = vrot.lane.b32.xlu0 %v6355, 64
    %v6408 = vpop.permute.xlu0 %6407
    %6409 = vrot.lane.b32.xlu0 %v6360, 64
    %v6410 = vpop.permute.xlu0 %6409
    %6411 = vrot.lane.b32.xlu0 %v6365, 64
    %v6412 = vpop.permute.xlu0 %6411
    %6413 = vrot.lane.b32.xlu0 %v6370, 64
    %v6414 = vpop.permute.xlu0 %6413
    %6415 = vrot.lane.b32.xlu0 %v6375, 64
    %v6416 = vpop.permute.xlu0 %6415
    %6417 = vrot.lane.b32.xlu0 %v6380, 64
    %v6418 = vpop.permute.xlu0 %6417
    %6419 = vrot.lane.b32.xlu0 %v6385, 64
    %v6420 = vpop.permute.xlu0 %6419
    %6421 = vrot.lane.b32.xlu0 %v6390, 64
    %v6422 = vpop.permute.xlu0 %6421
    %6423 = vrot.lane.b32.xlu0 %v6395, 64
    %v6424 = vpop.permute.xlu0 %6423
    %6434 = vst.msk [vmem:[#allocation3 + $0x8] sm:$0xff] %vm5884, %v6408
    %6435 = vst.msk [vmem:[#allocation3 + $0x18] sm:$0xff] %vm5884, %v6410
    %6436 = vst.msk [vmem:[#allocation3 + $0x28] sm:$0xff] %vm5884, %v6412
    %6437 = vst.msk [vmem:[#allocation3 + $0x38] sm:$0xff] %vm5884, %v6414
    %6438 = vst.msk [vmem:[#allocation3 + $0x48] sm:$0xff] %vm5884, %v6416
    %6439 = vst.msk [vmem:[#allocation3 + $0x58] sm:$0xff] %vm5884, %v6418
    %6440 = vst.msk [vmem:[#allocation3 + $0x68] sm:$0xff] %vm5884, %v6420
    %6441 = vst.msk [vmem:[#allocation3 + $0x78] sm:$0xff] %vm5884, %v6422
    %6442 = vst.msk [vmem:[#allocation3 + $0x88] sm:$0x1] %vm5893, %v6424
    %v6443 = vld [vmem:[%s3163] sm:$0xff]
    %v6444 = vld [vmem:[%s3163 + $0x8] sm:$0xff]
    %v6445 = vld [vmem:[%s3163 + $0x10] sm:$0xff]
    %v6446 = vld [vmem:[%s3163 + $0x18] sm:$0xff]
    %v6447 = vld [vmem:[%s3163 + $0x20] sm:$0xff]
    %v6448 = vld [vmem:[%s3163 + $0x28] sm:$0xff]
    %v6449 = vld [vmem:[%s3163 + $0x30] sm:$0xff]
    %v6450 = vld [vmem:[%s3163 + $0x38] sm:$0xff]
    %v6451 = vld [vmem:[%s3163 + $0x40] sm:$0xff]
    %v6452 = vld [vmem:[%s3163 + $0x48] sm:$0xff]
    %v6453 = vld [vmem:[%s3163 + $0x50] sm:$0xff]
    %v6454 = vld [vmem:[%s3163 + $0x58] sm:$0xff]
    %v6455 = vld [vmem:[%s3163 + $0x60] sm:$0xff]
    %v6456 = vld [vmem:[%s3163 + $0x68] sm:$0xff]
    %v6457 = vld [vmem:[%s3163 + $0x70] sm:$0xff]
    %v6458 = vld [vmem:[%s3163 + $0x78] sm:$0xff]
    %v6459 = vld [vmem:[%s3163 + $0x80] sm:$0xff]
    %v6460 = vld [vmem:[%s3163 + $0x88] sm:$0xff]
    %v6461 = vld [vmem:[%s3163 + $0x90] sm:$0xff]
    %v6462 = vld [vmem:[%s3163 + $0x98] sm:$0xff]
    %v6463 = vld [vmem:[%s3163 + $0xa0] sm:$0xff]
    %v6464 = vld [vmem:[%s3163 + $0xa8] sm:$0xff]
    %v6465 = vld [vmem:[%s3163 + $0xb0] sm:$0xff]
    %v6466 = vld [vmem:[%s3163 + $0xb8] sm:$0xff]
    %v6467 = vld [vmem:[%s3163 + $0xc0] sm:$0xff]
    %v6468 = vld [vmem:[%s3163 + $0xc8] sm:$0xff]
    %v6469 = vld [vmem:[%s3163 + $0xd0] sm:$0xff]
    %v6470 = vld [vmem:[%s3163 + $0xd8] sm:$0xff]
    %v6471 = vld [vmem:[%s3163 + $0xe0] sm:$0xff]
    %v6472 = vld [vmem:[%s3163 + $0xe8] sm:$0xff]
    %v6473 = vld [vmem:[%s3163 + $0xf0] sm:$0xff]
    %v6474 = vld [vmem:[%s3163 + $0xf8] sm:$0xff]
    %v6475 = vld [vmem:[%s3163 + $0x100] sm:$0xff]
    %v6476 = vld [vmem:[%s3163 + $0x108] sm:$0xff]
    %v6477 = vld [vmem:[%s3163 + $0x110] sm:$0xff]
    %v6478 = vld [vmem:[%s3163 + $0x118] sm:$0xff]
    %v6479 = vld [vmem:[%s3163 + $0x120] sm:$0xff]
    %v6480 = vld [vmem:[%s3163 + $0x128] sm:$0xff]
    %v6481 = vld [vmem:[%s3163 + $0x130] sm:$0xff]
    %v6482 = vld [vmem:[%s3163 + $0x138] sm:$0xff]
    %v6483 = vld [vmem:[%s3163 + $0x140] sm:$0xff]
    %v6484 = vld [vmem:[%s3163 + $0x148] sm:$0xff]
    %v6485 = vld [vmem:[%s3163 + $0x150] sm:$0xff]
    %v6486 = vld [vmem:[%s3163 + $0x158] sm:$0xff]
    %v6487 = vld [vmem:[%s3163 + $0x160] sm:$0xff]
    %v6488 = vld [vmem:[%s3163 + $0x168] sm:$0xff]
    %v6489 = vld [vmem:[%s3163 + $0x170] sm:$0xff]
    %v6490 = vld [vmem:[%s3163 + $0x178] sm:$0xff]
    %v6491 = vld [vmem:[%s3163 + $0x180] sm:$0xff]
    %v6492 = vld [vmem:[%s3163 + $0x188] sm:$0xff]
    %v6493 = vld [vmem:[%s3163 + $0x190] sm:$0xff]
    %v6494 = vld [vmem:[%s3163 + $0x198] sm:$0xff]
    %v6495 = vld [vmem:[%s3163 + $0x1a0] sm:$0xff]
    %v6496 = vld [vmem:[%s3163 + $0x1a8] sm:$0xff]
    %v6497 = vld [vmem:[%s3163 + $0x1b0] sm:$0xff]
    %v6498 = vld [vmem:[%s3163 + $0x1b8] sm:$0xff]
    %v6499 = vld [vmem:[%s3163 + $0x1c0] sm:$0xff]
    %v6500 = vld [vmem:[%s3163 + $0x1c8] sm:$0xff]
    %v6501 = vld [vmem:[%s3163 + $0x1d0] sm:$0xff]
    %v6502 = vld [vmem:[%s3163 + $0x1d8] sm:$0xff]
    %v6503 = vld [vmem:[%s3163 + $0x1e0] sm:$0xff]
    %v6504 = vld [vmem:[%s3163 + $0x1e8] sm:$0xff]
    %v6505 = vld [vmem:[%s3163 + $0x1f0] sm:$0xff]
    %v6506 = vld [vmem:[%s3163 + $0x1f8] sm:$0xff]
    %v6507 = vmul.f32 %v6443, %v3834
    %v6508 = vmul.f32 %v6444, %v3834
    %v6509 = vmul.f32 %v6445, %v3834
    %v6510 = vmul.f32 %v6446, %v3834
    %v6511 = vmul.f32 %v6447, %v3834
    %v6512 = vmul.f32 %v6448, %v3834
    %v6513 = vmul.f32 %v6449, %v3834
    %v6514 = vmul.f32 %v6450, %v3834
    %v6515 = vmul.f32 %v6451, %v3834
    %v6516 = vmul.f32 %v6452, %v3834
    %v6517 = vmul.f32 %v6453, %v3834
    %v6518 = vmul.f32 %v6454, %v3834
    %v6519 = vmul.f32 %v6455, %v3834
    %v6520 = vmul.f32 %v6456, %v3834
    %v6521 = vmul.f32 %v6457, %v3834
    %v6522 = vmul.f32 %v6458, %v3834
    %v6523 = vmul.f32 %v6459, %v3834
    %v6524 = vmul.f32 %v6460, %v3834
    %v6525 = vmul.f32 %v6461, %v3834
    %v6526 = vmul.f32 %v6462, %v3834
    %v6527 = vmul.f32 %v6463, %v3834
    %v6528 = vmul.f32 %v6464, %v3834
    %v6529 = vmul.f32 %v6465, %v3834
    %v6530 = vmul.f32 %v6466, %v3834
    %v6531 = vmul.f32 %v6467, %v3834
    %v6532 = vmul.f32 %v6468, %v3834
    %v6533 = vmul.f32 %v6469, %v3834
    %v6534 = vmul.f32 %v6470, %v3834
    %v6535 = vmul.f32 %v6471, %v3834
    %v6536 = vmul.f32 %v6472, %v3834
    %v6537 = vmul.f32 %v6473, %v3834
    %v6538 = vmul.f32 %v6474, %v3834
    %v6539 = vmul.f32 %v6475, %v3834
    %v6540 = vmul.f32 %v6476, %v3834
    %v6541 = vmul.f32 %v6477, %v3834
    %v6542 = vmul.f32 %v6478, %v3834
    %v6543 = vmul.f32 %v6479, %v3834
    %v6544 = vmul.f32 %v6480, %v3834
    %v6545 = vmul.f32 %v6481, %v3834
    %v6546 = vmul.f32 %v6482, %v3834
    %v6547 = vmul.f32 %v6483, %v3834
    %v6548 = vmul.f32 %v6484, %v3834
    %v6549 = vmul.f32 %v6485, %v3834
    %v6550 = vmul.f32 %v6486, %v3834
    %v6551 = vmul.f32 %v6487, %v3834
    %v6552 = vmul.f32 %v6488, %v3834
    %v6553 = vmul.f32 %v6489, %v3834
    %v6554 = vmul.f32 %v6490, %v3834
    %v6555 = vmul.f32 %v6491, %v3834
    %v6556 = vmul.f32 %v6492, %v3834
    %v6557 = vmul.f32 %v6493, %v3834
    %v6558 = vmul.f32 %v6494, %v3834
    %v6559 = vmul.f32 %v6495, %v3834
    %v6560 = vmul.f32 %v6496, %v3834
    %v6561 = vmul.f32 %v6497, %v3834
    %v6562 = vmul.f32 %v6498, %v3834
    %v6563 = vmul.f32 %v6499, %v3834
    %v6564 = vmul.f32 %v6500, %v3834
    %v6565 = vmul.f32 %v6501, %v3834
    %v6566 = vmul.f32 %v6502, %v3834
    %v6567 = vmul.f32 %v6503, %v3834
    %v6568 = vmul.f32 %v6504, %v3834
    %v6569 = vmul.f32 %v6505, %v3834
    %v6570 = vmul.f32 %v6506, %v3834
    %v6571 = vadd.f32 %v6507, %v3904
    %v6572 = vadd.f32 %v6508, %v3904
    %v6573 = vadd.f32 %v6509, %v3904
    %v6574 = vadd.f32 %v6510, %v3904
    %v6575 = vadd.f32 %v6511, %v3904
    %v6576 = vadd.f32 %v6512, %v3904
    %v6577 = vadd.f32 %v6513, %v3904
    %v6578 = vadd.f32 %v6514, %v3904
    %v6579 = vadd.f32 %v6515, %v3904
    %v6580 = vadd.f32 %v6516, %v3904
    %v6581 = vadd.f32 %v6517, %v3904
    %v6582 = vadd.f32 %v6518, %v3904
    %v6583 = vadd.f32 %v6519, %v3904
    %v6584 = vadd.f32 %v6520, %v3904
    %v6585 = vadd.f32 %v6521, %v3904
    %v6586 = vadd.f32 %v6522, %v3904
    %v6587 = vadd.f32 %v6523, %v3904
    %v6588 = vadd.f32 %v6524, %v3904
    %v6589 = vadd.f32 %v6525, %v3904
    %v6590 = vadd.f32 %v6526, %v3904
    %v6591 = vadd.f32 %v6527, %v3904
    %v6592 = vadd.f32 %v6528, %v3904
    %v6593 = vadd.f32 %v6529, %v3904
    %v6594 = vadd.f32 %v6530, %v3904
    %v6595 = vadd.f32 %v6531, %v3904
    %v6596 = vadd.f32 %v6532, %v3904
    %v6597 = vadd.f32 %v6533, %v3904
    %v6598 = vadd.f32 %v6534, %v3904
    %v6599 = vadd.f32 %v6535, %v3904
    %v6600 = vadd.f32 %v6536, %v3904
    %v6601 = vadd.f32 %v6537, %v3904
    %v6602 = vadd.f32 %v6538, %v3904
    %v6603 = vadd.f32 %v6539, %v3904
    %v6604 = vadd.f32 %v6540, %v3904
    %v6605 = vadd.f32 %v6541, %v3904
    %v6606 = vadd.f32 %v6542, %v3904
    %v6607 = vadd.f32 %v6543, %v3904
    %v6608 = vadd.f32 %v6544, %v3904
    %v6609 = vadd.f32 %v6545, %v3904
    %v6610 = vadd.f32 %v6546, %v3904
    %v6611 = vadd.f32 %v6547, %v3904
    %v6612 = vadd.f32 %v6548, %v3904
    %v6613 = vadd.f32 %v6549, %v3904
    %v6614 = vadd.f32 %v6550, %v3904
    %v6615 = vadd.f32 %v6551, %v3904
    %v6616 = vadd.f32 %v6552, %v3904
    %v6617 = vadd.f32 %v6553, %v3904
    %v6618 = vadd.f32 %v6554, %v3904
    %v6619 = vadd.f32 %v6555, %v3904
    %v6620 = vadd.f32 %v6556, %v3904
    %v6621 = vadd.f32 %v6557, %v3904
    %v6622 = vadd.f32 %v6558, %v3904
    %v6623 = vadd.f32 %v6559, %v3904
    %v6624 = vadd.f32 %v6560, %v3904
    %v6625 = vadd.f32 %v6561, %v3904
    %v6626 = vadd.f32 %v6562, %v3904
    %v6627 = vadd.f32 %v6563, %v3904
    %v6628 = vadd.f32 %v6564, %v3904
    %v6629 = vadd.f32 %v6565, %v3904
    %v6630 = vadd.f32 %v6566, %v3904
    %v6631 = vadd.f32 %v6567, %v3904
    %v6632 = vadd.f32 %v6568, %v3904
    %v6633 = vadd.f32 %v6569, %v3904
    %v6634 = vadd.f32 %v6570, %v3904
    %v6635 = vmax.f32 %v6571, 0.0
    %v6636 = vmax.f32 %v6572, 0.0
    %v6637 = vmax.f32 %v6573, 0.0
    %v6638 = vmax.f32 %v6574, 0.0
    %v6639 = vmax.f32 %v6575, 0.0
    %v6640 = vmax.f32 %v6576, 0.0
    %v6641 = vmax.f32 %v6577, 0.0
    %v6642 = vmax.f32 %v6578, 0.0
    %v6643 = vmax.f32 %v6579, 0.0
    %v6644 = vmax.f32 %v6580, 0.0
    %v6645 = vmax.f32 %v6581, 0.0
    %v6646 = vmax.f32 %v6582, 0.0
    %v6647 = vmax.f32 %v6583, 0.0
    %v6648 = vmax.f32 %v6584, 0.0
    %v6649 = vmax.f32 %v6585, 0.0
    %v6650 = vmax.f32 %v6586, 0.0
    %v6651 = vmax.f32 %v6587, 0.0
    %v6652 = vmax.f32 %v6588, 0.0
    %v6653 = vmax.f32 %v6589, 0.0
    %v6654 = vmax.f32 %v6590, 0.0
    %v6655 = vmax.f32 %v6591, 0.0
    %v6656 = vmax.f32 %v6592, 0.0
    %v6657 = vmax.f32 %v6593, 0.0
    %v6658 = vmax.f32 %v6594, 0.0
    %v6659 = vmax.f32 %v6595, 0.0
    %v6660 = vmax.f32 %v6596, 0.0
    %v6661 = vmax.f32 %v6597, 0.0
    %v6662 = vmax.f32 %v6598, 0.0
    %v6663 = vmax.f32 %v6599, 0.0
    %v6664 = vmax.f32 %v6600, 0.0
    %v6665 = vmax.f32 %v6601, 0.0
    %v6666 = vmax.f32 %v6602, 0.0
    %v6667 = vmax.f32 %v6603, 0.0
    %v6668 = vmax.f32 %v6604, 0.0
    %v6669 = vmax.f32 %v6605, 0.0
    %v6670 = vmax.f32 %v6606, 0.0
    %v6671 = vmax.f32 %v6607, 0.0
    %v6672 = vmax.f32 %v6608, 0.0
    %v6673 = vmax.f32 %v6609, 0.0
    %v6674 = vmax.f32 %v6610, 0.0
    %v6675 = vmax.f32 %v6611, 0.0
    %v6676 = vmax.f32 %v6612, 0.0
    %v6677 = vmax.f32 %v6613, 0.0
    %v6678 = vmax.f32 %v6614, 0.0
    %v6679 = vmax.f32 %v6615, 0.0
    %v6680 = vmax.f32 %v6616, 0.0
    %v6681 = vmax.f32 %v6617, 0.0
    %v6682 = vmax.f32 %v6618, 0.0
    %v6683 = vmax.f32 %v6619, 0.0
    %v6684 = vmax.f32 %v6620, 0.0
    %v6685 = vmax.f32 %v6621, 0.0
    %v6686 = vmax.f32 %v6622, 0.0
    %v6687 = vmax.f32 %v6623, 0.0
    %v6688 = vmax.f32 %v6624, 0.0
    %v6689 = vmax.f32 %v6625, 0.0
    %v6690 = vmax.f32 %v6626, 0.0
    %v6691 = vmax.f32 %v6627, 0.0
    %v6692 = vmax.f32 %v6628, 0.0
    %v6693 = vmax.f32 %v6629, 0.0
    %v6694 = vmax.f32 %v6630, 0.0
    %v6695 = vmax.f32 %v6631, 0.0
    %v6696 = vmax.f32 %v6632, 0.0
    %v6697 = vmax.f32 %v6633, 0.0
    %v6698 = vmax.f32 %v6634, 0.0
    %v6699 = vrot.slane %v6635, 7
    %v6700 = vrot.slane %v6636, 7
    %v6701 = vrot.slane %v6637, 7
    %v6702 = vrot.slane %v6638, 7
    %v6703 = vrot.slane %v6639, 7
    %v6704 = vrot.slane %v6640, 7
    %v6705 = vrot.slane %v6641, 7
    %v6706 = vrot.slane %v6642, 7
    %v6707 = vrot.slane %v6643, 7
    %v6708 = vrot.slane %v6644, 7
    %v6709 = vrot.slane %v6645, 7
    %v6710 = vrot.slane %v6646, 7
    %v6711 = vrot.slane %v6647, 7
    %v6712 = vrot.slane %v6648, 7
    %v6713 = vrot.slane %v6649, 7
    %v6714 = vrot.slane %v6650, 7
    %v6715 = vrot.slane %v6651, 7
    %v6716 = vrot.slane %v6652, 7
    %v6717 = vrot.slane %v6653, 7
    %v6718 = vrot.slane %v6654, 7
    %v6719 = vrot.slane %v6655, 7
    %v6720 = vrot.slane %v6656, 7
    %v6721 = vrot.slane %v6657, 7
    %v6722 = vrot.slane %v6658, 7
    %v6723 = vrot.slane %v6659, 7
    %v6724 = vrot.slane %v6660, 7
    %v6725 = vrot.slane %v6661, 7
    %v6726 = vrot.slane %v6662, 7
    %v6727 = vrot.slane %v6663, 7
    %v6728 = vrot.slane %v6664, 7
    %v6729 = vrot.slane %v6665, 7
    %v6730 = vrot.slane %v6666, 7
    %v6731 = vrot.slane %v6667, 7
    %v6732 = vrot.slane %v6668, 7
    %v6733 = vrot.slane %v6669, 7
    %v6734 = vrot.slane %v6670, 7
    %v6735 = vrot.slane %v6671, 7
    %v6736 = vrot.slane %v6672, 7
    %v6737 = vrot.slane %v6673, 7
    %v6738 = vrot.slane %v6674, 7
    %v6739 = vrot.slane %v6675, 7
    %v6740 = vrot.slane %v6676, 7
    %v6741 = vrot.slane %v6677, 7
    %v6742 = vrot.slane %v6678, 7
    %v6743 = vrot.slane %v6679, 7
    %v6744 = vrot.slane %v6680, 7
    %v6745 = vrot.slane %v6681, 7
    %v6746 = vrot.slane %v6682, 7
    %v6747 = vrot.slane %v6683, 7
    %v6748 = vrot.slane %v6684, 7
    %v6749 = vrot.slane %v6685, 7
    %v6750 = vrot.slane %v6686, 7
    %v6751 = vrot.slane %v6687, 7
    %v6752 = vrot.slane %v6688, 7
    %v6753 = vrot.slane %v6689, 7
    %v6754 = vrot.slane %v6690, 7
    %v6755 = vrot.slane %v6691, 7
    %v6756 = vrot.slane %v6692, 7
    %v6757 = vrot.slane %v6693, 7
    %v6758 = vrot.slane %v6694, 7
    %v6759 = vrot.slane %v6695, 7
    %v6760 = vrot.slane %v6696, 7
    %v6761 = vrot.slane %v6697, 7
    %v6762 = vrot.slane %v6698, 7
    %v6763 = vsel %vm4098, %v6761, %v6762
    %v6764 = vsel %vm4098, %v6760, %v6761
    %v6765 = vsel %vm4098, %v6759, %v6760
    %v6766 = vsel %vm4098, %v6758, %v6759
    %v6767 = vsel %vm4098, %v6757, %v6758
    %v6768 = vsel %vm4098, %v6756, %v6757
    %v6769 = vsel %vm4098, %v6755, %v6756
    %v6770 = vsel %vm4098, %v6754, %v6755
    %v6771 = vsel %vm4098, %v6753, %v6754
    %v6772 = vsel %vm4098, %v6752, %v6753
    %v6773 = vsel %vm4098, %v6751, %v6752
    %v6774 = vsel %vm4098, %v6750, %v6751
    %v6775 = vsel %vm4098, %v6749, %v6750
    %v6776 = vsel %vm4098, %v6748, %v6749
    %v6777 = vsel %vm4098, %v6747, %v6748
    %v6778 = vsel %vm4098, %v6746, %v6747
    %v6779 = vsel %vm4098, %v6745, %v6746
    %v6780 = vsel %vm4098, %v6744, %v6745
    %v6781 = vsel %vm4098, %v6743, %v6744
    %v6782 = vsel %vm4098, %v6742, %v6743
    %v6783 = vsel %vm4098, %v6741, %v6742
    %v6784 = vsel %vm4098, %v6740, %v6741
    %v6785 = vsel %vm4098, %v6739, %v6740
    %v6786 = vsel %vm4098, %v6738, %v6739
    %v6787 = vsel %vm4098, %v6737, %v6738
    %v6788 = vsel %vm4098, %v6736, %v6737
    %v6789 = vsel %vm4098, %v6735, %v6736
    %v6790 = vsel %vm4098, %v6734, %v6735
    %v6791 = vsel %vm4098, %v6733, %v6734
    %v6792 = vsel %vm4098, %v6732, %v6733
    %v6793 = vsel %vm4098, %v6731, %v6732
    %v6794 = vsel %vm4098, %v6730, %v6731
    %v6795 = vsel %vm4098, %v6729, %v6730
    %v6796 = vsel %vm4098, %v6728, %v6729
    %v6797 = vsel %vm4098, %v6727, %v6728
    %v6798 = vsel %vm4098, %v6726, %v6727
    %v6799 = vsel %vm4098, %v6725, %v6726
    %v6800 = vsel %vm4098, %v6724, %v6725
    %v6801 = vsel %vm4098, %v6723, %v6724
    %v6802 = vsel %vm4098, %v6722, %v6723
    %v6803 = vsel %vm4098, %v6721, %v6722
    %v6804 = vsel %vm4098, %v6720, %v6721
    %v6805 = vsel %vm4098, %v6719, %v6720
    %v6806 = vsel %vm4098, %v6718, %v6719
    %v6807 = vsel %vm4098, %v6717, %v6718
    %v6808 = vsel %vm4098, %v6716, %v6717
    %v6809 = vsel %vm4098, %v6715, %v6716
    %v6810 = vsel %vm4098, %v6714, %v6715
    %v6811 = vsel %vm4098, %v6713, %v6714
    %v6812 = vsel %vm4098, %v6712, %v6713
    %v6813 = vsel %vm4098, %v6711, %v6712
    %v6814 = vsel %vm4098, %v6710, %v6711
    %v6815 = vsel %vm4098, %v6709, %v6710
    %v6816 = vsel %vm4098, %v6708, %v6709
    %v6817 = vsel %vm4098, %v6707, %v6708
    %v6818 = vsel %vm4098, %v6706, %v6707
    %v6819 = vsel %vm4098, %v6705, %v6706
    %v6820 = vsel %vm4098, %v6704, %v6705
    %v6821 = vsel %vm4098, %v6703, %v6704
    %v6822 = vsel %vm4098, %v6702, %v6703
    %v6823 = vsel %vm4098, %v6701, %v6702
    %v6824 = vsel %vm4098, %v6700, %v6701
    %v6825 = vsel %vm4098, %v6699, %v6700
    %v6826 = vsel %vm4098, %v6762, %v6699
    %v6827 = vsel %vm3638, %v6826, 0.0
    %v6828 = vsel %vm3639, %v6825, 0.0
    %v6829 = vsel %vm3640, %v6824, 0.0
    %v6830 = vsel %vm3641, %v6823, 0.0
    %v6831 = vsel %vm3642, %v6822, 0.0
    %v6832 = vsel %vm3643, %v6821, 0.0
    %v6833 = vsel %vm3644, %v6820, 0.0
    %v6834 = vsel %vm3645, %v6819, 0.0
    %v6835 = vsel %vm3646, %v6818, 0.0
    %v6836 = vsel %vm3647, %v6817, 0.0
    %v6837 = vsel %vm3648, %v6816, 0.0
    %v6838 = vsel %vm3649, %v6815, 0.0
    %v6839 = vsel %vm3650, %v6814, 0.0
    %v6840 = vsel %vm3651, %v6813, 0.0
    %v6841 = vsel %vm3652, %v6812, 0.0
    %v6842 = vsel %vm3653, %v6811, 0.0
    %v6843 = vsel %vm3654, %v6810, 0.0
    %v6844 = vsel %vm3655, %v6809, 0.0
    %v6845 = vsel %vm3656, %v6808, 0.0
    %v6846 = vsel %vm3657, %v6807, 0.0
    %v6847 = vsel %vm3658, %v6806, 0.0
    %v6848 = vsel %vm3659, %v6805, 0.0
    %v6849 = vsel %vm3660, %v6804, 0.0
    %v6850 = vsel %vm3661, %v6803, 0.0
    %v6851 = vsel %vm3662, %v6802, 0.0
    %v6852 = vsel %vm3663, %v6801, 0.0
    %v6853 = vsel %vm3664, %v6800, 0.0
    %v6854 = vsel %vm3665, %v6799, 0.0
    %v6855 = vsel %vm3666, %v6798, 0.0
    %v6856 = vsel %vm3667, %v6797, 0.0
    %v6857 = vsel %vm3668, %v6796, 0.0
    %v6858 = vsel %vm3669, %v6795, 0.0
    %v6859 = vsel %vm3670, %v6794, 0.0
    %v6860 = vsel %vm3671, %v6793, 0.0
    %v6861 = vsel %vm3672, %v6792, 0.0
    %v6862 = vsel %vm3673, %v6791, 0.0
    %v6863 = vsel %vm3674, %v6790, 0.0
    %v6864 = vsel %vm3675, %v6789, 0.0
    %v6865 = vsel %vm3676, %v6788, 0.0
    %v6866 = vsel %vm3677, %v6787, 0.0
    %v6867 = vsel %vm3678, %v6786, 0.0
    %v6868 = vsel %vm3679, %v6785, 0.0
    %v6869 = vsel %vm3680, %v6784, 0.0
    %v6870 = vsel %vm3681, %v6783, 0.0
    %v6871 = vsel %vm3682, %v6782, 0.0
    %v6872 = vsel %vm3683, %v6781, 0.0
    %v6873 = vsel %vm3684, %v6780, 0.0
    %v6874 = vsel %vm3685, %v6779, 0.0
    %v6875 = vsel %vm3686, %v6778, 0.0
    %v6876 = vsel %vm3687, %v6777, 0.0
    %v6877 = vsel %vm3688, %v6776, 0.0
    %v6878 = vsel %vm3689, %v6775, 0.0
    %v6879 = vsel %vm3690, %v6774, 0.0
    %v6880 = vsel %vm3691, %v6773, 0.0
    %v6881 = vsel %vm3692, %v6772, 0.0
    %v6882 = vsel %vm3693, %v6771, 0.0
    %v6883 = vsel %vm3694, %v6770, 0.0
    %v6884 = vsel %vm3695, %v6769, 0.0
    %v6885 = vsel %vm3696, %v6768, 0.0
    %v6886 = vsel %vm3697, %v6767, 0.0
    %v6887 = vsel %vm3698, %v6766, 0.0
    %v6888 = vsel %vm3699, %v6765, 0.0
    %v6889 = vsel %vm3700, %v6764, 0.0
    %v6890 = vsel %vm3701, %v6763, 0.0
    %v6891 = vrot.slane %v6635, 2
    %v6892 = vrot.slane %v6636, 2
    %v6893 = vrot.slane %v6637, 2
    %v6894 = vrot.slane %v6638, 2
    %v6895 = vrot.slane %v6639, 2
    %v6896 = vrot.slane %v6640, 2
    %v6897 = vrot.slane %v6641, 2
    %v6898 = vrot.slane %v6642, 2
    %v6899 = vrot.slane %v6643, 2
    %v6900 = vrot.slane %v6644, 2
    %v6901 = vrot.slane %v6645, 2
    %v6902 = vrot.slane %v6646, 2
    %v6903 = vrot.slane %v6647, 2
    %v6904 = vrot.slane %v6648, 2
    %v6905 = vrot.slane %v6649, 2
    %v6906 = vrot.slane %v6650, 2
    %v6907 = vrot.slane %v6651, 2
    %v6908 = vrot.slane %v6652, 2
    %v6909 = vrot.slane %v6653, 2
    %v6910 = vrot.slane %v6654, 2
    %v6911 = vrot.slane %v6655, 2
    %v6912 = vrot.slane %v6656, 2
    %v6913 = vrot.slane %v6657, 2
    %v6914 = vrot.slane %v6658, 2
    %v6915 = vrot.slane %v6659, 2
    %v6916 = vrot.slane %v6660, 2
    %v6917 = vrot.slane %v6661, 2
    %v6918 = vrot.slane %v6662, 2
    %v6919 = vrot.slane %v6663, 2
    %v6920 = vrot.slane %v6664, 2
    %v6921 = vrot.slane %v6665, 2
    %v6922 = vrot.slane %v6666, 2
    %v6923 = vrot.slane %v6667, 2
    %v6924 = vrot.slane %v6668, 2
    %v6925 = vrot.slane %v6669, 2
    %v6926 = vrot.slane %v6670, 2
    %v6927 = vrot.slane %v6671, 2
    %v6928 = vrot.slane %v6672, 2
    %v6929 = vrot.slane %v6673, 2
    %v6930 = vrot.slane %v6674, 2
    %v6931 = vrot.slane %v6675, 2
    %v6932 = vrot.slane %v6676, 2
    %v6933 = vrot.slane %v6677, 2
    %v6934 = vrot.slane %v6678, 2
    %v6935 = vrot.slane %v6679, 2
    %v6936 = vrot.slane %v6680, 2
    %v6937 = vrot.slane %v6681, 2
    %v6938 = vrot.slane %v6682, 2
    %v6939 = vrot.slane %v6683, 2
    %v6940 = vrot.slane %v6684, 2
    %v6941 = vrot.slane %v6685, 2
    %v6942 = vrot.slane %v6686, 2
    %v6943 = vrot.slane %v6687, 2
    %v6944 = vrot.slane %v6688, 2
    %v6945 = vrot.slane %v6689, 2
    %v6946 = vrot.slane %v6690, 2
    %v6947 = vrot.slane %v6691, 2
    %v6948 = vrot.slane %v6692, 2
    %v6949 = vrot.slane %v6693, 2
    %v6950 = vrot.slane %v6694, 2
    %v6951 = vrot.slane %v6695, 2
    %v6952 = vrot.slane %v6696, 2
    %v6953 = vrot.slane %v6697, 2
    %v6954 = vrot.slane %v6698, 2
    %v6955 = vsel %vm4291, %v6953, %v6954
    %v6956 = vsel %vm4291, %v6952, %v6953
    %v6957 = vsel %vm4291, %v6951, %v6952
    %v6958 = vsel %vm4291, %v6950, %v6951
    %v6959 = vsel %vm4291, %v6949, %v6950
    %v6960 = vsel %vm4291, %v6948, %v6949
    %v6961 = vsel %vm4291, %v6947, %v6948
    %v6962 = vsel %vm4291, %v6946, %v6947
    %v6963 = vsel %vm4291, %v6945, %v6946
    %v6964 = vsel %vm4291, %v6944, %v6945
    %v6965 = vsel %vm4291, %v6943, %v6944
    %v6966 = vsel %vm4291, %v6942, %v6943
    %v6967 = vsel %vm4291, %v6941, %v6942
    %v6968 = vsel %vm4291, %v6940, %v6941
    %v6969 = vsel %vm4291, %v6939, %v6940
    %v6970 = vsel %vm4291, %v6938, %v6939
    %v6971 = vsel %vm4291, %v6937, %v6938
    %v6972 = vsel %vm4291, %v6936, %v6937
    %v6973 = vsel %vm4291, %v6935, %v6936
    %v6974 = vsel %vm4291, %v6934, %v6935
    %v6975 = vsel %vm4291, %v6933, %v6934
    %v6976 = vsel %vm4291, %v6932, %v6933
    %v6977 = vsel %vm4291, %v6931, %v6932
    %v6978 = vsel %vm4291, %v6930, %v6931
    %v6979 = vsel %vm4291, %v6929, %v6930
    %v6980 = vsel %vm4291, %v6928, %v6929
    %v6981 = vsel %vm4291, %v6927, %v6928
    %v6982 = vsel %vm4291, %v6926, %v6927
    %v6983 = vsel %vm4291, %v6925, %v6926
    %v6984 = vsel %vm4291, %v6924, %v6925
    %v6985 = vsel %vm4291, %v6923, %v6924
    %v6986 = vsel %vm4291, %v6922, %v6923
    %v6987 = vsel %vm4291, %v6921, %v6922
    %v6988 = vsel %vm4291, %v6920, %v6921
    %v6989 = vsel %vm4291, %v6919, %v6920
    %v6990 = vsel %vm4291, %v6918, %v6919
    %v6991 = vsel %vm4291, %v6917, %v6918
    %v6992 = vsel %vm4291, %v6916, %v6917
    %v6993 = vsel %vm4291, %v6915, %v6916
    %v6994 = vsel %vm4291, %v6914, %v6915
    %v6995 = vsel %vm4291, %v6913, %v6914
    %v6996 = vsel %vm4291, %v6912, %v6913
    %v6997 = vsel %vm4291, %v6911, %v6912
    %v6998 = vsel %vm4291, %v6910, %v6911
    %v6999 = vsel %vm4291, %v6909, %v6910
    %v7000 = vsel %vm4291, %v6908, %v6909
    %v7001 = vsel %vm4291, %v6907, %v6908
    %v7002 = vsel %vm4291, %v6906, %v6907
    %v7003 = vsel %vm4291, %v6905, %v6906
    %v7004 = vsel %vm4291, %v6904, %v6905
    %v7005 = vsel %vm4291, %v6903, %v6904
    %v7006 = vsel %vm4291, %v6902, %v6903
    %v7007 = vsel %vm4291, %v6901, %v6902
    %v7008 = vsel %vm4291, %v6900, %v6901
    %v7009 = vsel %vm4291, %v6899, %v6900
    %v7010 = vsel %vm4291, %v6898, %v6899
    %v7011 = vsel %vm4291, %v6897, %v6898
    %v7012 = vsel %vm4291, %v6896, %v6897
    %v7013 = vsel %vm4291, %v6895, %v6896
    %v7014 = vsel %vm4291, %v6894, %v6895
    %v7015 = vsel %vm4291, %v6893, %v6894
    %v7016 = vsel %vm4291, %v6892, %v6893
    %v7017 = vsel %vm4291, %v6891, %v6892
    %v7018 = vsel %vm4291, %v6954, %v6891
    %v7019 = vsel %vm3702, %v7017, 0.0
    %v7020 = vsel %vm3703, %v7016, 0.0
    %v7021 = vsel %vm3704, %v7015, 0.0
    %v7022 = vsel %vm3705, %v7014, 0.0
    %v7023 = vsel %vm3706, %v7013, 0.0
    %v7024 = vsel %vm3707, %v7012, 0.0
    %v7025 = vsel %vm3708, %v7011, 0.0
    %v7026 = vsel %vm3709, %v7010, 0.0
    %v7027 = vsel %vm3710, %v7009, 0.0
    %v7028 = vsel %vm3711, %v7008, 0.0
    %v7029 = vsel %vm3712, %v7007, 0.0
    %v7030 = vsel %vm3713, %v7006, 0.0
    %v7031 = vsel %vm3714, %v7005, 0.0
    %v7032 = vsel %vm3715, %v7004, 0.0
    %v7033 = vsel %vm3716, %v7003, 0.0
    %v7034 = vsel %vm3717, %v7002, 0.0
    %v7035 = vsel %vm3718, %v7001, 0.0
    %v7036 = vsel %vm3719, %v7000, 0.0
    %v7037 = vsel %vm3720, %v6999, 0.0
    %v7038 = vsel %vm3721, %v6998, 0.0
    %v7039 = vsel %vm3722, %v6997, 0.0
    %v7040 = vsel %vm3723, %v6996, 0.0
    %v7041 = vsel %vm3724, %v6995, 0.0
    %v7042 = vsel %vm3725, %v6994, 0.0
    %v7043 = vsel %vm3726, %v6993, 0.0
    %v7044 = vsel %vm3727, %v6992, 0.0
    %v7045 = vsel %vm3728, %v6991, 0.0
    %v7046 = vsel %vm3729, %v6990, 0.0
    %v7047 = vsel %vm3730, %v6989, 0.0
    %v7048 = vsel %vm3731, %v6988, 0.0
    %v7049 = vsel %vm3732, %v6987, 0.0
    %v7050 = vsel %vm3733, %v6986, 0.0
    %v7051 = vsel %vm3734, %v6985, 0.0
    %v7052 = vsel %vm3735, %v6984, 0.0
    %v7053 = vsel %vm3736, %v6983, 0.0
    %v7054 = vsel %vm3737, %v6982, 0.0
    %v7055 = vsel %vm3738, %v6981, 0.0
    %v7056 = vsel %vm3739, %v6980, 0.0
    %v7057 = vsel %vm3740, %v6979, 0.0
    %v7058 = vsel %vm3741, %v6978, 0.0
    %v7059 = vsel %vm3742, %v6977, 0.0
    %v7060 = vsel %vm3743, %v6976, 0.0
    %v7061 = vsel %vm3744, %v6975, 0.0
    %v7062 = vsel %vm3745, %v6974, 0.0
    %v7063 = vsel %vm3746, %v6973, 0.0
    %v7064 = vsel %vm3747, %v6972, 0.0
    %v7065 = vsel %vm3748, %v6971, 0.0
    %v7066 = vsel %vm3749, %v6970, 0.0
    %v7067 = vsel %vm3750, %v6969, 0.0
    %v7068 = vsel %vm3751, %v6968, 0.0
    %v7069 = vsel %vm3752, %v6967, 0.0
    %v7070 = vsel %vm3753, %v6966, 0.0
    %v7071 = vsel %vm3754, %v6965, 0.0
    %v7072 = vsel %vm3755, %v6964, 0.0
    %v7073 = vsel %vm3756, %v6963, 0.0
    %v7074 = vsel %vm3757, %v6962, 0.0
    %v7075 = vsel %vm3758, %v6961, 0.0
    %v7076 = vsel %vm3759, %v6960, 0.0
    %v7077 = vsel %vm3760, %v6959, 0.0
    %v7078 = vsel %vm3761, %v6958, 0.0
    %v7079 = vsel %vm3762, %v6957, 0.0
    %v7080 = vsel %vm3763, %v6956, 0.0
    %v7081 = vsel %vm3764, %v6955, 0.0
    %v7082 = vsel %vm3765, %v7018, 0.0
    %v7147 = vrot.slane %v6635, 1
    %v7148 = vrot.slane %v6636, 1
    %v7149 = vsel %vm1146, %v7147, %v7148
    %v7150 = vrot.slane %v6637, 1
    %v7151 = vsel %vm1146, %v7148, %v7150
    %v7152 = vrot.slane %v6638, 1
    %v7153 = vsel %vm1146, %v7150, %v7152
    %v7154 = vrot.slane %v6639, 1
    %v7155 = vsel %vm1146, %v7152, %v7154
    %v7156 = vrot.slane %v6640, 1
    %v7157 = vsel %vm1146, %v7154, %v7156
    %v7158 = vrot.slane %v6641, 1
    %v7159 = vsel %vm1146, %v7156, %v7158
    %v7160 = vrot.slane %v6642, 1
    %v7161 = vsel %vm1146, %v7158, %v7160
    %v7162 = vrot.slane %v6643, 1
    %v7163 = vsel %vm1146, %v7160, %v7162
    %v7164 = vrot.slane %v6644, 1
    %v7165 = vsel %vm1146, %v7162, %v7164
    %v7166 = vrot.slane %v6645, 1
    %v7167 = vsel %vm1146, %v7164, %v7166
    %v7168 = vrot.slane %v6646, 1
    %v7169 = vsel %vm1146, %v7166, %v7168
    %v7170 = vrot.slane %v6647, 1
    %v7171 = vsel %vm1146, %v7168, %v7170
    %v7172 = vrot.slane %v6648, 1
    %v7173 = vsel %vm1146, %v7170, %v7172
    %v7174 = vrot.slane %v6649, 1
    %v7175 = vsel %vm1146, %v7172, %v7174
    %v7176 = vrot.slane %v6650, 1
    %v7177 = vsel %vm1146, %v7174, %v7176
    %v7178 = vrot.slane %v6651, 1
    %v7179 = vsel %vm1146, %v7176, %v7178
    %v7180 = vrot.slane %v6652, 1
    %v7181 = vsel %vm1146, %v7178, %v7180
    %v7182 = vrot.slane %v6653, 1
    %v7183 = vsel %vm1146, %v7180, %v7182
    %v7184 = vrot.slane %v6654, 1
    %v7185 = vsel %vm1146, %v7182, %v7184
    %v7186 = vrot.slane %v6655, 1
    %v7187 = vsel %vm1146, %v7184, %v7186
    %v7188 = vrot.slane %v6656, 1
    %v7189 = vsel %vm1146, %v7186, %v7188
    %v7190 = vrot.slane %v6657, 1
    %v7191 = vsel %vm1146, %v7188, %v7190
    %v7192 = vrot.slane %v6658, 1
    %v7193 = vsel %vm1146, %v7190, %v7192
    %v7194 = vrot.slane %v6659, 1
    %v7195 = vsel %vm1146, %v7192, %v7194
    %v7196 = vrot.slane %v6660, 1
    %v7197 = vsel %vm1146, %v7194, %v7196
    %v7198 = vrot.slane %v6661, 1
    %v7199 = vsel %vm1146, %v7196, %v7198
    %v7200 = vrot.slane %v6662, 1
    %v7201 = vsel %vm1146, %v7198, %v7200
    %v7202 = vrot.slane %v6663, 1
    %v7203 = vsel %vm1146, %v7200, %v7202
    %v7204 = vrot.slane %v6664, 1
    %v7205 = vsel %vm1146, %v7202, %v7204
    %v7206 = vrot.slane %v6665, 1
    %v7207 = vsel %vm1146, %v7204, %v7206
    %v7208 = vrot.slane %v6666, 1
    %v7209 = vsel %vm1146, %v7206, %v7208
    %v7210 = vrot.slane %v6667, 1
    %v7211 = vsel %vm1146, %v7208, %v7210
    %v7212 = vrot.slane %v6668, 1
    %v7213 = vsel %vm1146, %v7210, %v7212
    %v7214 = vrot.slane %v6669, 1
    %v7215 = vsel %vm1146, %v7212, %v7214
    %v7216 = vrot.slane %v6670, 1
    %v7217 = vsel %vm1146, %v7214, %v7216
    %v7218 = vrot.slane %v6671, 1
    %v7219 = vsel %vm1146, %v7216, %v7218
    %v7220 = vrot.slane %v6672, 1
    %v7221 = vsel %vm1146, %v7218, %v7220
    %v7222 = vrot.slane %v6673, 1
    %v7223 = vsel %vm1146, %v7220, %v7222
    %v7224 = vrot.slane %v6674, 1
    %v7225 = vsel %vm1146, %v7222, %v7224
    %v7226 = vrot.slane %v6675, 1
    %v7227 = vsel %vm1146, %v7224, %v7226
    %v7228 = vrot.slane %v6676, 1
    %v7229 = vsel %vm1146, %v7226, %v7228
    %v7230 = vrot.slane %v6677, 1
    %v7231 = vsel %vm1146, %v7228, %v7230
    %v7232 = vrot.slane %v6678, 1
    %v7233 = vsel %vm1146, %v7230, %v7232
    %v7234 = vrot.slane %v6679, 1
    %v7235 = vsel %vm1146, %v7232, %v7234
    %v7236 = vrot.slane %v6680, 1
    %v7237 = vsel %vm1146, %v7234, %v7236
    %v7238 = vrot.slane %v6681, 1
    %v7239 = vsel %vm1146, %v7236, %v7238
    %v7240 = vrot.slane %v6682, 1
    %v7241 = vsel %vm1146, %v7238, %v7240
    %v7242 = vrot.slane %v6683, 1
    %v7243 = vsel %vm1146, %v7240, %v7242
    %v7244 = vrot.slane %v6684, 1
    %v7245 = vsel %vm1146, %v7242, %v7244
    %v7246 = vrot.slane %v6685, 1
    %v7247 = vsel %vm1146, %v7244, %v7246
    %v7248 = vrot.slane %v6686, 1
    %v7249 = vsel %vm1146, %v7246, %v7248
    %v7250 = vrot.slane %v6687, 1
    %v7251 = vsel %vm1146, %v7248, %v7250
    %v7252 = vrot.slane %v6688, 1
    %v7253 = vsel %vm1146, %v7250, %v7252
    %v7254 = vrot.slane %v6689, 1
    %v7255 = vsel %vm1146, %v7252, %v7254
    %v7256 = vrot.slane %v6690, 1
    %v7257 = vsel %vm1146, %v7254, %v7256
    %v7258 = vrot.slane %v6691, 1
    %v7259 = vsel %vm1146, %v7256, %v7258
    %v7260 = vrot.slane %v6692, 1
    %v7261 = vsel %vm1146, %v7258, %v7260
    %v7262 = vrot.slane %v6693, 1
    %v7263 = vsel %vm1146, %v7260, %v7262
    %v7264 = vrot.slane %v6694, 1
    %v7265 = vsel %vm1146, %v7262, %v7264
    %v7266 = vrot.slane %v6695, 1
    %v7267 = vsel %vm1146, %v7264, %v7266
    %v7268 = vrot.slane %v6696, 1
    %v7269 = vsel %vm1146, %v7266, %v7268
    %v7270 = vrot.slane %v6697, 1
    %v7271 = vsel %vm1146, %v7268, %v7270
    %v7272 = vrot.slane %v6698, 1
    %v7273 = vsel %vm1146, %v7270, %v7272
    %v7338 = vmax.f32 %v6635, %v7149
    %v7339 = vmax.f32 %v6636, %v7151
    %v7340 = vmax.f32 %v6637, %v7153
    %v7341 = vmax.f32 %v6638, %v7155
    %v7342 = vmax.f32 %v6639, %v7157
    %v7343 = vmax.f32 %v6640, %v7159
    %v7344 = vmax.f32 %v6641, %v7161
    %v7345 = vmax.f32 %v6642, %v7163
    %v7346 = vmax.f32 %v6643, %v7165
    %v7347 = vmax.f32 %v6644, %v7167
    %v7348 = vmax.f32 %v6645, %v7169
    %v7349 = vmax.f32 %v6646, %v7171
    %v7350 = vmax.f32 %v6647, %v7173
    %v7351 = vmax.f32 %v6648, %v7175
    %v7352 = vmax.f32 %v6649, %v7177
    %v7353 = vmax.f32 %v6650, %v7179
    %v7354 = vmax.f32 %v6651, %v7181
    %v7355 = vmax.f32 %v6652, %v7183
    %v7356 = vmax.f32 %v6653, %v7185
    %v7357 = vmax.f32 %v6654, %v7187
    %v7358 = vmax.f32 %v6655, %v7189
    %v7359 = vmax.f32 %v6656, %v7191
    %v7360 = vmax.f32 %v6657, %v7193
    %v7361 = vmax.f32 %v6658, %v7195
    %v7362 = vmax.f32 %v6659, %v7197
    %v7363 = vmax.f32 %v6660, %v7199
    %v7364 = vmax.f32 %v6661, %v7201
    %v7365 = vmax.f32 %v6662, %v7203
    %v7366 = vmax.f32 %v6663, %v7205
    %v7367 = vmax.f32 %v6664, %v7207
    %v7368 = vmax.f32 %v6665, %v7209
    %v7369 = vmax.f32 %v6666, %v7211
    %v7370 = vmax.f32 %v6667, %v7213
    %v7371 = vmax.f32 %v6668, %v7215
    %v7372 = vmax.f32 %v6669, %v7217
    %v7373 = vmax.f32 %v6670, %v7219
    %v7374 = vmax.f32 %v6671, %v7221
    %v7375 = vmax.f32 %v6672, %v7223
    %v7376 = vmax.f32 %v6673, %v7225
    %v7377 = vmax.f32 %v6674, %v7227
    %v7378 = vmax.f32 %v6675, %v7229
    %v7379 = vmax.f32 %v6676, %v7231
    %v7380 = vmax.f32 %v6677, %v7233
    %v7381 = vmax.f32 %v6678, %v7235
    %v7382 = vmax.f32 %v6679, %v7237
    %v7383 = vmax.f32 %v6680, %v7239
    %v7384 = vmax.f32 %v6681, %v7241
    %v7385 = vmax.f32 %v6682, %v7243
    %v7386 = vmax.f32 %v6683, %v7245
    %v7387 = vmax.f32 %v6684, %v7247
    %v7388 = vmax.f32 %v6685, %v7249
    %v7389 = vmax.f32 %v6686, %v7251
    %v7390 = vmax.f32 %v6687, %v7253
    %v7391 = vmax.f32 %v6688, %v7255
    %v7392 = vmax.f32 %v6689, %v7257
    %v7393 = vmax.f32 %v6690, %v7259
    %v7394 = vmax.f32 %v6691, %v7261
    %v7395 = vmax.f32 %v6692, %v7263
    %v7396 = vmax.f32 %v6693, %v7265
    %v7397 = vmax.f32 %v6694, %v7267
    %v7398 = vmax.f32 %v6695, %v7269
    %v7399 = vmax.f32 %v6696, %v7271
    %v7400 = vmax.f32 %v6697, %v7273
    %v7401 = vmax.f32 %v6698, %v7272
    %v7402 = vmax.f32 %v6827, %v7019
    %v7403 = vmax.f32 %v6828, %v7020
    %v7404 = vmax.f32 %v6829, %v7021
    %v7405 = vmax.f32 %v6830, %v7022
    %v7406 = vmax.f32 %v6831, %v7023
    %v7407 = vmax.f32 %v6832, %v7024
    %v7408 = vmax.f32 %v6833, %v7025
    %v7409 = vmax.f32 %v6834, %v7026
    %v7410 = vmax.f32 %v6835, %v7027
    %v7411 = vmax.f32 %v6836, %v7028
    %v7412 = vmax.f32 %v6837, %v7029
    %v7413 = vmax.f32 %v6838, %v7030
    %v7414 = vmax.f32 %v6839, %v7031
    %v7415 = vmax.f32 %v6840, %v7032
    %v7416 = vmax.f32 %v6841, %v7033
    %v7417 = vmax.f32 %v6842, %v7034
    %v7418 = vmax.f32 %v6843, %v7035
    %v7419 = vmax.f32 %v6844, %v7036
    %v7420 = vmax.f32 %v6845, %v7037
    %v7421 = vmax.f32 %v6846, %v7038
    %v7422 = vmax.f32 %v6847, %v7039
    %v7423 = vmax.f32 %v6848, %v7040
    %v7424 = vmax.f32 %v6849, %v7041
    %v7425 = vmax.f32 %v6850, %v7042
    %v7426 = vmax.f32 %v6851, %v7043
    %v7427 = vmax.f32 %v6852, %v7044
    %v7428 = vmax.f32 %v6853, %v7045
    %v7429 = vmax.f32 %v6854, %v7046
    %v7430 = vmax.f32 %v6855, %v7047
    %v7431 = vmax.f32 %v6856, %v7048
    %v7432 = vmax.f32 %v6857, %v7049
    %v7433 = vmax.f32 %v6858, %v7050
    %v7434 = vmax.f32 %v6859, %v7051
    %v7435 = vmax.f32 %v6860, %v7052
    %v7436 = vmax.f32 %v6861, %v7053
    %v7437 = vmax.f32 %v6862, %v7054
    %v7438 = vmax.f32 %v6863, %v7055
    %v7439 = vmax.f32 %v6864, %v7056
    %v7440 = vmax.f32 %v6865, %v7057
    %v7441 = vmax.f32 %v6866, %v7058
    %v7442 = vmax.f32 %v6867, %v7059
    %v7443 = vmax.f32 %v6868, %v7060
    %v7444 = vmax.f32 %v6869, %v7061
    %v7445 = vmax.f32 %v6870, %v7062
    %v7446 = vmax.f32 %v6871, %v7063
    %v7447 = vmax.f32 %v6872, %v7064
    %v7448 = vmax.f32 %v6873, %v7065
    %v7449 = vmax.f32 %v6874, %v7066
    %v7450 = vmax.f32 %v6875, %v7067
    %v7451 = vmax.f32 %v6876, %v7068
    %v7452 = vmax.f32 %v6877, %v7069
    %v7453 = vmax.f32 %v6878, %v7070
    %v7454 = vmax.f32 %v6879, %v7071
    %v7455 = vmax.f32 %v6880, %v7072
    %v7456 = vmax.f32 %v6881, %v7073
    %v7457 = vmax.f32 %v6882, %v7074
    %v7458 = vmax.f32 %v6883, %v7075
    %v7459 = vmax.f32 %v6884, %v7076
    %v7460 = vmax.f32 %v6885, %v7077
    %v7461 = vmax.f32 %v6886, %v7078
    %v7462 = vmax.f32 %v6887, %v7079
    %v7463 = vmax.f32 %v6888, %v7080
    %v7464 = vmax.f32 %v6889, %v7081
    %v7465 = vmax.f32 %v6890, %v7082
    %v7466 = vmax.f32 %v7338, %v7402
    %v7467 = vmax.f32 %v7339, %v7403
    %v7468 = vmax.f32 %v7340, %v7404
    %v7469 = vmax.f32 %v7341, %v7405
    %v7470 = vmax.f32 %v7342, %v7406
    %v7471 = vmax.f32 %v7343, %v7407
    %v7472 = vmax.f32 %v7344, %v7408
    %v7473 = vmax.f32 %v7345, %v7409
    %v7474 = vmax.f32 %v7346, %v7410
    %v7475 = vmax.f32 %v7347, %v7411
    %v7476 = vmax.f32 %v7348, %v7412
    %v7477 = vmax.f32 %v7349, %v7413
    %v7478 = vmax.f32 %v7350, %v7414
    %v7479 = vmax.f32 %v7351, %v7415
    %v7480 = vmax.f32 %v7352, %v7416
    %v7481 = vmax.f32 %v7353, %v7417
    %v7482 = vmax.f32 %v7354, %v7418
    %v7483 = vmax.f32 %v7355, %v7419
    %v7484 = vmax.f32 %v7356, %v7420
    %v7485 = vmax.f32 %v7357, %v7421
    %v7486 = vmax.f32 %v7358, %v7422
    %v7487 = vmax.f32 %v7359, %v7423
    %v7488 = vmax.f32 %v7360, %v7424
    %v7489 = vmax.f32 %v7361, %v7425
    %v7490 = vmax.f32 %v7362, %v7426
    %v7491 = vmax.f32 %v7363, %v7427
    %v7492 = vmax.f32 %v7364, %v7428
    %v7493 = vmax.f32 %v7365, %v7429
    %v7494 = vmax.f32 %v7366, %v7430
    %v7495 = vmax.f32 %v7367, %v7431
    %v7496 = vmax.f32 %v7368, %v7432
    %v7497 = vmax.f32 %v7369, %v7433
    %v7498 = vmax.f32 %v7370, %v7434
    %v7499 = vmax.f32 %v7371, %v7435
    %v7500 = vmax.f32 %v7372, %v7436
    %v7501 = vmax.f32 %v7373, %v7437
    %v7502 = vmax.f32 %v7374, %v7438
    %v7503 = vmax.f32 %v7375, %v7439
    %v7504 = vmax.f32 %v7376, %v7440
    %v7505 = vmax.f32 %v7377, %v7441
    %v7506 = vmax.f32 %v7378, %v7442
    %v7507 = vmax.f32 %v7379, %v7443
    %v7508 = vmax.f32 %v7380, %v7444
    %v7509 = vmax.f32 %v7381, %v7445
    %v7510 = vmax.f32 %v7382, %v7446
    %v7511 = vmax.f32 %v7383, %v7447
    %v7512 = vmax.f32 %v7384, %v7448
    %v7513 = vmax.f32 %v7385, %v7449
    %v7514 = vmax.f32 %v7386, %v7450
    %v7515 = vmax.f32 %v7387, %v7451
    %v7516 = vmax.f32 %v7388, %v7452
    %v7517 = vmax.f32 %v7389, %v7453
    %v7518 = vmax.f32 %v7390, %v7454
    %v7519 = vmax.f32 %v7391, %v7455
    %v7520 = vmax.f32 %v7392, %v7456
    %v7521 = vmax.f32 %v7393, %v7457
    %v7522 = vmax.f32 %v7394, %v7458
    %v7523 = vmax.f32 %v7395, %v7459
    %v7524 = vmax.f32 %v7396, %v7460
    %v7525 = vmax.f32 %v7397, %v7461
    %v7526 = vmax.f32 %v7398, %v7462
    %v7527 = vmax.f32 %v7399, %v7463
    %v7528 = vmax.f32 %v7400, %v7464
    %v7529 = vmax.f32 %v7401, %v7465
    %v7531 = vsel %vm1146, %v7529, 0
    %7533 = vmatprep.subr.mxu0 0.0
    %7534 = vmatpush1.msra.mxu0 %v7481
    %7535 = vmatprep.subr.mxu0 0.0
    %7536 = vmatpush1.msra.mxu0 %v7480
    %7537 = vmatprep.subr.mxu0 0.0
    %7538 = vmatpush1.msra.mxu0 %v7479
    %7539 = vmatprep.subr.mxu0 0.0
    %7540 = vmatpush1.msra.mxu0 %v7478
    %7541 = vmatprep.subr.mxu0 0.0
    %7542 = vmatpush1.msra.mxu0 %v7477
    %7543 = vmatprep.subr.mxu0 0.0
    %7544 = vmatpush1.msra.mxu0 %v7476
    %7545 = vmatprep.subr.mxu0 0.0
    %7546 = vmatpush1.msra.mxu0 %v7475
    %7547 = vmatprep.subr.mxu0 0.0
    %7548 = vmatpush1.msra.mxu0 %v7474
    %7549 = vmatprep.subr.mxu0 0.0
    %7550 = vmatpush1.msra.mxu0 %v7473
    %7551 = vmatprep.subr.mxu0 0.0
    %7552 = vmatpush1.msra.mxu0 %v7472
    %7553 = vmatprep.subr.mxu0 0.0
    %7554 = vmatpush1.msra.mxu0 %v7471
    %7555 = vmatprep.subr.mxu0 0.0
    %7556 = vmatpush1.msra.mxu0 %v7470
    %7557 = vmatprep.subr.mxu0 0.0
    %7558 = vmatpush1.msra.mxu0 %v7469
    %7559 = vmatprep.subr.mxu0 0.0
    %7560 = vmatpush1.msra.mxu0 %v7468
    %7561 = vmatprep.subr.mxu0 0.0
    %7562 = vmatpush1.msra.mxu0 %v7467
    %7563 = vmatprep.subr.mxu0 0.0
    %7564 = vmatpush1.msra.mxu0 %v7466
    %7565 = vmatprep.subr.mxu0 0.0
    %7566 = vmatpush2.msra.mxu0 %v7497
    %7567 = vmatprep.subr.mxu0 0.0
    %7568 = vmatpush2.msra.mxu0 %v7496
    %7569 = vmatprep.subr.mxu0 0.0
    %7570 = vmatpush2.msra.mxu0 %v7495
    %7571 = vmatprep.subr.mxu0 0.0
    %7572 = vmatpush2.msra.mxu0 %v7494
    %7573 = vmatprep.subr.mxu0 0.0
    %7574 = vmatpush2.msra.mxu0 %v7493
    %7575 = vmatprep.subr.mxu0 0.0
    %7576 = vmatpush2.msra.mxu0 %v7492
    %7577 = vmatprep.subr.mxu0 0.0
    %7578 = vmatpush2.msra.mxu0 %v7491
    %7579 = vmatprep.subr.mxu0 0.0
    %7580 = vmatpush2.msra.mxu0 %v7490
    %7581 = vmatprep.subr.mxu0 0.0
    %7582 = vmatpush2.msra.mxu0 %v7489
    %7583 = vmatprep.subr.mxu0 0.0
    %7584 = vmatpush2.msra.mxu0 %v7488
    %7585 = vmatprep.subr.mxu0 0.0
    %7586 = vmatpush2.msra.mxu0 %v7487
    %7587 = vmatprep.subr.mxu0 0.0
    %7588 = vmatpush2.msra.mxu0 %v7486
    %7589 = vmatprep.subr.mxu0 0.0
    %7590 = vmatpush2.msra.mxu0 %v7485
    %7591 = vmatprep.subr.mxu0 0.0
    %7592 = vmatpush2.msra.mxu0 %v7484
    %7593 = vmatprep.subr.mxu0 0.0
    %7594 = vmatpush2.msra.mxu0 %v7483
    %7595 = vmatprep.subr.mxu0 0.0
    %7596 = vmatpush2.msra.mxu0 %v7482
    %7597 = vmatprep.mubr.f32.mxu0 %v4963
    %7598 = vmatmul.mubr.f32.gmra.mxu0 %v4962
    %v7599 = vpop.f32.mrf.mxu0
    %v7600 = vadd.f32 0.0, %v7599
    %v7601 = vpop.f32.mrf.mxu0
    %7602 = vmatprep.mubr.f32.mxu0 %v4967
    %7603 = vmatmul.mubr.f32.gmra.mxu0 %v4966
    %v7604 = vpop.f32.mrf.mxu0
    %v7605 = vadd.f32 0.0, %v7604
    %v7606 = vpop.f32.mrf.mxu0
    %7607 = vmatprep.mubr.f32.mxu0 %v4971
    %7608 = vmatmul.mubr.f32.gmra.mxu0 %v4970
    %v7609 = vpop.f32.mrf.mxu0
    %v7610 = vadd.f32 0.0, %v7609
    %v7611 = vpop.f32.mrf.mxu0
    %7612 = vmatprep.mubr.f32.mxu0 %v4975
    %7613 = vmatmul.mubr.f32.gmra.mxu0 %v4974
    %v7614 = vpop.f32.mrf.mxu0
    %v7615 = vadd.f32 0.0, %v7614
    %v7616 = vpop.f32.mrf.mxu0
    %7617 = vmatprep.mubr.f32.mxu0 %v4979
    %7618 = vmatmul.mubr.f32.gmra.mxu0 %v4978
    %v7619 = vpop.f32.mrf.mxu0
    %v7620 = vadd.f32 0.0, %v7619
    %v7621 = vpop.f32.mrf.mxu0
    %7622 = vmatprep.mubr.f32.mxu0 %v4983
    %7623 = vmatmul.mubr.f32.gmra.mxu0 %v4982
    %v7624 = vpop.f32.mrf.mxu0
    %v7625 = vadd.f32 0.0, %v7624
    %v7626 = vpop.f32.mrf.mxu0
    %7627 = vmatprep.mubr.f32.mxu0 %v4987
    %7628 = vmatmul.mubr.f32.gmra.mxu0 %v4986
    %v7629 = vpop.f32.mrf.mxu0
    %v7630 = vadd.f32 0.0, %v7629
    %v7631 = vpop.f32.mrf.mxu0
    %7632 = vmatprep.mubr.f32.mxu0 %v4991
    %7633 = vmatmul.mubr.f32.gmra.mxu0 %v4990
    %v7634 = vpop.f32.mrf.mxu0
    %v7635 = vadd.f32 0.0, %v7634
    %v7636 = vpop.f32.mrf.mxu0
    %7637 = vmatprep.mubr.f32.mxu0 %v4995
    %7638 = vmatmul.mubr.f32.gmra.mxu0 %v4994
    %v7639 = vpop.f32.mrf.mxu0
    %v7640 = vadd.f32 0.0, %v7639
    %v7641 = vpop.f32.mrf.mxu0
    %7642 = vdwg.mxu0
    %7643 = vmatprep.subr.mxu0 0.0
    %7644 = vmatpush1.msra.mxu0 %v7513
    %7645 = vmatprep.subr.mxu0 0.0
    %7646 = vmatpush1.msra.mxu0 %v7512
    %7647 = vmatprep.subr.mxu0 0.0
    %7648 = vmatpush1.msra.mxu0 %v7511
    %7649 = vmatprep.subr.mxu0 0.0
    %7650 = vmatpush1.msra.mxu0 %v7510
    %7651 = vmatprep.subr.mxu0 0.0
    %7652 = vmatpush1.msra.mxu0 %v7509
    %7653 = vmatprep.subr.mxu0 0.0
    %7654 = vmatpush1.msra.mxu0 %v7508
    %7655 = vmatprep.subr.mxu0 0.0
    %7656 = vmatpush1.msra.mxu0 %v7507
    %7657 = vmatprep.subr.mxu0 0.0
    %7658 = vmatpush1.msra.mxu0 %v7506
    %7659 = vmatprep.subr.mxu0 0.0
    %7660 = vmatpush1.msra.mxu0 %v7505
    %7661 = vmatprep.subr.mxu0 0.0
    %7662 = vmatpush1.msra.mxu0 %v7504
    %7663 = vmatprep.subr.mxu0 0.0
    %7664 = vmatpush1.msra.mxu0 %v7503
    %7665 = vmatprep.subr.mxu0 0.0
    %7666 = vmatpush1.msra.mxu0 %v7502
    %7667 = vmatprep.subr.mxu0 0.0
    %7668 = vmatpush1.msra.mxu0 %v7501
    %7669 = vmatprep.subr.mxu0 0.0
    %7670 = vmatpush1.msra.mxu0 %v7500
    %7671 = vmatprep.subr.mxu0 0.0
    %7672 = vmatpush1.msra.mxu0 %v7499
    %7673 = vmatprep.subr.mxu0 0.0
    %7674 = vmatpush1.msra.mxu0 %v7498
    %7675 = vmatprep.subr.mxu0 0.0
    %7676 = vmatpush2.msra.mxu0 %v7531
    %7677 = vmatprep.subr.mxu0 0.0
    %7678 = vmatpush2.msra.mxu0 %v7528
    %7679 = vmatprep.subr.mxu0 0.0
    %7680 = vmatpush2.msra.mxu0 %v7527
    %7681 = vmatprep.subr.mxu0 0.0
    %7682 = vmatpush2.msra.mxu0 %v7526
    %7683 = vmatprep.subr.mxu0 0.0
    %7684 = vmatpush2.msra.mxu0 %v7525
    %7685 = vmatprep.subr.mxu0 0.0
    %7686 = vmatpush2.msra.mxu0 %v7524
    %7687 = vmatprep.subr.mxu0 0.0
    %7688 = vmatpush2.msra.mxu0 %v7523
    %7689 = vmatprep.subr.mxu0 0.0
    %7690 = vmatpush2.msra.mxu0 %v7522
    %7691 = vmatprep.subr.mxu0 0.0
    %7692 = vmatpush2.msra.mxu0 %v7521
    %7693 = vmatprep.subr.mxu0 0.0
    %7694 = vmatpush2.msra.mxu0 %v7520
    %7695 = vmatprep.subr.mxu0 0.0
    %7696 = vmatpush2.msra.mxu0 %v7519
    %7697 = vmatprep.subr.mxu0 0.0
    %7698 = vmatpush2.msra.mxu0 %v7518
    %7699 = vmatprep.subr.mxu0 0.0
    %7700 = vmatpush2.msra.mxu0 %v7517
    %7701 = vmatprep.subr.mxu0 0.0
    %7702 = vmatpush2.msra.mxu0 %v7516
    %7703 = vmatprep.subr.mxu0 0.0
    %7704 = vmatpush2.msra.mxu0 %v7515
    %7705 = vmatprep.subr.mxu0 0.0
    %7706 = vmatpush2.msra.mxu0 %v7514
    %7707 = vmatprep.mubr.f32.mxu0 %v5342
    %7708 = vmatmul.mubr.f32.gmra.mxu0 %v4964
    %v7709 = vpop.f32.mrf.mxu0
    %v7710 = vadd.f32 %v7600, %v7709
    %v7711 = vpop.f32.mrf.mxu0
    %7712 = vmatprep.mubr.f32.mxu0 %v5345
    %7713 = vmatmul.mubr.f32.gmra.mxu0 %v4968
    %v7714 = vpop.f32.mrf.mxu0
    %v7715 = vadd.f32 %v7605, %v7714
    %v7716 = vpop.f32.mrf.mxu0
    %7717 = vmatprep.mubr.f32.mxu0 %v5348
    %7718 = vmatmul.mubr.f32.gmra.mxu0 %v4972
    %v7719 = vpop.f32.mrf.mxu0
    %v7720 = vadd.f32 %v7610, %v7719
    %v7721 = vpop.f32.mrf.mxu0
    %7722 = vmatprep.mubr.f32.mxu0 %v5351
    %7723 = vmatmul.mubr.f32.gmra.mxu0 %v4976
    %v7724 = vpop.f32.mrf.mxu0
    %v7725 = vadd.f32 %v7615, %v7724
    %v7726 = vpop.f32.mrf.mxu0
    %7727 = vmatprep.mubr.f32.mxu0 %v5354
    %7728 = vmatmul.mubr.f32.gmra.mxu0 %v4980
    %v7729 = vpop.f32.mrf.mxu0
    %v7730 = vadd.f32 %v7620, %v7729
    %v7731 = vpop.f32.mrf.mxu0
    %7732 = vmatprep.mubr.f32.mxu0 %v5357
    %7733 = vmatmul.mubr.f32.gmra.mxu0 %v4984
    %v7734 = vpop.f32.mrf.mxu0
    %v7735 = vadd.f32 %v7625, %v7734
    %v7736 = vpop.f32.mrf.mxu0
    %7737 = vmatprep.mubr.f32.mxu0 %v5360
    %7738 = vmatmul.mubr.f32.gmra.mxu0 %v4988
    %v7739 = vpop.f32.mrf.mxu0
    %v7740 = vadd.f32 %v7630, %v7739
    %v7741 = vpop.f32.mrf.mxu0
    %7742 = vmatprep.mubr.f32.mxu0 %v5363
    %7743 = vmatmul.mubr.f32.gmra.mxu0 %v4992
    %v7744 = vpop.f32.mrf.mxu0
    %v7745 = vadd.f32 %v7635, %v7744
    %v7746 = vpop.f32.mrf.mxu0
    %7747 = vmatprep.mubr.f32.mxu0 %v5366
    %7748 = vmatmul.mubr.f32.gmra.mxu0 %v4996
    %v7749 = vpop.f32.mrf.mxu0
    %v7750 = vadd.f32 %v7640, %v7749
    %v7751 = vpop.f32.mrf.mxu0
    %7752 = vdwg.mxu0
    %s7753 = scalar_lea.vmem [#allocation3], 144
    %7754 = vst.msk [vmem:[%s7753] sm:$0xff] %vm1404, %v7710
    %7755 = vst.msk [vmem:[%s7753 + $0x10] sm:$0xff] %vm1404, %v7715
    %7756 = vst.msk [vmem:[%s7753 + $0x20] sm:$0xff] %vm1404, %v7720
    %7757 = vst.msk [vmem:[%s7753 + $0x30] sm:$0xff] %vm1404, %v7725
    %7758 = vst.msk [vmem:[%s7753 + $0x40] sm:$0xff] %vm1404, %v7730
    %7759 = vst.msk [vmem:[%s7753 + $0x50] sm:$0xff] %vm1404, %v7735
    %7760 = vst.msk [vmem:[%s7753 + $0x60] sm:$0xff] %vm1404, %v7740
    %7761 = vst.msk [vmem:[%s7753 + $0x70] sm:$0xff] %vm1404, %v7745
    %7762 = vst.msk [vmem:[%s7753 + $0x80] sm:$0x1] %vm5599, %v7750
    %7763 = vmatprep.subr.mxu0 0.0
    %7764 = vmatpush1.msra.mxu0 %v7481
    %7765 = vmatprep.subr.mxu0 0.0
    %7766 = vmatpush1.msra.mxu0 %v7480
    %7767 = vmatprep.subr.mxu0 0.0
    %7768 = vmatpush1.msra.mxu0 %v7479
    %7769 = vmatprep.subr.mxu0 0.0
    %7770 = vmatpush1.msra.mxu0 %v7478
    %7771 = vmatprep.subr.mxu0 0.0
    %7772 = vmatpush1.msra.mxu0 %v7477
    %7773 = vmatprep.subr.mxu0 0.0
    %7774 = vmatpush1.msra.mxu0 %v7476
    %7775 = vmatprep.subr.mxu0 0.0
    %7776 = vmatpush1.msra.mxu0 %v7475
    %7777 = vmatprep.subr.mxu0 0.0
    %7778 = vmatpush1.msra.mxu0 %v7474
    %7779 = vmatprep.subr.mxu0 0.0
    %7780 = vmatpush1.msra.mxu0 %v7473
    %7781 = vmatprep.subr.mxu0 0.0
    %7782 = vmatpush1.msra.mxu0 %v7472
    %7783 = vmatprep.subr.mxu0 0.0
    %7784 = vmatpush1.msra.mxu0 %v7471
    %7785 = vmatprep.subr.mxu0 0.0
    %7786 = vmatpush1.msra.mxu0 %v7470
    %7787 = vmatprep.subr.mxu0 0.0
    %7788 = vmatpush1.msra.mxu0 %v7469
    %7789 = vmatprep.subr.mxu0 0.0
    %7790 = vmatpush1.msra.mxu0 %v7468
    %7791 = vmatprep.subr.mxu0 0.0
    %7792 = vmatpush1.msra.mxu0 %v7467
    %7793 = vmatprep.subr.mxu0 0.0
    %7794 = vmatpush1.msra.mxu0 %v7466
    %7795 = vmatprep.subr.mxu0 0.0
    %7796 = vmatpush2.msra.mxu0 %v7497
    %7797 = vmatprep.subr.mxu0 0.0
    %7798 = vmatpush2.msra.mxu0 %v7496
    %7799 = vmatprep.subr.mxu0 0.0
    %7800 = vmatpush2.msra.mxu0 %v7495
    %7801 = vmatprep.subr.mxu0 0.0
    %7802 = vmatpush2.msra.mxu0 %v7494
    %7803 = vmatprep.subr.mxu0 0.0
    %7804 = vmatpush2.msra.mxu0 %v7493
    %7805 = vmatprep.subr.mxu0 0.0
    %7806 = vmatpush2.msra.mxu0 %v7492
    %7807 = vmatprep.subr.mxu0 0.0
    %7808 = vmatpush2.msra.mxu0 %v7491
    %7809 = vmatprep.subr.mxu0 0.0
    %7810 = vmatpush2.msra.mxu0 %v7490
    %7811 = vmatprep.subr.mxu0 0.0
    %7812 = vmatpush2.msra.mxu0 %v7489
    %7813 = vmatprep.subr.mxu0 0.0
    %7814 = vmatpush2.msra.mxu0 %v7488
    %7815 = vmatprep.subr.mxu0 0.0
    %7816 = vmatpush2.msra.mxu0 %v7487
    %7817 = vmatprep.subr.mxu0 0.0
    %7818 = vmatpush2.msra.mxu0 %v7486
    %7819 = vmatprep.subr.mxu0 0.0
    %7820 = vmatpush2.msra.mxu0 %v7485
    %7821 = vmatprep.subr.mxu0 0.0
    %7822 = vmatpush2.msra.mxu0 %v7484
    %7823 = vmatprep.subr.mxu0 0.0
    %7824 = vmatpush2.msra.mxu0 %v7483
    %7825 = vmatprep.subr.mxu0 0.0
    %7826 = vmatpush2.msra.mxu0 %v7482
    %7827 = vmatprep.mubr.f32.mxu0 %v5080
    %7828 = vmatmul.mubr.f32.gmra.mxu0 %v5079
    %v7829 = vpop.f32.mrf.mxu0
    %v7830 = vadd.f32 0.0, %v7829
    %v7831 = vpop.f32.mrf.mxu0
    %7832 = vmatprep.mubr.f32.mxu0 %v5084
    %7833 = vmatmul.mubr.f32.gmra.mxu0 %v5083
    %v7834 = vpop.f32.mrf.mxu0
    %v7835 = vadd.f32 0.0, %v7834
    %v7836 = vpop.f32.mrf.mxu0
    %7837 = vmatprep.mubr.f32.mxu0 %v5088
    %7838 = vmatmul.mubr.f32.gmra.mxu0 %v5087
    %v7839 = vpop.f32.mrf.mxu0
    %v7840 = vadd.f32 0.0, %v7839
    %v7841 = vpop.f32.mrf.mxu0
    %7842 = vmatprep.mubr.f32.mxu0 %v5092
    %7843 = vmatmul.mubr.f32.gmra.mxu0 %v5091
    %v7844 = vpop.f32.mrf.mxu0
    %v7845 = vadd.f32 0.0, %v7844
    %v7846 = vpop.f32.mrf.mxu0
    %7847 = vmatprep.mubr.f32.mxu0 %v5096
    %7848 = vmatmul.mubr.f32.gmra.mxu0 %v5095
    %v7849 = vpop.f32.mrf.mxu0
    %v7850 = vadd.f32 0.0, %v7849
    %v7851 = vpop.f32.mrf.mxu0
    %7852 = vmatprep.mubr.f32.mxu0 %v5100
    %7853 = vmatmul.mubr.f32.gmra.mxu0 %v5099
    %v7854 = vpop.f32.mrf.mxu0
    %v7855 = vadd.f32 0.0, %v7854
    %v7856 = vpop.f32.mrf.mxu0
    %7857 = vmatprep.mubr.f32.mxu0 %v5104
    %7858 = vmatmul.mubr.f32.gmra.mxu0 %v5103
    %v7859 = vpop.f32.mrf.mxu0
    %v7860 = vadd.f32 0.0, %v7859
    %v7861 = vpop.f32.mrf.mxu0
    %7862 = vmatprep.mubr.f32.mxu0 %v5108
    %7863 = vmatmul.mubr.f32.gmra.mxu0 %v5107
    %v7864 = vpop.f32.mrf.mxu0
    %v7865 = vadd.f32 0.0, %v7864
    %v7866 = vpop.f32.mrf.mxu0
    %7867 = vmatprep.mubr.f32.mxu0 %v5112
    %7868 = vmatmul.mubr.f32.gmra.mxu0 %v5111
    %v7869 = vpop.f32.mrf.mxu0
    %v7870 = vadd.f32 0.0, %v7869
    %v7871 = vpop.f32.mrf.mxu0
    %7872 = vdwg.mxu0
    %7873 = vmatprep.subr.mxu0 0.0
    %7874 = vmatpush1.msra.mxu0 %v7513
    %7875 = vmatprep.subr.mxu0 0.0
    %7876 = vmatpush1.msra.mxu0 %v7512
    %7877 = vmatprep.subr.mxu0 0.0
    %7878 = vmatpush1.msra.mxu0 %v7511
    %7879 = vmatprep.subr.mxu0 0.0
    %7880 = vmatpush1.msra.mxu0 %v7510
    %7881 = vmatprep.subr.mxu0 0.0
    %7882 = vmatpush1.msra.mxu0 %v7509
    %7883 = vmatprep.subr.mxu0 0.0
    %7884 = vmatpush1.msra.mxu0 %v7508
    %7885 = vmatprep.subr.mxu0 0.0
    %7886 = vmatpush1.msra.mxu0 %v7507
    %7887 = vmatprep.subr.mxu0 0.0
    %7888 = vmatpush1.msra.mxu0 %v7506
    %7889 = vmatprep.subr.mxu0 0.0
    %7890 = vmatpush1.msra.mxu0 %v7505
    %7891 = vmatprep.subr.mxu0 0.0
    %7892 = vmatpush1.msra.mxu0 %v7504
    %7893 = vmatprep.subr.mxu0 0.0
    %7894 = vmatpush1.msra.mxu0 %v7503
    %7895 = vmatprep.subr.mxu0 0.0
    %7896 = vmatpush1.msra.mxu0 %v7502
    %7897 = vmatprep.subr.mxu0 0.0
    %7898 = vmatpush1.msra.mxu0 %v7501
    %7899 = vmatprep.subr.mxu0 0.0
    %7900 = vmatpush1.msra.mxu0 %v7500
    %7901 = vmatprep.subr.mxu0 0.0
    %7902 = vmatpush1.msra.mxu0 %v7499
    %7903 = vmatprep.subr.mxu0 0.0
    %7904 = vmatpush1.msra.mxu0 %v7498
    %7905 = vmatprep.subr.mxu0 0.0
    %7906 = vmatpush2.msra.mxu0 %v7531
    %7907 = vmatprep.subr.mxu0 0.0
    %7908 = vmatpush2.msra.mxu0 %v7528
    %7909 = vmatprep.subr.mxu0 0.0
    %7910 = vmatpush2.msra.mxu0 %v7527
    %7911 = vmatprep.subr.mxu0 0.0
    %7912 = vmatpush2.msra.mxu0 %v7526
    %7913 = vmatprep.subr.mxu0 0.0
    %7914 = vmatpush2.msra.mxu0 %v7525
    %7915 = vmatprep.subr.mxu0 0.0
    %7916 = vmatpush2.msra.mxu0 %v7524
    %7917 = vmatprep.subr.mxu0 0.0
    %7918 = vmatpush2.msra.mxu0 %v7523
    %7919 = vmatprep.subr.mxu0 0.0
    %7920 = vmatpush2.msra.mxu0 %v7522
    %7921 = vmatprep.subr.mxu0 0.0
    %7922 = vmatpush2.msra.mxu0 %v7521
    %7923 = vmatprep.subr.mxu0 0.0
    %7924 = vmatpush2.msra.mxu0 %v7520
    %7925 = vmatprep.subr.mxu0 0.0
    %7926 = vmatpush2.msra.mxu0 %v7519
    %7927 = vmatprep.subr.mxu0 0.0
    %7928 = vmatpush2.msra.mxu0 %v7518
    %7929 = vmatprep.subr.mxu0 0.0
    %7930 = vmatpush2.msra.mxu0 %v7517
    %7931 = vmatprep.subr.mxu0 0.0
    %7932 = vmatpush2.msra.mxu0 %v7516
    %7933 = vmatprep.subr.mxu0 0.0
    %7934 = vmatpush2.msra.mxu0 %v7515
    %7935 = vmatprep.subr.mxu0 0.0
    %7936 = vmatpush2.msra.mxu0 %v7514
    %7937 = vmatprep.mubr.f32.mxu0 %v5602
    %7938 = vmatmul.mubr.f32.gmra.mxu0 %v5081
    %v7939 = vpop.f32.mrf.mxu0
    %v7940 = vadd.f32 %v7830, %v7939
    %v7941 = vpop.f32.mrf.mxu0
    %7942 = vmatprep.mubr.f32.mxu0 %v5605
    %7943 = vmatmul.mubr.f32.gmra.mxu0 %v5085
    %v7944 = vpop.f32.mrf.mxu0
    %v7945 = vadd.f32 %v7835, %v7944
    %v7946 = vpop.f32.mrf.mxu0
    %7947 = vmatprep.mubr.f32.mxu0 %v5608
    %7948 = vmatmul.mubr.f32.gmra.mxu0 %v5089
    %v7949 = vpop.f32.mrf.mxu0
    %v7950 = vadd.f32 %v7840, %v7949
    %v7951 = vpop.f32.mrf.mxu0
    %7952 = vmatprep.mubr.f32.mxu0 %v5611
    %7953 = vmatmul.mubr.f32.gmra.mxu0 %v5093
    %v7954 = vpop.f32.mrf.mxu0
    %v7955 = vadd.f32 %v7845, %v7954
    %v7956 = vpop.f32.mrf.mxu0
    %7957 = vmatprep.mubr.f32.mxu0 %v5614
    %7958 = vmatmul.mubr.f32.gmra.mxu0 %v5097
    %v7959 = vpop.f32.mrf.mxu0
    %v7960 = vadd.f32 %v7850, %v7959
    %v7961 = vpop.f32.mrf.mxu0
    %7962 = vmatprep.mubr.f32.mxu0 %v5617
    %7963 = vmatmul.mubr.f32.gmra.mxu0 %v5101
    %v7964 = vpop.f32.mrf.mxu0
    %v7965 = vadd.f32 %v7855, %v7964
    %v7966 = vpop.f32.mrf.mxu0
    %7967 = vmatprep.mubr.f32.mxu0 %v5620
    %7968 = vmatmul.mubr.f32.gmra.mxu0 %v5105
    %v7969 = vpop.f32.mrf.mxu0
    %v7970 = vadd.f32 %v7860, %v7969
    %v7971 = vpop.f32.mrf.mxu0
    %7972 = vmatprep.mubr.f32.mxu0 %v5623
    %7973 = vmatmul.mubr.f32.gmra.mxu0 %v5109
    %v7974 = vpop.f32.mrf.mxu0
    %v7975 = vadd.f32 %v7865, %v7974
    %v7976 = vpop.f32.mrf.mxu0
    %7977 = vmatprep.mubr.f32.mxu0 %v5626
    %7978 = vmatmul.mubr.f32.gmra.mxu0 %v5113
    %v7979 = vpop.f32.mrf.mxu0
    %v7980 = vadd.f32 %v7870, %v7979
    %v7981 = vpop.f32.mrf.mxu0
    %7982 = vdwg.mxu0
    %7992 = vrot.lane.b32.xlu0 %v7940, 64
    %v7993 = vpop.permute.xlu0 %7992
    %7994 = vrot.lane.b32.xlu0 %v7945, 64
    %v7995 = vpop.permute.xlu0 %7994
    %7996 = vrot.lane.b32.xlu0 %v7950, 64
    %v7997 = vpop.permute.xlu0 %7996
    %7998 = vrot.lane.b32.xlu0 %v7955, 64
    %v7999 = vpop.permute.xlu0 %7998
    %8000 = vrot.lane.b32.xlu0 %v7960, 64
    %v8001 = vpop.permute.xlu0 %8000
    %8002 = vrot.lane.b32.xlu0 %v7965, 64
    %v8003 = vpop.permute.xlu0 %8002
    %8004 = vrot.lane.b32.xlu0 %v7970, 64
    %v8005 = vpop.permute.xlu0 %8004
    %8006 = vrot.lane.b32.xlu0 %v7975, 64
    %v8007 = vpop.permute.xlu0 %8006
    %8008 = vrot.lane.b32.xlu0 %v7980, 64
    %v8009 = vpop.permute.xlu0 %8008
    %8019 = vst.msk [vmem:[%s7753] sm:$0xff] %vm5884, %v7993
    %8020 = vst.msk [vmem:[%s7753 + $0x10] sm:$0xff] %vm5884, %v7995
    %8021 = vst.msk [vmem:[%s7753 + $0x20] sm:$0xff] %vm5884, %v7997
    %8022 = vst.msk [vmem:[%s7753 + $0x30] sm:$0xff] %vm5884, %v7999
    %8023 = vst.msk [vmem:[%s7753 + $0x40] sm:$0xff] %vm5884, %v8001
    %8024 = vst.msk [vmem:[%s7753 + $0x50] sm:$0xff] %vm5884, %v8003
    %8025 = vst.msk [vmem:[%s7753 + $0x60] sm:$0xff] %vm5884, %v8005
    %8026 = vst.msk [vmem:[%s7753 + $0x70] sm:$0xff] %vm5884, %v8007
    %8027 = vst.msk [vmem:[%s7753 + $0x80] sm:$0x1] %vm5893, %v8009
    %8028 = vmatprep.subr.mxu0 0.0
    %8029 = vmatpush1.msra.mxu0 %v7481
    %8030 = vmatprep.subr.mxu0 0.0
    %8031 = vmatpush1.msra.mxu0 %v7480
    %8032 = vmatprep.subr.mxu0 0.0
    %8033 = vmatpush1.msra.mxu0 %v7479
    %8034 = vmatprep.subr.mxu0 0.0
    %8035 = vmatpush1.msra.mxu0 %v7478
    %8036 = vmatprep.subr.mxu0 0.0
    %8037 = vmatpush1.msra.mxu0 %v7477
    %8038 = vmatprep.subr.mxu0 0.0
    %8039 = vmatpush1.msra.mxu0 %v7476
    %8040 = vmatprep.subr.mxu0 0.0
    %8041 = vmatpush1.msra.mxu0 %v7475
    %8042 = vmatprep.subr.mxu0 0.0
    %8043 = vmatpush1.msra.mxu0 %v7474
    %8044 = vmatprep.subr.mxu0 0.0
    %8045 = vmatpush1.msra.mxu0 %v7473
    %8046 = vmatprep.subr.mxu0 0.0
    %8047 = vmatpush1.msra.mxu0 %v7472
    %8048 = vmatprep.subr.mxu0 0.0
    %8049 = vmatpush1.msra.mxu0 %v7471
    %8050 = vmatprep.subr.mxu0 0.0
    %8051 = vmatpush1.msra.mxu0 %v7470
    %8052 = vmatprep.subr.mxu0 0.0
    %8053 = vmatpush1.msra.mxu0 %v7469
    %8054 = vmatprep.subr.mxu0 0.0
    %8055 = vmatpush1.msra.mxu0 %v7468
    %8056 = vmatprep.subr.mxu0 0.0
    %8057 = vmatpush1.msra.mxu0 %v7467
    %8058 = vmatprep.subr.mxu0 0.0
    %8059 = vmatpush1.msra.mxu0 %v7466
    %8060 = vmatprep.subr.mxu0 0.0
    %8061 = vmatpush2.msra.mxu0 %v7497
    %8062 = vmatprep.subr.mxu0 0.0
    %8063 = vmatpush2.msra.mxu0 %v7496
    %8064 = vmatprep.subr.mxu0 0.0
    %8065 = vmatpush2.msra.mxu0 %v7495
    %8066 = vmatprep.subr.mxu0 0.0
    %8067 = vmatpush2.msra.mxu0 %v7494
    %8068 = vmatprep.subr.mxu0 0.0
    %8069 = vmatpush2.msra.mxu0 %v7493
    %8070 = vmatprep.subr.mxu0 0.0
    %8071 = vmatpush2.msra.mxu0 %v7492
    %8072 = vmatprep.subr.mxu0 0.0
    %8073 = vmatpush2.msra.mxu0 %v7491
    %8074 = vmatprep.subr.mxu0 0.0
    %8075 = vmatpush2.msra.mxu0 %v7490
    %8076 = vmatprep.subr.mxu0 0.0
    %8077 = vmatpush2.msra.mxu0 %v7489
    %8078 = vmatprep.subr.mxu0 0.0
    %8079 = vmatpush2.msra.mxu0 %v7488
    %8080 = vmatprep.subr.mxu0 0.0
    %8081 = vmatpush2.msra.mxu0 %v7487
    %8082 = vmatprep.subr.mxu0 0.0
    %8083 = vmatpush2.msra.mxu0 %v7486
    %8084 = vmatprep.subr.mxu0 0.0
    %8085 = vmatpush2.msra.mxu0 %v7485
    %8086 = vmatprep.subr.mxu0 0.0
    %8087 = vmatpush2.msra.mxu0 %v7484
    %8088 = vmatprep.subr.mxu0 0.0
    %8089 = vmatpush2.msra.mxu0 %v7483
    %8090 = vmatprep.subr.mxu0 0.0
    %8091 = vmatpush2.msra.mxu0 %v7482
    %8092 = vmatprep.mubr.f32.mxu0 %v5197
    %8093 = vmatmul.mubr.f32.gmra.mxu0 %v5196
    %v8094 = vpop.f32.mrf.mxu0
    %v8095 = vadd.f32 0.0, %v8094
    %v8096 = vpop.f32.mrf.mxu0
    %8097 = vmatprep.mubr.f32.mxu0 %v5201
    %8098 = vmatmul.mubr.f32.gmra.mxu0 %v5200
    %v8099 = vpop.f32.mrf.mxu0
    %v8100 = vadd.f32 0.0, %v8099
    %v8101 = vpop.f32.mrf.mxu0
    %8102 = vmatprep.mubr.f32.mxu0 %v5205
    %8103 = vmatmul.mubr.f32.gmra.mxu0 %v5204
    %v8104 = vpop.f32.mrf.mxu0
    %v8105 = vadd.f32 0.0, %v8104
    %v8106 = vpop.f32.mrf.mxu0
    %8107 = vmatprep.mubr.f32.mxu0 %v5209
    %8108 = vmatmul.mubr.f32.gmra.mxu0 %v5208
    %v8109 = vpop.f32.mrf.mxu0
    %v8110 = vadd.f32 0.0, %v8109
    %v8111 = vpop.f32.mrf.mxu0
    %8112 = vmatprep.mubr.f32.mxu0 %v5213
    %8113 = vmatmul.mubr.f32.gmra.mxu0 %v5212
    %v8114 = vpop.f32.mrf.mxu0
    %v8115 = vadd.f32 0.0, %v8114
    %v8116 = vpop.f32.mrf.mxu0
    %8117 = vmatprep.mubr.f32.mxu0 %v5217
    %8118 = vmatmul.mubr.f32.gmra.mxu0 %v5216
    %v8119 = vpop.f32.mrf.mxu0
    %v8120 = vadd.f32 0.0, %v8119
    %v8121 = vpop.f32.mrf.mxu0
    %8122 = vmatprep.mubr.f32.mxu0 %v5221
    %8123 = vmatmul.mubr.f32.gmra.mxu0 %v5220
    %v8124 = vpop.f32.mrf.mxu0
    %v8125 = vadd.f32 0.0, %v8124
    %v8126 = vpop.f32.mrf.mxu0
    %8127 = vmatprep.mubr.f32.mxu0 %v5225
    %8128 = vmatmul.mubr.f32.gmra.mxu0 %v5224
    %v8129 = vpop.f32.mrf.mxu0
    %v8130 = vadd.f32 0.0, %v8129
    %v8131 = vpop.f32.mrf.mxu0
    %8132 = vmatprep.mubr.f32.mxu0 %v5229
    %8133 = vmatmul.mubr.f32.gmra.mxu0 %v5228
    %v8134 = vpop.f32.mrf.mxu0
    %v8135 = vadd.f32 0.0, %v8134
    %v8136 = vpop.f32.mrf.mxu0
    %8137 = vdwg.mxu0
    %8138 = vmatprep.subr.mxu0 0.0
    %8139 = vmatpush1.msra.mxu0 %v7513
    %8140 = vmatprep.subr.mxu0 0.0
    %8141 = vmatpush1.msra.mxu0 %v7512
    %8142 = vmatprep.subr.mxu0 0.0
    %8143 = vmatpush1.msra.mxu0 %v7511
    %8144 = vmatprep.subr.mxu0 0.0
    %8145 = vmatpush1.msra.mxu0 %v7510
    %8146 = vmatprep.subr.mxu0 0.0
    %8147 = vmatpush1.msra.mxu0 %v7509
    %8148 = vmatprep.subr.mxu0 0.0
    %8149 = vmatpush1.msra.mxu0 %v7508
    %8150 = vmatprep.subr.mxu0 0.0
    %8151 = vmatpush1.msra.mxu0 %v7507
    %8152 = vmatprep.subr.mxu0 0.0
    %8153 = vmatpush1.msra.mxu0 %v7506
    %8154 = vmatprep.subr.mxu0 0.0
    %8155 = vmatpush1.msra.mxu0 %v7505
    %8156 = vmatprep.subr.mxu0 0.0
    %8157 = vmatpush1.msra.mxu0 %v7504
    %8158 = vmatprep.subr.mxu0 0.0
    %8159 = vmatpush1.msra.mxu0 %v7503
    %8160 = vmatprep.subr.mxu0 0.0
    %8161 = vmatpush1.msra.mxu0 %v7502
    %8162 = vmatprep.subr.mxu0 0.0
    %8163 = vmatpush1.msra.mxu0 %v7501
    %8164 = vmatprep.subr.mxu0 0.0
    %8165 = vmatpush1.msra.mxu0 %v7500
    %8166 = vmatprep.subr.mxu0 0.0
    %8167 = vmatpush1.msra.mxu0 %v7499
    %8168 = vmatprep.subr.mxu0 0.0
    %8169 = vmatpush1.msra.mxu0 %v7498
    %8170 = vmatprep.subr.mxu0 0.0
    %8171 = vmatpush2.msra.mxu0 %v7531
    %8172 = vmatprep.subr.mxu0 0.0
    %8173 = vmatpush2.msra.mxu0 %v7528
    %8174 = vmatprep.subr.mxu0 0.0
    %8175 = vmatpush2.msra.mxu0 %v7527
    %8176 = vmatprep.subr.mxu0 0.0
    %8177 = vmatpush2.msra.mxu0 %v7526
    %8178 = vmatprep.subr.mxu0 0.0
    %8179 = vmatpush2.msra.mxu0 %v7525
    %8180 = vmatprep.subr.mxu0 0.0
    %8181 = vmatpush2.msra.mxu0 %v7524
    %8182 = vmatprep.subr.mxu0 0.0
    %8183 = vmatpush2.msra.mxu0 %v7523
    %8184 = vmatprep.subr.mxu0 0.0
    %8185 = vmatpush2.msra.mxu0 %v7522
    %8186 = vmatprep.subr.mxu0 0.0
    %8187 = vmatpush2.msra.mxu0 %v7521
    %8188 = vmatprep.subr.mxu0 0.0
    %8189 = vmatpush2.msra.mxu0 %v7520
    %8190 = vmatprep.subr.mxu0 0.0
    %8191 = vmatpush2.msra.mxu0 %v7519
    %8192 = vmatprep.subr.mxu0 0.0
    %8193 = vmatpush2.msra.mxu0 %v7518
    %8194 = vmatprep.subr.mxu0 0.0
    %8195 = vmatpush2.msra.mxu0 %v7517
    %8196 = vmatprep.subr.mxu0 0.0
    %8197 = vmatpush2.msra.mxu0 %v7516
    %8198 = vmatprep.subr.mxu0 0.0
    %8199 = vmatpush2.msra.mxu0 %v7515
    %8200 = vmatprep.subr.mxu0 0.0
    %8201 = vmatpush2.msra.mxu0 %v7514
    %8202 = vmatprep.mubr.f32.mxu0 %v5896
    %8203 = vmatmul.mubr.f32.gmra.mxu0 %v5198
    %v8204 = vpop.f32.mrf.mxu0
    %v8205 = vadd.f32 %v8095, %v8204
    %v8206 = vpop.f32.mrf.mxu0
    %8207 = vmatprep.mubr.f32.mxu0 %v5899
    %8208 = vmatmul.mubr.f32.gmra.mxu0 %v5202
    %v8209 = vpop.f32.mrf.mxu0
    %v8210 = vadd.f32 %v8100, %v8209
    %v8211 = vpop.f32.mrf.mxu0
    %8212 = vmatprep.mubr.f32.mxu0 %v5902
    %8213 = vmatmul.mubr.f32.gmra.mxu0 %v5206
    %v8214 = vpop.f32.mrf.mxu0
    %v8215 = vadd.f32 %v8105, %v8214
    %v8216 = vpop.f32.mrf.mxu0
    %8217 = vmatprep.mubr.f32.mxu0 %v5905
    %8218 = vmatmul.mubr.f32.gmra.mxu0 %v5210
    %v8219 = vpop.f32.mrf.mxu0
    %v8220 = vadd.f32 %v8110, %v8219
    %v8221 = vpop.f32.mrf.mxu0
    %8222 = vmatprep.mubr.f32.mxu0 %v5908
    %8223 = vmatmul.mubr.f32.gmra.mxu0 %v5214
    %v8224 = vpop.f32.mrf.mxu0
    %v8225 = vadd.f32 %v8115, %v8224
    %v8226 = vpop.f32.mrf.mxu0
    %8227 = vmatprep.mubr.f32.mxu0 %v5911
    %8228 = vmatmul.mubr.f32.gmra.mxu0 %v5218
    %v8229 = vpop.f32.mrf.mxu0
    %v8230 = vadd.f32 %v8120, %v8229
    %v8231 = vpop.f32.mrf.mxu0
    %8232 = vmatprep.mubr.f32.mxu0 %v5914
    %8233 = vmatmul.mubr.f32.gmra.mxu0 %v5222
    %v8234 = vpop.f32.mrf.mxu0
    %v8235 = vadd.f32 %v8125, %v8234
    %v8236 = vpop.f32.mrf.mxu0
    %8237 = vmatprep.mubr.f32.mxu0 %v5917
    %8238 = vmatmul.mubr.f32.gmra.mxu0 %v5226
    %v8239 = vpop.f32.mrf.mxu0
    %v8240 = vadd.f32 %v8130, %v8239
    %v8241 = vpop.f32.mrf.mxu0
    %8242 = vmatprep.mubr.f32.mxu0 %v5920
    %8243 = vmatmul.mubr.f32.gmra.mxu0 %v5230
    %v8244 = vpop.f32.mrf.mxu0
    %v8245 = vadd.f32 %v8135, %v8244
    %v8246 = vpop.f32.mrf.mxu0
    %8247 = vdwg.mxu0
    %8248 = vst.msk [vmem:[%s7753 + $0x8] sm:$0xff] %vm1404, %v8205
    %8249 = vst.msk [vmem:[%s7753 + $0x18] sm:$0xff] %vm1404, %v8210
    %8250 = vst.msk [vmem:[%s7753 + $0x28] sm:$0xff] %vm1404, %v8215
    %8251 = vst.msk [vmem:[%s7753 + $0x38] sm:$0xff] %vm1404, %v8220
    %8252 = vst.msk [vmem:[%s7753 + $0x48] sm:$0xff] %vm1404, %v8225
    %8253 = vst.msk [vmem:[%s7753 + $0x58] sm:$0xff] %vm1404, %v8230
    %8254 = vst.msk [vmem:[%s7753 + $0x68] sm:$0xff] %vm1404, %v8235
    %8255 = vst.msk [vmem:[%s7753 + $0x78] sm:$0xff] %vm1404, %v8240
    %8256 = vst.msk [vmem:[%s7753 + $0x88] sm:$0x1] %vm5599, %v8245
    %8257 = vmatprep.subr.mxu0 0.0
    %8258 = vmatpush1.msra.mxu0 %v7481
    %8259 = vmatprep.subr.mxu0 0.0
    %8260 = vmatpush1.msra.mxu0 %v7480
    %8261 = vmatprep.subr.mxu0 0.0
    %8262 = vmatpush1.msra.mxu0 %v7479
    %8263 = vmatprep.subr.mxu0 0.0
    %8264 = vmatpush1.msra.mxu0 %v7478
    %8265 = vmatprep.subr.mxu0 0.0
    %8266 = vmatpush1.msra.mxu0 %v7477
    %8267 = vmatprep.subr.mxu0 0.0
    %8268 = vmatpush1.msra.mxu0 %v7476
    %8269 = vmatprep.subr.mxu0 0.0
    %8270 = vmatpush1.msra.mxu0 %v7475
    %8271 = vmatprep.subr.mxu0 0.0
    %8272 = vmatpush1.msra.mxu0 %v7474
    %8273 = vmatprep.subr.mxu0 0.0
    %8274 = vmatpush1.msra.mxu0 %v7473
    %8275 = vmatprep.subr.mxu0 0.0
    %8276 = vmatpush1.msra.mxu0 %v7472
    %8277 = vmatprep.subr.mxu0 0.0
    %8278 = vmatpush1.msra.mxu0 %v7471
    %8279 = vmatprep.subr.mxu0 0.0
    %8280 = vmatpush1.msra.mxu0 %v7470
    %8281 = vmatprep.subr.mxu0 0.0
    %8282 = vmatpush1.msra.mxu0 %v7469
    %8283 = vmatprep.subr.mxu0 0.0
    %8284 = vmatpush1.msra.mxu0 %v7468
    %8285 = vmatprep.subr.mxu0 0.0
    %8286 = vmatpush1.msra.mxu0 %v7467
    %8287 = vmatprep.subr.mxu0 0.0
    %8288 = vmatpush1.msra.mxu0 %v7466
    %8289 = vmatprep.subr.mxu0 0.0
    %8290 = vmatpush2.msra.mxu0 %v7497
    %8291 = vmatprep.subr.mxu0 0.0
    %8292 = vmatpush2.msra.mxu0 %v7496
    %8293 = vmatprep.subr.mxu0 0.0
    %8294 = vmatpush2.msra.mxu0 %v7495
    %8295 = vmatprep.subr.mxu0 0.0
    %8296 = vmatpush2.msra.mxu0 %v7494
    %8297 = vmatprep.subr.mxu0 0.0
    %8298 = vmatpush2.msra.mxu0 %v7493
    %8299 = vmatprep.subr.mxu0 0.0
    %8300 = vmatpush2.msra.mxu0 %v7492
    %8301 = vmatprep.subr.mxu0 0.0
    %8302 = vmatpush2.msra.mxu0 %v7491
    %8303 = vmatprep.subr.mxu0 0.0
    %8304 = vmatpush2.msra.mxu0 %v7490
    %8305 = vmatprep.subr.mxu0 0.0
    %8306 = vmatpush2.msra.mxu0 %v7489
    %8307 = vmatprep.subr.mxu0 0.0
    %8308 = vmatpush2.msra.mxu0 %v7488
    %8309 = vmatprep.subr.mxu0 0.0
    %8310 = vmatpush2.msra.mxu0 %v7487
    %8311 = vmatprep.subr.mxu0 0.0
    %8312 = vmatpush2.msra.mxu0 %v7486
    %8313 = vmatprep.subr.mxu0 0.0
    %8314 = vmatpush2.msra.mxu0 %v7485
    %8315 = vmatprep.subr.mxu0 0.0
    %8316 = vmatpush2.msra.mxu0 %v7484
    %8317 = vmatprep.subr.mxu0 0.0
    %8318 = vmatpush2.msra.mxu0 %v7483
    %8319 = vmatprep.subr.mxu0 0.0
    %8320 = vmatpush2.msra.mxu0 %v7482
    %8321 = vmatprep.mubr.f32.mxu0 %v5305
    %8322 = vmatmul.mubr.f32.gmra.mxu0 %v5304
    %v8323 = vpop.f32.mrf.mxu0
    %v8324 = vadd.f32 0.0, %v8323
    %v8325 = vpop.f32.mrf.mxu0
    %8326 = vmatprep.mubr.f32.mxu0 %v5309
    %8327 = vmatmul.mubr.f32.gmra.mxu0 %v5308
    %v8328 = vpop.f32.mrf.mxu0
    %v8329 = vadd.f32 0.0, %v8328
    %v8330 = vpop.f32.mrf.mxu0
    %8331 = vmatprep.mubr.f32.mxu0 %v5313
    %8332 = vmatmul.mubr.f32.gmra.mxu0 %v5312
    %v8333 = vpop.f32.mrf.mxu0
    %v8334 = vadd.f32 0.0, %v8333
    %v8335 = vpop.f32.mrf.mxu0
    %8336 = vmatprep.mubr.f32.mxu0 %v5317
    %8337 = vmatmul.mubr.f32.gmra.mxu0 %v5316
    %v8338 = vpop.f32.mrf.mxu0
    %v8339 = vadd.f32 0.0, %v8338
    %v8340 = vpop.f32.mrf.mxu0
    %8341 = vmatprep.mubr.f32.mxu0 %v5321
    %8342 = vmatmul.mubr.f32.gmra.mxu0 %v5320
    %v8343 = vpop.f32.mrf.mxu0
    %v8344 = vadd.f32 0.0, %v8343
    %v8345 = vpop.f32.mrf.mxu0
    %8346 = vmatprep.mubr.f32.mxu0 %v5325
    %8347 = vmatmul.mubr.f32.gmra.mxu0 %v5324
    %v8348 = vpop.f32.mrf.mxu0
    %v8349 = vadd.f32 0.0, %v8348
    %v8350 = vpop.f32.mrf.mxu0
    %8351 = vmatprep.mubr.f32.mxu0 %v5329
    %8352 = vmatmul.mubr.f32.gmra.mxu0 %v5328
    %v8353 = vpop.f32.mrf.mxu0
    %v8354 = vadd.f32 0.0, %v8353
    %v8355 = vpop.f32.mrf.mxu0
    %8356 = vmatprep.mubr.f32.mxu0 %v5333
    %8357 = vmatmul.mubr.f32.gmra.mxu0 %v5332
    %v8358 = vpop.f32.mrf.mxu0
    %v8359 = vadd.f32 0.0, %v8358
    %v8360 = vpop.f32.mrf.mxu0
    %8361 = vmatprep.mubr.f32.mxu0 %v5337
    %8362 = vmatmul.mubr.f32.gmra.mxu0 %v5336
    %v8363 = vpop.f32.mrf.mxu0
    %v8364 = vadd.f32 0.0, %v8363
    %v8365 = vpop.f32.mrf.mxu0
    %8366 = vdwg.mxu0
    %8367 = vmatprep.subr.mxu0 0.0
    %8368 = vmatpush1.msra.mxu0 %v7513
    %8369 = vmatprep.subr.mxu0 0.0
    %8370 = vmatpush1.msra.mxu0 %v7512
    %8371 = vmatprep.subr.mxu0 0.0
    %8372 = vmatpush1.msra.mxu0 %v7511
    %8373 = vmatprep.subr.mxu0 0.0
    %8374 = vmatpush1.msra.mxu0 %v7510
    %8375 = vmatprep.subr.mxu0 0.0
    %8376 = vmatpush1.msra.mxu0 %v7509
    %8377 = vmatprep.subr.mxu0 0.0
    %8378 = vmatpush1.msra.mxu0 %v7508
    %8379 = vmatprep.subr.mxu0 0.0
    %8380 = vmatpush1.msra.mxu0 %v7507
    %8381 = vmatprep.subr.mxu0 0.0
    %8382 = vmatpush1.msra.mxu0 %v7506
    %8383 = vmatprep.subr.mxu0 0.0
    %8384 = vmatpush1.msra.mxu0 %v7505
    %8385 = vmatprep.subr.mxu0 0.0
    %8386 = vmatpush1.msra.mxu0 %v7504
    %8387 = vmatprep.subr.mxu0 0.0
    %8388 = vmatpush1.msra.mxu0 %v7503
    %8389 = vmatprep.subr.mxu0 0.0
    %8390 = vmatpush1.msra.mxu0 %v7502
    %8391 = vmatprep.subr.mxu0 0.0
    %8392 = vmatpush1.msra.mxu0 %v7501
    %8393 = vmatprep.subr.mxu0 0.0
    %8394 = vmatpush1.msra.mxu0 %v7500
    %8395 = vmatprep.subr.mxu0 0.0
    %8396 = vmatpush1.msra.mxu0 %v7499
    %8397 = vmatprep.subr.mxu0 0.0
    %8398 = vmatpush1.msra.mxu0 %v7498
    %8399 = vmatprep.subr.mxu0 0.0
    %8400 = vmatpush2.msra.mxu0 %v7531
    %8401 = vmatprep.subr.mxu0 0.0
    %8402 = vmatpush2.msra.mxu0 %v7528
    %8403 = vmatprep.subr.mxu0 0.0
    %8404 = vmatpush2.msra.mxu0 %v7527
    %8405 = vmatprep.subr.mxu0 0.0
    %8406 = vmatpush2.msra.mxu0 %v7526
    %8407 = vmatprep.subr.mxu0 0.0
    %8408 = vmatpush2.msra.mxu0 %v7525
    %8409 = vmatprep.subr.mxu0 0.0
    %8410 = vmatpush2.msra.mxu0 %v7524
    %8411 = vmatprep.subr.mxu0 0.0
    %8412 = vmatpush2.msra.mxu0 %v7523
    %8413 = vmatprep.subr.mxu0 0.0
    %8414 = vmatpush2.msra.mxu0 %v7522
    %8415 = vmatprep.subr.mxu0 0.0
    %8416 = vmatpush2.msra.mxu0 %v7521
    %8417 = vmatprep.subr.mxu0 0.0
    %8418 = vmatpush2.msra.mxu0 %v7520
    %8419 = vmatprep.subr.mxu0 0.0
    %8420 = vmatpush2.msra.mxu0 %v7519
    %8421 = vmatprep.subr.mxu0 0.0
    %8422 = vmatpush2.msra.mxu0 %v7518
    %8423 = vmatprep.subr.mxu0 0.0
    %8424 = vmatpush2.msra.mxu0 %v7517
    %8425 = vmatprep.subr.mxu0 0.0
    %8426 = vmatpush2.msra.mxu0 %v7516
    %8427 = vmatprep.subr.mxu0 0.0
    %8428 = vmatpush2.msra.mxu0 %v7515
    %8429 = vmatprep.subr.mxu0 0.0
    %8430 = vmatpush2.msra.mxu0 %v7514
    %8431 = vmatprep.mubr.f32.mxu0 %v6152
    %8432 = vmatmul.mubr.f32.gmra.mxu0 %v5306
    %v8433 = vpop.f32.mrf.mxu0
    %v8434 = vadd.f32 %v8324, %v8433
    %v8435 = vpop.f32.mrf.mxu0
    %8436 = vmatprep.mubr.f32.mxu0 %v6155
    %8437 = vmatmul.mubr.f32.gmra.mxu0 %v5310
    %v8438 = vpop.f32.mrf.mxu0
    %v8439 = vadd.f32 %v8329, %v8438
    %v8440 = vpop.f32.mrf.mxu0
    %8441 = vmatprep.mubr.f32.mxu0 %v6158
    %8442 = vmatmul.mubr.f32.gmra.mxu0 %v5314
    %v8443 = vpop.f32.mrf.mxu0
    %v8444 = vadd.f32 %v8334, %v8443
    %v8445 = vpop.f32.mrf.mxu0
    %8446 = vmatprep.mubr.f32.mxu0 %v6161
    %8447 = vmatmul.mubr.f32.gmra.mxu0 %v5318
    %v8448 = vpop.f32.mrf.mxu0
    %v8449 = vadd.f32 %v8339, %v8448
    %v8450 = vpop.f32.mrf.mxu0
    %8451 = vmatprep.mubr.f32.mxu0 %v6164
    %8452 = vmatmul.mubr.f32.gmra.mxu0 %v5322
    %v8453 = vpop.f32.mrf.mxu0
    %v8454 = vadd.f32 %v8344, %v8453
    %v8455 = vpop.f32.mrf.mxu0
    %8456 = vmatprep.mubr.f32.mxu0 %v6167
    %8457 = vmatmul.mubr.f32.gmra.mxu0 %v5326
    %v8458 = vpop.f32.mrf.mxu0
    %v8459 = vadd.f32 %v8349, %v8458
    %v8460 = vpop.f32.mrf.mxu0
    %8461 = vmatprep.mubr.f32.mxu0 %v6170
    %8462 = vmatmul.mubr.f32.gmra.mxu0 %v5330
    %v8463 = vpop.f32.mrf.mxu0
    %v8464 = vadd.f32 %v8354, %v8463
    %v8465 = vpop.f32.mrf.mxu0
    %8466 = vmatprep.mubr.f32.mxu0 %v6173
    %8467 = vmatmul.mubr.f32.gmra.mxu0 %v5334
    %v8468 = vpop.f32.mrf.mxu0
    %v8469 = vadd.f32 %v8359, %v8468
    %v8470 = vpop.f32.mrf.mxu0
    %8471 = vmatprep.mubr.f32.mxu0 %v6176
    %8472 = vmatmul.mubr.f32.gmra.mxu0 %v5338
    %v8473 = vpop.f32.mrf.mxu0
    %v8474 = vadd.f32 %v8364, %v8473
    %v8475 = vpop.f32.mrf.mxu0
    %8476 = vdwg.mxu0
    %8486 = vrot.lane.b32.xlu0 %v8434, 64
    %v8487 = vpop.permute.xlu0 %8486
    %8488 = vrot.lane.b32.xlu0 %v8439, 64
    %v8489 = vpop.permute.xlu0 %8488
    %8490 = vrot.lane.b32.xlu0 %v8444, 64
    %v8491 = vpop.permute.xlu0 %8490
    %8492 = vrot.lane.b32.xlu0 %v8449, 64
    %v8493 = vpop.permute.xlu0 %8492
    %8494 = vrot.lane.b32.xlu0 %v8454, 64
    %v8495 = vpop.permute.xlu0 %8494
    %8496 = vrot.lane.b32.xlu0 %v8459, 64
    %v8497 = vpop.permute.xlu0 %8496
    %8498 = vrot.lane.b32.xlu0 %v8464, 64
    %v8499 = vpop.permute.xlu0 %8498
    %8500 = vrot.lane.b32.xlu0 %v8469, 64
    %v8501 = vpop.permute.xlu0 %8500
    %8502 = vrot.lane.b32.xlu0 %v8474, 64
    %v8503 = vpop.permute.xlu0 %8502
    %8513 = vst.msk [vmem:[%s7753 + $0x8] sm:$0xff] %vm5884, %v8487
    %8514 = vst.msk [vmem:[%s7753 + $0x18] sm:$0xff] %vm5884, %v8489
    %8515 = vst.msk [vmem:[%s7753 + $0x28] sm:$0xff] %vm5884, %v8491
    %8516 = vst.msk [vmem:[%s7753 + $0x38] sm:$0xff] %vm5884, %v8493
    %8517 = vst.msk [vmem:[%s7753 + $0x48] sm:$0xff] %vm5884, %v8495
    %8518 = vst.msk [vmem:[%s7753 + $0x58] sm:$0xff] %vm5884, %v8497
    %8519 = vst.msk [vmem:[%s7753 + $0x68] sm:$0xff] %vm5884, %v8499
    %8520 = vst.msk [vmem:[%s7753 + $0x78] sm:$0xff] %vm5884, %v8501
    %8521 = vst.msk [vmem:[%s7753 + $0x88] sm:$0x1] %vm5893, %v8503
    %v8522 = vld [vmem:[%s4] sm:$0xff]
    %v8523 = vld [vmem:[%s4 + $0x8] sm:$0xff]
    %v8524 = vld [vmem:[%s4 + $0x10] sm:$0xff]
    %v8525 = vld [vmem:[%s4 + $0x18] sm:$0xff]
    %v8526 = vld [vmem:[%s4 + $0x20] sm:$0xff]
    %v8527 = vld [vmem:[%s4 + $0x28] sm:$0xff]
    %v8528 = vld [vmem:[%s4 + $0x30] sm:$0xff]
    %v8529 = vld [vmem:[%s4 + $0x38] sm:$0xff]
    %v8530 = vld [vmem:[%s4 + $0x40] sm:$0xff]
    %v8531 = vld [vmem:[%s4 + $0x48] sm:$0xff]
    %v8532 = vld [vmem:[%s4 + $0x50] sm:$0xff]
    %v8533 = vld [vmem:[%s4 + $0x58] sm:$0xff]
    %v8534 = vld [vmem:[%s4 + $0x60] sm:$0xff]
    %v8535 = vld [vmem:[%s4 + $0x68] sm:$0xff]
    %v8536 = vld [vmem:[%s4 + $0x70] sm:$0xff]
    %v8537 = vld [vmem:[%s4 + $0x78] sm:$0xff]
    %v8538 = vld [vmem:[%s4 + $0x80] sm:$0xff]
    %v8539 = vld [vmem:[%s4 + $0x88] sm:$0xff]
    %v8540 = vld [vmem:[%s4 + $0x90] sm:$0xff]
    %v8541 = vld [vmem:[%s4 + $0x98] sm:$0xff]
    %v8542 = vld [vmem:[%s4 + $0xa0] sm:$0xff]
    %v8543 = vld [vmem:[%s4 + $0xa8] sm:$0xff]
    %v8544 = vld [vmem:[%s4 + $0xb0] sm:$0xff]
    %v8545 = vld [vmem:[%s4 + $0xb8] sm:$0xff]
    %v8546 = vld [vmem:[%s4 + $0xc0] sm:$0xff]
    %v8547 = vld [vmem:[%s4 + $0xc8] sm:$0xff]
    %v8548 = vld [vmem:[%s4 + $0xd0] sm:$0xff]
    %v8549 = vld [vmem:[%s4 + $0xd8] sm:$0xff]
    %v8550 = vld [vmem:[%s4 + $0xe0] sm:$0xff]
    %v8551 = vld [vmem:[%s4 + $0xe8] sm:$0xff]
    %v8552 = vld [vmem:[%s4 + $0xf0] sm:$0xff]
    %v8553 = vld [vmem:[%s4 + $0xf8] sm:$0xff]
    %s8554 = scalar_lea.vmem %s4, 256
    %v8555 = vld [vmem:[%s8554] sm:$0xff]
    %v8556 = vld [vmem:[%s8554 + $0x8] sm:$0xff]
    %v8557 = vld [vmem:[%s8554 + $0x10] sm:$0xff]
    %v8558 = vld [vmem:[%s8554 + $0x18] sm:$0xff]
    %v8559 = vld [vmem:[%s8554 + $0x20] sm:$0xff]
    %v8560 = vld [vmem:[%s8554 + $0x28] sm:$0xff]
    %v8561 = vld [vmem:[%s8554 + $0x30] sm:$0xff]
    %v8562 = vld [vmem:[%s8554 + $0x38] sm:$0xff]
    %v8563 = vld [vmem:[%s8554 + $0x40] sm:$0xff]
    %v8564 = vld [vmem:[%s8554 + $0x48] sm:$0xff]
    %v8565 = vld [vmem:[%s8554 + $0x50] sm:$0xff]
    %v8566 = vld [vmem:[%s8554 + $0x58] sm:$0xff]
    %v8567 = vld [vmem:[%s8554 + $0x60] sm:$0xff]
    %v8568 = vld [vmem:[%s8554 + $0x68] sm:$0xff]
    %v8569 = vld [vmem:[%s8554 + $0x70] sm:$0xff]
    %v8570 = vld [vmem:[%s8554 + $0x78] sm:$0xff]
    %v8571 = vld [vmem:[%s8554 + $0x80] sm:$0xff]
    %v8572 = vld [vmem:[%s8554 + $0x88] sm:$0xff]
    %v8573 = vld [vmem:[%s8554 + $0x90] sm:$0xff]
    %v8574 = vld [vmem:[%s8554 + $0x98] sm:$0xff]
    %v8575 = vld [vmem:[%s8554 + $0xa0] sm:$0xff]
    %v8576 = vld [vmem:[%s8554 + $0xa8] sm:$0xff]
    %v8577 = vld [vmem:[%s8554 + $0xb0] sm:$0xff]
    %v8578 = vld [vmem:[%s8554 + $0xb8] sm:$0xff]
    %v8579 = vld [vmem:[%s8554 + $0xc0] sm:$0xff]
    %v8580 = vld [vmem:[%s8554 + $0xc8] sm:$0xff]
    %v8581 = vld [vmem:[%s8554 + $0xd0] sm:$0xff]
    %v8582 = vld [vmem:[%s8554 + $0xd8] sm:$0xff]
    %v8583 = vld [vmem:[%s8554 + $0xe0] sm:$0xff]
    %v8584 = vld [vmem:[%s8554 + $0xe8] sm:$0xff]
    %v8585 = vld [vmem:[%s8554 + $0xf0] sm:$0xff]
    %v8586 = vld [vmem:[%s8554 + $0xf8] sm:$0xff]
    %v8587 = vld [vmem:[#allocation3] sm:$0xff]
    %v8588 = vld [vmem:[#allocation3 + $0x8] sm:$0xff]
    %v8589 = vld [vmem:[#allocation3 + $0x10] sm:$0xff]
    %v8590 = vld [vmem:[#allocation3 + $0x18] sm:$0xff]
    %v8591 = vld [vmem:[#allocation3 + $0x20] sm:$0xff]
    %v8592 = vld [vmem:[#allocation3 + $0x28] sm:$0xff]
    %v8593 = vld [vmem:[#allocation3 + $0x30] sm:$0xff]
    %v8594 = vld [vmem:[#allocation3 + $0x38] sm:$0xff]
    %v8595 = vld [vmem:[#allocation3 + $0x40] sm:$0xff]
    %v8596 = vld [vmem:[#allocation3 + $0x48] sm:$0xff]
    %v8597 = vld [vmem:[#allocation3 + $0x50] sm:$0xff]
    %v8598 = vld [vmem:[#allocation3 + $0x58] sm:$0xff]
    %v8599 = vld [vmem:[#allocation3 + $0x60] sm:$0xff]
    %v8600 = vld [vmem:[#allocation3 + $0x68] sm:$0xff]
    %v8601 = vld [vmem:[#allocation3 + $0x70] sm:$0xff]
    %v8602 = vld [vmem:[#allocation3 + $0x78] sm:$0xff]
    %v8603 = vld [vmem:[#allocation3 + $0x80] sm:$0x1]
    %v8604 = vld [vmem:[#allocation3 + $0x88] sm:$0x1]
    %8605 = vmatprep.subr.mxu0 0.0
    %8606 = vmatpush1.msra.mxu0 %v8537
    %8607 = vmatprep.subr.mxu0 0.0
    %8608 = vmatpush1.msra.mxu0 %v8536
    %8609 = vmatprep.subr.mxu0 0.0
    %8610 = vmatpush1.msra.mxu0 %v8535
    %8611 = vmatprep.subr.mxu0 0.0
    %8612 = vmatpush1.msra.mxu0 %v8534
    %8613 = vmatprep.subr.mxu0 0.0
    %8614 = vmatpush1.msra.mxu0 %v8533
    %8615 = vmatprep.subr.mxu0 0.0
    %8616 = vmatpush1.msra.mxu0 %v8532
    %8617 = vmatprep.subr.mxu0 0.0
    %8618 = vmatpush1.msra.mxu0 %v8531
    %8619 = vmatprep.subr.mxu0 0.0
    %8620 = vmatpush1.msra.mxu0 %v8530
    %8621 = vmatprep.subr.mxu0 0.0
    %8622 = vmatpush1.msra.mxu0 %v8529
    %8623 = vmatprep.subr.mxu0 0.0
    %8624 = vmatpush1.msra.mxu0 %v8528
    %8625 = vmatprep.subr.mxu0 0.0
    %8626 = vmatpush1.msra.mxu0 %v8527
    %8627 = vmatprep.subr.mxu0 0.0
    %8628 = vmatpush1.msra.mxu0 %v8526
    %8629 = vmatprep.subr.mxu0 0.0
    %8630 = vmatpush1.msra.mxu0 %v8525
    %8631 = vmatprep.subr.mxu0 0.0
    %8632 = vmatpush1.msra.mxu0 %v8524
    %8633 = vmatprep.subr.mxu0 0.0
    %8634 = vmatpush1.msra.mxu0 %v8523
    %8635 = vmatprep.subr.mxu0 0.0
    %8636 = vmatpush1.msra.mxu0 %v8522
    %8637 = vmatprep.subr.mxu0 0.0
    %8638 = vmatpush2.msra.mxu0 %v8553
    %8639 = vmatprep.subr.mxu0 0.0
    %8640 = vmatpush2.msra.mxu0 %v8552
    %8641 = vmatprep.subr.mxu0 0.0
    %8642 = vmatpush2.msra.mxu0 %v8551
    %8643 = vmatprep.subr.mxu0 0.0
    %8644 = vmatpush2.msra.mxu0 %v8550
    %8645 = vmatprep.subr.mxu0 0.0
    %8646 = vmatpush2.msra.mxu0 %v8549
    %8647 = vmatprep.subr.mxu0 0.0
    %8648 = vmatpush2.msra.mxu0 %v8548
    %8649 = vmatprep.subr.mxu0 0.0
    %8650 = vmatpush2.msra.mxu0 %v8547
    %8651 = vmatprep.subr.mxu0 0.0
    %8652 = vmatpush2.msra.mxu0 %v8546
    %8653 = vmatprep.subr.mxu0 0.0
    %8654 = vmatpush2.msra.mxu0 %v8545
    %8655 = vmatprep.subr.mxu0 0.0
    %8656 = vmatpush2.msra.mxu0 %v8544
    %8657 = vmatprep.subr.mxu0 0.0
    %8658 = vmatpush2.msra.mxu0 %v8543
    %8659 = vmatprep.subr.mxu0 0.0
    %8660 = vmatpush2.msra.mxu0 %v8542
    %8661 = vmatprep.subr.mxu0 0.0
    %8662 = vmatpush2.msra.mxu0 %v8541
    %8663 = vmatprep.subr.mxu0 0.0
    %8664 = vmatpush2.msra.mxu0 %v8540
    %8665 = vmatprep.subr.mxu0 0.0
    %8666 = vmatpush2.msra.mxu0 %v8539
    %8667 = vmatprep.subr.mxu0 0.0
    %8668 = vmatpush2.msra.mxu0 %v8538
    %8669 = vmatprep.mubr.f32.mxu0 %v8588
    %8670 = vmatmul.mubr.f32.gmra.mxu0 %v8587
    %v8671 = vpop.f32.mrf.mxu0
    %v8672 = vadd.f32 0.0, %v8671
    %v8673 = vpop.f32.mrf.mxu0
    %8674 = vmatprep.mubr.f32.mxu0 %v8590
    %8675 = vmatmul.mubr.f32.gmra.mxu0 %v8589
    %v8676 = vpop.f32.mrf.mxu0
    %v8677 = vadd.f32 0.0, %v8676
    %v8678 = vpop.f32.mrf.mxu0
    %8679 = vmatprep.mubr.f32.mxu0 %v8592
    %8680 = vmatmul.mubr.f32.gmra.mxu0 %v8591
    %v8681 = vpop.f32.mrf.mxu0
    %v8682 = vadd.f32 0.0, %v8681
    %v8683 = vpop.f32.mrf.mxu0
    %8684 = vmatprep.mubr.f32.mxu0 %v8594
    %8685 = vmatmul.mubr.f32.gmra.mxu0 %v8593
    %v8686 = vpop.f32.mrf.mxu0
    %v8687 = vadd.f32 0.0, %v8686
    %v8688 = vpop.f32.mrf.mxu0
    %8689 = vmatprep.mubr.f32.mxu0 %v8596
    %8690 = vmatmul.mubr.f32.gmra.mxu0 %v8595
    %v8691 = vpop.f32.mrf.mxu0
    %v8692 = vadd.f32 0.0, %v8691
    %v8693 = vpop.f32.mrf.mxu0
    %8694 = vmatprep.mubr.f32.mxu0 %v8598
    %8695 = vmatmul.mubr.f32.gmra.mxu0 %v8597
    %v8696 = vpop.f32.mrf.mxu0
    %v8697 = vadd.f32 0.0, %v8696
    %v8698 = vpop.f32.mrf.mxu0
    %8699 = vmatprep.mubr.f32.mxu0 %v8600
    %8700 = vmatmul.mubr.f32.gmra.mxu0 %v8599
    %v8701 = vpop.f32.mrf.mxu0
    %v8702 = vadd.f32 0.0, %v8701
    %v8703 = vpop.f32.mrf.mxu0
    %8704 = vmatprep.mubr.f32.mxu0 %v8602
    %8705 = vmatmul.mubr.f32.gmra.mxu0 %v8601
    %v8706 = vpop.f32.mrf.mxu0
    %v8707 = vadd.f32 0.0, %v8706
    %v8708 = vpop.f32.mrf.mxu0
    %8709 = vmatprep.mubr.f32.mxu0 %v8604
    %8710 = vmatmul.mubr.f32.gmra.mxu0 %v8603
    %v8711 = vpop.f32.mrf.mxu0
    %v8712 = vpop.f32.mrf.mxu0
    %8713 = vdwg.mxu0
    %8714 = vmatprep.subr.mxu0 0.0
    %8715 = vmatpush1.msra.mxu0 %v8570
    %8716 = vmatprep.subr.mxu0 0.0
    %8717 = vmatpush1.msra.mxu0 %v8569
    %8718 = vmatprep.subr.mxu0 0.0
    %8719 = vmatpush1.msra.mxu0 %v8568
    %8720 = vmatprep.subr.mxu0 0.0
    %8721 = vmatpush1.msra.mxu0 %v8567
    %8722 = vmatprep.subr.mxu0 0.0
    %8723 = vmatpush1.msra.mxu0 %v8566
    %8724 = vmatprep.subr.mxu0 0.0
    %8725 = vmatpush1.msra.mxu0 %v8565
    %8726 = vmatprep.subr.mxu0 0.0
    %8727 = vmatpush1.msra.mxu0 %v8564
    %8728 = vmatprep.subr.mxu0 0.0
    %8729 = vmatpush1.msra.mxu0 %v8563
    %8730 = vmatprep.subr.mxu0 0.0
    %8731 = vmatpush1.msra.mxu0 %v8562
    %8732 = vmatprep.subr.mxu0 0.0
    %8733 = vmatpush1.msra.mxu0 %v8561
    %8734 = vmatprep.subr.mxu0 0.0
    %8735 = vmatpush1.msra.mxu0 %v8560
    %8736 = vmatprep.subr.mxu0 0.0
    %8737 = vmatpush1.msra.mxu0 %v8559
    %8738 = vmatprep.subr.mxu0 0.0
    %8739 = vmatpush1.msra.mxu0 %v8558
    %8740 = vmatprep.subr.mxu0 0.0
    %8741 = vmatpush1.msra.mxu0 %v8557
    %8742 = vmatprep.subr.mxu0 0.0
    %8743 = vmatpush1.msra.mxu0 %v8556
    %8744 = vmatprep.subr.mxu0 0.0
    %8745 = vmatpush1.msra.mxu0 %v8555
    %8746 = vmatprep.subr.mxu0 0.0
    %8747 = vmatpush2.msra.mxu0 %v8586
    %8748 = vmatprep.subr.mxu0 0.0
    %8749 = vmatpush2.msra.mxu0 %v8585
    %8750 = vmatprep.subr.mxu0 0.0
    %8751 = vmatpush2.msra.mxu0 %v8584
    %8752 = vmatprep.subr.mxu0 0.0
    %8753 = vmatpush2.msra.mxu0 %v8583
    %8754 = vmatprep.subr.mxu0 0.0
    %8755 = vmatpush2.msra.mxu0 %v8582
    %8756 = vmatprep.subr.mxu0 0.0
    %8757 = vmatpush2.msra.mxu0 %v8581
    %8758 = vmatprep.subr.mxu0 0.0
    %8759 = vmatpush2.msra.mxu0 %v8580
    %8760 = vmatprep.subr.mxu0 0.0
    %8761 = vmatpush2.msra.mxu0 %v8579
    %8762 = vmatprep.subr.mxu0 0.0
    %8763 = vmatpush2.msra.mxu0 %v8578
    %8764 = vmatprep.subr.mxu0 0.0
    %8765 = vmatpush2.msra.mxu0 %v8577
    %8766 = vmatprep.subr.mxu0 0.0
    %8767 = vmatpush2.msra.mxu0 %v8576
    %8768 = vmatprep.subr.mxu0 0.0
    %8769 = vmatpush2.msra.mxu0 %v8575
    %8770 = vmatprep.subr.mxu0 0.0
    %8771 = vmatpush2.msra.mxu0 %v8574
    %8772 = vmatprep.subr.mxu0 0.0
    %8773 = vmatpush2.msra.mxu0 %v8573
    %8774 = vmatprep.subr.mxu0 0.0
    %8775 = vmatpush2.msra.mxu0 %v8572
    %8776 = vmatprep.subr.mxu0 0.0
    %8777 = vmatpush2.msra.mxu0 %v8571
    %8778 = vmatprep.mubr.f32.mxu0 %v8588
    %8779 = vmatmul.mubr.f32.gmra.mxu0 %v8587
    %v8780 = vpop.f32.mrf.mxu0
    %v8781 = vadd.f32 0.0, %v8780
    %v8782 = vpop.f32.mrf.mxu0
    %8783 = vmatprep.mubr.f32.mxu0 %v8590
    %8784 = vmatmul.mubr.f32.gmra.mxu0 %v8589
    %v8785 = vpop.f32.mrf.mxu0
    %v8786 = vadd.f32 0.0, %v8785
    %v8787 = vpop.f32.mrf.mxu0
    %8788 = vmatprep.mubr.f32.mxu0 %v8592
    %8789 = vmatmul.mubr.f32.gmra.mxu0 %v8591
    %v8790 = vpop.f32.mrf.mxu0
    %v8791 = vadd.f32 0.0, %v8790
    %v8792 = vpop.f32.mrf.mxu0
    %8793 = vmatprep.mubr.f32.mxu0 %v8594
    %8794 = vmatmul.mubr.f32.gmra.mxu0 %v8593
    %v8795 = vpop.f32.mrf.mxu0
    %v8796 = vadd.f32 0.0, %v8795
    %v8797 = vpop.f32.mrf.mxu0
    %8798 = vmatprep.mubr.f32.mxu0 %v8596
    %8799 = vmatmul.mubr.f32.gmra.mxu0 %v8595
    %v8800 = vpop.f32.mrf.mxu0
    %v8801 = vadd.f32 0.0, %v8800
    %v8802 = vpop.f32.mrf.mxu0
    %8803 = vmatprep.mubr.f32.mxu0 %v8598
    %8804 = vmatmul.mubr.f32.gmra.mxu0 %v8597
    %v8805 = vpop.f32.mrf.mxu0
    %v8806 = vadd.f32 0.0, %v8805
    %v8807 = vpop.f32.mrf.mxu0
    %8808 = vmatprep.mubr.f32.mxu0 %v8600
    %8809 = vmatmul.mubr.f32.gmra.mxu0 %v8599
    %v8810 = vpop.f32.mrf.mxu0
    %v8811 = vadd.f32 0.0, %v8810
    %v8812 = vpop.f32.mrf.mxu0
    %8813 = vmatprep.mubr.f32.mxu0 %v8602
    %8814 = vmatmul.mubr.f32.gmra.mxu0 %v8601
    %v8815 = vpop.f32.mrf.mxu0
    %v8816 = vadd.f32 0.0, %v8815
    %v8817 = vpop.f32.mrf.mxu0
    %8818 = vmatprep.mubr.f32.mxu0 %v8604
    %8819 = vmatmul.mubr.f32.gmra.mxu0 %v8603
    %v8820 = vpop.f32.mrf.mxu0
    %v8821 = vadd.f32 0.0, %v8820
    %v8822 = vpop.f32.mrf.mxu0
    %8823 = vdwg.mxu0
    %v8833 = vrot.slane %v8781, 1
    %v8834 = vrot.slane %v8786, 1
    %v8835 = vsel %vm1146, %v8833, %v8834
    %v8836 = vrot.slane %v8791, 1
    %v8837 = vsel %vm1146, %v8834, %v8836
    %v8838 = vrot.slane %v8796, 1
    %v8839 = vsel %vm1146, %v8836, %v8838
    %v8840 = vrot.slane %v8801, 1
    %v8841 = vsel %vm1146, %v8838, %v8840
    %v8842 = vrot.slane %v8806, 1
    %v8843 = vsel %vm1146, %v8840, %v8842
    %v8844 = vrot.slane %v8811, 1
    %v8845 = vsel %vm1146, %v8842, %v8844
    %v8846 = vrot.slane %v8816, 1
    %v8847 = vsel %vm1146, %v8844, %v8846
    %v8848 = vrot.slane %v8821, 1
    %v8849 = vsel %vm1146, %v8846, %v8848
    %v8858 = vadd.f32 %v8672, %v8835
    %v8859 = vadd.f32 %v8677, %v8837
    %v8860 = vadd.f32 %v8682, %v8839
    %v8861 = vadd.f32 %v8687, %v8841
    %v8862 = vadd.f32 %v8692, %v8843
    %v8863 = vadd.f32 %v8697, %v8845
    %v8864 = vadd.f32 %v8702, %v8847
    %v8865 = vadd.f32 %v8707, %v8849
    %8866 = vst [vmem:[#allocation4] sm:$0xff] %v8858
    %8867 = vst [vmem:[#allocation4 + $0x8] sm:$0xff] %v8859
    %8868 = vst [vmem:[#allocation4 + $0x10] sm:$0xff] %v8860
    %8869 = vst [vmem:[#allocation4 + $0x18] sm:$0xff] %v8861
    %8870 = vst [vmem:[#allocation4 + $0x20] sm:$0xff] %v8862
    %8871 = vst [vmem:[#allocation4 + $0x28] sm:$0xff] %v8863
    %8872 = vst [vmem:[#allocation4 + $0x30] sm:$0xff] %v8864
    %8873 = vst [vmem:[#allocation4 + $0x38] sm:$0xff] %v8865
    %v8874 = vadd.f32 %v8858, %v8859
    %v8875 = vadd.f32 %v8874, %v8860
    %v8876 = vadd.f32 %v8875, %v8861
    %v8877 = vadd.f32 %v8876, %v8862
    %v8878 = vadd.f32 %v8877, %v8863
    %v8879 = vadd.f32 %v8878, %v8864
    %v8880 = vadd.f32 %v8879, %v8865
    %v8881 = vrot.slane %v8880, 4
    %v8882 = vadd.f32 %v8880, %v8881
    %v8883 = vrot.slane %v8882, 2
    %v8884 = vadd.f32 %v8882, %v8883
    %v8885 = vrot.slane %v8884, 1
    %v8886 = vadd.f32 %v8884, %v8885
    %v8887 = vadd.f32 %v8886, 0.0
    %v8888 = vmul.f32 %v8858, %v8858
    %v8889 = vmul.f32 %v8859, %v8859
    %v8890 = vmul.f32 %v8860, %v8860
    %v8891 = vmul.f32 %v8861, %v8861
    %v8892 = vmul.f32 %v8862, %v8862
    %v8893 = vmul.f32 %v8863, %v8863
    %v8894 = vmul.f32 %v8864, %v8864
    %v8895 = vmul.f32 %v8865, %v8865
    %v8896 = vadd.f32 %v8888, %v8889
    %v8897 = vadd.f32 %v8896, %v8890
    %v8898 = vadd.f32 %v8897, %v8891
    %v8899 = vadd.f32 %v8898, %v8892
    %v8900 = vadd.f32 %v8899, %v8893
    %v8901 = vadd.f32 %v8900, %v8894
    %v8902 = vadd.f32 %v8901, %v8895
    %v8903 = vrot.slane %v8902, 4
    %v8904 = vadd.f32 %v8902, %v8903
    %v8905 = vrot.slane %v8904, 2
    %v8906 = vadd.f32 %v8904, %v8905
    %v8907 = vrot.slane %v8906, 1
    %v8908 = vadd.f32 %v8906, %v8907
    %v8909 = vadd.f32 %v8908, 0.0
    %v8910 = vld [vmem:[%s7753] sm:$0xff]
    %v8911 = vld [vmem:[%s7753 + $0x8] sm:$0xff]
    %v8912 = vld [vmem:[%s7753 + $0x10] sm:$0xff]
    %v8913 = vld [vmem:[%s7753 + $0x18] sm:$0xff]
    %v8914 = vld [vmem:[%s7753 + $0x20] sm:$0xff]
    %v8915 = vld [vmem:[%s7753 + $0x28] sm:$0xff]
    %v8916 = vld [vmem:[%s7753 + $0x30] sm:$0xff]
    %v8917 = vld [vmem:[%s7753 + $0x38] sm:$0xff]
    %v8918 = vld [vmem:[%s7753 + $0x40] sm:$0xff]
    %v8919 = vld [vmem:[%s7753 + $0x48] sm:$0xff]
    %v8920 = vld [vmem:[%s7753 + $0x50] sm:$0xff]
    %v8921 = vld [vmem:[%s7753 + $0x58] sm:$0xff]
    %v8922 = vld [vmem:[%s7753 + $0x60] sm:$0xff]
    %v8923 = vld [vmem:[%s7753 + $0x68] sm:$0xff]
    %v8924 = vld [vmem:[%s7753 + $0x70] sm:$0xff]
    %v8925 = vld [vmem:[%s7753 + $0x78] sm:$0xff]
    %v8926 = vld [vmem:[%s7753 + $0x80] sm:$0x1]
    %v8927 = vld [vmem:[%s7753 + $0x88] sm:$0x1]
    %8928 = vmatprep.subr.mxu0 0.0
    %8929 = vmatpush1.msra.mxu0 %v8537
    %8930 = vmatprep.subr.mxu0 0.0
    %8931 = vmatpush1.msra.mxu0 %v8536
    %8932 = vmatprep.subr.mxu0 0.0
    %8933 = vmatpush1.msra.mxu0 %v8535
    %8934 = vmatprep.subr.mxu0 0.0
    %8935 = vmatpush1.msra.mxu0 %v8534
    %8936 = vmatprep.subr.mxu0 0.0
    %8937 = vmatpush1.msra.mxu0 %v8533
    %8938 = vmatprep.subr.mxu0 0.0
    %8939 = vmatpush1.msra.mxu0 %v8532
    %8940 = vmatprep.subr.mxu0 0.0
    %8941 = vmatpush1.msra.mxu0 %v8531
    %8942 = vmatprep.subr.mxu0 0.0
    %8943 = vmatpush1.msra.mxu0 %v8530
    %8944 = vmatprep.subr.mxu0 0.0
    %8945 = vmatpush1.msra.mxu0 %v8529
    %8946 = vmatprep.subr.mxu0 0.0
    %8947 = vmatpush1.msra.mxu0 %v8528
    %8948 = vmatprep.subr.mxu0 0.0
    %8949 = vmatpush1.msra.mxu0 %v8527
    %8950 = vmatprep.subr.mxu0 0.0
    %8951 = vmatpush1.msra.mxu0 %v8526
    %8952 = vmatprep.subr.mxu0 0.0
    %8953 = vmatpush1.msra.mxu0 %v8525
    %8954 = vmatprep.subr.mxu0 0.0
    %8955 = vmatpush1.msra.mxu0 %v8524
    %8956 = vmatprep.subr.mxu0 0.0
    %8957 = vmatpush1.msra.mxu0 %v8523
    %8958 = vmatprep.subr.mxu0 0.0
    %8959 = vmatpush1.msra.mxu0 %v8522
    %8960 = vmatprep.subr.mxu0 0.0
    %8961 = vmatpush2.msra.mxu0 %v8553
    %8962 = vmatprep.subr.mxu0 0.0
    %8963 = vmatpush2.msra.mxu0 %v8552
    %8964 = vmatprep.subr.mxu0 0.0
    %8965 = vmatpush2.msra.mxu0 %v8551
    %8966 = vmatprep.subr.mxu0 0.0
    %8967 = vmatpush2.msra.mxu0 %v8550
    %8968 = vmatprep.subr.mxu0 0.0
    %8969 = vmatpush2.msra.mxu0 %v8549
    %8970 = vmatprep.subr.mxu0 0.0
    %8971 = vmatpush2.msra.mxu0 %v8548
    %8972 = vmatprep.subr.mxu0 0.0
    %8973 = vmatpush2.msra.mxu0 %v8547
    %8974 = vmatprep.subr.mxu0 0.0
    %8975 = vmatpush2.msra.mxu0 %v8546
    %8976 = vmatprep.subr.mxu0 0.0
    %8977 = vmatpush2.msra.mxu0 %v8545
    %8978 = vmatprep.subr.mxu0 0.0
    %8979 = vmatpush2.msra.mxu0 %v8544
    %8980 = vmatprep.subr.mxu0 0.0
    %8981 = vmatpush2.msra.mxu0 %v8543
    %8982 = vmatprep.subr.mxu0 0.0
    %8983 = vmatpush2.msra.mxu0 %v8542
    %8984 = vmatprep.subr.mxu0 0.0
    %8985 = vmatpush2.msra.mxu0 %v8541
    %8986 = vmatprep.subr.mxu0 0.0
    %8987 = vmatpush2.msra.mxu0 %v8540
    %8988 = vmatprep.subr.mxu0 0.0
    %8989 = vmatpush2.msra.mxu0 %v8539
    %8990 = vmatprep.subr.mxu0 0.0
    %8991 = vmatpush2.msra.mxu0 %v8538
    %8992 = vmatprep.mubr.f32.mxu0 %v8911
    %8993 = vmatmul.mubr.f32.gmra.mxu0 %v8910
    %v8994 = vpop.f32.mrf.mxu0
    %v8995 = vadd.f32 0.0, %v8994
    %v8996 = vpop.f32.mrf.mxu0
    %8997 = vmatprep.mubr.f32.mxu0 %v8913
    %8998 = vmatmul.mubr.f32.gmra.mxu0 %v8912
    %v8999 = vpop.f32.mrf.mxu0
    %v9000 = vadd.f32 0.0, %v8999
    %v9001 = vpop.f32.mrf.mxu0
    %9002 = vmatprep.mubr.f32.mxu0 %v8915
    %9003 = vmatmul.mubr.f32.gmra.mxu0 %v8914
    %v9004 = vpop.f32.mrf.mxu0
    %v9005 = vadd.f32 0.0, %v9004
    %v9006 = vpop.f32.mrf.mxu0
    %9007 = vmatprep.mubr.f32.mxu0 %v8917
    %9008 = vmatmul.mubr.f32.gmra.mxu0 %v8916
    %v9009 = vpop.f32.mrf.mxu0
    %v9010 = vadd.f32 0.0, %v9009
    %v9011 = vpop.f32.mrf.mxu0
    %9012 = vmatprep.mubr.f32.mxu0 %v8919
    %9013 = vmatmul.mubr.f32.gmra.mxu0 %v8918
    %v9014 = vpop.f32.mrf.mxu0
    %v9015 = vadd.f32 0.0, %v9014
    %v9016 = vpop.f32.mrf.mxu0
    %9017 = vmatprep.mubr.f32.mxu0 %v8921
    %9018 = vmatmul.mubr.f32.gmra.mxu0 %v8920
    %v9019 = vpop.f32.mrf.mxu0
    %v9020 = vadd.f32 0.0, %v9019
    %v9021 = vpop.f32.mrf.mxu0
    %9022 = vmatprep.mubr.f32.mxu0 %v8923
    %9023 = vmatmul.mubr.f32.gmra.mxu0 %v8922
    %v9024 = vpop.f32.mrf.mxu0
    %v9025 = vadd.f32 0.0, %v9024
    %v9026 = vpop.f32.mrf.mxu0
    %9027 = vmatprep.mubr.f32.mxu0 %v8925
    %9028 = vmatmul.mubr.f32.gmra.mxu0 %v8924
    %v9029 = vpop.f32.mrf.mxu0
    %v9030 = vadd.f32 0.0, %v9029
    %v9031 = vpop.f32.mrf.mxu0
    %9032 = vmatprep.mubr.f32.mxu0 %v8927
    %9033 = vmatmul.mubr.f32.gmra.mxu0 %v8926
    %v9034 = vpop.f32.mrf.mxu0
    %v9035 = vpop.f32.mrf.mxu0
    %9036 = vdwg.mxu0
    %9037 = vmatprep.subr.mxu0 0.0
    %9038 = vmatpush1.msra.mxu0 %v8570
    %9039 = vmatprep.subr.mxu0 0.0
    %9040 = vmatpush1.msra.mxu0 %v8569
    %9041 = vmatprep.subr.mxu0 0.0
    %9042 = vmatpush1.msra.mxu0 %v8568
    %9043 = vmatprep.subr.mxu0 0.0
    %9044 = vmatpush1.msra.mxu0 %v8567
    %9045 = vmatprep.subr.mxu0 0.0
    %9046 = vmatpush1.msra.mxu0 %v8566
    %9047 = vmatprep.subr.mxu0 0.0
    %9048 = vmatpush1.msra.mxu0 %v8565
    %9049 = vmatprep.subr.mxu0 0.0
    %9050 = vmatpush1.msra.mxu0 %v8564
    %9051 = vmatprep.subr.mxu0 0.0
    %9052 = vmatpush1.msra.mxu0 %v8563
    %9053 = vmatprep.subr.mxu0 0.0
    %9054 = vmatpush1.msra.mxu0 %v8562
    %9055 = vmatprep.subr.mxu0 0.0
    %9056 = vmatpush1.msra.mxu0 %v8561
    %9057 = vmatprep.subr.mxu0 0.0
    %9058 = vmatpush1.msra.mxu0 %v8560
    %9059 = vmatprep.subr.mxu0 0.0
    %9060 = vmatpush1.msra.mxu0 %v8559
    %9061 = vmatprep.subr.mxu0 0.0
    %9062 = vmatpush1.msra.mxu0 %v8558
    %9063 = vmatprep.subr.mxu0 0.0
    %9064 = vmatpush1.msra.mxu0 %v8557
    %9065 = vmatprep.subr.mxu0 0.0
    %9066 = vmatpush1.msra.mxu0 %v8556
    %9067 = vmatprep.subr.mxu0 0.0
    %9068 = vmatpush1.msra.mxu0 %v8555
    %9069 = vmatprep.subr.mxu0 0.0
    %9070 = vmatpush2.msra.mxu0 %v8586
    %9071 = vmatprep.subr.mxu0 0.0
    %9072 = vmatpush2.msra.mxu0 %v8585
    %9073 = vmatprep.subr.mxu0 0.0
    %9074 = vmatpush2.msra.mxu0 %v8584
    %9075 = vmatprep.subr.mxu0 0.0
    %9076 = vmatpush2.msra.mxu0 %v8583
    %9077 = vmatprep.subr.mxu0 0.0
    %9078 = vmatpush2.msra.mxu0 %v8582
    %9079 = vmatprep.subr.mxu0 0.0
    %9080 = vmatpush2.msra.mxu0 %v8581
    %9081 = vmatprep.subr.mxu0 0.0
    %9082 = vmatpush2.msra.mxu0 %v8580
    %9083 = vmatprep.subr.mxu0 0.0
    %9084 = vmatpush2.msra.mxu0 %v8579
    %9085 = vmatprep.subr.mxu0 0.0
    %9086 = vmatpush2.msra.mxu0 %v8578
    %9087 = vmatprep.subr.mxu0 0.0
    %9088 = vmatpush2.msra.mxu0 %v8577
    %9089 = vmatprep.subr.mxu0 0.0
    %9090 = vmatpush2.msra.mxu0 %v8576
    %9091 = vmatprep.subr.mxu0 0.0
    %9092 = vmatpush2.msra.mxu0 %v8575
    %9093 = vmatprep.subr.mxu0 0.0
    %9094 = vmatpush2.msra.mxu0 %v8574
    %9095 = vmatprep.subr.mxu0 0.0
    %9096 = vmatpush2.msra.mxu0 %v8573
    %9097 = vmatprep.subr.mxu0 0.0
    %9098 = vmatpush2.msra.mxu0 %v8572
    %9099 = vmatprep.subr.mxu0 0.0
    %9100 = vmatpush2.msra.mxu0 %v8571
    %9101 = vmatprep.mubr.f32.mxu0 %v8911
    %9102 = vmatmul.mubr.f32.gmra.mxu0 %v8910
    %v9103 = vpop.f32.mrf.mxu0
    %v9104 = vadd.f32 0.0, %v9103
    %v9105 = vpop.f32.mrf.mxu0
    %9106 = vmatprep.mubr.f32.mxu0 %v8913
    %9107 = vmatmul.mubr.f32.gmra.mxu0 %v8912
    %v9108 = vpop.f32.mrf.mxu0
    %v9109 = vadd.f32 0.0, %v9108
    %v9110 = vpop.f32.mrf.mxu0
    %9111 = vmatprep.mubr.f32.mxu0 %v8915
    %9112 = vmatmul.mubr.f32.gmra.mxu0 %v8914
    %v9113 = vpop.f32.mrf.mxu0
    %v9114 = vadd.f32 0.0, %v9113
    %v9115 = vpop.f32.mrf.mxu0
    %9116 = vmatprep.mubr.f32.mxu0 %v8917
    %9117 = vmatmul.mubr.f32.gmra.mxu0 %v8916
    %v9118 = vpop.f32.mrf.mxu0
    %v9119 = vadd.f32 0.0, %v9118
    %v9120 = vpop.f32.mrf.mxu0
    %9121 = vmatprep.mubr.f32.mxu0 %v8919
    %9122 = vmatmul.mubr.f32.gmra.mxu0 %v8918
    %v9123 = vpop.f32.mrf.mxu0
    %v9124 = vadd.f32 0.0, %v9123
    %v9125 = vpop.f32.mrf.mxu0
    %9126 = vmatprep.mubr.f32.mxu0 %v8921
    %9127 = vmatmul.mubr.f32.gmra.mxu0 %v8920
    %v9128 = vpop.f32.mrf.mxu0
    %v9129 = vadd.f32 0.0, %v9128
    %v9130 = vpop.f32.mrf.mxu0
    %9131 = vmatprep.mubr.f32.mxu0 %v8923
    %9132 = vmatmul.mubr.f32.gmra.mxu0 %v8922
    %v9133 = vpop.f32.mrf.mxu0
    %v9134 = vadd.f32 0.0, %v9133
    %v9135 = vpop.f32.mrf.mxu0
    %9136 = vmatprep.mubr.f32.mxu0 %v8925
    %9137 = vmatmul.mubr.f32.gmra.mxu0 %v8924
    %v9138 = vpop.f32.mrf.mxu0
    %v9139 = vadd.f32 0.0, %v9138
    %v9140 = vpop.f32.mrf.mxu0
    %9141 = vmatprep.mubr.f32.mxu0 %v8927
    %9142 = vmatmul.mubr.f32.gmra.mxu0 %v8926
    %v9143 = vpop.f32.mrf.mxu0
    %v9144 = vadd.f32 0.0, %v9143
    %v9145 = vpop.f32.mrf.mxu0
    %9146 = vdwg.mxu0
    %v9156 = vrot.slane %v9104, 1
    %v9157 = vrot.slane %v9109, 1
    %v9158 = vsel %vm1146, %v9156, %v9157
    %v9159 = vrot.slane %v9114, 1
    %v9160 = vsel %vm1146, %v9157, %v9159
    %v9161 = vrot.slane %v9119, 1
    %v9162 = vsel %vm1146, %v9159, %v9161
    %v9163 = vrot.slane %v9124, 1
    %v9164 = vsel %vm1146, %v9161, %v9163
    %v9165 = vrot.slane %v9129, 1
    %v9166 = vsel %vm1146, %v9163, %v9165
    %v9167 = vrot.slane %v9134, 1
    %v9168 = vsel %vm1146, %v9165, %v9167
    %v9169 = vrot.slane %v9139, 1
    %v9170 = vsel %vm1146, %v9167, %v9169
    %v9171 = vrot.slane %v9144, 1
    %v9172 = vsel %vm1146, %v9169, %v9171
    %v9181 = vadd.f32 %v8995, %v9158
    %v9182 = vadd.f32 %v9000, %v9160
    %v9183 = vadd.f32 %v9005, %v9162
    %v9184 = vadd.f32 %v9010, %v9164
    %v9185 = vadd.f32 %v9015, %v9166
    %v9186 = vadd.f32 %v9020, %v9168
    %v9187 = vadd.f32 %v9025, %v9170
    %v9188 = vadd.f32 %v9030, %v9172
    %s9189 = scalar_lea.vmem [#allocation4], 64
    %9190 = vst [vmem:[%s9189] sm:$0xff] %v9181
    %9191 = vst [vmem:[%s9189 + $0x8] sm:$0xff] %v9182
    %9192 = vst [vmem:[%s9189 + $0x10] sm:$0xff] %v9183
    %9193 = vst [vmem:[%s9189 + $0x18] sm:$0xff] %v9184
    %9194 = vst [vmem:[%s9189 + $0x20] sm:$0xff] %v9185
    %9195 = vst [vmem:[%s9189 + $0x28] sm:$0xff] %v9186
    %9196 = vst [vmem:[%s9189 + $0x30] sm:$0xff] %v9187
    %9197 = vst [vmem:[%s9189 + $0x38] sm:$0xff] %v9188
    %v9198 = vadd.f32 %v9181, %v9182
    %v9199 = vadd.f32 %v9198, %v9183
    %v9200 = vadd.f32 %v9199, %v9184
    %v9201 = vadd.f32 %v9200, %v9185
    %v9202 = vadd.f32 %v9201, %v9186
    %v9203 = vadd.f32 %v9202, %v9187
    %v9204 = vadd.f32 %v9203, %v9188
    %v9205 = vrot.slane %v9204, 4
    %v9206 = vadd.f32 %v9204, %v9205
    %v9207 = vrot.slane %v9206, 2
    %v9208 = vadd.f32 %v9206, %v9207
    %v9209 = vrot.slane %v9208, 1
    %v9210 = vadd.f32 %v9208, %v9209
    %v9211 = vadd.f32 %v8887, %v9210
    %v9212 = vmul.f32 %v9181, %v9181
    %v9213 = vmul.f32 %v9182, %v9182
    %v9214 = vmul.f32 %v9183, %v9183
    %v9215 = vmul.f32 %v9184, %v9184
    %v9216 = vmul.f32 %v9185, %v9185
    %v9217 = vmul.f32 %v9186, %v9186
    %v9218 = vmul.f32 %v9187, %v9187
    %v9219 = vmul.f32 %v9188, %v9188
    %v9220 = vadd.f32 %v9212, %v9213
    %v9221 = vadd.f32 %v9220, %v9214
    %v9222 = vadd.f32 %v9221, %v9215
    %v9223 = vadd.f32 %v9222, %v9216
    %v9224 = vadd.f32 %v9223, %v9217
    %v9225 = vadd.f32 %v9224, %v9218
    %v9226 = vadd.f32 %v9225, %v9219
    %v9227 = vrot.slane %v9226, 4
    %v9228 = vadd.f32 %v9226, %v9227
    %v9229 = vrot.slane %v9228, 2
    %v9230 = vadd.f32 %v9228, %v9229
    %v9231 = vrot.slane %v9230, 1
    %v9232 = vadd.f32 %v9230, %v9231
    %v9233 = vadd.f32 %v8909, %v9232
    %v9234 = vrcp.pop 128.0
    %v9235 = vmul.f32 %v9211, %v9234
    %v9236 = vmul.f32 %v9233, %v9234
    %v9237 = vmul.f32 %v9235, %v9235
    %v9238 = vsub.f32 %v9236, %v9237
    %v9239 = vmax.f32 %v9238, 0.0
    %v9240 = vld [vmem:[%s5] sm:$0x1]
    %v9241 = vadd.f32 %v9239, 1e-05
    %v9242 = vrsqrt.pop %v9241
    %v9243 = vmul.f32 %v9240, %v9242
    %v9244 = vld [vmem:[%s6] sm:$0x1]
    %v9245 = vmul.f32 %v9235, %v9243
    %v9246 = vsub.f32 %v9244, %v9245
    %v9247 = vld [vmem:[#allocation4] sm:$0xff]
    %v9248 = vld [vmem:[#allocation4 + $0x8] sm:$0xff]
    %v9249 = vld [vmem:[#allocation4 + $0x10] sm:$0xff]
    %v9250 = vld [vmem:[#allocation4 + $0x18] sm:$0xff]
    %v9251 = vld [vmem:[#allocation4 + $0x20] sm:$0xff]
    %v9252 = vld [vmem:[#allocation4 + $0x28] sm:$0xff]
    %v9253 = vld [vmem:[#allocation4 + $0x30] sm:$0xff]
    %v9254 = vld [vmem:[#allocation4 + $0x38] sm:$0xff]
    %v9256 = vlaneseq
    %v9257 = vshrl.u32 %v9256, 7
    %v9258 = vsub.s32 0, %v9257
    %v9259 = vrot.slane %v9243, %v9258
    %v9261 = vmul.f32 %v9247, %v9259
    %v9262 = vmul.f32 %v9248, %v9259
    %v9263 = vmul.f32 %v9249, %v9259
    %v9264 = vmul.f32 %v9250, %v9259
    %v9265 = vmul.f32 %v9251, %v9259
    %v9266 = vmul.f32 %v9252, %v9259
    %v9267 = vmul.f32 %v9253, %v9259
    %v9268 = vmul.f32 %v9254, %v9259
    %v9270 = vlaneseq
    %v9271 = vshrl.u32 %v9270, 7
    %v9272 = vsub.s32 0, %v9271
    %v9273 = vrot.slane %v9246, %v9272
    %v9275 = vadd.f32 %v9261, %v9273
    %v9276 = vadd.f32 %v9262, %v9273
    %v9277 = vadd.f32 %v9263, %v9273
    %v9278 = vadd.f32 %v9264, %v9273
    %v9279 = vadd.f32 %v9265, %v9273
    %v9280 = vadd.f32 %v9266, %v9273
    %v9281 = vadd.f32 %v9267, %v9273
    %v9282 = vadd.f32 %v9268, %v9273
    %v9283 = vmax.f32 %v9275, 0.0
    %v9284 = vmax.f32 %v9276, 0.0
    %v9285 = vmax.f32 %v9277, 0.0
    %v9286 = vmax.f32 %v9278, 0.0
    %v9287 = vmax.f32 %v9279, 0.0
    %v9288 = vmax.f32 %v9280, 0.0
    %v9289 = vmax.f32 %v9281, 0.0
    %v9290 = vmax.f32 %v9282, 0.0
    %v9299 = vrot.slane %v9283, 1
    %v9300 = vrot.slane %v9284, 1
    %v9301 = vsel %vm1146, %v9299, %v9300
    %v9302 = vrot.slane %v9285, 1
    %v9303 = vsel %vm1146, %v9300, %v9302
    %v9304 = vrot.slane %v9286, 1
    %v9305 = vsel %vm1146, %v9302, %v9304
    %v9306 = vrot.slane %v9287, 1
    %v9307 = vsel %vm1146, %v9304, %v9306
    %v9308 = vrot.slane %v9288, 1
    %v9309 = vsel %vm1146, %v9306, %v9308
    %v9310 = vrot.slane %v9289, 1
    %v9311 = vsel %vm1146, %v9308, %v9310
    %v9312 = vrot.slane %v9290, 1
    %v9313 = vsel %vm1146, %v9310, %v9312
    %v9322 = vmax.f32 %v9283, %v9301
    %v9323 = vmax.f32 %v9284, %v9303
    %v9324 = vmax.f32 %v9285, %v9305
    %v9325 = vmax.f32 %v9286, %v9307
    %v9326 = vmax.f32 %v9287, %v9309
    %v9327 = vmax.f32 %v9288, %v9311
    %v9328 = vmax.f32 %v9289, %v9313
    %v9329 = vmax.f32 %v9290, %v9312
    %vm9338 = vcmask 1045504
    %v9339 = vrot.slane %v9322, 2
    %v9340 = vrot.slane %v9323, 2
    %v9341 = vsel %vm9338, %v9339, %v9340
    %v9342 = vrot.slane %v9324, 2
    %v9343 = vsel %vm9338, %v9340, %v9342
    %v9344 = vrot.slane %v9325, 2
    %v9345 = vsel %vm9338, %v9342, %v9344
    %v9346 = vrot.slane %v9326, 2
    %v9347 = vsel %vm9338, %v9344, %v9346
    %v9348 = vrot.slane %v9327, 2
    %v9349 = vsel %vm9338, %v9346, %v9348
    %v9350 = vrot.slane %v9328, 2
    %v9351 = vsel %vm9338, %v9348, %v9350
    %v9352 = vrot.slane %v9329, 2
    %v9353 = vsel %vm9338, %v9350, %v9352
    %v9362 = vmax.f32 %v9322, %v9341
    %v9363 = vmax.f32 %v9323, %v9343
    %v9364 = vmax.f32 %v9324, %v9345
    %v9365 = vmax.f32 %v9325, %v9347
    %v9366 = vmax.f32 %v9326, %v9349
    %v9367 = vmax.f32 %v9327, %v9351
    %v9368 = vmax.f32 %v9328, %v9353
    %v9369 = vmax.f32 %v9329, %v9352
    %v9370 = vadd.s32 %v4872, 2
    %vm9371 = vcmp.eq.s32.totalorder %v4868, %v9370
    %v9372 = vsel %vm9371, 1, 0
    %v9373 = vcvt.s32.f32 %v9372
    %v9374 = vadd.s32 %v4872, 4
    %vm9375 = vcmp.eq.s32.totalorder %v4868, %v9374
    %v9376 = vsel %vm9375, 1, 0
    %v9377 = vcvt.s32.f32 %v9376
    %v9378 = vadd.s32 %v4872, 6
    %vm9379 = vcmp.eq.s32.totalorder %v4868, %v9378
    %v9380 = vsel %vm9379, 1, 0
    %v9381 = vcvt.s32.f32 %v9380
    %vm9382 = vcmask 498688
    %v9384 = vsel %vm9382, %v5304, 0
    %vm9386 = vcmask 1044480
    %v9388 = vsel %vm9386, %v9369, 0
    %9390 = vmatprep.subr.mxu0 0.0
    %9391 = vmatpush1.msra.mxu0 0.0
    %9392 = vmatprep.subr.mxu0 0.0
    %9393 = vmatpush1.msra.mxu0 0.0
    %9394 = vmatprep.subr.mxu0 0.0
    %9395 = vmatpush1.msra.mxu0 0.0
    %9396 = vmatprep.subr.mxu0 0.0
    %9397 = vmatpush1.msra.mxu0 0.0
    %9398 = vmatprep.subr.mxu0 0.0
    %9399 = vmatpush1.msra.mxu0 0.0
    %9400 = vmatprep.subr.mxu0 0.0
    %9401 = vmatpush1.msra.mxu0 0.0
    %9402 = vmatprep.subr.mxu0 0.0
    %9403 = vmatpush1.msra.mxu0 0.0
    %9404 = vmatprep.subr.mxu0 0.0
    %9405 = vmatpush1.msra.mxu0 0.0
    %9406 = vmatprep.subr.mxu0 0.0
    %9407 = vmatpush1.msra.mxu0 %v9388
    %9408 = vmatprep.subr.mxu0 0.0
    %9409 = vmatpush1.msra.mxu0 %v9368
    %9410 = vmatprep.subr.mxu0 0.0
    %9411 = vmatpush1.msra.mxu0 %v9367
    %9412 = vmatprep.subr.mxu0 0.0
    %9413 = vmatpush1.msra.mxu0 %v9366
    %9414 = vmatprep.subr.mxu0 0.0
    %9415 = vmatpush1.msra.mxu0 %v9365
    %9416 = vmatprep.subr.mxu0 0.0
    %9417 = vmatpush1.msra.mxu0 %v9364
    %9418 = vmatprep.subr.mxu0 0.0
    %9419 = vmatpush1.msra.mxu0 %v9363
    %9420 = vmatprep.subr.mxu0 0.0
    %9421 = vmatpush1.msra.mxu0 %v9362
    %9422 = vmatprep.subr.mxu0 0.0
    %9423 = vmatpush2.msra.mxu0 0.0
    %9424 = vmatprep.subr.mxu0 0.0
    %9425 = vmatpush2.msra.mxu0 0.0
    %9426 = vmatprep.subr.mxu0 0.0
    %9427 = vmatpush2.msra.mxu0 0.0
    %9428 = vmatprep.subr.mxu0 0.0
    %9429 = vmatpush2.msra.mxu0 0.0
    %9430 = vmatprep.subr.mxu0 0.0
    %9431 = vmatpush2.msra.mxu0 0.0
    %9432 = vmatprep.subr.mxu0 0.0
    %9433 = vmatpush2.msra.mxu0 0.0
    %9434 = vmatprep.subr.mxu0 0.0
    %9435 = vmatpush2.msra.mxu0 0.0
    %9436 = vmatprep.subr.mxu0 0.0
    %9437 = vmatpush2.msra.mxu0 0.0
    %9438 = vmatprep.subr.mxu0 0.0
    %9439 = vmatpush2.msra.mxu0 0.0
    %9440 = vmatprep.subr.mxu0 0.0
    %9441 = vmatpush2.msra.mxu0 0.0
    %9442 = vmatprep.subr.mxu0 0.0
    %9443 = vmatpush2.msra.mxu0 0.0
    %9444 = vmatprep.subr.mxu0 0.0
    %9445 = vmatpush2.msra.mxu0 0.0
    %9446 = vmatprep.subr.mxu0 0.0
    %9447 = vmatpush2.msra.mxu0 0.0
    %9448 = vmatprep.subr.mxu0 0.0
    %9449 = vmatpush2.msra.mxu0 0.0
    %9450 = vmatprep.subr.mxu0 0.0
    %9451 = vmatpush2.msra.mxu0 0.0
    %9452 = vmatprep.subr.mxu0 0.0
    %9453 = vmatpush2.msra.mxu0 0.0
    %9454 = vmatprep.mubr.f32.mxu0 0.0
    %9455 = vmatmul.mubr.f32.gmra.mxu0 %v9384
    %v9456 = vpop.f32.mrf.mxu0
    %v9457 = vadd.f32 0.0, %v9456
    %v9458 = vpop.f32.mrf.mxu0
    %9459 = vdwg.mxu0
    %9460 = vst [vmem:[#allocation5] sm:$0xff] %v9457
    %v9462 = vsel %vm9382, %v9373, 0
    %9464 = vmatprep.subr.mxu0 0.0
    %9465 = vmatpush1.msra.mxu0 0.0
    %9466 = vmatprep.subr.mxu0 0.0
    %9467 = vmatpush1.msra.mxu0 0.0
    %9468 = vmatprep.subr.mxu0 0.0
    %9469 = vmatpush1.msra.mxu0 0.0
    %9470 = vmatprep.subr.mxu0 0.0
    %9471 = vmatpush1.msra.mxu0 0.0
    %9472 = vmatprep.subr.mxu0 0.0
    %9473 = vmatpush1.msra.mxu0 0.0
    %9474 = vmatprep.subr.mxu0 0.0
    %9475 = vmatpush1.msra.mxu0 0.0
    %9476 = vmatprep.subr.mxu0 0.0
    %9477 = vmatpush1.msra.mxu0 0.0
    %9478 = vmatprep.subr.mxu0 0.0
    %9479 = vmatpush1.msra.mxu0 0.0
    %9480 = vmatprep.subr.mxu0 0.0
    %9481 = vmatpush1.msra.mxu0 %v9388
    %9482 = vmatprep.subr.mxu0 0.0
    %9483 = vmatpush1.msra.mxu0 %v9368
    %9484 = vmatprep.subr.mxu0 0.0
    %9485 = vmatpush1.msra.mxu0 %v9367
    %9486 = vmatprep.subr.mxu0 0.0
    %9487 = vmatpush1.msra.mxu0 %v9366
    %9488 = vmatprep.subr.mxu0 0.0
    %9489 = vmatpush1.msra.mxu0 %v9365
    %9490 = vmatprep.subr.mxu0 0.0
    %9491 = vmatpush1.msra.mxu0 %v9364
    %9492 = vmatprep.subr.mxu0 0.0
    %9493 = vmatpush1.msra.mxu0 %v9363
    %9494 = vmatprep.subr.mxu0 0.0
    %9495 = vmatpush1.msra.mxu0 %v9362
    %9496 = vmatprep.subr.mxu0 0.0
    %9497 = vmatpush2.msra.mxu0 0.0
    %9498 = vmatprep.subr.mxu0 0.0
    %9499 = vmatpush2.msra.mxu0 0.0
    %9500 = vmatprep.subr.mxu0 0.0
    %9501 = vmatpush2.msra.mxu0 0.0
    %9502 = vmatprep.subr.mxu0 0.0
    %9503 = vmatpush2.msra.mxu0 0.0
    %9504 = vmatprep.subr.mxu0 0.0
    %9505 = vmatpush2.msra.mxu0 0.0
    %9506 = vmatprep.subr.mxu0 0.0
    %9507 = vmatpush2.msra.mxu0 0.0
    %9508 = vmatprep.subr.mxu0 0.0
    %9509 = vmatpush2.msra.mxu0 0.0
    %9510 = vmatprep.subr.mxu0 0.0
    %9511 = vmatpush2.msra.mxu0 0.0
    %9512 = vmatprep.subr.mxu0 0.0
    %9513 = vmatpush2.msra.mxu0 0.0
    %9514 = vmatprep.subr.mxu0 0.0
    %9515 = vmatpush2.msra.mxu0 0.0
    %9516 = vmatprep.subr.mxu0 0.0
    %9517 = vmatpush2.msra.mxu0 0.0
    %9518 = vmatprep.subr.mxu0 0.0
    %9519 = vmatpush2.msra.mxu0 0.0
    %9520 = vmatprep.subr.mxu0 0.0
    %9521 = vmatpush2.msra.mxu0 0.0
    %9522 = vmatprep.subr.mxu0 0.0
    %9523 = vmatpush2.msra.mxu0 0.0
    %9524 = vmatprep.subr.mxu0 0.0
    %9525 = vmatpush2.msra.mxu0 0.0
    %9526 = vmatprep.subr.mxu0 0.0
    %9527 = vmatpush2.msra.mxu0 0.0
    %9528 = vmatprep.mubr.f32.mxu0 0.0
    %9529 = vmatmul.mubr.f32.gmra.mxu0 %v9462
    %v9530 = vpop.f32.mrf.mxu0
    %v9531 = vadd.f32 0.0, %v9530
    %v9532 = vpop.f32.mrf.mxu0
    %9533 = vdwg.mxu0
    %9534 = vst [vmem:[#allocation5 + $0x8] sm:$0xff] %v9531
    %v9536 = vsel %vm9382, %v9377, 0
    %9538 = vmatprep.subr.mxu0 0.0
    %9539 = vmatpush1.msra.mxu0 0.0
    %9540 = vmatprep.subr.mxu0 0.0
    %9541 = vmatpush1.msra.mxu0 0.0
    %9542 = vmatprep.subr.mxu0 0.0
    %9543 = vmatpush1.msra.mxu0 0.0
    %9544 = vmatprep.subr.mxu0 0.0
    %9545 = vmatpush1.msra.mxu0 0.0
    %9546 = vmatprep.subr.mxu0 0.0
    %9547 = vmatpush1.msra.mxu0 0.0
    %9548 = vmatprep.subr.mxu0 0.0
    %9549 = vmatpush1.msra.mxu0 0.0
    %9550 = vmatprep.subr.mxu0 0.0
    %9551 = vmatpush1.msra.mxu0 0.0
    %9552 = vmatprep.subr.mxu0 0.0
    %9553 = vmatpush1.msra.mxu0 0.0
    %9554 = vmatprep.subr.mxu0 0.0
    %9555 = vmatpush1.msra.mxu0 %v9388
    %9556 = vmatprep.subr.mxu0 0.0
    %9557 = vmatpush1.msra.mxu0 %v9368
    %9558 = vmatprep.subr.mxu0 0.0
    %9559 = vmatpush1.msra.mxu0 %v9367
    %9560 = vmatprep.subr.mxu0 0.0
    %9561 = vmatpush1.msra.mxu0 %v9366
    %9562 = vmatprep.subr.mxu0 0.0
    %9563 = vmatpush1.msra.mxu0 %v9365
    %9564 = vmatprep.subr.mxu0 0.0
    %9565 = vmatpush1.msra.mxu0 %v9364
    %9566 = vmatprep.subr.mxu0 0.0
    %9567 = vmatpush1.msra.mxu0 %v9363
    %9568 = vmatprep.subr.mxu0 0.0
    %9569 = vmatpush1.msra.mxu0 %v9362
    %9570 = vmatprep.subr.mxu0 0.0
    %9571 = vmatpush2.msra.mxu0 0.0
    %9572 = vmatprep.subr.mxu0 0.0
    %9573 = vmatpush2.msra.mxu0 0.0
    %9574 = vmatprep.subr.mxu0 0.0
    %9575 = vmatpush2.msra.mxu0 0.0
    %9576 = vmatprep.subr.mxu0 0.0
    %9577 = vmatpush2.msra.mxu0 0.0
    %9578 = vmatprep.subr.mxu0 0.0
    %9579 = vmatpush2.msra.mxu0 0.0
    %9580 = vmatprep.subr.mxu0 0.0
    %9581 = vmatpush2.msra.mxu0 0.0
    %9582 = vmatprep.subr.mxu0 0.0
    %9583 = vmatpush2.msra.mxu0 0.0
    %9584 = vmatprep.subr.mxu0 0.0
    %9585 = vmatpush2.msra.mxu0 0.0
    %9586 = vmatprep.subr.mxu0 0.0
    %9587 = vmatpush2.msra.mxu0 0.0
    %9588 = vmatprep.subr.mxu0 0.0
    %9589 = vmatpush2.msra.mxu0 0.0
    %9590 = vmatprep.subr.mxu0 0.0
    %9591 = vmatpush2.msra.mxu0 0.0
    %9592 = vmatprep.subr.mxu0 0.0
    %9593 = vmatpush2.msra.mxu0 0.0
    %9594 = vmatprep.subr.mxu0 0.0
    %9595 = vmatpush2.msra.mxu0 0.0
    %9596 = vmatprep.subr.mxu0 0.0
    %9597 = vmatpush2.msra.mxu0 0.0
    %9598 = vmatprep.subr.mxu0 0.0
    %9599 = vmatpush2.msra.mxu0 0.0
    %9600 = vmatprep.subr.mxu0 0.0
    %9601 = vmatpush2.msra.mxu0 0.0
    %9602 = vmatprep.mubr.f32.mxu0 0.0
    %9603 = vmatmul.mubr.f32.gmra.mxu0 %v9536
    %v9604 = vpop.f32.mrf.mxu0
    %v9605 = vadd.f32 0.0, %v9604
    %v9606 = vpop.f32.mrf.mxu0
    %9607 = vdwg.mxu0
    %9608 = vst [vmem:[#allocation5 + $0x10] sm:$0xff] %v9605
    %v9610 = vsel %vm9382, %v9381, 0
    %9612 = vmatprep.subr.mxu0 0.0
    %9613 = vmatpush1.msra.mxu0 0.0
    %9614 = vmatprep.subr.mxu0 0.0
    %9615 = vmatpush1.msra.mxu0 0.0
    %9616 = vmatprep.subr.mxu0 0.0
    %9617 = vmatpush1.msra.mxu0 0.0
    %9618 = vmatprep.subr.mxu0 0.0
    %9619 = vmatpush1.msra.mxu0 0.0
    %9620 = vmatprep.subr.mxu0 0.0
    %9621 = vmatpush1.msra.mxu0 0.0
    %9622 = vmatprep.subr.mxu0 0.0
    %9623 = vmatpush1.msra.mxu0 0.0
    %9624 = vmatprep.subr.mxu0 0.0
    %9625 = vmatpush1.msra.mxu0 0.0
    %9626 = vmatprep.subr.mxu0 0.0
    %9627 = vmatpush1.msra.mxu0 0.0
    %9628 = vmatprep.subr.mxu0 0.0
    %9629 = vmatpush1.msra.mxu0 %v9388
    %9630 = vmatprep.subr.mxu0 0.0
    %9631 = vmatpush1.msra.mxu0 %v9368
    %9632 = vmatprep.subr.mxu0 0.0
    %9633 = vmatpush1.msra.mxu0 %v9367
    %9634 = vmatprep.subr.mxu0 0.0
    %9635 = vmatpush1.msra.mxu0 %v9366
    %9636 = vmatprep.subr.mxu0 0.0
    %9637 = vmatpush1.msra.mxu0 %v9365
    %9638 = vmatprep.subr.mxu0 0.0
    %9639 = vmatpush1.msra.mxu0 %v9364
    %9640 = vmatprep.subr.mxu0 0.0
    %9641 = vmatpush1.msra.mxu0 %v9363
    %9642 = vmatprep.subr.mxu0 0.0
    %9643 = vmatpush1.msra.mxu0 %v9362
    %9644 = vmatprep.subr.mxu0 0.0
    %9645 = vmatpush2.msra.mxu0 0.0
    %9646 = vmatprep.subr.mxu0 0.0
    %9647 = vmatpush2.msra.mxu0 0.0
    %9648 = vmatprep.subr.mxu0 0.0
    %9649 = vmatpush2.msra.mxu0 0.0
    %9650 = vmatprep.subr.mxu0 0.0
    %9651 = vmatpush2.msra.mxu0 0.0
    %9652 = vmatprep.subr.mxu0 0.0
    %9653 = vmatpush2.msra.mxu0 0.0
    %9654 = vmatprep.subr.mxu0 0.0
    %9655 = vmatpush2.msra.mxu0 0.0
    %9656 = vmatprep.subr.mxu0 0.0
    %9657 = vmatpush2.msra.mxu0 0.0
    %9658 = vmatprep.subr.mxu0 0.0
    %9659 = vmatpush2.msra.mxu0 0.0
    %9660 = vmatprep.subr.mxu0 0.0
    %9661 = vmatpush2.msra.mxu0 0.0
    %9662 = vmatprep.subr.mxu0 0.0
    %9663 = vmatpush2.msra.mxu0 0.0
    %9664 = vmatprep.subr.mxu0 0.0
    %9665 = vmatpush2.msra.mxu0 0.0
    %9666 = vmatprep.subr.mxu0 0.0
    %9667 = vmatpush2.msra.mxu0 0.0
    %9668 = vmatprep.subr.mxu0 0.0
    %9669 = vmatpush2.msra.mxu0 0.0
    %9670 = vmatprep.subr.mxu0 0.0
    %9671 = vmatpush2.msra.mxu0 0.0
    %9672 = vmatprep.subr.mxu0 0.0
    %9673 = vmatpush2.msra.mxu0 0.0
    %9674 = vmatprep.subr.mxu0 0.0
    %9675 = vmatpush2.msra.mxu0 0.0
    %9676 = vmatprep.mubr.f32.mxu0 0.0
    %9677 = vmatmul.mubr.f32.gmra.mxu0 %v9610
    %v9678 = vpop.f32.mrf.mxu0
    %v9679 = vadd.f32 0.0, %v9678
    %v9680 = vpop.f32.mrf.mxu0
    %9681 = vdwg.mxu0
    %9682 = vst [vmem:[#allocation5 + $0x18] sm:$0xff] %v9679
    %v9683 = vld [vmem:[%s9189] sm:$0xff]
    %v9684 = vld [vmem:[%s9189 + $0x8] sm:$0xff]
    %v9685 = vld [vmem:[%s9189 + $0x10] sm:$0xff]
    %v9686 = vld [vmem:[%s9189 + $0x18] sm:$0xff]
    %v9687 = vld [vmem:[%s9189 + $0x20] sm:$0xff]
    %v9688 = vld [vmem:[%s9189 + $0x28] sm:$0xff]
    %v9689 = vld [vmem:[%s9189 + $0x30] sm:$0xff]
    %v9690 = vld [vmem:[%s9189 + $0x38] sm:$0xff]
    %v9691 = vmul.f32 %v9683, %v9259
    %v9692 = vmul.f32 %v9684, %v9259
    %v9693 = vmul.f32 %v9685, %v9259
    %v9694 = vmul.f32 %v9686, %v9259
    %v9695 = vmul.f32 %v9687, %v9259
    %v9696 = vmul.f32 %v9688, %v9259
    %v9697 = vmul.f32 %v9689, %v9259
    %v9698 = vmul.f32 %v9690, %v9259
    %v9699 = vadd.f32 %v9691, %v9273
    %v9700 = vadd.f32 %v9692, %v9273
    %v9701 = vadd.f32 %v9693, %v9273
    %v9702 = vadd.f32 %v9694, %v9273
    %v9703 = vadd.f32 %v9695, %v9273
    %v9704 = vadd.f32 %v9696, %v9273
    %v9705 = vadd.f32 %v9697, %v9273
    %v9706 = vadd.f32 %v9698, %v9273
    %v9707 = vmax.f32 %v9699, 0.0
    %v9708 = vmax.f32 %v9700, 0.0
    %v9709 = vmax.f32 %v9701, 0.0
    %v9710 = vmax.f32 %v9702, 0.0
    %v9711 = vmax.f32 %v9703, 0.0
    %v9712 = vmax.f32 %v9704, 0.0
    %v9713 = vmax.f32 %v9705, 0.0
    %v9714 = vmax.f32 %v9706, 0.0
    %v9723 = vrot.slane %v9707, 1
    %v9724 = vrot.slane %v9708, 1
    %v9725 = vsel %vm1146, %v9723, %v9724
    %v9726 = vrot.slane %v9709, 1
    %v9727 = vsel %vm1146, %v9724, %v9726
    %v9728 = vrot.slane %v9710, 1
    %v9729 = vsel %vm1146, %v9726, %v9728
    %v9730 = vrot.slane %v9711, 1
    %v9731 = vsel %vm1146, %v9728, %v9730
    %v9732 = vrot.slane %v9712, 1
    %v9733 = vsel %vm1146, %v9730, %v9732
    %v9734 = vrot.slane %v9713, 1
    %v9735 = vsel %vm1146, %v9732, %v9734
    %v9736 = vrot.slane %v9714, 1
    %v9737 = vsel %vm1146, %v9734, %v9736
    %v9746 = vmax.f32 %v9707, %v9725
    %v9747 = vmax.f32 %v9708, %v9727
    %v9748 = vmax.f32 %v9709, %v9729
    %v9749 = vmax.f32 %v9710, %v9731
    %v9750 = vmax.f32 %v9711, %v9733
    %v9751 = vmax.f32 %v9712, %v9735
    %v9752 = vmax.f32 %v9713, %v9737
    %v9753 = vmax.f32 %v9714, %v9736
    %v9762 = vrot.slane %v9746, 2
    %v9763 = vrot.slane %v9747, 2
    %v9764 = vsel %vm9338, %v9762, %v9763
    %v9765 = vrot.slane %v9748, 2
    %v9766 = vsel %vm9338, %v9763, %v9765
    %v9767 = vrot.slane %v9749, 2
    %v9768 = vsel %vm9338, %v9765, %v9767
    %v9769 = vrot.slane %v9750, 2
    %v9770 = vsel %vm9338, %v9767, %v9769
    %v9771 = vrot.slane %v9751, 2
    %v9772 = vsel %vm9338, %v9769, %v9771
    %v9773 = vrot.slane %v9752, 2
    %v9774 = vsel %vm9338, %v9771, %v9773
    %v9775 = vrot.slane %v9753, 2
    %v9776 = vsel %vm9338, %v9773, %v9775
    %v9785 = vmax.f32 %v9746, %v9764
    %v9786 = vmax.f32 %v9747, %v9766
    %v9787 = vmax.f32 %v9748, %v9768
    %v9788 = vmax.f32 %v9749, %v9770
    %v9789 = vmax.f32 %v9750, %v9772
    %v9790 = vmax.f32 %v9751, %v9774
    %v9791 = vmax.f32 %v9752, %v9776
    %v9792 = vmax.f32 %v9753, %v9775
    %v9794 = vsel %vm9386, %v9792, 0
    %9796 = vmatprep.subr.mxu0 0.0
    %9797 = vmatpush1.msra.mxu0 0.0
    %9798 = vmatprep.subr.mxu0 0.0
    %9799 = vmatpush1.msra.mxu0 0.0
    %9800 = vmatprep.subr.mxu0 0.0
    %9801 = vmatpush1.msra.mxu0 0.0
    %9802 = vmatprep.subr.mxu0 0.0
    %9803 = vmatpush1.msra.mxu0 0.0
    %9804 = vmatprep.subr.mxu0 0.0
    %9805 = vmatpush1.msra.mxu0 0.0
    %9806 = vmatprep.subr.mxu0 0.0
    %9807 = vmatpush1.msra.mxu0 0.0
    %9808 = vmatprep.subr.mxu0 0.0
    %9809 = vmatpush1.msra.mxu0 0.0
    %9810 = vmatprep.subr.mxu0 0.0
    %9811 = vmatpush1.msra.mxu0 0.0
    %9812 = vmatprep.subr.mxu0 0.0
    %9813 = vmatpush1.msra.mxu0 %v9794
    %9814 = vmatprep.subr.mxu0 0.0
    %9815 = vmatpush1.msra.mxu0 %v9791
    %9816 = vmatprep.subr.mxu0 0.0
    %9817 = vmatpush1.msra.mxu0 %v9790
    %9818 = vmatprep.subr.mxu0 0.0
    %9819 = vmatpush1.msra.mxu0 %v9789
    %9820 = vmatprep.subr.mxu0 0.0
    %9821 = vmatpush1.msra.mxu0 %v9788
    %9822 = vmatprep.subr.mxu0 0.0
    %9823 = vmatpush1.msra.mxu0 %v9787
    %9824 = vmatprep.subr.mxu0 0.0
    %9825 = vmatpush1.msra.mxu0 %v9786
    %9826 = vmatprep.subr.mxu0 0.0
    %9827 = vmatpush1.msra.mxu0 %v9785
    %9828 = vmatprep.subr.mxu0 0.0
    %9829 = vmatpush2.msra.mxu0 0.0
    %9830 = vmatprep.subr.mxu0 0.0
    %9831 = vmatpush2.msra.mxu0 0.0
    %9832 = vmatprep.subr.mxu0 0.0
    %9833 = vmatpush2.msra.mxu0 0.0
    %9834 = vmatprep.subr.mxu0 0.0
    %9835 = vmatpush2.msra.mxu0 0.0
    %9836 = vmatprep.subr.mxu0 0.0
    %9837 = vmatpush2.msra.mxu0 0.0
    %9838 = vmatprep.subr.mxu0 0.0
    %9839 = vmatpush2.msra.mxu0 0.0
    %9840 = vmatprep.subr.mxu0 0.0
    %9841 = vmatpush2.msra.mxu0 0.0
    %9842 = vmatprep.subr.mxu0 0.0
    %9843 = vmatpush2.msra.mxu0 0.0
    %9844 = vmatprep.subr.mxu0 0.0
    %9845 = vmatpush2.msra.mxu0 0.0
    %9846 = vmatprep.subr.mxu0 0.0
    %9847 = vmatpush2.msra.mxu0 0.0
    %9848 = vmatprep.subr.mxu0 0.0
    %9849 = vmatpush2.msra.mxu0 0.0
    %9850 = vmatprep.subr.mxu0 0.0
    %9851 = vmatpush2.msra.mxu0 0.0
    %9852 = vmatprep.subr.mxu0 0.0
    %9853 = vmatpush2.msra.mxu0 0.0
    %9854 = vmatprep.subr.mxu0 0.0
    %9855 = vmatpush2.msra.mxu0 0.0
    %9856 = vmatprep.subr.mxu0 0.0
    %9857 = vmatpush2.msra.mxu0 0.0
    %9858 = vmatprep.subr.mxu0 0.0
    %9859 = vmatpush2.msra.mxu0 0.0
    %9860 = vmatprep.mubr.f32.mxu0 0.0
    %9861 = vmatmul.mubr.f32.gmra.mxu0 %v9384
    %v9862 = vpop.f32.mrf.mxu0
    %v9863 = vadd.f32 0.0, %v9862
    %v9864 = vpop.f32.mrf.mxu0
    %9865 = vdwg.mxu0
    %s9866 = scalar_lea.vmem [#allocation5], 32
    %9867 = vst [vmem:[%s9866] sm:$0xff] %v9863
    %9868 = vmatprep.subr.mxu0 0.0
    %9869 = vmatpush1.msra.mxu0 0.0
    %9870 = vmatprep.subr.mxu0 0.0
    %9871 = vmatpush1.msra.mxu0 0.0
    %9872 = vmatprep.subr.mxu0 0.0
    %9873 = vmatpush1.msra.mxu0 0.0
    %9874 = vmatprep.subr.mxu0 0.0
    %9875 = vmatpush1.msra.mxu0 0.0
    %9876 = vmatprep.subr.mxu0 0.0
    %9877 = vmatpush1.msra.mxu0 0.0
    %9878 = vmatprep.subr.mxu0 0.0
    %9879 = vmatpush1.msra.mxu0 0.0
    %9880 = vmatprep.subr.mxu0 0.0
    %9881 = vmatpush1.msra.mxu0 0.0
    %9882 = vmatprep.subr.mxu0 0.0
    %9883 = vmatpush1.msra.mxu0 0.0
    %9884 = vmatprep.subr.mxu0 0.0
    %9885 = vmatpush1.msra.mxu0 %v9794
    %9886 = vmatprep.subr.mxu0 0.0
    %9887 = vmatpush1.msra.mxu0 %v9791
    %9888 = vmatprep.subr.mxu0 0.0
    %9889 = vmatpush1.msra.mxu0 %v9790
    %9890 = vmatprep.subr.mxu0 0.0
    %9891 = vmatpush1.msra.mxu0 %v9789
    %9892 = vmatprep.subr.mxu0 0.0
    %9893 = vmatpush1.msra.mxu0 %v9788
    %9894 = vmatprep.subr.mxu0 0.0
    %9895 = vmatpush1.msra.mxu0 %v9787
    %9896 = vmatprep.subr.mxu0 0.0
    %9897 = vmatpush1.msra.mxu0 %v9786
    %9898 = vmatprep.subr.mxu0 0.0
    %9899 = vmatpush1.msra.mxu0 %v9785
    %9900 = vmatprep.subr.mxu0 0.0
    %9901 = vmatpush2.msra.mxu0 0.0
    %9902 = vmatprep.subr.mxu0 0.0
    %9903 = vmatpush2.msra.mxu0 0.0
    %9904 = vmatprep.subr.mxu0 0.0
    %9905 = vmatpush2.msra.mxu0 0.0
    %9906 = vmatprep.subr.mxu0 0.0
    %9907 = vmatpush2.msra.mxu0 0.0
    %9908 = vmatprep.subr.mxu0 0.0
    %9909 = vmatpush2.msra.mxu0 0.0
    %9910 = vmatprep.subr.mxu0 0.0
    %9911 = vmatpush2.msra.mxu0 0.0
    %9912 = vmatprep.subr.mxu0 0.0
    %9913 = vmatpush2.msra.mxu0 0.0
    %9914 = vmatprep.subr.mxu0 0.0
    %9915 = vmatpush2.msra.mxu0 0.0
    %9916 = vmatprep.subr.mxu0 0.0
    %9917 = vmatpush2.msra.mxu0 0.0
    %9918 = vmatprep.subr.mxu0 0.0
    %9919 = vmatpush2.msra.mxu0 0.0
    %9920 = vmatprep.subr.mxu0 0.0
    %9921 = vmatpush2.msra.mxu0 0.0
    %9922 = vmatprep.subr.mxu0 0.0
    %9923 = vmatpush2.msra.mxu0 0.0
    %9924 = vmatprep.subr.mxu0 0.0
    %9925 = vmatpush2.msra.mxu0 0.0
    %9926 = vmatprep.subr.mxu0 0.0
    %9927 = vmatpush2.msra.mxu0 0.0
    %9928 = vmatprep.subr.mxu0 0.0
    %9929 = vmatpush2.msra.mxu0 0.0
    %9930 = vmatprep.subr.mxu0 0.0
    %9931 = vmatpush2.msra.mxu0 0.0
    %9932 = vmatprep.mubr.f32.mxu0 0.0
    %9933 = vmatmul.mubr.f32.gmra.mxu0 %v9462
    %v9934 = vpop.f32.mrf.mxu0
    %v9935 = vadd.f32 0.0, %v9934
    %v9936 = vpop.f32.mrf.mxu0
    %9937 = vdwg.mxu0
    %9938 = vst [vmem:[%s9866 + $0x8] sm:$0xff] %v9935
    %9939 = vmatprep.subr.mxu0 0.0
    %9940 = vmatpush1.msra.mxu0 0.0
    %9941 = vmatprep.subr.mxu0 0.0
    %9942 = vmatpush1.msra.mxu0 0.0
    %9943 = vmatprep.subr.mxu0 0.0
    %9944 = vmatpush1.msra.mxu0 0.0
    %9945 = vmatprep.subr.mxu0 0.0
    %9946 = vmatpush1.msra.mxu0 0.0
    %9947 = vmatprep.subr.mxu0 0.0
    %9948 = vmatpush1.msra.mxu0 0.0
    %9949 = vmatprep.subr.mxu0 0.0
    %9950 = vmatpush1.msra.mxu0 0.0
    %9951 = vmatprep.subr.mxu0 0.0
    %9952 = vmatpush1.msra.mxu0 0.0
    %9953 = vmatprep.subr.mxu0 0.0
    %9954 = vmatpush1.msra.mxu0 0.0
    %9955 = vmatprep.subr.mxu0 0.0
    %9956 = vmatpush1.msra.mxu0 %v9794
    %9957 = vmatprep.subr.mxu0 0.0
    %9958 = vmatpush1.msra.mxu0 %v9791
    %9959 = vmatprep.subr.mxu0 0.0
    %9960 = vmatpush1.msra.mxu0 %v9790
    %9961 = vmatprep.subr.mxu0 0.0
    %9962 = vmatpush1.msra.mxu0 %v9789
    %9963 = vmatprep.subr.mxu0 0.0
    %9964 = vmatpush1.msra.mxu0 %v9788
    %9965 = vmatprep.subr.mxu0 0.0
    %9966 = vmatpush1.msra.mxu0 %v9787
    %9967 = vmatprep.subr.mxu0 0.0
    %9968 = vmatpush1.msra.mxu0 %v9786
    %9969 = vmatprep.subr.mxu0 0.0
    %9970 = vmatpush1.msra.mxu0 %v9785
    %9971 = vmatprep.subr.mxu0 0.0
    %9972 = vmatpush2.msra.mxu0 0.0
    %9973 = vmatprep.subr.mxu0 0.0
    %9974 = vmatpush2.msra.mxu0 0.0
    %9975 = vmatprep.subr.mxu0 0.0
    %9976 = vmatpush2.msra.mxu0 0.0
    %9977 = vmatprep.subr.mxu0 0.0
    %9978 = vmatpush2.msra.mxu0 0.0
    %9979 = vmatprep.subr.mxu0 0.0
    %9980 = vmatpush2.msra.mxu0 0.0
    %9981 = vmatprep.subr.mxu0 0.0
    %9982 = vmatpush2.msra.mxu0 0.0
    %9983 = vmatprep.subr.mxu0 0.0
    %9984 = vmatpush2.msra.mxu0 0.0
    %9985 = vmatprep.subr.mxu0 0.0
    %9986 = vmatpush2.msra.mxu0 0.0
    %9987 = vmatprep.subr.mxu0 0.0
    %9988 = vmatpush2.msra.mxu0 0.0
    %9989 = vmatprep.subr.mxu0 0.0
    %9990 = vmatpush2.msra.mxu0 0.0
    %9991 = vmatprep.subr.mxu0 0.0
    %9992 = vmatpush2.msra.mxu0 0.0
    %9993 = vmatprep.subr.mxu0 0.0
    %9994 = vmatpush2.msra.mxu0 0.0
    %9995 = vmatprep.subr.mxu0 0.0
    %9996 = vmatpush2.msra.mxu0 0.0
    %9997 = vmatprep.subr.mxu0 0.0
    %9998 = vmatpush2.msra.mxu0 0.0
    %9999 = vmatprep.subr.mxu0 0.0
    %10000 = vmatpush2.msra.mxu0 0.0
    %10001 = vmatprep.subr.mxu0 0.0
    %10002 = vmatpush2.msra.mxu0 0.0
    %10003 = vmatprep.mubr.f32.mxu0 0.0
    %10004 = vmatmul.mubr.f32.gmra.mxu0 %v9536
    %v10005 = vpop.f32.mrf.mxu0
    %v10006 = vadd.f32 0.0, %v10005
    %v10007 = vpop.f32.mrf.mxu0
    %10008 = vdwg.mxu0
    %10009 = vst [vmem:[%s9866 + $0x10] sm:$0xff] %v10006
    %10010 = vmatprep.subr.mxu0 0.0
    %10011 = vmatpush1.msra.mxu0 0.0
    %10012 = vmatprep.subr.mxu0 0.0
    %10013 = vmatpush1.msra.mxu0 0.0
    %10014 = vmatprep.subr.mxu0 0.0
    %10015 = vmatpush1.msra.mxu0 0.0
    %10016 = vmatprep.subr.mxu0 0.0
    %10017 = vmatpush1.msra.mxu0 0.0
    %10018 = vmatprep.subr.mxu0 0.0
    %10019 = vmatpush1.msra.mxu0 0.0
    %10020 = vmatprep.subr.mxu0 0.0
    %10021 = vmatpush1.msra.mxu0 0.0
    %10022 = vmatprep.subr.mxu0 0.0
    %10023 = vmatpush1.msra.mxu0 0.0
    %10024 = vmatprep.subr.mxu0 0.0
    %10025 = vmatpush1.msra.mxu0 0.0
    %10026 = vmatprep.subr.mxu0 0.0
    %10027 = vmatpush1.msra.mxu0 %v9794
    %10028 = vmatprep.subr.mxu0 0.0
    %10029 = vmatpush1.msra.mxu0 %v9791
    %10030 = vmatprep.subr.mxu0 0.0
    %10031 = vmatpush1.msra.mxu0 %v9790
    %10032 = vmatprep.subr.mxu0 0.0
    %10033 = vmatpush1.msra.mxu0 %v9789
    %10034 = vmatprep.subr.mxu0 0.0
    %10035 = vmatpush1.msra.mxu0 %v9788
    %10036 = vmatprep.subr.mxu0 0.0
    %10037 = vmatpush1.msra.mxu0 %v9787
    %10038 = vmatprep.subr.mxu0 0.0
    %10039 = vmatpush1.msra.mxu0 %v9786
    %10040 = vmatprep.subr.mxu0 0.0
    %10041 = vmatpush1.msra.mxu0 %v9785
    %10042 = vmatprep.subr.mxu0 0.0
    %10043 = vmatpush2.msra.mxu0 0.0
    %10044 = vmatprep.subr.mxu0 0.0
    %10045 = vmatpush2.msra.mxu0 0.0
    %10046 = vmatprep.subr.mxu0 0.0
    %10047 = vmatpush2.msra.mxu0 0.0
    %10048 = vmatprep.subr.mxu0 0.0
    %10049 = vmatpush2.msra.mxu0 0.0
    %10050 = vmatprep.subr.mxu0 0.0
    %10051 = vmatpush2.msra.mxu0 0.0
    %10052 = vmatprep.subr.mxu0 0.0
    %10053 = vmatpush2.msra.mxu0 0.0
    %10054 = vmatprep.subr.mxu0 0.0
    %10055 = vmatpush2.msra.mxu0 0.0
    %10056 = vmatprep.subr.mxu0 0.0
    %10057 = vmatpush2.msra.mxu0 0.0
    %10058 = vmatprep.subr.mxu0 0.0
    %10059 = vmatpush2.msra.mxu0 0.0
    %10060 = vmatprep.subr.mxu0 0.0
    %10061 = vmatpush2.msra.mxu0 0.0
    %10062 = vmatprep.subr.mxu0 0.0
    %10063 = vmatpush2.msra.mxu0 0.0
    %10064 = vmatprep.subr.mxu0 0.0
    %10065 = vmatpush2.msra.mxu0 0.0
    %10066 = vmatprep.subr.mxu0 0.0
    %10067 = vmatpush2.msra.mxu0 0.0
    %10068 = vmatprep.subr.mxu0 0.0
    %10069 = vmatpush2.msra.mxu0 0.0
    %10070 = vmatprep.subr.mxu0 0.0
    %10071 = vmatpush2.msra.mxu0 0.0
    %10072 = vmatprep.subr.mxu0 0.0
    %10073 = vmatpush2.msra.mxu0 0.0
    %10074 = vmatprep.mubr.f32.mxu0 0.0
    %10075 = vmatmul.mubr.f32.gmra.mxu0 %v9610
    %v10076 = vpop.f32.mrf.mxu0
    %v10077 = vadd.f32 0.0, %v10076
    %v10078 = vpop.f32.mrf.mxu0
    %10079 = vdwg.mxu0
    %10080 = vst [vmem:[%s9866 + $0x18] sm:$0xff] %v10077
    %v10081 = vld [vmem:[%s7] sm:$0xff]
    %v10082 = vld [vmem:[%s7 + $0x8] sm:$0xff]
    %v10083 = vld [vmem:[%s7 + $0x10] sm:$0xff]
    %v10084 = vld [vmem:[%s7 + $0x18] sm:$0xff]
    %v10085 = vld [vmem:[%s7 + $0x20] sm:$0xff]
    %v10086 = vld [vmem:[%s7 + $0x28] sm:$0xff]
    %v10087 = vld [vmem:[%s7 + $0x30] sm:$0xff]
    %v10088 = vld [vmem:[%s7 + $0x38] sm:$0xff]
    %v10089 = vld [vmem:[%s7 + $0x40] sm:$0xff]
    %v10090 = vld [vmem:[%s7 + $0x48] sm:$0xff]
    %v10091 = vld [vmem:[%s7 + $0x50] sm:$0xff]
    %v10092 = vld [vmem:[%s7 + $0x58] sm:$0xff]
    %v10093 = vld [vmem:[%s7 + $0x60] sm:$0xff]
    %v10094 = vld [vmem:[%s7 + $0x68] sm:$0xff]
    %v10095 = vld [vmem:[%s7 + $0x70] sm:$0xff]
    %v10096 = vld [vmem:[%s7 + $0x78] sm:$0xff]
    %v10097 = vld [vmem:[%s7 + $0x80] sm:$0xff]
    %v10098 = vld [vmem:[%s7 + $0x88] sm:$0xff]
    %v10099 = vld [vmem:[%s7 + $0x90] sm:$0xff]
    %v10100 = vld [vmem:[%s7 + $0x98] sm:$0xff]
    %v10101 = vld [vmem:[%s7 + $0xa0] sm:$0xff]
    %v10102 = vld [vmem:[%s7 + $0xa8] sm:$0xff]
    %v10103 = vld [vmem:[%s7 + $0xb0] sm:$0xff]
    %v10104 = vld [vmem:[%s7 + $0xb8] sm:$0xff]
    %v10105 = vld [vmem:[%s7 + $0xc0] sm:$0xff]
    %v10106 = vld [vmem:[%s7 + $0xc8] sm:$0xff]
    %v10107 = vld [vmem:[%s7 + $0xd0] sm:$0xff]
    %v10108 = vld [vmem:[%s7 + $0xd8] sm:$0xff]
    %v10109 = vld [vmem:[%s7 + $0xe0] sm:$0xff]
    %v10110 = vld [vmem:[%s7 + $0xe8] sm:$0xff]
    %v10111 = vld [vmem:[%s7 + $0xf0] sm:$0xff]
    %v10112 = vld [vmem:[%s7 + $0xf8] sm:$0xff]
    %v10113 = vld [vmem:[%s7 + $0x100] sm:$0xff]
    %v10114 = vld [vmem:[%s7 + $0x108] sm:$0xff]
    %v10115 = vld [vmem:[%s7 + $0x110] sm:$0xff]
    %v10116 = vld [vmem:[%s7 + $0x118] sm:$0xff]
    %v10117 = vld [vmem:[%s7 + $0x120] sm:$0xff]
    %v10118 = vld [vmem:[%s7 + $0x128] sm:$0xff]
    %v10119 = vld [vmem:[%s7 + $0x130] sm:$0xff]
    %v10120 = vld [vmem:[%s7 + $0x138] sm:$0xff]
    %v10121 = vld [vmem:[%s7 + $0x140] sm:$0xff]
    %v10122 = vld [vmem:[%s7 + $0x148] sm:$0xff]
    %v10123 = vld [vmem:[%s7 + $0x150] sm:$0xff]
    %v10124 = vld [vmem:[%s7 + $0x158] sm:$0xff]
    %v10125 = vld [vmem:[%s7 + $0x160] sm:$0xff]
    %v10126 = vld [vmem:[%s7 + $0x168] sm:$0xff]
    %v10127 = vld [vmem:[%s7 + $0x170] sm:$0xff]
    %v10128 = vld [vmem:[%s7 + $0x178] sm:$0xff]
    %v10129 = vld [vmem:[%s7 + $0x180] sm:$0xff]
    %v10130 = vld [vmem:[%s7 + $0x188] sm:$0xff]
    %v10131 = vld [vmem:[%s7 + $0x190] sm:$0xff]
    %v10132 = vld [vmem:[%s7 + $0x198] sm:$0xff]
    %v10133 = vld [vmem:[%s7 + $0x1a0] sm:$0xff]
    %v10134 = vld [vmem:[%s7 + $0x1a8] sm:$0xff]
    %v10135 = vld [vmem:[%s7 + $0x1b0] sm:$0xff]
    %v10136 = vld [vmem:[%s7 + $0x1b8] sm:$0xff]
    %v10137 = vld [vmem:[%s7 + $0x1c0] sm:$0xff]
    %v10138 = vld [vmem:[%s7 + $0x1c8] sm:$0xff]
    %v10139 = vld [vmem:[%s7 + $0x1d0] sm:$0xff]
    %v10140 = vld [vmem:[%s7 + $0x1d8] sm:$0xff]
    %v10141 = vld [vmem:[%s7 + $0x1e0] sm:$0xff]
    %v10142 = vld [vmem:[%s7 + $0x1e8] sm:$0xff]
    %v10143 = vld [vmem:[%s7 + $0x1f0] sm:$0xff]
    %v10144 = vld [vmem:[%s7 + $0x1f8] sm:$0xff]
    %s10145 = scalar_lea.vmem %s7, 512
    %v10146 = vld [vmem:[%s10145] sm:$0xff]
    %v10147 = vld [vmem:[%s10145 + $0x8] sm:$0xff]
    %v10148 = vld [vmem:[%s10145 + $0x10] sm:$0xff]
    %v10149 = vld [vmem:[%s10145 + $0x18] sm:$0xff]
    %v10150 = vld [vmem:[%s10145 + $0x20] sm:$0xff]
    %v10151 = vld [vmem:[%s10145 + $0x28] sm:$0xff]
    %v10152 = vld [vmem:[%s10145 + $0x30] sm:$0xff]
    %v10153 = vld [vmem:[%s10145 + $0x38] sm:$0xff]
    %v10154 = vld [vmem:[%s10145 + $0x40] sm:$0xff]
    %v10155 = vld [vmem:[%s10145 + $0x48] sm:$0xff]
    %v10156 = vld [vmem:[%s10145 + $0x50] sm:$0xff]
    %v10157 = vld [vmem:[%s10145 + $0x58] sm:$0xff]
    %v10158 = vld [vmem:[%s10145 + $0x60] sm:$0xff]
    %v10159 = vld [vmem:[%s10145 + $0x68] sm:$0xff]
    %v10160 = vld [vmem:[%s10145 + $0x70] sm:$0xff]
    %v10161 = vld [vmem:[%s10145 + $0x78] sm:$0xff]
    %v10162 = vld [vmem:[%s10145 + $0x80] sm:$0xff]
    %v10163 = vld [vmem:[%s10145 + $0x88] sm:$0xff]
    %v10164 = vld [vmem:[%s10145 + $0x90] sm:$0xff]
    %v10165 = vld [vmem:[%s10145 + $0x98] sm:$0xff]
    %v10166 = vld [vmem:[%s10145 + $0xa0] sm:$0xff]
    %v10167 = vld [vmem:[%s10145 + $0xa8] sm:$0xff]
    %v10168 = vld [vmem:[%s10145 + $0xb0] sm:$0xff]
    %v10169 = vld [vmem:[%s10145 + $0xb8] sm:$0xff]
    %v10170 = vld [vmem:[%s10145 + $0xc0] sm:$0xff]
    %v10171 = vld [vmem:[%s10145 + $0xc8] sm:$0xff]
    %v10172 = vld [vmem:[%s10145 + $0xd0] sm:$0xff]
    %v10173 = vld [vmem:[%s10145 + $0xd8] sm:$0xff]
    %v10174 = vld [vmem:[%s10145 + $0xe0] sm:$0xff]
    %v10175 = vld [vmem:[%s10145 + $0xe8] sm:$0xff]
    %v10176 = vld [vmem:[%s10145 + $0xf0] sm:$0xff]
    %v10177 = vld [vmem:[%s10145 + $0xf8] sm:$0xff]
    %v10178 = vld [vmem:[%s10145 + $0x100] sm:$0xff]
    %v10179 = vld [vmem:[%s10145 + $0x108] sm:$0xff]
    %v10180 = vld [vmem:[%s10145 + $0x110] sm:$0xff]
    %v10181 = vld [vmem:[%s10145 + $0x118] sm:$0xff]
    %v10182 = vld [vmem:[%s10145 + $0x120] sm:$0xff]
    %v10183 = vld [vmem:[%s10145 + $0x128] sm:$0xff]
    %v10184 = vld [vmem:[%s10145 + $0x130] sm:$0xff]
    %v10185 = vld [vmem:[%s10145 + $0x138] sm:$0xff]
    %v10186 = vld [vmem:[%s10145 + $0x140] sm:$0xff]
    %v10187 = vld [vmem:[%s10145 + $0x148] sm:$0xff]
    %v10188 = vld [vmem:[%s10145 + $0x150] sm:$0xff]
    %v10189 = vld [vmem:[%s10145 + $0x158] sm:$0xff]
    %v10190 = vld [vmem:[%s10145 + $0x160] sm:$0xff]
    %v10191 = vld [vmem:[%s10145 + $0x168] sm:$0xff]
    %v10192 = vld [vmem:[%s10145 + $0x170] sm:$0xff]
    %v10193 = vld [vmem:[%s10145 + $0x178] sm:$0xff]
    %v10194 = vld [vmem:[%s10145 + $0x180] sm:$0xff]
    %v10195 = vld [vmem:[%s10145 + $0x188] sm:$0xff]
    %v10196 = vld [vmem:[%s10145 + $0x190] sm:$0xff]
    %v10197 = vld [vmem:[%s10145 + $0x198] sm:$0xff]
    %v10198 = vld [vmem:[%s10145 + $0x1a0] sm:$0xff]
    %v10199 = vld [vmem:[%s10145 + $0x1a8] sm:$0xff]
    %v10200 = vld [vmem:[%s10145 + $0x1b0] sm:$0xff]
    %v10201 = vld [vmem:[%s10145 + $0x1b8] sm:$0xff]
    %v10202 = vld [vmem:[%s10145 + $0x1c0] sm:$0xff]
    %v10203 = vld [vmem:[%s10145 + $0x1c8] sm:$0xff]
    %v10204 = vld [vmem:[%s10145 + $0x1d0] sm:$0xff]
    %v10205 = vld [vmem:[%s10145 + $0x1d8] sm:$0xff]
    %v10206 = vld [vmem:[%s10145 + $0x1e0] sm:$0xff]
    %v10207 = vld [vmem:[%s10145 + $0x1e8] sm:$0xff]
    %v10208 = vld [vmem:[%s10145 + $0x1f0] sm:$0xff]
    %v10209 = vld [vmem:[%s10145 + $0x1f8] sm:$0xff]
    %v10210 = vld [vmem:[#allocation5] sm:$0xff]
    %v10211 = vld [vmem:[#allocation5 + $0x8] sm:$0xff]
    %v10212 = vld [vmem:[#allocation5 + $0x10] sm:$0xff]
    %v10213 = vld [vmem:[#allocation5 + $0x18] sm:$0xff]
    %10214 = vmatprep.subr.mxu0 0.0
    %10215 = vmatpush1.msra.mxu0 %v10096
    %10216 = vmatprep.subr.mxu0 0.0
    %10217 = vmatpush1.msra.mxu0 %v10095
    %10218 = vmatprep.subr.mxu0 0.0
    %10219 = vmatpush1.msra.mxu0 %v10094
    %10220 = vmatprep.subr.mxu0 0.0
    %10221 = vmatpush1.msra.mxu0 %v10093
    %10222 = vmatprep.subr.mxu0 0.0
    %10223 = vmatpush1.msra.mxu0 %v10092
    %10224 = vmatprep.subr.mxu0 0.0
    %10225 = vmatpush1.msra.mxu0 %v10091
    %10226 = vmatprep.subr.mxu0 0.0
    %10227 = vmatpush1.msra.mxu0 %v10090
    %10228 = vmatprep.subr.mxu0 0.0
    %10229 = vmatpush1.msra.mxu0 %v10089
    %10230 = vmatprep.subr.mxu0 0.0
    %10231 = vmatpush1.msra.mxu0 %v10088
    %10232 = vmatprep.subr.mxu0 0.0
    %10233 = vmatpush1.msra.mxu0 %v10087
    %10234 = vmatprep.subr.mxu0 0.0
    %10235 = vmatpush1.msra.mxu0 %v10086
    %10236 = vmatprep.subr.mxu0 0.0
    %10237 = vmatpush1.msra.mxu0 %v10085
    %10238 = vmatprep.subr.mxu0 0.0
    %10239 = vmatpush1.msra.mxu0 %v10084
    %10240 = vmatprep.subr.mxu0 0.0
    %10241 = vmatpush1.msra.mxu0 %v10083
    %10242 = vmatprep.subr.mxu0 0.0
    %10243 = vmatpush1.msra.mxu0 %v10082
    %10244 = vmatprep.subr.mxu0 0.0
    %10245 = vmatpush1.msra.mxu0 %v10081
    %10246 = vmatprep.subr.mxu0 0.0
    %10247 = vmatpush2.msra.mxu0 %v10112
    %10248 = vmatprep.subr.mxu0 0.0
    %10249 = vmatpush2.msra.mxu0 %v10111
    %10250 = vmatprep.subr.mxu0 0.0
    %10251 = vmatpush2.msra.mxu0 %v10110
    %10252 = vmatprep.subr.mxu0 0.0
    %10253 = vmatpush2.msra.mxu0 %v10109
    %10254 = vmatprep.subr.mxu0 0.0
    %10255 = vmatpush2.msra.mxu0 %v10108
    %10256 = vmatprep.subr.mxu0 0.0
    %10257 = vmatpush2.msra.mxu0 %v10107
    %10258 = vmatprep.subr.mxu0 0.0
    %10259 = vmatpush2.msra.mxu0 %v10106
    %10260 = vmatprep.subr.mxu0 0.0
    %10261 = vmatpush2.msra.mxu0 %v10105
    %10262 = vmatprep.subr.mxu0 0.0
    %10263 = vmatpush2.msra.mxu0 %v10104
    %10264 = vmatprep.subr.mxu0 0.0
    %10265 = vmatpush2.msra.mxu0 %v10103
    %10266 = vmatprep.subr.mxu0 0.0
    %10267 = vmatpush2.msra.mxu0 %v10102
    %10268 = vmatprep.subr.mxu0 0.0
    %10269 = vmatpush2.msra.mxu0 %v10101
    %10270 = vmatprep.subr.mxu0 0.0
    %10271 = vmatpush2.msra.mxu0 %v10100
    %10272 = vmatprep.subr.mxu0 0.0
    %10273 = vmatpush2.msra.mxu0 %v10099
    %10274 = vmatprep.subr.mxu0 0.0
    %10275 = vmatpush2.msra.mxu0 %v10098
    %10276 = vmatprep.subr.mxu0 0.0
    %10277 = vmatpush2.msra.mxu0 %v10097
    %10278 = vmatprep.mubr.f32.mxu0 %v10211
    %10279 = vmatmul.mubr.f32.gmra.mxu0 %v10210
    %v10280 = vpop.f32.mrf.mxu0
    %v10281 = vadd.f32 0.0, %v10280
    %v10282 = vpop.f32.mrf.mxu0
    %10283 = vdwg.mxu0
    %10284 = vmatprep.subr.mxu0 0.0
    %10285 = vmatpush1.msra.mxu0 %v10128
    %10286 = vmatprep.subr.mxu0 0.0
    %10287 = vmatpush1.msra.mxu0 %v10127
    %10288 = vmatprep.subr.mxu0 0.0
    %10289 = vmatpush1.msra.mxu0 %v10126
    %10290 = vmatprep.subr.mxu0 0.0
    %10291 = vmatpush1.msra.mxu0 %v10125
    %10292 = vmatprep.subr.mxu0 0.0
    %10293 = vmatpush1.msra.mxu0 %v10124
    %10294 = vmatprep.subr.mxu0 0.0
    %10295 = vmatpush1.msra.mxu0 %v10123
    %10296 = vmatprep.subr.mxu0 0.0
    %10297 = vmatpush1.msra.mxu0 %v10122
    %10298 = vmatprep.subr.mxu0 0.0
    %10299 = vmatpush1.msra.mxu0 %v10121
    %10300 = vmatprep.subr.mxu0 0.0
    %10301 = vmatpush1.msra.mxu0 %v10120
    %10302 = vmatprep.subr.mxu0 0.0
    %10303 = vmatpush1.msra.mxu0 %v10119
    %10304 = vmatprep.subr.mxu0 0.0
    %10305 = vmatpush1.msra.mxu0 %v10118
    %10306 = vmatprep.subr.mxu0 0.0
    %10307 = vmatpush1.msra.mxu0 %v10117
    %10308 = vmatprep.subr.mxu0 0.0
    %10309 = vmatpush1.msra.mxu0 %v10116
    %10310 = vmatprep.subr.mxu0 0.0
    %10311 = vmatpush1.msra.mxu0 %v10115
    %10312 = vmatprep.subr.mxu0 0.0
    %10313 = vmatpush1.msra.mxu0 %v10114
    %10314 = vmatprep.subr.mxu0 0.0
    %10315 = vmatpush1.msra.mxu0 %v10113
    %10316 = vmatprep.subr.mxu0 0.0
    %10317 = vmatpush2.msra.mxu0 %v10144
    %10318 = vmatprep.subr.mxu0 0.0
    %10319 = vmatpush2.msra.mxu0 %v10143
    %10320 = vmatprep.subr.mxu0 0.0
    %10321 = vmatpush2.msra.mxu0 %v10142
    %10322 = vmatprep.subr.mxu0 0.0
    %10323 = vmatpush2.msra.mxu0 %v10141
    %10324 = vmatprep.subr.mxu0 0.0
    %10325 = vmatpush2.msra.mxu0 %v10140
    %10326 = vmatprep.subr.mxu0 0.0
    %10327 = vmatpush2.msra.mxu0 %v10139
    %10328 = vmatprep.subr.mxu0 0.0
    %10329 = vmatpush2.msra.mxu0 %v10138
    %10330 = vmatprep.subr.mxu0 0.0
    %10331 = vmatpush2.msra.mxu0 %v10137
    %10332 = vmatprep.subr.mxu0 0.0
    %10333 = vmatpush2.msra.mxu0 %v10136
    %10334 = vmatprep.subr.mxu0 0.0
    %10335 = vmatpush2.msra.mxu0 %v10135
    %10336 = vmatprep.subr.mxu0 0.0
    %10337 = vmatpush2.msra.mxu0 %v10134
    %10338 = vmatprep.subr.mxu0 0.0
    %10339 = vmatpush2.msra.mxu0 %v10133
    %10340 = vmatprep.subr.mxu0 0.0
    %10341 = vmatpush2.msra.mxu0 %v10132
    %10342 = vmatprep.subr.mxu0 0.0
    %10343 = vmatpush2.msra.mxu0 %v10131
    %10344 = vmatprep.subr.mxu0 0.0
    %10345 = vmatpush2.msra.mxu0 %v10130
    %10346 = vmatprep.subr.mxu0 0.0
    %10347 = vmatpush2.msra.mxu0 %v10129
    %10348 = vmatprep.mubr.f32.mxu0 %v10213
    %10349 = vmatmul.mubr.f32.gmra.mxu0 %v10212
    %v10350 = vpop.f32.mrf.mxu0
    %v10351 = vadd.f32 %v10281, %v10350
    %v10352 = vpop.f32.mrf.mxu0
    %10353 = vdwg.mxu0
    %10354 = vmatprep.subr.mxu0 0.0
    %10355 = vmatpush1.msra.mxu0 %v10161
    %10356 = vmatprep.subr.mxu0 0.0
    %10357 = vmatpush1.msra.mxu0 %v10160
    %10358 = vmatprep.subr.mxu0 0.0
    %10359 = vmatpush1.msra.mxu0 %v10159
    %10360 = vmatprep.subr.mxu0 0.0
    %10361 = vmatpush1.msra.mxu0 %v10158
    %10362 = vmatprep.subr.mxu0 0.0
    %10363 = vmatpush1.msra.mxu0 %v10157
    %10364 = vmatprep.subr.mxu0 0.0
    %10365 = vmatpush1.msra.mxu0 %v10156
    %10366 = vmatprep.subr.mxu0 0.0
    %10367 = vmatpush1.msra.mxu0 %v10155
    %10368 = vmatprep.subr.mxu0 0.0
    %10369 = vmatpush1.msra.mxu0 %v10154
    %10370 = vmatprep.subr.mxu0 0.0
    %10371 = vmatpush1.msra.mxu0 %v10153
    %10372 = vmatprep.subr.mxu0 0.0
    %10373 = vmatpush1.msra.mxu0 %v10152
    %10374 = vmatprep.subr.mxu0 0.0
    %10375 = vmatpush1.msra.mxu0 %v10151
    %10376 = vmatprep.subr.mxu0 0.0
    %10377 = vmatpush1.msra.mxu0 %v10150
    %10378 = vmatprep.subr.mxu0 0.0
    %10379 = vmatpush1.msra.mxu0 %v10149
    %10380 = vmatprep.subr.mxu0 0.0
    %10381 = vmatpush1.msra.mxu0 %v10148
    %10382 = vmatprep.subr.mxu0 0.0
    %10383 = vmatpush1.msra.mxu0 %v10147
    %10384 = vmatprep.subr.mxu0 0.0
    %10385 = vmatpush1.msra.mxu0 %v10146
    %10386 = vmatprep.subr.mxu0 0.0
    %10387 = vmatpush2.msra.mxu0 %v10177
    %10388 = vmatprep.subr.mxu0 0.0
    %10389 = vmatpush2.msra.mxu0 %v10176
    %10390 = vmatprep.subr.mxu0 0.0
    %10391 = vmatpush2.msra.mxu0 %v10175
    %10392 = vmatprep.subr.mxu0 0.0
    %10393 = vmatpush2.msra.mxu0 %v10174
    %10394 = vmatprep.subr.mxu0 0.0
    %10395 = vmatpush2.msra.mxu0 %v10173
    %10396 = vmatprep.subr.mxu0 0.0
    %10397 = vmatpush2.msra.mxu0 %v10172
    %10398 = vmatprep.subr.mxu0 0.0
    %10399 = vmatpush2.msra.mxu0 %v10171
    %10400 = vmatprep.subr.mxu0 0.0
    %10401 = vmatpush2.msra.mxu0 %v10170
    %10402 = vmatprep.subr.mxu0 0.0
    %10403 = vmatpush2.msra.mxu0 %v10169
    %10404 = vmatprep.subr.mxu0 0.0
    %10405 = vmatpush2.msra.mxu0 %v10168
    %10406 = vmatprep.subr.mxu0 0.0
    %10407 = vmatpush2.msra.mxu0 %v10167
    %10408 = vmatprep.subr.mxu0 0.0
    %10409 = vmatpush2.msra.mxu0 %v10166
    %10410 = vmatprep.subr.mxu0 0.0
    %10411 = vmatpush2.msra.mxu0 %v10165
    %10412 = vmatprep.subr.mxu0 0.0
    %10413 = vmatpush2.msra.mxu0 %v10164
    %10414 = vmatprep.subr.mxu0 0.0
    %10415 = vmatpush2.msra.mxu0 %v10163
    %10416 = vmatprep.subr.mxu0 0.0
    %10417 = vmatpush2.msra.mxu0 %v10162
    %10418 = vmatprep.mubr.f32.mxu0 %v10211
    %10419 = vmatmul.mubr.f32.gmra.mxu0 %v10210
    %v10420 = vpop.f32.mrf.mxu0
    %v10421 = vadd.f32 0.0, %v10420
    %v10422 = vpop.f32.mrf.mxu0
    %10423 = vdwg.mxu0
    %10424 = vmatprep.subr.mxu0 0.0
    %10425 = vmatpush1.msra.mxu0 %v10193
    %10426 = vmatprep.subr.mxu0 0.0
    %10427 = vmatpush1.msra.mxu0 %v10192
    %10428 = vmatprep.subr.mxu0 0.0
    %10429 = vmatpush1.msra.mxu0 %v10191
    %10430 = vmatprep.subr.mxu0 0.0
    %10431 = vmatpush1.msra.mxu0 %v10190
    %10432 = vmatprep.subr.mxu0 0.0
    %10433 = vmatpush1.msra.mxu0 %v10189
    %10434 = vmatprep.subr.mxu0 0.0
    %10435 = vmatpush1.msra.mxu0 %v10188
    %10436 = vmatprep.subr.mxu0 0.0
    %10437 = vmatpush1.msra.mxu0 %v10187
    %10438 = vmatprep.subr.mxu0 0.0
    %10439 = vmatpush1.msra.mxu0 %v10186
    %10440 = vmatprep.subr.mxu0 0.0
    %10441 = vmatpush1.msra.mxu0 %v10185
    %10442 = vmatprep.subr.mxu0 0.0
    %10443 = vmatpush1.msra.mxu0 %v10184
    %10444 = vmatprep.subr.mxu0 0.0
    %10445 = vmatpush1.msra.mxu0 %v10183
    %10446 = vmatprep.subr.mxu0 0.0
    %10447 = vmatpush1.msra.mxu0 %v10182
    %10448 = vmatprep.subr.mxu0 0.0
    %10449 = vmatpush1.msra.mxu0 %v10181
    %10450 = vmatprep.subr.mxu0 0.0
    %10451 = vmatpush1.msra.mxu0 %v10180
    %10452 = vmatprep.subr.mxu0 0.0
    %10453 = vmatpush1.msra.mxu0 %v10179
    %10454 = vmatprep.subr.mxu0 0.0
    %10455 = vmatpush1.msra.mxu0 %v10178
    %10456 = vmatprep.subr.mxu0 0.0
    %10457 = vmatpush2.msra.mxu0 %v10209
    %10458 = vmatprep.subr.mxu0 0.0
    %10459 = vmatpush2.msra.mxu0 %v10208
    %10460 = vmatprep.subr.mxu0 0.0
    %10461 = vmatpush2.msra.mxu0 %v10207
    %10462 = vmatprep.subr.mxu0 0.0
    %10463 = vmatpush2.msra.mxu0 %v10206
    %10464 = vmatprep.subr.mxu0 0.0
    %10465 = vmatpush2.msra.mxu0 %v10205
    %10466 = vmatprep.subr.mxu0 0.0
    %10467 = vmatpush2.msra.mxu0 %v10204
    %10468 = vmatprep.subr.mxu0 0.0
    %10469 = vmatpush2.msra.mxu0 %v10203
    %10470 = vmatprep.subr.mxu0 0.0
    %10471 = vmatpush2.msra.mxu0 %v10202
    %10472 = vmatprep.subr.mxu0 0.0
    %10473 = vmatpush2.msra.mxu0 %v10201
    %10474 = vmatprep.subr.mxu0 0.0
    %10475 = vmatpush2.msra.mxu0 %v10200
    %10476 = vmatprep.subr.mxu0 0.0
    %10477 = vmatpush2.msra.mxu0 %v10199
    %10478 = vmatprep.subr.mxu0 0.0
    %10479 = vmatpush2.msra.mxu0 %v10198
    %10480 = vmatprep.subr.mxu0 0.0
    %10481 = vmatpush2.msra.mxu0 %v10197
    %10482 = vmatprep.subr.mxu0 0.0
    %10483 = vmatpush2.msra.mxu0 %v10196
    %10484 = vmatprep.subr.mxu0 0.0
    %10485 = vmatpush2.msra.mxu0 %v10195
    %10486 = vmatprep.subr.mxu0 0.0
    %10487 = vmatpush2.msra.mxu0 %v10194
    %10488 = vmatprep.mubr.f32.mxu0 %v10213
    %10489 = vmatmul.mubr.f32.gmra.mxu0 %v10212
    %v10490 = vpop.f32.mrf.mxu0
    %v10491 = vadd.f32 %v10421, %v10490
    %v10492 = vpop.f32.mrf.mxu0
    %10493 = vdwg.mxu0
    %v10495 = vrot.slane %v10491, 1
    %v10497 = vadd.f32 %v10351, %v10495
    %10498 = vst [vmem:[#allocation6] sm:$0x7f] %v10497
    %v10499 = vsel %vm1146, %v10497, 0.0
    %v10500 = vrot.slane %v10499, 4
    %v10501 = vadd.f32 %v10499, %v10500
    %v10502 = vrot.slane %v10501, 2
    %v10503 = vadd.f32 %v10501, %v10502
    %v10504 = vrot.slane %v10503, 1
    %v10505 = vadd.f32 %v10503, %v10504
    %v10506 = vadd.f32 %v10505, 0.0
    %v10507 = vmul.f32 %v10497, %v10497
    %v10508 = vsel %vm1146, %v10507, 0.0
    %v10509 = vrot.slane %v10508, 4
    %v10510 = vadd.f32 %v10508, %v10509
    %v10511 = vrot.slane %v10510, 2
    %v10512 = vadd.f32 %v10510, %v10511
    %v10513 = vrot.slane %v10512, 1
    %v10514 = vadd.f32 %v10512, %v10513
    %v10515 = vadd.f32 %v10514, 0.0
    %v10516 = vld [vmem:[%s9866] sm:$0xff]
    %v10517 = vld [vmem:[%s9866 + $0x8] sm:$0xff]
    %v10518 = vld [vmem:[%s9866 + $0x10] sm:$0xff]
    %v10519 = vld [vmem:[%s9866 + $0x18] sm:$0xff]
    %10520 = vmatprep.subr.mxu0 0.0
    %10521 = vmatpush1.msra.mxu0 %v10096
    %10522 = vmatprep.subr.mxu0 0.0
    %10523 = vmatpush1.msra.mxu0 %v10095
    %10524 = vmatprep.subr.mxu0 0.0
    %10525 = vmatpush1.msra.mxu0 %v10094
    %10526 = vmatprep.subr.mxu0 0.0
    %10527 = vmatpush1.msra.mxu0 %v10093
    %10528 = vmatprep.subr.mxu0 0.0
    %10529 = vmatpush1.msra.mxu0 %v10092
    %10530 = vmatprep.subr.mxu0 0.0
    %10531 = vmatpush1.msra.mxu0 %v10091
    %10532 = vmatprep.subr.mxu0 0.0
    %10533 = vmatpush1.msra.mxu0 %v10090
    %10534 = vmatprep.subr.mxu0 0.0
    %10535 = vmatpush1.msra.mxu0 %v10089
    %10536 = vmatprep.subr.mxu0 0.0
    %10537 = vmatpush1.msra.mxu0 %v10088
    %10538 = vmatprep.subr.mxu0 0.0
    %10539 = vmatpush1.msra.mxu0 %v10087
    %10540 = vmatprep.subr.mxu0 0.0
    %10541 = vmatpush1.msra.mxu0 %v10086
    %10542 = vmatprep.subr.mxu0 0.0
    %10543 = vmatpush1.msra.mxu0 %v10085
    %10544 = vmatprep.subr.mxu0 0.0
    %10545 = vmatpush1.msra.mxu0 %v10084
    %10546 = vmatprep.subr.mxu0 0.0
    %10547 = vmatpush1.msra.mxu0 %v10083
    %10548 = vmatprep.subr.mxu0 0.0
    %10549 = vmatpush1.msra.mxu0 %v10082
    %10550 = vmatprep.subr.mxu0 0.0
    %10551 = vmatpush1.msra.mxu0 %v10081
    %10552 = vmatprep.subr.mxu0 0.0
    %10553 = vmatpush2.msra.mxu0 %v10112
    %10554 = vmatprep.subr.mxu0 0.0
    %10555 = vmatpush2.msra.mxu0 %v10111
    %10556 = vmatprep.subr.mxu0 0.0
    %10557 = vmatpush2.msra.mxu0 %v10110
    %10558 = vmatprep.subr.mxu0 0.0
    %10559 = vmatpush2.msra.mxu0 %v10109
    %10560 = vmatprep.subr.mxu0 0.0
    %10561 = vmatpush2.msra.mxu0 %v10108
    %10562 = vmatprep.subr.mxu0 0.0
    %10563 = vmatpush2.msra.mxu0 %v10107
    %10564 = vmatprep.subr.mxu0 0.0
    %10565 = vmatpush2.msra.mxu0 %v10106
    %10566 = vmatprep.subr.mxu0 0.0
    %10567 = vmatpush2.msra.mxu0 %v10105
    %10568 = vmatprep.subr.mxu0 0.0
    %10569 = vmatpush2.msra.mxu0 %v10104
    %10570 = vmatprep.subr.mxu0 0.0
    %10571 = vmatpush2.msra.mxu0 %v10103
    %10572 = vmatprep.subr.mxu0 0.0
    %10573 = vmatpush2.msra.mxu0 %v10102
    %10574 = vmatprep.subr.mxu0 0.0
    %10575 = vmatpush2.msra.mxu0 %v10101
    %10576 = vmatprep.subr.mxu0 0.0
    %10577 = vmatpush2.msra.mxu0 %v10100
    %10578 = vmatprep.subr.mxu0 0.0
    %10579 = vmatpush2.msra.mxu0 %v10099
    %10580 = vmatprep.subr.mxu0 0.0
    %10581 = vmatpush2.msra.mxu0 %v10098
    %10582 = vmatprep.subr.mxu0 0.0
    %10583 = vmatpush2.msra.mxu0 %v10097
    %10584 = vmatprep.mubr.f32.mxu0 %v10517
    %10585 = vmatmul.mubr.f32.gmra.mxu0 %v10516
    %v10586 = vpop.f32.mrf.mxu0
    %v10587 = vadd.f32 0.0, %v10586
    %v10588 = vpop.f32.mrf.mxu0
    %10589 = vdwg.mxu0
    %10590 = vmatprep.subr.mxu0 0.0
    %10591 = vmatpush1.msra.mxu0 %v10128
    %10592 = vmatprep.subr.mxu0 0.0
    %10593 = vmatpush1.msra.mxu0 %v10127
    %10594 = vmatprep.subr.mxu0 0.0
    %10595 = vmatpush1.msra.mxu0 %v10126
    %10596 = vmatprep.subr.mxu0 0.0
    %10597 = vmatpush1.msra.mxu0 %v10125
    %10598 = vmatprep.subr.mxu0 0.0
    %10599 = vmatpush1.msra.mxu0 %v10124
    %10600 = vmatprep.subr.mxu0 0.0
    %10601 = vmatpush1.msra.mxu0 %v10123
    %10602 = vmatprep.subr.mxu0 0.0
    %10603 = vmatpush1.msra.mxu0 %v10122
    %10604 = vmatprep.subr.mxu0 0.0
    %10605 = vmatpush1.msra.mxu0 %v10121
    %10606 = vmatprep.subr.mxu0 0.0
    %10607 = vmatpush1.msra.mxu0 %v10120
    %10608 = vmatprep.subr.mxu0 0.0
    %10609 = vmatpush1.msra.mxu0 %v10119
    %10610 = vmatprep.subr.mxu0 0.0
    %10611 = vmatpush1.msra.mxu0 %v10118
    %10612 = vmatprep.subr.mxu0 0.0
    %10613 = vmatpush1.msra.mxu0 %v10117
    %10614 = vmatprep.subr.mxu0 0.0
    %10615 = vmatpush1.msra.mxu0 %v10116
    %10616 = vmatprep.subr.mxu0 0.0
    %10617 = vmatpush1.msra.mxu0 %v10115
    %10618 = vmatprep.subr.mxu0 0.0
    %10619 = vmatpush1.msra.mxu0 %v10114
    %10620 = vmatprep.subr.mxu0 0.0
    %10621 = vmatpush1.msra.mxu0 %v10113
    %10622 = vmatprep.subr.mxu0 0.0
    %10623 = vmatpush2.msra.mxu0 %v10144
    %10624 = vmatprep.subr.mxu0 0.0
    %10625 = vmatpush2.msra.mxu0 %v10143
    %10626 = vmatprep.subr.mxu0 0.0
    %10627 = vmatpush2.msra.mxu0 %v10142
    %10628 = vmatprep.subr.mxu0 0.0
    %10629 = vmatpush2.msra.mxu0 %v10141
    %10630 = vmatprep.subr.mxu0 0.0
    %10631 = vmatpush2.msra.mxu0 %v10140
    %10632 = vmatprep.subr.mxu0 0.0
    %10633 = vmatpush2.msra.mxu0 %v10139
    %10634 = vmatprep.subr.mxu0 0.0
    %10635 = vmatpush2.msra.mxu0 %v10138
    %10636 = vmatprep.subr.mxu0 0.0
    %10637 = vmatpush2.msra.mxu0 %v10137
    %10638 = vmatprep.subr.mxu0 0.0
    %10639 = vmatpush2.msra.mxu0 %v10136
    %10640 = vmatprep.subr.mxu0 0.0
    %10641 = vmatpush2.msra.mxu0 %v10135
    %10642 = vmatprep.subr.mxu0 0.0
    %10643 = vmatpush2.msra.mxu0 %v10134
    %10644 = vmatprep.subr.mxu0 0.0
    %10645 = vmatpush2.msra.mxu0 %v10133
    %10646 = vmatprep.subr.mxu0 0.0
    %10647 = vmatpush2.msra.mxu0 %v10132
    %10648 = vmatprep.subr.mxu0 0.0
    %10649 = vmatpush2.msra.mxu0 %v10131
    %10650 = vmatprep.subr.mxu0 0.0
    %10651 = vmatpush2.msra.mxu0 %v10130
    %10652 = vmatprep.subr.mxu0 0.0
    %10653 = vmatpush2.msra.mxu0 %v10129
    %10654 = vmatprep.mubr.f32.mxu0 %v10519
    %10655 = vmatmul.mubr.f32.gmra.mxu0 %v10518
    %v10656 = vpop.f32.mrf.mxu0
    %v10657 = vadd.f32 %v10587, %v10656
    %v10658 = vpop.f32.mrf.mxu0
    %10659 = vdwg.mxu0
    %10660 = vmatprep.subr.mxu0 0.0
    %10661 = vmatpush1.msra.mxu0 %v10161
    %10662 = vmatprep.subr.mxu0 0.0
    %10663 = vmatpush1.msra.mxu0 %v10160
    %10664 = vmatprep.subr.mxu0 0.0
    %10665 = vmatpush1.msra.mxu0 %v10159
    %10666 = vmatprep.subr.mxu0 0.0
    %10667 = vmatpush1.msra.mxu0 %v10158
    %10668 = vmatprep.subr.mxu0 0.0
    %10669 = vmatpush1.msra.mxu0 %v10157
    %10670 = vmatprep.subr.mxu0 0.0
    %10671 = vmatpush1.msra.mxu0 %v10156
    %10672 = vmatprep.subr.mxu0 0.0
    %10673 = vmatpush1.msra.mxu0 %v10155
    %10674 = vmatprep.subr.mxu0 0.0
    %10675 = vmatpush1.msra.mxu0 %v10154
    %10676 = vmatprep.subr.mxu0 0.0
    %10677 = vmatpush1.msra.mxu0 %v10153
    %10678 = vmatprep.subr.mxu0 0.0
    %10679 = vmatpush1.msra.mxu0 %v10152
    %10680 = vmatprep.subr.mxu0 0.0
    %10681 = vmatpush1.msra.mxu0 %v10151
    %10682 = vmatprep.subr.mxu0 0.0
    %10683 = vmatpush1.msra.mxu0 %v10150
    %10684 = vmatprep.subr.mxu0 0.0
    %10685 = vmatpush1.msra.mxu0 %v10149
    %10686 = vmatprep.subr.mxu0 0.0
    %10687 = vmatpush1.msra.mxu0 %v10148
    %10688 = vmatprep.subr.mxu0 0.0
    %10689 = vmatpush1.msra.mxu0 %v10147
    %10690 = vmatprep.subr.mxu0 0.0
    %10691 = vmatpush1.msra.mxu0 %v10146
    %10692 = vmatprep.subr.mxu0 0.0
    %10693 = vmatpush2.msra.mxu0 %v10177
    %10694 = vmatprep.subr.mxu0 0.0
    %10695 = vmatpush2.msra.mxu0 %v10176
    %10696 = vmatprep.subr.mxu0 0.0
    %10697 = vmatpush2.msra.mxu0 %v10175
    %10698 = vmatprep.subr.mxu0 0.0
    %10699 = vmatpush2.msra.mxu0 %v10174
    %10700 = vmatprep.subr.mxu0 0.0
    %10701 = vmatpush2.msra.mxu0 %v10173
    %10702 = vmatprep.subr.mxu0 0.0
    %10703 = vmatpush2.msra.mxu0 %v10172
    %10704 = vmatprep.subr.mxu0 0.0
    %10705 = vmatpush2.msra.mxu0 %v10171
    %10706 = vmatprep.subr.mxu0 0.0
    %10707 = vmatpush2.msra.mxu0 %v10170
    %10708 = vmatprep.subr.mxu0 0.0
    %10709 = vmatpush2.msra.mxu0 %v10169
    %10710 = vmatprep.subr.mxu0 0.0
    %10711 = vmatpush2.msra.mxu0 %v10168
    %10712 = vmatprep.subr.mxu0 0.0
    %10713 = vmatpush2.msra.mxu0 %v10167
    %10714 = vmatprep.subr.mxu0 0.0
    %10715 = vmatpush2.msra.mxu0 %v10166
    %10716 = vmatprep.subr.mxu0 0.0
    %10717 = vmatpush2.msra.mxu0 %v10165
    %10718 = vmatprep.subr.mxu0 0.0
    %10719 = vmatpush2.msra.mxu0 %v10164
    %10720 = vmatprep.subr.mxu0 0.0
    %10721 = vmatpush2.msra.mxu0 %v10163
    %10722 = vmatprep.subr.mxu0 0.0
    %10723 = vmatpush2.msra.mxu0 %v10162
    %10724 = vmatprep.mubr.f32.mxu0 %v10517
    %10725 = vmatmul.mubr.f32.gmra.mxu0 %v10516
    %v10726 = vpop.f32.mrf.mxu0
    %v10727 = vadd.f32 0.0, %v10726
    %v10728 = vpop.f32.mrf.mxu0
    %10729 = vdwg.mxu0
    %10730 = vmatprep.subr.mxu0 0.0
    %10731 = vmatpush1.msra.mxu0 %v10193
    %10732 = vmatprep.subr.mxu0 0.0
    %10733 = vmatpush1.msra.mxu0 %v10192
    %10734 = vmatprep.subr.mxu0 0.0
    %10735 = vmatpush1.msra.mxu0 %v10191
    %10736 = vmatprep.subr.mxu0 0.0
    %10737 = vmatpush1.msra.mxu0 %v10190
    %10738 = vmatprep.subr.mxu0 0.0
    %10739 = vmatpush1.msra.mxu0 %v10189
    %10740 = vmatprep.subr.mxu0 0.0
    %10741 = vmatpush1.msra.mxu0 %v10188
    %10742 = vmatprep.subr.mxu0 0.0
    %10743 = vmatpush1.msra.mxu0 %v10187
    %10744 = vmatprep.subr.mxu0 0.0
    %10745 = vmatpush1.msra.mxu0 %v10186
    %10746 = vmatprep.subr.mxu0 0.0
    %10747 = vmatpush1.msra.mxu0 %v10185
    %10748 = vmatprep.subr.mxu0 0.0
    %10749 = vmatpush1.msra.mxu0 %v10184
    %10750 = vmatprep.subr.mxu0 0.0
    %10751 = vmatpush1.msra.mxu0 %v10183
    %10752 = vmatprep.subr.mxu0 0.0
    %10753 = vmatpush1.msra.mxu0 %v10182
    %10754 = vmatprep.subr.mxu0 0.0
    %10755 = vmatpush1.msra.mxu0 %v10181
    %10756 = vmatprep.subr.mxu0 0.0
    %10757 = vmatpush1.msra.mxu0 %v10180
    %10758 = vmatprep.subr.mxu0 0.0
    %10759 = vmatpush1.msra.mxu0 %v10179
    %10760 = vmatprep.subr.mxu0 0.0
    %10761 = vmatpush1.msra.mxu0 %v10178
    %10762 = vmatprep.subr.mxu0 0.0
    %10763 = vmatpush2.msra.mxu0 %v10209
    %10764 = vmatprep.subr.mxu0 0.0
    %10765 = vmatpush2.msra.mxu0 %v10208
    %10766 = vmatprep.subr.mxu0 0.0
    %10767 = vmatpush2.msra.mxu0 %v10207
    %10768 = vmatprep.subr.mxu0 0.0
    %10769 = vmatpush2.msra.mxu0 %v10206
    %10770 = vmatprep.subr.mxu0 0.0
    %10771 = vmatpush2.msra.mxu0 %v10205
    %10772 = vmatprep.subr.mxu0 0.0
    %10773 = vmatpush2.msra.mxu0 %v10204
    %10774 = vmatprep.subr.mxu0 0.0
    %10775 = vmatpush2.msra.mxu0 %v10203
    %10776 = vmatprep.subr.mxu0 0.0
    %10777 = vmatpush2.msra.mxu0 %v10202
    %10778 = vmatprep.subr.mxu0 0.0
    %10779 = vmatpush2.msra.mxu0 %v10201
    %10780 = vmatprep.subr.mxu0 0.0
    %10781 = vmatpush2.msra.mxu0 %v10200
    %10782 = vmatprep.subr.mxu0 0.0
    %10783 = vmatpush2.msra.mxu0 %v10199
    %10784 = vmatprep.subr.mxu0 0.0
    %10785 = vmatpush2.msra.mxu0 %v10198
    %10786 = vmatprep.subr.mxu0 0.0
    %10787 = vmatpush2.msra.mxu0 %v10197
    %10788 = vmatprep.subr.mxu0 0.0
    %10789 = vmatpush2.msra.mxu0 %v10196
    %10790 = vmatprep.subr.mxu0 0.0
    %10791 = vmatpush2.msra.mxu0 %v10195
    %10792 = vmatprep.subr.mxu0 0.0
    %10793 = vmatpush2.msra.mxu0 %v10194
    %10794 = vmatprep.mubr.f32.mxu0 %v10519
    %10795 = vmatmul.mubr.f32.gmra.mxu0 %v10518
    %v10796 = vpop.f32.mrf.mxu0
    %v10797 = vadd.f32 %v10727, %v10796
    %v10798 = vpop.f32.mrf.mxu0
    %10799 = vdwg.mxu0
    %v10801 = vrot.slane %v10797, 1
    %v10803 = vadd.f32 %v10657, %v10801
    %s10804 = scalar_lea.vmem [#allocation6], 8
    %10805 = vst [vmem:[%s10804] sm:$0x7f] %v10803
    %v10806 = vsel %vm1146, %v10803, 0.0
    %v10807 = vrot.slane %v10806, 4
    %v10808 = vadd.f32 %v10806, %v10807
    %v10809 = vrot.slane %v10808, 2
    %v10810 = vadd.f32 %v10808, %v10809
    %v10811 = vrot.slane %v10810, 1
    %v10812 = vadd.f32 %v10810, %v10811
    %v10813 = vadd.f32 %v10506, %v10812
    %v10814 = vmul.f32 %v10803, %v10803
    %v10815 = vsel %vm1146, %v10814, 0.0
    %v10816 = vrot.slane %v10815, 4
    %v10817 = vadd.f32 %v10815, %v10816
    %v10818 = vrot.slane %v10817, 2
    %v10819 = vadd.f32 %v10817, %v10818
    %v10820 = vrot.slane %v10819, 1
    %v10821 = vadd.f32 %v10819, %v10820
    %v10822 = vadd.f32 %v10515, %v10821
    %v10823 = vrcp.pop 14.0
    %v10824 = vmul.f32 %v10813, %v10823
    %v10825 = vmul.f32 %v10822, %v10823
    %v10826 = vmul.f32 %v10824, %v10824
    %v10827 = vsub.f32 %v10825, %v10826
    %v10828 = vmax.f32 %v10827, 0.0
    %v10829 = vld [vmem:[%s8] sm:$0x1]
    %v10830 = vadd.f32 %v10828, 1e-05
    %v10831 = vrsqrt.pop %v10830
    %v10832 = vmul.f32 %v10829, %v10831
    %v10833 = vld [vmem:[%s9] sm:$0x1]
    %v10834 = vmul.f32 %v10824, %v10832
    %v10835 = vsub.f32 %v10833, %v10834
    %v10836 = vld [vmem:[#allocation6] sm:$0x7f]
    %v10838 = vlaneseq
    %v10839 = vshrl.u32 %v10838, 7
    %v10840 = vsub.s32 0, %v10839
    %v10841 = vrot.slane %v10832, %v10840
    %v10843 = vmul.f32 %v10836, %v10841
    %v10845 = vlaneseq
    %v10846 = vshrl.u32 %v10845, 7
    %v10847 = vsub.s32 0, %v10846
    %v10848 = vrot.slane %v10835, %v10847
    %v10850 = vadd.f32 %v10843, %v10848
    %v10851 = vmax.f32 %v10850, 0.0
    %v10853 = vrot.slane %v10851, 1
    %v10855 = vmax.f32 %v10851, %v10853
    %v10857 = vrot.slane %v10855, 2
    %v10859 = vmax.f32 %v10855, %v10857
    %v10860 = vmul.u32 %v3574, 2
    %vm10861 = vcmp.eq.s32.totalorder %v4868, %v10860
    %v10862 = vsel %vm10861, 1, 0
    %v10863 = vcvt.s32.f32 %v10862
    %vm10864 = vcmask 31744
    %v10866 = vsel %vm10864, %v10863, 0
    %vm10868 = vcmask 1043456
    %v10870 = vsel %vm10868, %v10859, 0
    %10872 = vmatprep.subr.mxu0 0.0
    %10873 = vmatpush1.msra.mxu0 0.0
    %10874 = vmatprep.subr.mxu0 0.0
    %10875 = vmatpush1.msra.mxu0 0.0
    %10876 = vmatprep.subr.mxu0 0.0
    %10877 = vmatpush1.msra.mxu0 0.0
    %10878 = vmatprep.subr.mxu0 0.0
    %10879 = vmatpush1.msra.mxu0 0.0
    %10880 = vmatprep.subr.mxu0 0.0
    %10881 = vmatpush1.msra.mxu0 0.0
    %10882 = vmatprep.subr.mxu0 0.0
    %10883 = vmatpush1.msra.mxu0 0.0
    %10884 = vmatprep.subr.mxu0 0.0
    %10885 = vmatpush1.msra.mxu0 0.0
    %10886 = vmatprep.subr.mxu0 0.0
    %10887 = vmatpush1.msra.mxu0 0.0
    %10888 = vmatprep.subr.mxu0 0.0
    %10889 = vmatpush1.msra.mxu0 0.0
    %10890 = vmatprep.subr.mxu0 0.0
    %10891 = vmatpush1.msra.mxu0 0.0
    %10892 = vmatprep.subr.mxu0 0.0
    %10893 = vmatpush1.msra.mxu0 0.0
    %10894 = vmatprep.subr.mxu0 0.0
    %10895 = vmatpush1.msra.mxu0 0.0
    %10896 = vmatprep.subr.mxu0 0.0
    %10897 = vmatpush1.msra.mxu0 0.0
    %10898 = vmatprep.subr.mxu0 0.0
    %10899 = vmatpush1.msra.mxu0 0.0
    %10900 = vmatprep.subr.mxu0 0.0
    %10901 = vmatpush1.msra.mxu0 0.0
    %10902 = vmatprep.subr.mxu0 0.0
    %10903 = vmatpush1.msra.mxu0 %v10870
    %10904 = vmatprep.subr.mxu0 0.0
    %10905 = vmatpush2.msra.mxu0 0.0
    %10906 = vmatprep.subr.mxu0 0.0
    %10907 = vmatpush2.msra.mxu0 0.0
    %10908 = vmatprep.subr.mxu0 0.0
    %10909 = vmatpush2.msra.mxu0 0.0
    %10910 = vmatprep.subr.mxu0 0.0
    %10911 = vmatpush2.msra.mxu0 0.0
    %10912 = vmatprep.subr.mxu0 0.0
    %10913 = vmatpush2.msra.mxu0 0.0
    %10914 = vmatprep.subr.mxu0 0.0
    %10915 = vmatpush2.msra.mxu0 0.0
    %10916 = vmatprep.subr.mxu0 0.0
    %10917 = vmatpush2.msra.mxu0 0.0
    %10918 = vmatprep.subr.mxu0 0.0
    %10919 = vmatpush2.msra.mxu0 0.0
    %10920 = vmatprep.subr.mxu0 0.0
    %10921 = vmatpush2.msra.mxu0 0.0
    %10922 = vmatprep.subr.mxu0 0.0
    %10923 = vmatpush2.msra.mxu0 0.0
    %10924 = vmatprep.subr.mxu0 0.0
    %10925 = vmatpush2.msra.mxu0 0.0
    %10926 = vmatprep.subr.mxu0 0.0
    %10927 = vmatpush2.msra.mxu0 0.0
    %10928 = vmatprep.subr.mxu0 0.0
    %10929 = vmatpush2.msra.mxu0 0.0
    %10930 = vmatprep.subr.mxu0 0.0
    %10931 = vmatpush2.msra.mxu0 0.0
    %10932 = vmatprep.subr.mxu0 0.0
    %10933 = vmatpush2.msra.mxu0 0.0
    %10934 = vmatprep.subr.mxu0 0.0
    %10935 = vmatpush2.msra.mxu0 0.0
    %10936 = vmatprep.mubr.f32.mxu0 0.0
    %10937 = vmatmul.mubr.f32.gmra.mxu0 %v10866
    %v10938 = vpop.f32.mrf.mxu0
    %v10939 = vadd.f32 0.0, %v10938
    %v10940 = vpop.f32.mrf.mxu0
    %10941 = vdwg.mxu0
    %10942 = vst [vmem:[#allocation7] sm:$0x3] %v10939
    %v10943 = vld [vmem:[%s10804] sm:$0x7f]
    %v10944 = vmul.f32 %v10943, %v10841
    %v10945 = vadd.f32 %v10944, %v10848
    %v10946 = vmax.f32 %v10945, 0.0
    %v10948 = vrot.slane %v10946, 1
    %v10950 = vmax.f32 %v10946, %v10948
    %v10952 = vrot.slane %v10950, 2
    %v10954 = vmax.f32 %v10950, %v10952
    %v10956 = vsel %vm10868, %v10954, 0
    %10958 = vmatprep.subr.mxu0 0.0
    %10959 = vmatpush1.msra.mxu0 0.0
    %10960 = vmatprep.subr.mxu0 0.0
    %10961 = vmatpush1.msra.mxu0 0.0
    %10962 = vmatprep.subr.mxu0 0.0
    %10963 = vmatpush1.msra.mxu0 0.0
    %10964 = vmatprep.subr.mxu0 0.0
    %10965 = vmatpush1.msra.mxu0 0.0
    %10966 = vmatprep.subr.mxu0 0.0
    %10967 = vmatpush1.msra.mxu0 0.0
    %10968 = vmatprep.subr.mxu0 0.0
    %10969 = vmatpush1.msra.mxu0 0.0
    %10970 = vmatprep.subr.mxu0 0.0
    %10971 = vmatpush1.msra.mxu0 0.0
    %10972 = vmatprep.subr.mxu0 0.0
    %10973 = vmatpush1.msra.mxu0 0.0
    %10974 = vmatprep.subr.mxu0 0.0
    %10975 = vmatpush1.msra.mxu0 0.0
    %10976 = vmatprep.subr.mxu0 0.0
    %10977 = vmatpush1.msra.mxu0 0.0
    %10978 = vmatprep.subr.mxu0 0.0
    %10979 = vmatpush1.msra.mxu0 0.0
    %10980 = vmatprep.subr.mxu0 0.0
    %10981 = vmatpush1.msra.mxu0 0.0
    %10982 = vmatprep.subr.mxu0 0.0
    %10983 = vmatpush1.msra.mxu0 0.0
    %10984 = vmatprep.subr.mxu0 0.0
    %10985 = vmatpush1.msra.mxu0 0.0
    %10986 = vmatprep.subr.mxu0 0.0
    %10987 = vmatpush1.msra.mxu0 0.0
    %10988 = vmatprep.subr.mxu0 0.0
    %10989 = vmatpush1.msra.mxu0 %v10956
    %10990 = vmatprep.subr.mxu0 0.0
    %10991 = vmatpush2.msra.mxu0 0.0
    %10992 = vmatprep.subr.mxu0 0.0
    %10993 = vmatpush2.msra.mxu0 0.0
    %10994 = vmatprep.subr.mxu0 0.0
    %10995 = vmatpush2.msra.mxu0 0.0
    %10996 = vmatprep.subr.mxu0 0.0
    %10997 = vmatpush2.msra.mxu0 0.0
    %10998 = vmatprep.subr.mxu0 0.0
    %10999 = vmatpush2.msra.mxu0 0.0
    %11000 = vmatprep.subr.mxu0 0.0
    %11001 = vmatpush2.msra.mxu0 0.0
    %11002 = vmatprep.subr.mxu0 0.0
    %11003 = vmatpush2.msra.mxu0 0.0
    %11004 = vmatprep.subr.mxu0 0.0
    %11005 = vmatpush2.msra.mxu0 0.0
    %11006 = vmatprep.subr.mxu0 0.0
    %11007 = vmatpush2.msra.mxu0 0.0
    %11008 = vmatprep.subr.mxu0 0.0
    %11009 = vmatpush2.msra.mxu0 0.0
    %11010 = vmatprep.subr.mxu0 0.0
    %11011 = vmatpush2.msra.mxu0 0.0
    %11012 = vmatprep.subr.mxu0 0.0
    %11013 = vmatpush2.msra.mxu0 0.0
    %11014 = vmatprep.subr.mxu0 0.0
    %11015 = vmatpush2.msra.mxu0 0.0
    %11016 = vmatprep.subr.mxu0 0.0
    %11017 = vmatpush2.msra.mxu0 0.0
    %11018 = vmatprep.subr.mxu0 0.0
    %11019 = vmatpush2.msra.mxu0 0.0
    %11020 = vmatprep.subr.mxu0 0.0
    %11021 = vmatpush2.msra.mxu0 0.0
    %11022 = vmatprep.mubr.f32.mxu0 0.0
    %11023 = vmatmul.mubr.f32.gmra.mxu0 %v10866
    %v11024 = vpop.f32.mrf.mxu0
    %v11025 = vadd.f32 0.0, %v11024
    %v11026 = vpop.f32.mrf.mxu0
    %11027 = vdwg.mxu0
    %s11028 = scalar_lea.vmem [#allocation7], 2
    %11029 = vst [vmem:[%s11028] sm:$0x3] %v11025
    // Predicated region
    $region42: #{cnn_frontend_forward.1} parent=1 // pred_check
      _
    $region43: #{cnn_frontend_forward.1} parent=1 // pred_check_branch
      %11031 = sbr.rel (0) target = $region45
    $region44: #{cnn_frontend_forward.1} parent=1 // pred_region
      %s11033 = ssub.s32 64, 64
      %11034 = vsyncadd [#allocation8], %s11033
      %s11035 = sshll.u32 [#allocation7], 4
      %s11036 = int_to_ptr.vmem [resolvable:$true] %s11035
      %11041 = dma.vmem_to_hbm [thread:$0]  %s11036, 64, %s10, [#allocation8], 32, 32, 2
    $region45: #{cnn_frontend_forward.1} parent=1 // pred_fallthru
      _
    // Predicated region
    $region46: #{cnn_frontend_forward.1} parent=1 // pred_check
      _
    $region47: #{cnn_frontend_forward.1} parent=1 // pred_check_branch
      %11043 = sbr.rel (0) target = $region49
    $region48: #{cnn_frontend_forward.1} parent=1 // pred_region
      %11044 = dma.done [#allocation8], 64
    $region49: #{cnn_frontend_forward.1} parent=1 // pred_fallthru
      _
    %11045 = vsyncpa [#allocation8], 1

</llo_original>
